<compile_context>
chip_gen: v6e
topology: v6e:2x2x1
jax: 0.10.0
libtpu: 0.0.40
codegen_flags: <defaults>
</compile_context>

<pallas_src>
import functools

import jax
import jax.numpy as jnp
from jax.experimental import pallas as pl
from jax.experimental.pallas import tpu as pltpu

CMID = 256     # enc_conv output channels / fc_decode output
EMB = 128      # embedding_dim
NB = 8         # ROIs per grid step (see header comment for per-chip tuning)


def _shape_branch_kernel(nb, h, w,
                         x_ref,      # (NB, (H+2)*W, 3*Cin)  bf16, kw-shift channel concat
                         wc_ref,     # (3, 3*Cin, 256)       bf16 conv weight per kh tap
                         bc_ref,     # (1, 256)              f32 conv bias
                         we_ref,     # (256, EMB)            bf16 fc_embed weight
                         be_ref,     # (1, EMB)              f32
                         wd_ref,     # (EMB, 256)            bf16 fc_decode weight
                         bd_ref,     # (1, 256)              f32
                         wo_ref,     # (256, 128)            bf16 dec_conv 1x1, col 0 real
                         out_ref):   # out: (NB, 256) f32: lanes [0,128)=embed, lane 128=logit
    hw = h * w
    inv_hw = 1.0 / hw
    bconv = bc_ref[...]                                   # hoisted (1, 256) bias load

    # ---- enc_conv (3x3, pad=1) + ReLU + AdaptiveAvgPool2d((1,1)), fused per ROI ----
    # Chunk = one ROI (HW=256 rows).  Accumulator starts from the first tap's matmul
    # (no zero-init pass); bias/ReLU/pool-sum are fused so only a (HW,256) f32 chunk
    # is ever live; pooled sum stays in f32.
    pooled_rows = []
    for r in range(nb):                                   # static, nb == NB == 8
        acc = jnp.dot(x_ref[r, pl.ds(0, hw), :], wc_ref[0],
                      preferred_element_type=jnp.float32)
        acc = acc + jnp.dot(x_ref[r, pl.ds(w, hw), :], wc_ref[1],
                            preferred_element_type=jnp.float32)
        acc = acc + jnp.dot(x_ref[r, pl.ds(2 * w, hw), :], wc_ref[2],
                            preferred_element_type=jnp.float32)
        conv = jnp.maximum(acc + bconv, 0.0)              # (hw, 256) f32
        pooled_rows.append(jnp.sum(conv, axis=0, keepdims=True))   # (1, 256) f32
    pooled = jnp.concatenate(pooled_rows, axis=0) * inv_hw          # (nb, 256) f32

    # ---- fc_embed ---------------------------------------------------------------
    embed = jnp.dot(pooled.astype(jnp.bfloat16), we_ref[...],
                    preferred_element_type=jnp.float32) + be_ref[...]   # (nb, EMB) f32

    # ---- decoder: ReLU(fc_decode) -> 1x1 conv (256 -> 1), lane-padded to 128 ----
    dec = jnp.maximum(jnp.dot(embed.astype(jnp.bfloat16), wd_ref[...],
                              preferred_element_type=jnp.float32) + bd_ref[...], 0.0)
    logit = jnp.dot(dec.astype(jnp.bfloat16), wo_ref[...],
                    preferred_element_type=jnp.float32)                 # (nb, 128) f32

    # Single lane-dense 256-wide output block per step.
    out_ref[...] = jnp.concatenate([embed, logit], axis=-1)


@jax.jit
def _fused_forward(feats_all, params):
    """feats_all: (Ntot, Cin, H, W) f32. Returns (embed (Ntot,EMB) f32, logit (Ntot,) f32)."""
    wc, bc, we, be, wd, bd, wo_pad, bo = params
    N, Cin, H, W = feats_all.shape
    c3 = 3 * Cin
    n_pad = ((N + NB - 1) // NB) * NB

    # bf16 cast first (halves bytes moved), NCHW -> NHWC, pad ROI count + spatial,
    # then one concat pass builds the kw-shifted channel-concatenated tile.
    # TODO(synk): for tiny Cin a full 9-tap im2col (single K=9*Cin matmul) would use
    # the MXU better; kept the 3-tap scheme since it is right for Cin>=128.
    x = jnp.transpose(feats_all.astype(jnp.bfloat16), (0, 2, 3, 1))       # (N,H,W,Cin)
    xp = jnp.pad(x, ((0, n_pad - N), (1, 1), (1, 1), (0, 0)))             # (n_pad,H+2,W+2,Cin)
    xw = jnp.concatenate([xp[:, :, j:j + W, :] for j in range(3)], axis=-1)
    xw = xw.reshape(n_pad, (H + 2) * W, c3)                               # (n_pad,(H+2)*W,3Cin)

    kernel = functools.partial(_shape_branch_kernel, NB, H, W)

    out = pl.pallas_call(
        kernel,
        out_shape=jax.ShapeDtypeStruct((n_pad, 2 * EMB), jnp.float32),
        grid_spec=pltpu.PrefetchScalarGridSpec(
            num_scalar_prefetch=0,
            grid=(n_pad // NB,),
            in_specs=[
                pl.BlockSpec((NB, (H + 2) * W, c3), lambda i: (i, 0, 0)),
                # Grid-invariant operands: single-buffered, never re-DMA'd.
                pl.BlockSpec((3, c3, CMID), lambda i: (0, 0, 0),
                             pipeline_mode=pl.Buffered(1)),
                pl.BlockSpec((1, CMID), lambda i: (0, 0),
                             pipeline_mode=pl.Buffered(1)),
                pl.BlockSpec((CMID, EMB), lambda i: (0, 0),
                             pipeline_mode=pl.Buffered(1)),
                pl.BlockSpec((1, EMB), lambda i: (0, 0),
                             pipeline_mode=pl.Buffered(1)),
                pl.BlockSpec((EMB, CMID), lambda i: (0, 0),
                             pipeline_mode=pl.Buffered(1)),
                pl.BlockSpec((1, CMID), lambda i: (0, 0),
                             pipeline_mode=pl.Buffered(1)),
                pl.BlockSpec((CMID, EMB), lambda i: (0, 0),
                             pipeline_mode=pl.Buffered(1)),
            ],
            out_specs=pl.BlockSpec((NB, 2 * EMB), lambda i: (i, 0)),
        ),
        compiler_params=pltpu.CompilerParams(dimension_semantics=("parallel",)),
    )(xw, wc, bc, we, be, wd, bd, wo_pad)

    return out[:N, :EMB], out[:N, EMB] + bo


def _next_pow2(n):
    n = int(n)
    return 1 if n <= 1 else 1 << (n - 1).bit_length()


def shape_branch_with_loss(roi_pooled, gt_masks, params, training=True):
    """Mirrors ShapeBranchWithLoss.forward over per-image lists (single fused kernel call)."""
    sizes = [int(f.shape[0]) for f in roi_pooled]
    n_tot = sum(sizes)
    feats_all = jnp.concatenate([f.astype(jnp.float32) for f in roi_pooled], axis=0)

    # Bucket the total ROI count (pow-2 multiples of NB) so varying per-call ROI
    # counts hit a small set of compiled shapes instead of retracing every time.
    n_bucket = NB * _next_pow2(-(-n_tot // NB))
    feats_all = jnp.pad(feats_all, ((0, n_bucket - n_tot), (0, 0), (0, 0), (0, 0)))

    emb_all, logit_all = _fused_forward(feats_all, params)
    emb_all = emb_all[:n_tot]          # drop padded (garbage) ROI rows
    logit_all = logit_all[:n_tot]

    outputs = []
    aux_losses = {}
    off = 0
    # Per-image loop runs only over images (losses are separate dict entries by spec);
    # the BCE itself is vectorized over the ROIs of each image.
    for idx, n_i in enumerate(sizes):
        outputs.append(emb_all[off:off + n_i])
        if training and gt_masks is not None:
            if idx < len(gt_masks) and gt_masks[idx] is not None:
                z = logit_all[off:off + n_i]                                  # (n_i,)
                t = jnp.mean(gt_masks[idx].astype(jnp.float32), axis=(1, 2))  # (n_i,)
                bce = (jnp.maximum(z, 0.0) - z * t
                       + jnp.log1p(jnp.exp(-jnp.abs(z))))
                aux_losses[f'shape_loss_{idx}'] = jnp.mean(bce)
            else:
                aux_losses[f'shape_loss_{idx}'] = jnp.float32(0.0)
        off += n_i
    return outputs, aux_losses


def init_params(key, in_channels, emb=EMB):
    """Synthetic init; shapes/packing match the PyTorch module's layers.
    (A torch conv weight (Cout,Cin,kh,kw) maps to wc[i, j*Cin+ci, co] = W[co,ci,i,j].)"""
    ks = jax.random.split(key, 8)
    w_conv = jax.random.normal(ks[0], (3, 3, in_channels, CMID), jnp.float32) * 0.05
    wc = w_conv.reshape(3, 3 * in_channels, CMID).astype(jnp.bfloat16)
    bc = jax.random.normal(ks[1], (1, CMID), jnp.float32) * 0.01
    we = (jax.random.normal(ks[2], (CMID, emb), jnp.float32) * 0.05).astype(jnp.bfloat16)
    be = jax.random.normal(ks[3], (1, emb), jnp.float32) * 0.01
    wd = (jax.random.normal(ks[4], (emb, CMID), jnp.float32) * 0.05).astype(jnp.bfloat16)
    bd = jax.random.normal(ks[5], (1, CMID), jnp.float32) * 0.01
    wo = jax.random.normal(ks[6], (CMID, 1), jnp.float32) * 0.05
    wo_pad = jnp.pad(wo, ((0, 0), (0, 127))).astype(jnp.bfloat16)     # (256,128), col 0 real
    bo = jax.random.normal(ks[7], (), jnp.float32) * 0.01
    return (wc, bc, we, be, wd, bd, wo_pad, bo)


def _reference_forward(feats, params):
    """Pure-JAX f32 reference of the forward (for a loose numerical check)."""
    wc, bc, we, be, wd, bd, wo_pad, bo = params
    N, Cin, H, W = feats.shape
    w_conv = wc.astype(jnp.float32).reshape(3, 3, Cin, CMID)
    x = jnp.transpose(feats, (0, 2, 3, 1))
    xp = jnp.pad(x, ((0, 0), (1, 1), (1, 1), (0, 0)))
    acc = jnp.zeros((N, H, W, CMID), jnp.float32)
    for i in range(3):
        for j in range(3):
            acc = acc + jnp.einsum('nhwc,co->nhwo',
                                   xp[:, i:i + H, j:j + W, :], w_conv[i, j])
    conv = jax.nn.relu(acc + bc)
    pooled = jnp.mean(conv, axis=(1, 2))
    embed = pooled @ we.astype(jnp.float32) + be
    dec = jax.nn.relu(embed @ wd.astype(jnp.float32) + bd)
    logit = dec @ wo_pad.astype(jnp.float32)[:, 0] + bo
    return embed, logit


if __name__ == "__main__":
    key = jax.random.PRNGKey(0)
    in_channels, H, W = 4, 16, 16
    kparam, kdata = jax.random.split(key)
    params = init_params(kparam, in_channels)

    kd = jax.random.split(kdata, 4)
    # Two images, with 9 and 8 ROIs (Ni x C x H x W, NCHW like PyTorch):
    # 17 total ROIs -> bucketed to 32 -> a 4-step grid (exercises pipelining,
    # megacore sharding, and padded-ROI handling).
    roi_pooled = [
        jax.random.normal(kd[0], (9, in_channels, H, W), jnp.float32),
        jax.random.normal(kd[1], (8, in_channels, H, W), jnp.float32),
    ]
    gt_masks = [
        (jax.random.uniform(kd[2], (9, H, W)) > 0.5).astype(jnp.float32),
        (jax.random.uniform(kd[3], (8, H, W)) > 0.5).astype(jnp.float32),
    ]

    outputs, aux_losses = shape_branch_with_loss(roi_pooled, gt_masks, params,
                                                 training=True)
    for o in outputs:
        jax.block_until_ready(o)
    for v in aux_losses.values():
        jax.block_until_ready(v)

    assert outputs[0].shape == (9, EMB) and outputs[1].shape == (8, EMB)
    assert set(aux_losses.keys()) == {"shape_loss_0", "shape_loss_1"}

    # Loose numerical check vs an f32 pure-JAX reference (bf16 MXU operands).
    feats_all = jnp.concatenate(roi_pooled, axis=0)
    ref_emb, ref_logit = _reference_forward(feats_all, params)
    got_emb = jnp.concatenate(outputs, axis=0)
    assert bool(jnp.allclose(got_emb, ref_emb, rtol=2e-2, atol=2e-2))
    off = 0
    for idx, m in enumerate(gt_masks):
        n_i = m.shape[0]
        z = ref_logit[off:off + n_i]
        t = jnp.mean(m, axis=(1, 2))
        ref_loss = jnp.mean(jnp.maximum(z, 0.0) - z * t
                            + jnp.log1p(jnp.exp(-jnp.abs(z))))
        assert bool(jnp.allclose(aux_losses[f'shape_loss_{idx}'], ref_loss,
                                 rtol=2e-2, atol=2e-2))
        off += n_i

    print("KERNEL_OK")
</pallas_src>

<mosaic_0001>
module attributes {stable_mosaic.version = 11 : i64} {
  func.func @_shape_branch_kernel(%arg0: i32, %arg1: memref<8x288x12xbf16, #tpu.memory_space<vmem>>, %arg2: memref<3x12x256xbf16, #tpu.memory_space<vmem>>, %arg3: memref<1x256xf32, #tpu.memory_space<vmem>>, %arg4: memref<256x128xbf16, #tpu.memory_space<vmem>>, %arg5: memref<1x128xf32, #tpu.memory_space<vmem>>, %arg6: memref<128x256xbf16, #tpu.memory_space<vmem>>, %arg7: memref<1x256xf32, #tpu.memory_space<vmem>>, %arg8: memref<256x128xbf16, #tpu.memory_space<vmem>>, %arg9: memref<8x256xf32, #tpu.memory_space<vmem>>) attributes {dimension_semantics = [#tpu.dimension_semantics<parallel>], iteration_bounds = array<i64: 4>, scalar_prefetch = 0 : i64, scratch_operands = 0 : i64, tpu.core_type = #tpu.core_type<tc>, window_params = [{transform_indices = @transform_0, window_bounds = array<i64: 8, 288, 12>}, {pipeline_mode = #tpu.pipeline_mode<synchronous>, transform_indices = @transform_1, window_bounds = array<i64: 3, 12, 256>}, {pipeline_mode = #tpu.pipeline_mode<synchronous>, transform_indices = @transform_2, window_bounds = array<i64: 1, 256>}, {pipeline_mode = #tpu.pipeline_mode<synchronous>, transform_indices = @transform_3, window_bounds = array<i64: 256, 128>}, {pipeline_mode = #tpu.pipeline_mode<synchronous>, transform_indices = @transform_4, window_bounds = array<i64: 1, 128>}, {pipeline_mode = #tpu.pipeline_mode<synchronous>, transform_indices = @transform_5, window_bounds = array<i64: 128, 256>}, {pipeline_mode = #tpu.pipeline_mode<synchronous>, transform_indices = @transform_6, window_bounds = array<i64: 1, 256>}, {pipeline_mode = #tpu.pipeline_mode<synchronous>, transform_indices = @transform_7, window_bounds = array<i64: 256, 128>}, {transform_indices = @transform_8, window_bounds = array<i64: 8, 256>}]} {
    %c0 = arith.constant 0 : index
    %c0_0 = arith.constant 0 : index
    %0 = vector.load %arg3[%c0, %c0_0] : memref<1x256xf32, #tpu.memory_space<vmem>>, vector<1x256xf32>
    %c0_1 = arith.constant 0 : index
    %c0_2 = arith.constant 0 : index
    %c0_3 = arith.constant 0 : index
    %1 = vector.load %arg1[%c0_1, %c0_2, %c0_3] : memref<8x288x12xbf16, #tpu.memory_space<vmem>>, vector<1x256x12xbf16>
    %2 = vector.shape_cast %1 : vector<1x256x12xbf16> to vector<256x12xbf16>
    %c0_4 = arith.constant 0 : index
    %c0_5 = arith.constant 0 : index
    %c0_6 = arith.constant 0 : index
    %3 = vector.load %arg2[%c0_4, %c0_5, %c0_6] : memref<3x12x256xbf16, #tpu.memory_space<vmem>>, vector<1x12x256xbf16>
    %4 = vector.shape_cast %3 : vector<1x12x256xbf16> to vector<12x256xbf16>
    %cst = arith.constant dense<0.000000e+00> : vector<256x256xf32>
    %5 = tpu.matmul %2, %4, %cst {dimension_numbers = #tpu.dot_dimension_numbers<[1], [0], [0], [1], [0, 0, 1, 1], [], []>} : vector<256x12xbf16>, vector<12x256xbf16>, vector<256x256xf32> -> vector<256x256xf32>
    %c0_7 = arith.constant 0 : index
    %c16 = arith.constant 16 : index
    %c0_8 = arith.constant 0 : index
    %6 = vector.load %arg1[%c0_7, %c16, %c0_8] : memref<8x288x12xbf16, #tpu.memory_space<vmem>>, vector<1x256x12xbf16>
    %7 = vector.shape_cast %6 : vector<1x256x12xbf16> to vector<256x12xbf16>
    %c1 = arith.constant 1 : index
    %c0_9 = arith.constant 0 : index
    %c0_10 = arith.constant 0 : index
    %8 = vector.load %arg2[%c1, %c0_9, %c0_10] : memref<3x12x256xbf16, #tpu.memory_space<vmem>>, vector<1x12x256xbf16>
    %9 = vector.shape_cast %8 : vector<1x12x256xbf16> to vector<12x256xbf16>
    %cst_11 = arith.constant dense<0.000000e+00> : vector<256x256xf32>
    %10 = tpu.matmul %7, %9, %cst_11 {dimension_numbers = #tpu.dot_dimension_numbers<[1], [0], [0], [1], [0, 0, 1, 1], [], []>} : vector<256x12xbf16>, vector<12x256xbf16>, vector<256x256xf32> -> vector<256x256xf32>
    %11 = arith.addf %5, %10 : vector<256x256xf32>
    %c0_12 = arith.constant 0 : index
    %c32 = arith.constant 32 : index
    %c0_13 = arith.constant 0 : index
    %12 = vector.load %arg1[%c0_12, %c32, %c0_13] : memref<8x288x12xbf16, #tpu.memory_space<vmem>>, vector<1x256x12xbf16>
    %13 = vector.shape_cast %12 : vector<1x256x12xbf16> to vector<256x12xbf16>
    %c2 = arith.constant 2 : index
    %c0_14 = arith.constant 0 : index
    %c0_15 = arith.constant 0 : index
    %14 = vector.load %arg2[%c2, %c0_14, %c0_15] : memref<3x12x256xbf16, #tpu.memory_space<vmem>>, vector<1x12x256xbf16>
    %15 = vector.shape_cast %14 : vector<1x12x256xbf16> to vector<12x256xbf16>
    %cst_16 = arith.constant dense<0.000000e+00> : vector<256x256xf32>
    %16 = tpu.matmul %13, %15, %cst_16 {dimension_numbers = #tpu.dot_dimension_numbers<[1], [0], [0], [1], [0, 0, 1, 1], [], []>} : vector<256x12xbf16>, vector<12x256xbf16>, vector<256x256xf32> -> vector<256x256xf32>
    %17 = arith.addf %11, %16 : vector<256x256xf32>
    %18 = vector.broadcast %0 : vector<1x256xf32> to vector<256x256xf32>
    %19 = arith.addf %17, %18 : vector<256x256xf32>
    %cst_17 = arith.constant 0.000000e+00 : f32
    %20 = vector.broadcast %cst_17 : f32 to vector<256x256xf32>
    %21 = arith.maximumf %19, %20 : vector<256x256xf32>
    %cst_18 = arith.constant dense<0.000000e+00> : vector<256xf32>
    %22 = vector.multi_reduction <add>, %21, %cst_18 [0] : vector<256x256xf32> to vector<256xf32>
    %23 = vector.shape_cast %22 : vector<256xf32> to vector<1x256xf32>
    %c1_19 = arith.constant 1 : index
    %c0_20 = arith.constant 0 : index
    %c0_21 = arith.constant 0 : index
    %24 = vector.load %arg1[%c1_19, %c0_20, %c0_21] : memref<8x288x12xbf16, #tpu.memory_space<vmem>>, vector<1x256x12xbf16>
    %25 = vector.shape_cast %24 : vector<1x256x12xbf16> to vector<256x12xbf16>
    %c0_22 = arith.constant 0 : index
    %c0_23 = arith.constant 0 : index
    %c0_24 = arith.constant 0 : index
    %26 = vector.load %arg2[%c0_22, %c0_23, %c0_24] : memref<3x12x256xbf16, #tpu.memory_space<vmem>>, vector<1x12x256xbf16>
    %27 = vector.shape_cast %26 : vector<1x12x256xbf16> to vector<12x256xbf16>
    %cst_25 = arith.constant dense<0.000000e+00> : vector<256x256xf32>
    %28 = tpu.matmul %25, %27, %cst_25 {dimension_numbers = #tpu.dot_dimension_numbers<[1], [0], [0], [1], [0, 0, 1, 1], [], []>} : vector<256x12xbf16>, vector<12x256xbf16>, vector<256x256xf32> -> vector<256x256xf32>
    %c1_26 = arith.constant 1 : index
    %c16_27 = arith.constant 16 : index
    %c0_28 = arith.constant 0 : index
    %29 = vector.load %arg1[%c1_26, %c16_27, %c0_28] : memref<8x288x12xbf16, #tpu.memory_space<vmem>>, vector<1x256x12xbf16>
    %30 = vector.shape_cast %29 : vector<1x256x12xbf16> to vector<256x12xbf16>
    %c1_29 = arith.constant 1 : index
    %c0_30 = arith.constant 0 : index
    %c0_31 = arith.constant 0 : index
    %31 = vector.load %arg2[%c1_29, %c0_30, %c0_31] : memref<3x12x256xbf16, #tpu.memory_space<vmem>>, vector<1x12x256xbf16>
    %32 = vector.shape_cast %31 : vector<1x12x256xbf16> to vector<12x256xbf16>
    %cst_32 = arith.constant dense<0.000000e+00> : vector<256x256xf32>
    %33 = tpu.matmul %30, %32, %cst_32 {dimension_numbers = #tpu.dot_dimension_numbers<[1], [0], [0], [1], [0, 0, 1, 1], [], []>} : vector<256x12xbf16>, vector<12x256xbf16>, vector<256x256xf32> -> vector<256x256xf32>
    %34 = arith.addf %28, %33 : vector<256x256xf32>
    %c1_33 = arith.constant 1 : index
    %c32_34 = arith.constant 32 : index
    %c0_35 = arith.constant 0 : index
    %35 = vector.load %arg1[%c1_33, %c32_34, %c0_35] : memref<8x288x12xbf16, #tpu.memory_space<vmem>>, vector<1x256x12xbf16>
    %36 = vector.shape_cast %35 : vector<1x256x12xbf16> to vector<256x12xbf16>
    %c2_36 = arith.constant 2 : index
    %c0_37 = arith.constant 0 : index
    %c0_38 = arith.constant 0 : index
    %37 = vector.load %arg2[%c2_36, %c0_37, %c0_38] : memref<3x12x256xbf16, #tpu.memory_space<vmem>>, vector<1x12x256xbf16>
    %38 = vector.shape_cast %37 : vector<1x12x256xbf16> to vector<12x256xbf16>
    %cst_39 = arith.constant dense<0.000000e+00> : vector<256x256xf32>
    %39 = tpu.matmul %36, %38, %cst_39 {dimension_numbers = #tpu.dot_dimension_numbers<[1], [0], [0], [1], [0, 0, 1, 1], [], []>} : vector<256x12xbf16>, vector<12x256xbf16>, vector<256x256xf32> -> vector<256x256xf32>
    %40 = arith.addf %34, %39 : vector<256x256xf32>
    %41 = vector.broadcast %0 : vector<1x256xf32> to vector<256x256xf32>
    %42 = arith.addf %40, %41 : vector<256x256xf32>
    %cst_40 = arith.constant 0.000000e+00 : f32
    %43 = vector.broadcast %cst_40 : f32 to vector<256x256xf32>
    %44 = arith.maximumf %42, %43 : vector<256x256xf32>
    %cst_41 = arith.constant dense<0.000000e+00> : vector<256xf32>
    %45 = vector.multi_reduction <add>, %44, %cst_41 [0] : vector<256x256xf32> to vector<256xf32>
    %46 = vector.shape_cast %45 : vector<256xf32> to vector<1x256xf32>
    %c2_42 = arith.constant 2 : index
    %c0_43 = arith.constant 0 : index
    %c0_44 = arith.constant 0 : index
    %47 = vector.load %arg1[%c2_42, %c0_43, %c0_44] : memref<8x288x12xbf16, #tpu.memory_space<vmem>>, vector<1x256x12xbf16>
    %48 = vector.shape_cast %47 : vector<1x256x12xbf16> to vector<256x12xbf16>
    %c0_45 = arith.constant 0 : index
    %c0_46 = arith.constant 0 : index
    %c0_47 = arith.constant 0 : index
    %49 = vector.load %arg2[%c0_45, %c0_46, %c0_47] : memref<3x12x256xbf16, #tpu.memory_space<vmem>>, vector<1x12x256xbf16>
    %50 = vector.shape_cast %49 : vector<1x12x256xbf16> to vector<12x256xbf16>
    %cst_48 = arith.constant dense<0.000000e+00> : vector<256x256xf32>
    %51 = tpu.matmul %48, %50, %cst_48 {dimension_numbers = #tpu.dot_dimension_numbers<[1], [0], [0], [1], [0, 0, 1, 1], [], []>} : vector<256x12xbf16>, vector<12x256xbf16>, vector<256x256xf32> -> vector<256x256xf32>
    %c2_49 = arith.constant 2 : index
    %c16_50 = arith.constant 16 : index
    %c0_51 = arith.constant 0 : index
    %52 = vector.load %arg1[%c2_49, %c16_50, %c0_51] : memref<8x288x12xbf16, #tpu.memory_space<vmem>>, vector<1x256x12xbf16>
    %53 = vector.shape_cast %52 : vector<1x256x12xbf16> to vector<256x12xbf16>
    %c1_52 = arith.constant 1 : index
    %c0_53 = arith.constant 0 : index
    %c0_54 = arith.constant 0 : index
    %54 = vector.load %arg2[%c1_52, %c0_53, %c0_54] : memref<3x12x256xbf16, #tpu.memory_space<vmem>>, vector<1x12x256xbf16>
    %55 = vector.shape_cast %54 : vector<1x12x256xbf16> to vector<12x256xbf16>
    %cst_55 = arith.constant dense<0.000000e+00> : vector<256x256xf32>
    %56 = tpu.matmul %53, %55, %cst_55 {dimension_numbers = #tpu.dot_dimension_numbers<[1], [0], [0], [1], [0, 0, 1, 1], [], []>} : vector<256x12xbf16>, vector<12x256xbf16>, vector<256x256xf32> -> vector<256x256xf32>
    %57 = arith.addf %51, %56 : vector<256x256xf32>
    %c2_56 = arith.constant 2 : index
    %c32_57 = arith.constant 32 : index
    %c0_58 = arith.constant 0 : index
    %58 = vector.load %arg1[%c2_56, %c32_57, %c0_58] : memref<8x288x12xbf16, #tpu.memory_space<vmem>>, vector<1x256x12xbf16>
    %59 = vector.shape_cast %58 : vector<1x256x12xbf16> to vector<256x12xbf16>
    %c2_59 = arith.constant 2 : index
    %c0_60 = arith.constant 0 : index
    %c0_61 = arith.constant 0 : index
    %60 = vector.load %arg2[%c2_59, %c0_60, %c0_61] : memref<3x12x256xbf16, #tpu.memory_space<vmem>>, vector<1x12x256xbf16>
    %61 = vector.shape_cast %60 : vector<1x12x256xbf16> to vector<12x256xbf16>
    %cst_62 = arith.constant dense<0.000000e+00> : vector<256x256xf32>
    %62 = tpu.matmul %59, %61, %cst_62 {dimension_numbers = #tpu.dot_dimension_numbers<[1], [0], [0], [1], [0, 0, 1, 1], [], []>} : vector<256x12xbf16>, vector<12x256xbf16>, vector<256x256xf32> -> vector<256x256xf32>
    %63 = arith.addf %57, %62 : vector<256x256xf32>
    %64 = vector.broadcast %0 : vector<1x256xf32> to vector<256x256xf32>
    %65 = arith.addf %63, %64 : vector<256x256xf32>
    %cst_63 = arith.constant 0.000000e+00 : f32
    %66 = vector.broadcast %cst_63 : f32 to vector<256x256xf32>
    %67 = arith.maximumf %65, %66 : vector<256x256xf32>
    %cst_64 = arith.constant dense<0.000000e+00> : vector<256xf32>
    %68 = vector.multi_reduction <add>, %67, %cst_64 [0] : vector<256x256xf32> to vector<256xf32>
    %69 = vector.shape_cast %68 : vector<256xf32> to vector<1x256xf32>
    %c3 = arith.constant 3 : index
    %c0_65 = arith.constant 0 : index
    %c0_66 = arith.constant 0 : index
    %70 = vector.load %arg1[%c3, %c0_65, %c0_66] : memref<8x288x12xbf16, #tpu.memory_space<vmem>>, vector<1x256x12xbf16>
    %71 = vector.shape_cast %70 : vector<1x256x12xbf16> to vector<256x12xbf16>
    %c0_67 = arith.constant 0 : index
    %c0_68 = arith.constant 0 : index
    %c0_69 = arith.constant 0 : index
    %72 = vector.load %arg2[%c0_67, %c0_68, %c0_69] : memref<3x12x256xbf16, #tpu.memory_space<vmem>>, vector<1x12x256xbf16>
    %73 = vector.shape_cast %72 : vector<1x12x256xbf16> to vector<12x256xbf16>
    %cst_70 = arith.constant dense<0.000000e+00> : vector<256x256xf32>
    %74 = tpu.matmul %71, %73, %cst_70 {dimension_numbers = #tpu.dot_dimension_numbers<[1], [0], [0], [1], [0, 0, 1, 1], [], []>} : vector<256x12xbf16>, vector<12x256xbf16>, vector<256x256xf32> -> vector<256x256xf32>
    %c3_71 = arith.constant 3 : index
    %c16_72 = arith.constant 16 : index
    %c0_73 = arith.constant 0 : index
    %75 = vector.load %arg1[%c3_71, %c16_72, %c0_73] : memref<8x288x12xbf16, #tpu.memory_space<vmem>>, vector<1x256x12xbf16>
    %76 = vector.shape_cast %75 : vector<1x256x12xbf16> to vector<256x12xbf16>
    %c1_74 = arith.constant 1 : index
    %c0_75 = arith.constant 0 : index
    %c0_76 = arith.constant 0 : index
    %77 = vector.load %arg2[%c1_74, %c0_75, %c0_76] : memref<3x12x256xbf16, #tpu.memory_space<vmem>>, vector<1x12x256xbf16>
    %78 = vector.shape_cast %77 : vector<1x12x256xbf16> to vector<12x256xbf16>
    %cst_77 = arith.constant dense<0.000000e+00> : vector<256x256xf32>
    %79 = tpu.matmul %76, %78, %cst_77 {dimension_numbers = #tpu.dot_dimension_numbers<[1], [0], [0], [1], [0, 0, 1, 1], [], []>} : vector<256x12xbf16>, vector<12x256xbf16>, vector<256x256xf32> -> vector<256x256xf32>
    %80 = arith.addf %74, %79 : vector<256x256xf32>
    %c3_78 = arith.constant 3 : index
    %c32_79 = arith.constant 32 : index
    %c0_80 = arith.constant 0 : index
    %81 = vector.load %arg1[%c3_78, %c32_79, %c0_80] : memref<8x288x12xbf16, #tpu.memory_space<vmem>>, vector<1x256x12xbf16>
    %82 = vector.shape_cast %81 : vector<1x256x12xbf16> to vector<256x12xbf16>
    %c2_81 = arith.constant 2 : index
    %c0_82 = arith.constant 0 : index
    %c0_83 = arith.constant 0 : index
    %83 = vector.load %arg2[%c2_81, %c0_82, %c0_83] : memref<3x12x256xbf16, #tpu.memory_space<vmem>>, vector<1x12x256xbf16>
    %84 = vector.shape_cast %83 : vector<1x12x256xbf16> to vector<12x256xbf16>
    %cst_84 = arith.constant dense<0.000000e+00> : vector<256x256xf32>
    %85 = tpu.matmul %82, %84, %cst_84 {dimension_numbers = #tpu.dot_dimension_numbers<[1], [0], [0], [1], [0, 0, 1, 1], [], []>} : vector<256x12xbf16>, vector<12x256xbf16>, vector<256x256xf32> -> vector<256x256xf32>
    %86 = arith.addf %80, %85 : vector<256x256xf32>
    %87 = vector.broadcast %0 : vector<1x256xf32> to vector<256x256xf32>
    %88 = arith.addf %86, %87 : vector<256x256xf32>
    %cst_85 = arith.constant 0.000000e+00 : f32
    %89 = vector.broadcast %cst_85 : f32 to vector<256x256xf32>
    %90 = arith.maximumf %88, %89 : vector<256x256xf32>
    %cst_86 = arith.constant dense<0.000000e+00> : vector<256xf32>
    %91 = vector.multi_reduction <add>, %90, %cst_86 [0] : vector<256x256xf32> to vector<256xf32>
    %92 = vector.shape_cast %91 : vector<256xf32> to vector<1x256xf32>
    %c4 = arith.constant 4 : index
    %c0_87 = arith.constant 0 : index
    %c0_88 = arith.constant 0 : index
    %93 = vector.load %arg1[%c4, %c0_87, %c0_88] : memref<8x288x12xbf16, #tpu.memory_space<vmem>>, vector<1x256x12xbf16>
    %94 = vector.shape_cast %93 : vector<1x256x12xbf16> to vector<256x12xbf16>
    %c0_89 = arith.constant 0 : index
    %c0_90 = arith.constant 0 : index
    %c0_91 = arith.constant 0 : index
    %95 = vector.load %arg2[%c0_89, %c0_90, %c0_91] : memref<3x12x256xbf16, #tpu.memory_space<vmem>>, vector<1x12x256xbf16>
    %96 = vector.shape_cast %95 : vector<1x12x256xbf16> to vector<12x256xbf16>
    %cst_92 = arith.constant dense<0.000000e+00> : vector<256x256xf32>
    %97 = tpu.matmul %94, %96, %cst_92 {dimension_numbers = #tpu.dot_dimension_numbers<[1], [0], [0], [1], [0, 0, 1, 1], [], []>} : vector<256x12xbf16>, vector<12x256xbf16>, vector<256x256xf32> -> vector<256x256xf32>
    %c4_93 = arith.constant 4 : index
    %c16_94 = arith.constant 16 : index
    %c0_95 = arith.constant 0 : index
    %98 = vector.load %arg1[%c4_93, %c16_94, %c0_95] : memref<8x288x12xbf16, #tpu.memory_space<vmem>>, vector<1x256x12xbf16>
    %99 = vector.shape_cast %98 : vector<1x256x12xbf16> to vector<256x12xbf16>
    %c1_96 = arith.constant 1 : index
    %c0_97 = arith.constant 0 : index
    %c0_98 = arith.constant 0 : index
    %100 = vector.load %arg2[%c1_96, %c0_97, %c0_98] : memref<3x12x256xbf16, #tpu.memory_space<vmem>>, vector<1x12x256xbf16>
    %101 = vector.shape_cast %100 : vector<1x12x256xbf16> to vector<12x256xbf16>
    %cst_99 = arith.constant dense<0.000000e+00> : vector<256x256xf32>
    %102 = tpu.matmul %99, %101, %cst_99 {dimension_numbers = #tpu.dot_dimension_numbers<[1], [0], [0], [1], [0, 0, 1, 1], [], []>} : vector<256x12xbf16>, vector<12x256xbf16>, vector<256x256xf32> -> vector<256x256xf32>
    %103 = arith.addf %97, %102 : vector<256x256xf32>
    %c4_100 = arith.constant 4 : index
    %c32_101 = arith.constant 32 : index
    %c0_102 = arith.constant 0 : index
    %104 = vector.load %arg1[%c4_100, %c32_101, %c0_102] : memref<8x288x12xbf16, #tpu.memory_space<vmem>>, vector<1x256x12xbf16>
    %105 = vector.shape_cast %104 : vector<1x256x12xbf16> to vector<256x12xbf16>
    %c2_103 = arith.constant 2 : index
    %c0_104 = arith.constant 0 : index
    %c0_105 = arith.constant 0 : index
    %106 = vector.load %arg2[%c2_103, %c0_104, %c0_105] : memref<3x12x256xbf16, #tpu.memory_space<vmem>>, vector<1x12x256xbf16>
    %107 = vector.shape_cast %106 : vector<1x12x256xbf16> to vector<12x256xbf16>
    %cst_106 = arith.constant dense<0.000000e+00> : vector<256x256xf32>
    %108 = tpu.matmul %105, %107, %cst_106 {dimension_numbers = #tpu.dot_dimension_numbers<[1], [0], [0], [1], [0, 0, 1, 1], [], []>} : vector<256x12xbf16>, vector<12x256xbf16>, vector<256x256xf32> -> vector<256x256xf32>
    %109 = arith.addf %103, %108 : vector<256x256xf32>
    %110 = vector.broadcast %0 : vector<1x256xf32> to vector<256x256xf32>
    %111 = arith.addf %109, %110 : vector<256x256xf32>
    %cst_107 = arith.constant 0.000000e+00 : f32
    %112 = vector.broadcast %cst_107 : f32 to vector<256x256xf32>
    %113 = arith.maximumf %111, %112 : vector<256x256xf32>
    %cst_108 = arith.constant dense<0.000000e+00> : vector<256xf32>
    %114 = vector.multi_reduction <add>, %113, %cst_108 [0] : vector<256x256xf32> to vector<256xf32>
    %115 = vector.shape_cast %114 : vector<256xf32> to vector<1x256xf32>
    %c5 = arith.constant 5 : index
    %c0_109 = arith.constant 0 : index
    %c0_110 = arith.constant 0 : index
    %116 = vector.load %arg1[%c5, %c0_109, %c0_110] : memref<8x288x12xbf16, #tpu.memory_space<vmem>>, vector<1x256x12xbf16>
    %117 = vector.shape_cast %116 : vector<1x256x12xbf16> to vector<256x12xbf16>
    %c0_111 = arith.constant 0 : index
    %c0_112 = arith.constant 0 : index
    %c0_113 = arith.constant 0 : index
    %118 = vector.load %arg2[%c0_111, %c0_112, %c0_113] : memref<3x12x256xbf16, #tpu.memory_space<vmem>>, vector<1x12x256xbf16>
    %119 = vector.shape_cast %118 : vector<1x12x256xbf16> to vector<12x256xbf16>
    %cst_114 = arith.constant dense<0.000000e+00> : vector<256x256xf32>
    %120 = tpu.matmul %117, %119, %cst_114 {dimension_numbers = #tpu.dot_dimension_numbers<[1], [0], [0], [1], [0, 0, 1, 1], [], []>} : vector<256x12xbf16>, vector<12x256xbf16>, vector<256x256xf32> -> vector<256x256xf32>
    %c5_115 = arith.constant 5 : index
    %c16_116 = arith.constant 16 : index
    %c0_117 = arith.constant 0 : index
    %121 = vector.load %arg1[%c5_115, %c16_116, %c0_117] : memref<8x288x12xbf16, #tpu.memory_space<vmem>>, vector<1x256x12xbf16>
    %122 = vector.shape_cast %121 : vector<1x256x12xbf16> to vector<256x12xbf16>
    %c1_118 = arith.constant 1 : index
    %c0_119 = arith.constant 0 : index
    %c0_120 = arith.constant 0 : index
    %123 = vector.load %arg2[%c1_118, %c0_119, %c0_120] : memref<3x12x256xbf16, #tpu.memory_space<vmem>>, vector<1x12x256xbf16>
    %124 = vector.shape_cast %123 : vector<1x12x256xbf16> to vector<12x256xbf16>
    %cst_121 = arith.constant dense<0.000000e+00> : vector<256x256xf32>
    %125 = tpu.matmul %122, %124, %cst_121 {dimension_numbers = #tpu.dot_dimension_numbers<[1], [0], [0], [1], [0, 0, 1, 1], [], []>} : vector<256x12xbf16>, vector<12x256xbf16>, vector<256x256xf32> -> vector<256x256xf32>
    %126 = arith.addf %120, %125 : vector<256x256xf32>
    %c5_122 = arith.constant 5 : index
    %c32_123 = arith.constant 32 : index
    %c0_124 = arith.constant 0 : index
    %127 = vector.load %arg1[%c5_122, %c32_123, %c0_124] : memref<8x288x12xbf16, #tpu.memory_space<vmem>>, vector<1x256x12xbf16>
    %128 = vector.shape_cast %127 : vector<1x256x12xbf16> to vector<256x12xbf16>
    %c2_125 = arith.constant 2 : index
    %c0_126 = arith.constant 0 : index
    %c0_127 = arith.constant 0 : index
    %129 = vector.load %arg2[%c2_125, %c0_126, %c0_127] : memref<3x12x256xbf16, #tpu.memory_space<vmem>>, vector<1x12x256xbf16>
    %130 = vector.shape_cast %129 : vector<1x12x256xbf16> to vector<12x256xbf16>
    %cst_128 = arith.constant dense<0.000000e+00> : vector<256x256xf32>
    %131 = tpu.matmul %128, %130, %cst_128 {dimension_numbers = #tpu.dot_dimension_numbers<[1], [0], [0], [1], [0, 0, 1, 1], [], []>} : vector<256x12xbf16>, vector<12x256xbf16>, vector<256x256xf32> -> vector<256x256xf32>
    %132 = arith.addf %126, %131 : vector<256x256xf32>
    %133 = vector.broadcast %0 : vector<1x256xf32> to vector<256x256xf32>
    %134 = arith.addf %132, %133 : vector<256x256xf32>
    %cst_129 = arith.constant 0.000000e+00 : f32
    %135 = vector.broadcast %cst_129 : f32 to vector<256x256xf32>
    %136 = arith.maximumf %134, %135 : vector<256x256xf32>
    %cst_130 = arith.constant dense<0.000000e+00> : vector<256xf32>
    %137 = vector.multi_reduction <add>, %136, %cst_130 [0] : vector<256x256xf32> to vector<256xf32>
    %138 = vector.shape_cast %137 : vector<256xf32> to vector<1x256xf32>
    %c6 = arith.constant 6 : index
    %c0_131 = arith.constant 0 : index
    %c0_132 = arith.constant 0 : index
    %139 = vector.load %arg1[%c6, %c0_131, %c0_132] : memref<8x288x12xbf16, #tpu.memory_space<vmem>>, vector<1x256x12xbf16>
    %140 = vector.shape_cast %139 : vector<1x256x12xbf16> to vector<256x12xbf16>
    %c0_133 = arith.constant 0 : index
    %c0_134 = arith.constant 0 : index
    %c0_135 = arith.constant 0 : index
    %141 = vector.load %arg2[%c0_133, %c0_134, %c0_135] : memref<3x12x256xbf16, #tpu.memory_space<vmem>>, vector<1x12x256xbf16>
    %142 = vector.shape_cast %141 : vector<1x12x256xbf16> to vector<12x256xbf16>
    %cst_136 = arith.constant dense<0.000000e+00> : vector<256x256xf32>
    %143 = tpu.matmul %140, %142, %cst_136 {dimension_numbers = #tpu.dot_dimension_numbers<[1], [0], [0], [1], [0, 0, 1, 1], [], []>} : vector<256x12xbf16>, vector<12x256xbf16>, vector<256x256xf32> -> vector<256x256xf32>
    %c6_137 = arith.constant 6 : index
    %c16_138 = arith.constant 16 : index
    %c0_139 = arith.constant 0 : index
    %144 = vector.load %arg1[%c6_137, %c16_138, %c0_139] : memref<8x288x12xbf16, #tpu.memory_space<vmem>>, vector<1x256x12xbf16>
    %145 = vector.shape_cast %144 : vector<1x256x12xbf16> to vector<256x12xbf16>
    %c1_140 = arith.constant 1 : index
    %c0_141 = arith.constant 0 : index
    %c0_142 = arith.constant 0 : index
    %146 = vector.load %arg2[%c1_140, %c0_141, %c0_142] : memref<3x12x256xbf16, #tpu.memory_space<vmem>>, vector<1x12x256xbf16>
    %147 = vector.shape_cast %146 : vector<1x12x256xbf16> to vector<12x256xbf16>
    %cst_143 = arith.constant dense<0.000000e+00> : vector<256x256xf32>
    %148 = tpu.matmul %145, %147, %cst_143 {dimension_numbers = #tpu.dot_dimension_numbers<[1], [0], [0], [1], [0, 0, 1, 1], [], []>} : vector<256x12xbf16>, vector<12x256xbf16>, vector<256x256xf32> -> vector<256x256xf32>
    %149 = arith.addf %143, %148 : vector<256x256xf32>
    %c6_144 = arith.constant 6 : index
    %c32_145 = arith.constant 32 : index
    %c0_146 = arith.constant 0 : index
    %150 = vector.load %arg1[%c6_144, %c32_145, %c0_146] : memref<8x288x12xbf16, #tpu.memory_space<vmem>>, vector<1x256x12xbf16>
    %151 = vector.shape_cast %150 : vector<1x256x12xbf16> to vector<256x12xbf16>
    %c2_147 = arith.constant 2 : index
    %c0_148 = arith.constant 0 : index
    %c0_149 = arith.constant 0 : index
    %152 = vector.load %arg2[%c2_147, %c0_148, %c0_149] : memref<3x12x256xbf16, #tpu.memory_space<vmem>>, vector<1x12x256xbf16>
    %153 = vector.shape_cast %152 : vector<1x12x256xbf16> to vector<12x256xbf16>
    %cst_150 = arith.constant dense<0.000000e+00> : vector<256x256xf32>
    %154 = tpu.matmul %151, %153, %cst_150 {dimension_numbers = #tpu.dot_dimension_numbers<[1], [0], [0], [1], [0, 0, 1, 1], [], []>} : vector<256x12xbf16>, vector<12x256xbf16>, vector<256x256xf32> -> vector<256x256xf32>
    %155 = arith.addf %149, %154 : vector<256x256xf32>
    %156 = vector.broadcast %0 : vector<1x256xf32> to vector<256x256xf32>
    %157 = arith.addf %155, %156 : vector<256x256xf32>
    %cst_151 = arith.constant 0.000000e+00 : f32
    %158 = vector.broadcast %cst_151 : f32 to vector<256x256xf32>
    %159 = arith.maximumf %157, %158 : vector<256x256xf32>
    %cst_152 = arith.constant dense<0.000000e+00> : vector<256xf32>
    %160 = vector.multi_reduction <add>, %159, %cst_152 [0] : vector<256x256xf32> to vector<256xf32>
    %161 = vector.shape_cast %160 : vector<256xf32> to vector<1x256xf32>
    %c7 = arith.constant 7 : index
    %c0_153 = arith.constant 0 : index
    %c0_154 = arith.constant 0 : index
    %162 = vector.load %arg1[%c7, %c0_153, %c0_154] : memref<8x288x12xbf16, #tpu.memory_space<vmem>>, vector<1x256x12xbf16>
    %163 = vector.shape_cast %162 : vector<1x256x12xbf16> to vector<256x12xbf16>
    %c0_155 = arith.constant 0 : index
    %c0_156 = arith.constant 0 : index
    %c0_157 = arith.constant 0 : index
    %164 = vector.load %arg2[%c0_155, %c0_156, %c0_157] : memref<3x12x256xbf16, #tpu.memory_space<vmem>>, vector<1x12x256xbf16>
    %165 = vector.shape_cast %164 : vector<1x12x256xbf16> to vector<12x256xbf16>
    %cst_158 = arith.constant dense<0.000000e+00> : vector<256x256xf32>
    %166 = tpu.matmul %163, %165, %cst_158 {dimension_numbers = #tpu.dot_dimension_numbers<[1], [0], [0], [1], [0, 0, 1, 1], [], []>} : vector<256x12xbf16>, vector<12x256xbf16>, vector<256x256xf32> -> vector<256x256xf32>
    %c7_159 = arith.constant 7 : index
    %c16_160 = arith.constant 16 : index
    %c0_161 = arith.constant 0 : index
    %167 = vector.load %arg1[%c7_159, %c16_160, %c0_161] : memref<8x288x12xbf16, #tpu.memory_space<vmem>>, vector<1x256x12xbf16>
    %168 = vector.shape_cast %167 : vector<1x256x12xbf16> to vector<256x12xbf16>
    %c1_162 = arith.constant 1 : index
    %c0_163 = arith.constant 0 : index
    %c0_164 = arith.constant 0 : index
    %169 = vector.load %arg2[%c1_162, %c0_163, %c0_164] : memref<3x12x256xbf16, #tpu.memory_space<vmem>>, vector<1x12x256xbf16>
    %170 = vector.shape_cast %169 : vector<1x12x256xbf16> to vector<12x256xbf16>
    %cst_165 = arith.constant dense<0.000000e+00> : vector<256x256xf32>
    %171 = tpu.matmul %168, %170, %cst_165 {dimension_numbers = #tpu.dot_dimension_numbers<[1], [0], [0], [1], [0, 0, 1, 1], [], []>} : vector<256x12xbf16>, vector<12x256xbf16>, vector<256x256xf32> -> vector<256x256xf32>
    %172 = arith.addf %166, %171 : vector<256x256xf32>
    %c7_166 = arith.constant 7 : index
    %c32_167 = arith.constant 32 : index
    %c0_168 = arith.constant 0 : index
    %173 = vector.load %arg1[%c7_166, %c32_167, %c0_168] : memref<8x288x12xbf16, #tpu.memory_space<vmem>>, vector<1x256x12xbf16>
    %174 = vector.shape_cast %173 : vector<1x256x12xbf16> to vector<256x12xbf16>
    %c2_169 = arith.constant 2 : index
    %c0_170 = arith.constant 0 : index
    %c0_171 = arith.constant 0 : index
    %175 = vector.load %arg2[%c2_169, %c0_170, %c0_171] : memref<3x12x256xbf16, #tpu.memory_space<vmem>>, vector<1x12x256xbf16>
    %176 = vector.shape_cast %175 : vector<1x12x256xbf16> to vector<12x256xbf16>
    %cst_172 = arith.constant dense<0.000000e+00> : vector<256x256xf32>
    %177 = tpu.matmul %174, %176, %cst_172 {dimension_numbers = #tpu.dot_dimension_numbers<[1], [0], [0], [1], [0, 0, 1, 1], [], []>} : vector<256x12xbf16>, vector<12x256xbf16>, vector<256x256xf32> -> vector<256x256xf32>
    %178 = arith.addf %172, %177 : vector<256x256xf32>
    %179 = vector.broadcast %0 : vector<1x256xf32> to vector<256x256xf32>
    %180 = arith.addf %178, %179 : vector<256x256xf32>
    %cst_173 = arith.constant 0.000000e+00 : f32
    %181 = vector.broadcast %cst_173 : f32 to vector<256x256xf32>
    %182 = arith.maximumf %180, %181 : vector<256x256xf32>
    %cst_174 = arith.constant dense<0.000000e+00> : vector<256xf32>
    %183 = vector.multi_reduction <add>, %182, %cst_174 [0] : vector<256x256xf32> to vector<256xf32>
    %184 = vector.shape_cast %183 : vector<256xf32> to vector<1x256xf32>
    %185 = tpu.concatenate %23, %46, %69, %92, %115, %138, %161, %184 in 0 : vector<1x256xf32>, vector<1x256xf32>, vector<1x256xf32>, vector<1x256xf32>, vector<1x256xf32>, vector<1x256xf32>, vector<1x256xf32>, vector<1x256xf32> -> vector<8x256xf32>
    %cst_175 = arith.constant 3.906250e-03 : f32
    %186 = vector.broadcast %cst_175 : f32 to vector<8x256xf32>
    %187 = arith.mulf %185, %186 : vector<8x256xf32>
    %188 = arith.truncf %187 : vector<8x256xf32> to vector<8x256xbf16>
    %c0_176 = arith.constant 0 : index
    %c0_177 = arith.constant 0 : index
    %189 = vector.load %arg4[%c0_176, %c0_177] : memref<256x128xbf16, #tpu.memory_space<vmem>>, vector<256x128xbf16>
    %cst_178 = arith.constant dense<0.000000e+00> : vector<8x128xf32>
    %190 = tpu.matmul %188, %189, %cst_178 {dimension_numbers = #tpu.dot_dimension_numbers<[1], [0], [0], [1], [0, 0, 1, 1], [], []>} : vector<8x256xbf16>, vector<256x128xbf16>, vector<8x128xf32> -> vector<8x128xf32>
    %c0_179 = arith.constant 0 : index
    %c0_180 = arith.constant 0 : index
    %191 = vector.load %arg5[%c0_179, %c0_180] : memref<1x128xf32, #tpu.memory_space<vmem>>, vector<1x128xf32>
    %192 = vector.broadcast %191 : vector<1x128xf32> to vector<8x128xf32>
    %193 = arith.addf %190, %192 : vector<8x128xf32>
    %194 = arith.truncf %193 : vector<8x128xf32> to vector<8x128xbf16>
    %c0_181 = arith.constant 0 : index
    %c0_182 = arith.constant 0 : index
    %195 = vector.load %arg6[%c0_181, %c0_182] : memref<128x256xbf16, #tpu.memory_space<vmem>>, vector<128x256xbf16>
    %cst_183 = arith.constant dense<0.000000e+00> : vector<8x256xf32>
    %196 = tpu.matmul %194, %195, %cst_183 {dimension_numbers = #tpu.dot_dimension_numbers<[1], [0], [0], [1], [0, 0, 1, 1], [], []>} : vector<8x128xbf16>, vector<128x256xbf16>, vector<8x256xf32> -> vector<8x256xf32>
    %c0_184 = arith.constant 0 : index
    %c0_185 = arith.constant 0 : index
    %197 = vector.load %arg7[%c0_184, %c0_185] : memref<1x256xf32, #tpu.memory_space<vmem>>, vector<1x256xf32>
    %198 = vector.broadcast %197 : vector<1x256xf32> to vector<8x256xf32>
    %199 = arith.addf %196, %198 : vector<8x256xf32>
    %cst_186 = arith.constant 0.000000e+00 : f32
    %200 = vector.broadcast %cst_186 : f32 to vector<8x256xf32>
    %201 = arith.maximumf %199, %200 : vector<8x256xf32>
    %202 = arith.truncf %201 : vector<8x256xf32> to vector<8x256xbf16>
    %c0_187 = arith.constant 0 : index
    %c0_188 = arith.constant 0 : index
    %203 = vector.load %arg8[%c0_187, %c0_188] : memref<256x128xbf16, #tpu.memory_space<vmem>>, vector<256x128xbf16>
    %cst_189 = arith.constant dense<0.000000e+00> : vector<8x128xf32>
    %204 = tpu.matmul %202, %203, %cst_189 {dimension_numbers = #tpu.dot_dimension_numbers<[1], [0], [0], [1], [0, 0, 1, 1], [], []>} : vector<8x256xbf16>, vector<256x128xbf16>, vector<8x128xf32> -> vector<8x128xf32>
    %205 = tpu.concatenate %193, %204 in 1 : vector<8x128xf32>, vector<8x128xf32> -> vector<8x256xf32>
    %c0_190 = arith.constant 0 : index
    %c0_191 = arith.constant 0 : index
    %206 = vector.load %arg9[%c0_190, %c0_191] : memref<8x256xf32, #tpu.memory_space<vmem>>, vector<8x256xf32>
    tpu.vector_store %arg9[%c0_190, %c0_191], %205 {strides = array<i32>} : memref<8x256xf32, #tpu.memory_space<vmem>>, vector<8x256xf32>,
    return
  }
  func.func @transform_0(%arg0: i32) -> (i32, i32, i32) {
    %c0_i32 = arith.constant 0 : i32
    %c0_i32_0 = arith.constant 0 : i32
    %c0_i32_1 = arith.constant 0 : i32
    return %arg0, %c0_i32, %c0_i32_0 : i32, i32, i32
  }
  func.func @transform_1(%arg0: i32) -> (i32, i32, i32) {
    %c0_i32 = arith.constant 0 : i32
    %c0_i32_0 = arith.constant 0 : i32
    %c0_i32_1 = arith.constant 0 : i32
    %c0_i32_2 = arith.constant 0 : i32
    return %c0_i32, %c0_i32_0, %c0_i32_1 : i32, i32, i32
  }
  func.func @transform_2(%arg0: i32) -> (i32, i32) {
    %c0_i32 = arith.constant 0 : i32
    %c0_i32_0 = arith.constant 0 : i32
    %c0_i32_1 = arith.constant 0 : i32
    return %c0_i32, %c0_i32_0 : i32, i32
  }
  func.func @transform_3(%arg0: i32) -> (i32, i32) {
    %c0_i32 = arith.constant 0 : i32
    %c0_i32_0 = arith.constant 0 : i32
    %c0_i32_1 = arith.constant 0 : i32
    return %c0_i32, %c0_i32_0 : i32, i32
  }
  func.func @transform_4(%arg0: i32) -> (i32, i32) {
    %c0_i32 = arith.constant 0 : i32
    %c0_i32_0 = arith.constant 0 : i32
    %c0_i32_1 = arith.constant 0 : i32
    return %c0_i32, %c0_i32_0 : i32, i32
  }
  func.func @transform_5(%arg0: i32) -> (i32, i32) {
    %c0_i32 = arith.constant 0 : i32
    %c0_i32_0 = arith.constant 0 : i32
    %c0_i32_1 = arith.constant 0 : i32
    return %c0_i32, %c0_i32_0 : i32, i32
  }
  func.func @transform_6(%arg0: i32) -> (i32, i32) {
    %c0_i32 = arith.constant 0 : i32
    %c0_i32_0 = arith.constant 0 : i32
    %c0_i32_1 = arith.constant 0 : i32
    return %c0_i32, %c0_i32_0 : i32, i32
  }
  func.func @transform_7(%arg0: i32) -> (i32, i32) {
    %c0_i32 = arith.constant 0 : i32
    %c0_i32_0 = arith.constant 0 : i32
    %c0_i32_1 = arith.constant 0 : i32
    return %c0_i32, %c0_i32_0 : i32, i32
  }
  func.func @transform_8(%arg0: i32) -> (i32, i32) {
    %c0_i32 = arith.constant 0 : i32
    %c0_i32_0 = arith.constant 0 : i32
    return %arg0, %c0_i32 : i32, i32
  }
}

</mosaic_0001>

<llo_original>
// kernel: _fused_forward.1
$region0: #{_fused_forward.1}
  #allocation0 [shape = 'u32[]', space=smem, size = 0x4, offset = 0x4, fixed_abs, tag = 'smem constant byte address 0x4 - core index']
  #allocation1 [shape = 'u32[144,128]{1,0:T(1,128)}', space=vmem, size = 0x12000, scoped, tag = 'internal scratch']
  %s0 = inlined_call_operand.vmem [shape: bf16[32,288,12], index: 0, kind: input, shape index: {}]
  %s1 = inlined_call_operand.vmem [shape: bf16[3,12,256], index: 1, kind: input, shape index: {}]
  %s2 = inlined_call_operand.vmem [shape: f32[1,256], index: 2, kind: input, shape index: {}]
  %s3 = inlined_call_operand.vmem [shape: bf16[256,128], index: 3, kind: input, shape index: {}]
  %s4 = inlined_call_operand.vmem [shape: f32[1,128], index: 4, kind: input, shape index: {}]
  %s5 = inlined_call_operand.vmem [shape: bf16[128,256], index: 5, kind: input, shape index: {}]
  %s6 = inlined_call_operand.vmem [shape: f32[1,256], index: 6, kind: input, shape index: {}]
  %s7 = inlined_call_operand.vmem [shape: bf16[256,128], index: 7, kind: input, shape index: {}]
  %s8 = inlined_call_operand.vmem [shape: f32[32,256], index: 8, kind: output, shape index: {}]
  %s9 = sld [smem:[#allocation0]]
  $region65: #{_fused_forward.1} parent=0
    _
  %s11 = ssub.s32 1, %s9
  %s12 = scalar_select 0, %s11, %s9
  loop: start=0, step=1, limit=6
  $region2: #{_fused_forward.1} parent=0 // loop_pre_header
    _
  $region3: #{_fused_forward.1} parent=0 // loop_header
    %s14 = sphi 0, %s18
    %p15 = scmp.ge.s32.totalorder %s14, 6
    %s24 = sphi 0, %s26
    %s27 = sphi 0, %s24
    %s28 = sphi 0, %s27
    %s44 = sphi 0, %s28
    %s48 = sphi 0, %s48
    %s50 = sphi 0, %s48
    %s51 = sphi 0, %s50
    %s65 = sphi 0, %s51
    %s69 = sphi 0, %s69
    %s71 = sphi 0, %s69
    %s72 = sphi 0, %s71
    %s86 = sphi 0, %s72
    %s90 = sphi 0, %s90
    %s92 = sphi 0, %s90
    %s93 = sphi 0, %s92
    %s107 = sphi 0, %s93
    %s111 = sphi 0, %s111
    %s113 = sphi 0, %s111
    %s114 = sphi 0, %s113
    %s128 = sphi 0, %s114
    %s132 = sphi 0, %s132
    %s134 = sphi 0, %s132
    %s135 = sphi 0, %s134
    %s149 = sphi 0, %s135
    %s153 = sphi 0, %s153
    %s155 = sphi 0, %s153
    %s156 = sphi 0, %s155
    %s170 = sphi 0, %s156
    %s174 = sphi 0, %s174
    %s176 = sphi 0, %s174
    %s177 = sphi 0, %s176
    %s191 = sphi 0, %s177
    %s197 = sphi 0, %s199
    %s200 = sphi 0, %s197
    %s201 = sphi 0, %s200
    %s217 = sphi 0, %s201
  $region4: #{_fused_forward.1} parent=0 // loop_header_branch
    %17 = sbr.rel (%p15) target = $region8
  $region5: #{_fused_forward.1} parent=0 // loop_body
    %s19 = ssub.s32 %s14, 1
    %s20 = ssub.s32 %s14, 2
    %s21 = sadd.s32 %s14, 1
    %s22 = ssub.s32 %s14, %s21
    %p23 = scmp.eq.s32.totalorder %s22, 0
    %s25 = sadd.s32 %s24, 1
    %s26 = scalar_select %p23, %s24, %s25
    %p29 = pneg %p23
    %p30 = scmp.eq.s32.totalorder %s14, 3
    %p31 = por %p29, %p30
    %p32 = scmp.ne.s32.totalorder %s24, %s27
    %p33 = scmp.eq.s32.totalorder %s14, 0
    %p34 = por %p32, %p33
    %p35 = scmp.ne.s32.totalorder %s24, %s27
    %p36 = scmp.eq.s32.totalorder %s19, 3
    %p37 = por %p35, %p36
    %p38 = scmp.ne.s32.totalorder %s27, %s28
    %p39 = scmp.eq.s32.totalorder %s19, 0
    %p40 = por %p38, %p39
    %p41 = scmp.ne.s32.totalorder %s27, %s28
    %p42 = scmp.eq.s32.totalorder %s20, 3
    %p43 = por %p41, %p42
    %p45 = scmp.ne.s32.totalorder %s28, %s44
    %p46 = scmp.eq.s32.totalorder %s20, 0
    %p47 = por %p45, %p46
    %s49 = sadd.s32 %s48, 1
    %p52 = scmp.eq.s32.totalorder %s14, 3
    %p53 = scmp.ne.s32.totalorder %s48, %s50
    %p54 = scmp.eq.s32.totalorder %s14, 0
    %p55 = por %p53, %p54
    %p56 = scmp.ne.s32.totalorder %s48, %s50
    %p57 = scmp.eq.s32.totalorder %s19, 3
    %p58 = por %p56, %p57
    %p59 = scmp.ne.s32.totalorder %s50, %s51
    %p60 = scmp.eq.s32.totalorder %s19, 0
    %p61 = por %p59, %p60
    %p62 = scmp.ne.s32.totalorder %s50, %s51
    %p63 = scmp.eq.s32.totalorder %s20, 3
    %p64 = por %p62, %p63
    %p66 = scmp.ne.s32.totalorder %s51, %s65
    %p67 = scmp.eq.s32.totalorder %s20, 0
    %p68 = por %p66, %p67
    %s70 = sadd.s32 %s69, 1
    %p73 = scmp.eq.s32.totalorder %s14, 3
    %p74 = scmp.ne.s32.totalorder %s69, %s71
    %p75 = scmp.eq.s32.totalorder %s14, 0
    %p76 = por %p74, %p75
    %p77 = scmp.ne.s32.totalorder %s69, %s71
    %p78 = scmp.eq.s32.totalorder %s19, 3
    %p79 = por %p77, %p78
    %p80 = scmp.ne.s32.totalorder %s71, %s72
    %p81 = scmp.eq.s32.totalorder %s19, 0
    %p82 = por %p80, %p81
    %p83 = scmp.ne.s32.totalorder %s71, %s72
    %p84 = scmp.eq.s32.totalorder %s20, 3
    %p85 = por %p83, %p84
    %p87 = scmp.ne.s32.totalorder %s72, %s86
    %p88 = scmp.eq.s32.totalorder %s20, 0
    %p89 = por %p87, %p88
    %s91 = sadd.s32 %s90, 1
    %p94 = scmp.eq.s32.totalorder %s14, 3
    %p95 = scmp.ne.s32.totalorder %s90, %s92
    %p96 = scmp.eq.s32.totalorder %s14, 0
    %p97 = por %p95, %p96
    %p98 = scmp.ne.s32.totalorder %s90, %s92
    %p99 = scmp.eq.s32.totalorder %s19, 3
    %p100 = por %p98, %p99
    %p101 = scmp.ne.s32.totalorder %s92, %s93
    %p102 = scmp.eq.s32.totalorder %s19, 0
    %p103 = por %p101, %p102
    %p104 = scmp.ne.s32.totalorder %s92, %s93
    %p105 = scmp.eq.s32.totalorder %s20, 3
    %p106 = por %p104, %p105
    %p108 = scmp.ne.s32.totalorder %s93, %s107
    %p109 = scmp.eq.s32.totalorder %s20, 0
    %p110 = por %p108, %p109
    %s112 = sadd.s32 %s111, 1
    %p115 = scmp.eq.s32.totalorder %s14, 3
    %p116 = scmp.ne.s32.totalorder %s111, %s113
    %p117 = scmp.eq.s32.totalorder %s14, 0
    %p118 = por %p116, %p117
    %p119 = scmp.ne.s32.totalorder %s111, %s113
    %p120 = scmp.eq.s32.totalorder %s19, 3
    %p121 = por %p119, %p120
    %p122 = scmp.ne.s32.totalorder %s113, %s114
    %p123 = scmp.eq.s32.totalorder %s19, 0
    %p124 = por %p122, %p123
    %p125 = scmp.ne.s32.totalorder %s113, %s114
    %p126 = scmp.eq.s32.totalorder %s20, 3
    %p127 = por %p125, %p126
    %p129 = scmp.ne.s32.totalorder %s114, %s128
    %p130 = scmp.eq.s32.totalorder %s20, 0
    %p131 = por %p129, %p130
    %s133 = sadd.s32 %s132, 1
    %p136 = scmp.eq.s32.totalorder %s14, 3
    %p137 = scmp.ne.s32.totalorder %s132, %s134
    %p138 = scmp.eq.s32.totalorder %s14, 0
    %p139 = por %p137, %p138
    %p140 = scmp.ne.s32.totalorder %s132, %s134
    %p141 = scmp.eq.s32.totalorder %s19, 3
    %p142 = por %p140, %p141
    %p143 = scmp.ne.s32.totalorder %s134, %s135
    %p144 = scmp.eq.s32.totalorder %s19, 0
    %p145 = por %p143, %p144
    %p146 = scmp.ne.s32.totalorder %s134, %s135
    %p147 = scmp.eq.s32.totalorder %s20, 3
    %p148 = por %p146, %p147
    %p150 = scmp.ne.s32.totalorder %s135, %s149
    %p151 = scmp.eq.s32.totalorder %s20, 0
    %p152 = por %p150, %p151
    %s154 = sadd.s32 %s153, 1
    %p157 = scmp.eq.s32.totalorder %s14, 3
    %p158 = scmp.ne.s32.totalorder %s153, %s155
    %p159 = scmp.eq.s32.totalorder %s14, 0
    %p160 = por %p158, %p159
    %p161 = scmp.ne.s32.totalorder %s153, %s155
    %p162 = scmp.eq.s32.totalorder %s19, 3
    %p163 = por %p161, %p162
    %p164 = scmp.ne.s32.totalorder %s155, %s156
    %p165 = scmp.eq.s32.totalorder %s19, 0
    %p166 = por %p164, %p165
    %p167 = scmp.ne.s32.totalorder %s155, %s156
    %p168 = scmp.eq.s32.totalorder %s20, 3
    %p169 = por %p167, %p168
    %p171 = scmp.ne.s32.totalorder %s156, %s170
    %p172 = scmp.eq.s32.totalorder %s20, 0
    %p173 = por %p171, %p172
    %s175 = sadd.s32 %s174, 1
    %p178 = scmp.eq.s32.totalorder %s14, 3
    %p179 = scmp.ne.s32.totalorder %s174, %s176
    %p180 = scmp.eq.s32.totalorder %s14, 0
    %p181 = por %p179, %p180
    %p182 = scmp.ne.s32.totalorder %s174, %s176
    %p183 = scmp.eq.s32.totalorder %s19, 3
    %p184 = por %p182, %p183
    %p185 = scmp.ne.s32.totalorder %s176, %s177
    %p186 = scmp.eq.s32.totalorder %s19, 0
    %p187 = por %p185, %p186
    %p188 = scmp.ne.s32.totalorder %s176, %s177
    %p189 = scmp.eq.s32.totalorder %s20, 3
    %p190 = por %p188, %p189
    %p192 = scmp.ne.s32.totalorder %s177, %s191
    %p193 = scmp.eq.s32.totalorder %s20, 0
    %p194 = por %p192, %p193
    %s195 = ssub.s32 %s14, %s21
    %p196 = scmp.eq.s32.totalorder %s195, 0
    %s198 = sadd.s32 %s197, 1
    %s199 = scalar_select %p196, %s197, %s198
    %p202 = pneg %p196
    %p203 = scmp.eq.s32.totalorder %s14, 3
    %p204 = por %p202, %p203
    %p205 = scmp.ne.s32.totalorder %s197, %s200
    %p206 = scmp.eq.s32.totalorder %s14, 0
    %p207 = por %p205, %p206
    %p208 = scmp.ne.s32.totalorder %s197, %s200
    %p209 = scmp.eq.s32.totalorder %s19, 3
    %p210 = por %p208, %p209
    %p211 = scmp.ne.s32.totalorder %s200, %s201
    %p212 = scmp.eq.s32.totalorder %s19, 0
    %p213 = por %p211, %p212
    %p214 = scmp.ne.s32.totalorder %s200, %s201
    %p215 = scmp.eq.s32.totalorder %s20, 3
    %p216 = por %p214, %p215
    %p218 = scmp.ne.s32.totalorder %s201, %s217
    %p219 = scmp.eq.s32.totalorder %s20, 0
    %p220 = por %p218, %p219
    %p221 = scmp.le.s32.totalorder 1, %s14
    %p222 = scmp.lt.s32.totalorder %s14, 5
    %p223 = pnand %p221, %p222
    %p224 = pneg %p223
    // Predicated region
    $region9: #{_fused_forward.1} parent=5 // pred_check
      _
    $region10: #{_fused_forward.1} parent=5 // pred_check_branch
      %226 = sbr.rel (%p223) target = $region12
    $region11: #{_fused_forward.1} parent=5 // pred_region
      %s227 = ssub.s32 %s14, 1
      // Predicated region
      $region13: #{_fused_forward.1} parent=11 // pred_check
        %p228 = pneg %p61
      $region14: #{_fused_forward.1} parent=11 // pred_check_branch
        %230 = sbr.rel (%p228) target = $region16
      $region15: #{_fused_forward.1} parent=11 // pred_region
        _
      $region16: #{_fused_forward.1} parent=11 // pred_fallthru
        _
      // Predicated region
      $region17: #{_fused_forward.1} parent=11 // pred_check
        %p231 = pneg %p82
      $region18: #{_fused_forward.1} parent=11 // pred_check_branch
        %233 = sbr.rel (%p231) target = $region20
      $region19: #{_fused_forward.1} parent=11 // pred_region
        _
      $region20: #{_fused_forward.1} parent=11 // pred_fallthru
        _
      // Predicated region
      $region21: #{_fused_forward.1} parent=11 // pred_check
        %p234 = pneg %p103
      $region22: #{_fused_forward.1} parent=11 // pred_check_branch
        %236 = sbr.rel (%p234) target = $region24
      $region23: #{_fused_forward.1} parent=11 // pred_region
        _
      $region24: #{_fused_forward.1} parent=11 // pred_fallthru
        _
      // Predicated region
      $region25: #{_fused_forward.1} parent=11 // pred_check
        %p237 = pneg %p124
      $region26: #{_fused_forward.1} parent=11 // pred_check_branch
        %239 = sbr.rel (%p237) target = $region28
      $region27: #{_fused_forward.1} parent=11 // pred_region
        _
      $region28: #{_fused_forward.1} parent=11 // pred_fallthru
        _
      // Predicated region
      $region29: #{_fused_forward.1} parent=11 // pred_check
        %p240 = pneg %p145
      $region30: #{_fused_forward.1} parent=11 // pred_check_branch
        %242 = sbr.rel (%p240) target = $region32
      $region31: #{_fused_forward.1} parent=11 // pred_region
        _
      $region32: #{_fused_forward.1} parent=11 // pred_fallthru
        _
      // Predicated region
      $region33: #{_fused_forward.1} parent=11 // pred_check
        %p243 = pneg %p166
      $region34: #{_fused_forward.1} parent=11 // pred_check_branch
        %245 = sbr.rel (%p243) target = $region36
      $region35: #{_fused_forward.1} parent=11 // pred_region
        _
      $region36: #{_fused_forward.1} parent=11 // pred_fallthru
        _
      // Predicated region
      $region37: #{_fused_forward.1} parent=11 // pred_check
        %p246 = pneg %p187
      $region38: #{_fused_forward.1} parent=11 // pred_check_branch
        %248 = sbr.rel (%p246) target = $region40
      $region39: #{_fused_forward.1} parent=11 // pred_region
        _
      $region40: #{_fused_forward.1} parent=11 // pred_fallthru
        _
    $region12: #{_fused_forward.1} parent=5 // pred_fallthru
      _
    %p249 = scmp.lt.s32.totalorder %s14, 4
    // Predicated region
    $region41: #{_fused_forward.1} parent=5 // pred_check
      %p250 = pneg %p249
    $region42: #{_fused_forward.1} parent=5 // pred_check_branch
      %252 = sbr.rel (%p250) target = $region44
    $region43: #{_fused_forward.1} parent=5 // pred_region
      // Predicated region
      $region45: #{_fused_forward.1} parent=43 // pred_check
        %p253 = pneg %p34
      $region46: #{_fused_forward.1} parent=43 // pred_check_branch
        %255 = sbr.rel (%p253) target = $region48
      $region47: #{_fused_forward.1} parent=43 // pred_region
        %s256 = smul.u32 8, %s14
        %p257 = scmp.lt.s32.totalorder %s256, 31
        %s258 = scalar_select %p257, %s256, 31
        %s259 = smul.addr %s258, 36
        %s260 = smul.addr %s259, 4
        %s261 = scalar_lea.vmem %s0, %s260
        %s262 = smul.u32 8, %s14
      $region48: #{_fused_forward.1} parent=43 // pred_fallthru
        _
    $region44: #{_fused_forward.1} parent=5 // pred_fallthru
      _
    %p263 = scmp.le.s32.totalorder 1, %s14
    %p264 = scmp.lt.s32.totalorder %s14, 5
    %p265 = pnand %p263, %p264
    %p266 = pneg %p265
    // Predicated region
    $region49: #{_fused_forward.1} parent=5 // pred_check
      _
    $region50: #{_fused_forward.1} parent=5 // pred_check_branch
      %268 = sbr.rel (%p265) target = $region52
    $region51: #{_fused_forward.1} parent=5 // pred_region
      %s269 = ssub.s32 %s14, 1
      %s270 = smul.u32 8, %s19
      %p271 = scmp.lt.s32.totalorder %s270, 31
      %s272 = scalar_select %p271, %s270, 31
      %s273 = smul.addr %s272, 36
      %s274 = smul.addr %s273, 4
      %s275 = scalar_lea.vmem %s0, %s274
      %p276 = pneg %p40
      %p277 = pneg %p37
      %p278 = pneg %p61
      %p279 = pneg %p58
      %p280 = pneg %p82
      %p281 = pneg %p79
      %p282 = pneg %p103
      %p283 = pneg %p100
      %p284 = pneg %p124
      %p285 = pneg %p121
      %p286 = pneg %p145
      %p287 = pneg %p142
      %p288 = pneg %p166
      %p289 = pneg %p163
      %p290 = pneg %p187
      %p291 = pneg %p184
      %p292 = pneg %p213
      %p293 = pneg %p210
      %p294 = scmp.lt.s32.totalorder %s19, 3
      %s295 = scalar_select %p294, %s19, 3
      %s296 = smul.addr %s295, 2
      %s297 = smul.addr %s296, 8
      %s298 = scalar_lea.vmem %s8, %s297
      %s299 = smul.u32 8, %s19
      %p300 = scmp.lt.s32.totalorder %s299, 31
      %s301 = scalar_select %p300, %s299, 31
      %s302 = smul.addr %s301, 36
      %s303 = smul.addr %s302, 4
      %s304 = scalar_lea.vmem %s0, %s303
      %s305 = smul.u32 8, %s19
      %p306 = scmp.lt.s32.totalorder %s19, 3
      %s307 = scalar_select %p306, %s19, 3
      %s308 = smul.addr %s307, 2
      %s309 = smul.addr %s308, 8
      %s310 = scalar_lea.vmem %s8, %s309
      %v312 = vld [vmem:[%s2] sm:$0x3]
      %v313 = vld [vmem:[%s304] sm:$0xf]
      %v314 = vld [vmem:[%s304 + $0x4] sm:$0xf]
      %v315 = vld [vmem:[%s304 + $0x8] sm:$0xf]
      %v316 = vld [vmem:[%s304 + $0xc] sm:$0xf]
      %v317 = vld [vmem:[%s304 + $0x10] sm:$0xf]
      %v318 = vld [vmem:[%s304 + $0x14] sm:$0xf]
      %v319 = vld [vmem:[%s304 + $0x18] sm:$0xf]
      %v320 = vld [vmem:[%s304 + $0x1c] sm:$0xf]
      %v321 = vld [vmem:[%s304 + $0x20] sm:$0xf]
      %v322 = vld [vmem:[%s304 + $0x24] sm:$0xf]
      %v323 = vld [vmem:[%s304 + $0x28] sm:$0xf]
      %v324 = vld [vmem:[%s304 + $0x2c] sm:$0xf]
      %v325 = vld [vmem:[%s304 + $0x30] sm:$0xf]
      %v326 = vld [vmem:[%s304 + $0x34] sm:$0xf]
      %v327 = vld [vmem:[%s304 + $0x38] sm:$0xf]
      %v328 = vld [vmem:[%s304 + $0x3c] sm:$0xf]
      %v329 = vld [vmem:[%s304 + $0x40] sm:$0xf]
      %v330 = vld [vmem:[%s304 + $0x44] sm:$0xf]
      %v331 = vld [vmem:[%s304 + $0x48] sm:$0xf]
      %v332 = vld [vmem:[%s304 + $0x4c] sm:$0xf]
      %v333 = vld [vmem:[%s304 + $0x50] sm:$0xf]
      %v334 = vld [vmem:[%s304 + $0x54] sm:$0xf]
      %v335 = vld [vmem:[%s304 + $0x58] sm:$0xf]
      %v336 = vld [vmem:[%s304 + $0x5c] sm:$0xf]
      %v337 = vld [vmem:[%s304 + $0x60] sm:$0xf]
      %v338 = vld [vmem:[%s304 + $0x64] sm:$0xf]
      %v339 = vld [vmem:[%s304 + $0x68] sm:$0xf]
      %v340 = vld [vmem:[%s304 + $0x6c] sm:$0xf]
      %v341 = vld [vmem:[%s304 + $0x70] sm:$0xf]
      %v342 = vld [vmem:[%s304 + $0x74] sm:$0xf]
      %v343 = vld [vmem:[%s304 + $0x78] sm:$0xf]
      %v344 = vld [vmem:[%s304 + $0x7c] sm:$0xf]
      %v345 = vld [vmem:[%s1] sm:$0xff]
      %v346 = vld [vmem:[%s1 + $0x8] sm:$0x33]
      %v347 = vld [vmem:[%s304 + $0x80] sm:$0xf]
      %v348 = vld [vmem:[%s304 + $0x84] sm:$0xf]
      %s349 = scalar_lea.vmem %s1, 16
      %v350 = vld [vmem:[%s349] sm:$0xff]
      %v351 = vld [vmem:[%s349 + $0x8] sm:$0x33]
      %v384 = vunpack.c.l.b16 %v315
      %v385 = vunpack.c.l.b16 %v316
      %v386 = vunpack.c.l.b16 %v317
      %v387 = vunpack.c.l.b16 %v318
      %v388 = vunpack.c.l.b16 %v319
      %v389 = vunpack.c.l.b16 %v320
      %v390 = vunpack.c.l.b16 %v321
      %v391 = vunpack.c.l.b16 %v322
      %v392 = vunpack.c.l.b16 %v323
      %v393 = vunpack.c.l.b16 %v324
      %v394 = vunpack.c.l.b16 %v325
      %v395 = vunpack.c.l.b16 %v326
      %v396 = vunpack.c.l.b16 %v327
      %v397 = vunpack.c.l.b16 %v328
      %v398 = vunpack.c.l.b16 %v329
      %v399 = vunpack.c.l.b16 %v330
      %v400 = vunpack.c.l.b16 %v331
      %v401 = vunpack.c.l.b16 %v332
      %v402 = vunpack.c.l.b16 %v333
      %v403 = vunpack.c.l.b16 %v334
      %v404 = vunpack.c.l.b16 %v335
      %v405 = vunpack.c.l.b16 %v336
      %v406 = vunpack.c.l.b16 %v337
      %v407 = vunpack.c.l.b16 %v338
      %v408 = vunpack.c.l.b16 %v339
      %v409 = vunpack.c.l.b16 %v340
      %v410 = vunpack.c.l.b16 %v341
      %v411 = vunpack.c.l.b16 %v342
      %v412 = vunpack.c.l.b16 %v343
      %v413 = vunpack.c.l.b16 %v344
      %v414 = vunpack.c.l.b16 %v347
      %v415 = vunpack.c.l.b16 %v348
      %v416 = vpack.c.b16 %v385, %v384
      %v417 = vpack.c.b16 %v387, %v386
      %v418 = vpack.c.b16 %v389, %v388
      %v419 = vpack.c.b16 %v391, %v390
      %v420 = vpack.c.b16 %v393, %v392
      %v421 = vpack.c.b16 %v395, %v394
      %v422 = vpack.c.b16 %v397, %v396
      %v423 = vpack.c.b16 %v399, %v398
      %v424 = vpack.c.b16 %v401, %v400
      %v425 = vpack.c.b16 %v403, %v402
      %v426 = vpack.c.b16 %v405, %v404
      %v427 = vpack.c.b16 %v407, %v406
      %v428 = vpack.c.b16 %v409, %v408
      %v429 = vpack.c.b16 %v411, %v410
      %v430 = vpack.c.b16 %v413, %v412
      %v431 = vpack.c.b16 %v415, %v414
      %v434 = vunpack.c.l.b16 %v350
      %v435 = vunpack.c.h.b16 %v350
      %v436 = vunpack.c.l.b16 %v351
      %v437 = vunpack.c.h.b16 %v351
      %v438 = vpack.c.b16 %v436, %v434
      %v439 = vpack.c.b16 %v437, %v435
      %vm440 = vcmask 97280
      %v442 = vsel %vm440, %v416, 0
      %v445 = vsel %vm440, %v417, 0
      %v448 = vsel %vm440, %v418, 0
      %v451 = vsel %vm440, %v419, 0
      %v454 = vsel %vm440, %v420, 0
      %v457 = vsel %vm440, %v421, 0
      %v460 = vsel %vm440, %v422, 0
      %v463 = vsel %vm440, %v423, 0
      %v466 = vsel %vm440, %v424, 0
      %v469 = vsel %vm440, %v425, 0
      %v472 = vsel %vm440, %v426, 0
      %v475 = vsel %vm440, %v427, 0
      %v478 = vsel %vm440, %v428, 0
      %v481 = vsel %vm440, %v429, 0
      %v484 = vsel %vm440, %v430, 0
      %v487 = vsel %vm440, %v431, 0
      %vm489 = vcmask 1045504
      %v491 = vsel %vm489, %v438, 0
      %v494 = vsel %vm489, %v439, 0
      %496 = vmatprep.subr.bf16.mxu0 0
      %497 = vmatpush1.bf16.msra.mxu0 0
      %498 = vmatprep.subr.bf16.mxu0 0
      %499 = vmatpush1.bf16.msra.mxu0 0
      %500 = vmatprep.subr.bf16.mxu0 0
      %501 = vmatpush1.bf16.msra.mxu0 0
      %502 = vmatprep.subr.bf16.mxu0 0
      %503 = vmatpush1.bf16.msra.mxu0 0
      %504 = vmatprep.subr.bf16.mxu0 0
      %505 = vmatpush1.bf16.msra.mxu0 0
      %506 = vmatprep.subr.bf16.mxu0 0
      %507 = vmatpush1.bf16.msra.mxu0 0
      %508 = vmatprep.subr.bf16.mxu0 0
      %509 = vmatpush1.bf16.msra.mxu0 0
      %510 = vmatprep.subr.bf16.mxu0 %v494
      %511 = vmatpush1.bf16.msra.mxu0 %v491
      %512 = vmatprep.subr.bf16.mxu0 0
      %513 = vmatpush2.bf16.msra.mxu0 0
      %514 = vmatprep.subr.bf16.mxu0 0
      %515 = vmatpush2.bf16.msra.mxu0 0
      %516 = vmatprep.subr.bf16.mxu0 0
      %517 = vmatpush2.bf16.msra.mxu0 0
      %518 = vmatprep.subr.bf16.mxu0 0
      %519 = vmatpush2.bf16.msra.mxu0 0
      %520 = vmatprep.subr.bf16.mxu0 0
      %521 = vmatpush2.bf16.msra.mxu0 0
      %522 = vmatprep.subr.bf16.mxu0 0
      %523 = vmatpush2.bf16.msra.mxu0 0
      %524 = vmatprep.subr.bf16.mxu0 0
      %525 = vmatpush2.bf16.msra.mxu0 0
      %526 = vmatprep.subr.bf16.mxu0 0
      %527 = vmatpush2.bf16.msra.mxu0 0
      %528 = vmatprep.mubr.bf16.mxu0 0
      %529 = vmatmul.mubr.bf16.gmra.mxu0 %v442
      %v530 = vpop.f32.mrf.mxu0
      %v531 = vadd.f32 0.0, %v530
      %v532 = vpop.f32.mrf.mxu0
      %v533 = vadd.f32 0.0, %v532
      %v534 = vpop.f32.mrf.mxu0
      %v535 = vadd.f32 0.0, %v534
      %v536 = vpop.f32.mrf.mxu0
      %v537 = vadd.f32 0.0, %v536
      %538 = vmatprep.mubr.bf16.mxu0 0
      %539 = vmatmul.mubr.bf16.gmra.mxu0 %v445
      %v540 = vpop.f32.mrf.mxu0
      %v541 = vadd.f32 0.0, %v540
      %v542 = vpop.f32.mrf.mxu0
      %v543 = vadd.f32 0.0, %v542
      %v544 = vpop.f32.mrf.mxu0
      %v545 = vadd.f32 0.0, %v544
      %v546 = vpop.f32.mrf.mxu0
      %v547 = vadd.f32 0.0, %v546
      %548 = vmatprep.mubr.bf16.mxu0 0
      %549 = vmatmul.mubr.bf16.gmra.mxu0 %v448
      %v550 = vpop.f32.mrf.mxu0
      %v551 = vadd.f32 0.0, %v550
      %v552 = vpop.f32.mrf.mxu0
      %v553 = vadd.f32 0.0, %v552
      %v554 = vpop.f32.mrf.mxu0
      %v555 = vadd.f32 0.0, %v554
      %v556 = vpop.f32.mrf.mxu0
      %v557 = vadd.f32 0.0, %v556
      %558 = vmatprep.mubr.bf16.mxu0 0
      %559 = vmatmul.mubr.bf16.gmra.mxu0 %v451
      %v560 = vpop.f32.mrf.mxu0
      %v561 = vadd.f32 0.0, %v560
      %v562 = vpop.f32.mrf.mxu0
      %v563 = vadd.f32 0.0, %v562
      %v564 = vpop.f32.mrf.mxu0
      %v565 = vadd.f32 0.0, %v564
      %v566 = vpop.f32.mrf.mxu0
      %v567 = vadd.f32 0.0, %v566
      %568 = vmatprep.mubr.bf16.mxu0 0
      %569 = vmatmul.mubr.bf16.gmra.mxu0 %v454
      %v570 = vpop.f32.mrf.mxu0
      %v571 = vadd.f32 0.0, %v570
      %v572 = vpop.f32.mrf.mxu0
      %v573 = vadd.f32 0.0, %v572
      %v574 = vpop.f32.mrf.mxu0
      %v575 = vadd.f32 0.0, %v574
      %v576 = vpop.f32.mrf.mxu0
      %v577 = vadd.f32 0.0, %v576
      %578 = vmatprep.mubr.bf16.mxu0 0
      %579 = vmatmul.mubr.bf16.gmra.mxu0 %v457
      %v580 = vpop.f32.mrf.mxu0
      %v581 = vadd.f32 0.0, %v580
      %v582 = vpop.f32.mrf.mxu0
      %v583 = vadd.f32 0.0, %v582
      %v584 = vpop.f32.mrf.mxu0
      %v585 = vadd.f32 0.0, %v584
      %v586 = vpop.f32.mrf.mxu0
      %v587 = vadd.f32 0.0, %v586
      %588 = vmatprep.mubr.bf16.mxu0 0
      %589 = vmatmul.mubr.bf16.gmra.mxu0 %v460
      %v590 = vpop.f32.mrf.mxu0
      %v591 = vadd.f32 0.0, %v590
      %v592 = vpop.f32.mrf.mxu0
      %v593 = vadd.f32 0.0, %v592
      %v594 = vpop.f32.mrf.mxu0
      %v595 = vadd.f32 0.0, %v594
      %v596 = vpop.f32.mrf.mxu0
      %v597 = vadd.f32 0.0, %v596
      %598 = vmatprep.mubr.bf16.mxu0 0
      %599 = vmatmul.mubr.bf16.gmra.mxu0 %v463
      %v600 = vpop.f32.mrf.mxu0
      %v601 = vadd.f32 0.0, %v600
      %v602 = vpop.f32.mrf.mxu0
      %v603 = vadd.f32 0.0, %v602
      %v604 = vpop.f32.mrf.mxu0
      %v605 = vadd.f32 0.0, %v604
      %v606 = vpop.f32.mrf.mxu0
      %v607 = vadd.f32 0.0, %v606
      %608 = vmatprep.mubr.bf16.mxu0 0
      %609 = vmatmul.mubr.bf16.gmra.mxu0 %v466
      %v610 = vpop.f32.mrf.mxu0
      %v611 = vadd.f32 0.0, %v610
      %v612 = vpop.f32.mrf.mxu0
      %v613 = vadd.f32 0.0, %v612
      %v614 = vpop.f32.mrf.mxu0
      %v615 = vadd.f32 0.0, %v614
      %v616 = vpop.f32.mrf.mxu0
      %v617 = vadd.f32 0.0, %v616
      %618 = vmatprep.mubr.bf16.mxu0 0
      %619 = vmatmul.mubr.bf16.gmra.mxu0 %v469
      %v620 = vpop.f32.mrf.mxu0
      %v621 = vadd.f32 0.0, %v620
      %v622 = vpop.f32.mrf.mxu0
      %v623 = vadd.f32 0.0, %v622
      %v624 = vpop.f32.mrf.mxu0
      %v625 = vadd.f32 0.0, %v624
      %v626 = vpop.f32.mrf.mxu0
      %v627 = vadd.f32 0.0, %v626
      %628 = vmatprep.mubr.bf16.mxu0 0
      %629 = vmatmul.mubr.bf16.gmra.mxu0 %v472
      %v630 = vpop.f32.mrf.mxu0
      %v631 = vadd.f32 0.0, %v630
      %v632 = vpop.f32.mrf.mxu0
      %v633 = vadd.f32 0.0, %v632
      %v634 = vpop.f32.mrf.mxu0
      %v635 = vadd.f32 0.0, %v634
      %v636 = vpop.f32.mrf.mxu0
      %v637 = vadd.f32 0.0, %v636
      %638 = vmatprep.mubr.bf16.mxu0 0
      %639 = vmatmul.mubr.bf16.gmra.mxu0 %v475
      %v640 = vpop.f32.mrf.mxu0
      %v641 = vadd.f32 0.0, %v640
      %v642 = vpop.f32.mrf.mxu0
      %v643 = vadd.f32 0.0, %v642
      %v644 = vpop.f32.mrf.mxu0
      %v645 = vadd.f32 0.0, %v644
      %v646 = vpop.f32.mrf.mxu0
      %v647 = vadd.f32 0.0, %v646
      %648 = vmatprep.mubr.bf16.mxu0 0
      %649 = vmatmul.mubr.bf16.gmra.mxu0 %v478
      %v650 = vpop.f32.mrf.mxu0
      %v651 = vadd.f32 0.0, %v650
      %v652 = vpop.f32.mrf.mxu0
      %v653 = vadd.f32 0.0, %v652
      %v654 = vpop.f32.mrf.mxu0
      %v655 = vadd.f32 0.0, %v654
      %v656 = vpop.f32.mrf.mxu0
      %v657 = vadd.f32 0.0, %v656
      %658 = vmatprep.mubr.bf16.mxu0 0
      %659 = vmatmul.mubr.bf16.gmra.mxu0 %v481
      %v660 = vpop.f32.mrf.mxu0
      %v661 = vadd.f32 0.0, %v660
      %v662 = vpop.f32.mrf.mxu0
      %v663 = vadd.f32 0.0, %v662
      %v664 = vpop.f32.mrf.mxu0
      %v665 = vadd.f32 0.0, %v664
      %v666 = vpop.f32.mrf.mxu0
      %v667 = vadd.f32 0.0, %v666
      %668 = vmatprep.mubr.bf16.mxu0 0
      %669 = vmatmul.mubr.bf16.gmra.mxu0 %v484
      %v670 = vpop.f32.mrf.mxu0
      %v671 = vadd.f32 0.0, %v670
      %v672 = vpop.f32.mrf.mxu0
      %v673 = vadd.f32 0.0, %v672
      %v674 = vpop.f32.mrf.mxu0
      %v675 = vadd.f32 0.0, %v674
      %v676 = vpop.f32.mrf.mxu0
      %v677 = vadd.f32 0.0, %v676
      %678 = vmatprep.mubr.bf16.mxu0 0
      %679 = vmatmul.mubr.bf16.gmra.mxu0 %v487
      %v680 = vpop.f32.mrf.mxu0
      %v681 = vadd.f32 0.0, %v680
      %v682 = vpop.f32.mrf.mxu0
      %v683 = vadd.f32 0.0, %v682
      %v684 = vpop.f32.mrf.mxu0
      %v685 = vadd.f32 0.0, %v684
      %v686 = vpop.f32.mrf.mxu0
      %v687 = vadd.f32 0.0, %v686
      %688 = vdwg.mxu0
      %v691 = vunpack.c.l.b16 %v313
      %v692 = vunpack.c.l.b16 %v314
      %v693 = vpack.c.b16 %v692, %v691
      %v696 = vunpack.c.l.b16 %v345
      %v697 = vunpack.c.h.b16 %v345
      %v698 = vunpack.c.l.b16 %v346
      %v699 = vunpack.c.h.b16 %v346
      %v700 = vpack.c.b16 %v698, %v696
      %v701 = vpack.c.b16 %v699, %v697
      %v703 = vsel %vm440, %v693, 0
      %v706 = vsel %vm489, %v700, 0
      %v709 = vsel %vm489, %v701, 0
      %711 = vmatprep.subr.bf16.mxu0 0
      %712 = vmatpush1.bf16.msra.mxu0 0
      %713 = vmatprep.subr.bf16.mxu0 0
      %714 = vmatpush1.bf16.msra.mxu0 0
      %715 = vmatprep.subr.bf16.mxu0 0
      %716 = vmatpush1.bf16.msra.mxu0 0
      %717 = vmatprep.subr.bf16.mxu0 0
      %718 = vmatpush1.bf16.msra.mxu0 0
      %719 = vmatprep.subr.bf16.mxu0 0
      %720 = vmatpush1.bf16.msra.mxu0 0
      %721 = vmatprep.subr.bf16.mxu0 0
      %722 = vmatpush1.bf16.msra.mxu0 0
      %723 = vmatprep.subr.bf16.mxu0 0
      %724 = vmatpush1.bf16.msra.mxu0 0
      %725 = vmatprep.subr.bf16.mxu0 %v709
      %726 = vmatpush1.bf16.msra.mxu0 %v706
      %727 = vmatprep.subr.bf16.mxu0 0
      %728 = vmatpush2.bf16.msra.mxu0 0
      %729 = vmatprep.subr.bf16.mxu0 0
      %730 = vmatpush2.bf16.msra.mxu0 0
      %731 = vmatprep.subr.bf16.mxu0 0
      %732 = vmatpush2.bf16.msra.mxu0 0
      %733 = vmatprep.subr.bf16.mxu0 0
      %734 = vmatpush2.bf16.msra.mxu0 0
      %735 = vmatprep.subr.bf16.mxu0 0
      %736 = vmatpush2.bf16.msra.mxu0 0
      %737 = vmatprep.subr.bf16.mxu0 0
      %738 = vmatpush2.bf16.msra.mxu0 0
      %739 = vmatprep.subr.bf16.mxu0 0
      %740 = vmatpush2.bf16.msra.mxu0 0
      %741 = vmatprep.subr.bf16.mxu0 0
      %742 = vmatpush2.bf16.msra.mxu0 0
      %743 = vmatprep.mubr.bf16.mxu0 0
      %744 = vmatmul.mubr.bf16.gmra.mxu0 %v703
      %v745 = vpop.f32.mrf.mxu0
      %v746 = vadd.f32 %v531, %v745
      %v747 = vpop.f32.mrf.mxu0
      %v748 = vadd.f32 %v533, %v747
      %v749 = vpop.f32.mrf.mxu0
      %v750 = vadd.f32 %v535, %v749
      %v751 = vpop.f32.mrf.mxu0
      %v752 = vadd.f32 %v537, %v751
      %753 = vmatprep.mubr.bf16.mxu0 0
      %754 = vmatmul.mubr.bf16.gmra.mxu0 %v442
      %v755 = vpop.f32.mrf.mxu0
      %v756 = vadd.f32 %v541, %v755
      %v757 = vpop.f32.mrf.mxu0
      %v758 = vadd.f32 %v543, %v757
      %v759 = vpop.f32.mrf.mxu0
      %v760 = vadd.f32 %v545, %v759
      %v761 = vpop.f32.mrf.mxu0
      %v762 = vadd.f32 %v547, %v761
      %763 = vmatprep.mubr.bf16.mxu0 0
      %764 = vmatmul.mubr.bf16.gmra.mxu0 %v445
      %v765 = vpop.f32.mrf.mxu0
      %v766 = vadd.f32 %v551, %v765
      %v767 = vpop.f32.mrf.mxu0
      %v768 = vadd.f32 %v553, %v767
      %v769 = vpop.f32.mrf.mxu0
      %v770 = vadd.f32 %v555, %v769
      %v771 = vpop.f32.mrf.mxu0
      %v772 = vadd.f32 %v557, %v771
      %773 = vmatprep.mubr.bf16.mxu0 0
      %774 = vmatmul.mubr.bf16.gmra.mxu0 %v448
      %v775 = vpop.f32.mrf.mxu0
      %v776 = vadd.f32 %v561, %v775
      %v777 = vpop.f32.mrf.mxu0
      %v778 = vadd.f32 %v563, %v777
      %v779 = vpop.f32.mrf.mxu0
      %v780 = vadd.f32 %v565, %v779
      %v781 = vpop.f32.mrf.mxu0
      %v782 = vadd.f32 %v567, %v781
      %783 = vmatprep.mubr.bf16.mxu0 0
      %784 = vmatmul.mubr.bf16.gmra.mxu0 %v451
      %v785 = vpop.f32.mrf.mxu0
      %v786 = vadd.f32 %v571, %v785
      %v787 = vpop.f32.mrf.mxu0
      %v788 = vadd.f32 %v573, %v787
      %v789 = vpop.f32.mrf.mxu0
      %v790 = vadd.f32 %v575, %v789
      %v791 = vpop.f32.mrf.mxu0
      %v792 = vadd.f32 %v577, %v791
      %793 = vmatprep.mubr.bf16.mxu0 0
      %794 = vmatmul.mubr.bf16.gmra.mxu0 %v454
      %v795 = vpop.f32.mrf.mxu0
      %v796 = vadd.f32 %v581, %v795
      %v797 = vpop.f32.mrf.mxu0
      %v798 = vadd.f32 %v583, %v797
      %v799 = vpop.f32.mrf.mxu0
      %v800 = vadd.f32 %v585, %v799
      %v801 = vpop.f32.mrf.mxu0
      %v802 = vadd.f32 %v587, %v801
      %803 = vmatprep.mubr.bf16.mxu0 0
      %804 = vmatmul.mubr.bf16.gmra.mxu0 %v457
      %v805 = vpop.f32.mrf.mxu0
      %v806 = vadd.f32 %v591, %v805
      %v807 = vpop.f32.mrf.mxu0
      %v808 = vadd.f32 %v593, %v807
      %v809 = vpop.f32.mrf.mxu0
      %v810 = vadd.f32 %v595, %v809
      %v811 = vpop.f32.mrf.mxu0
      %v812 = vadd.f32 %v597, %v811
      %813 = vmatprep.mubr.bf16.mxu0 0
      %814 = vmatmul.mubr.bf16.gmra.mxu0 %v460
      %v815 = vpop.f32.mrf.mxu0
      %v816 = vadd.f32 %v601, %v815
      %v817 = vpop.f32.mrf.mxu0
      %v818 = vadd.f32 %v603, %v817
      %v819 = vpop.f32.mrf.mxu0
      %v820 = vadd.f32 %v605, %v819
      %v821 = vpop.f32.mrf.mxu0
      %v822 = vadd.f32 %v607, %v821
      %823 = vmatprep.mubr.bf16.mxu0 0
      %824 = vmatmul.mubr.bf16.gmra.mxu0 %v463
      %v825 = vpop.f32.mrf.mxu0
      %v826 = vadd.f32 %v611, %v825
      %v827 = vpop.f32.mrf.mxu0
      %v828 = vadd.f32 %v613, %v827
      %v829 = vpop.f32.mrf.mxu0
      %v830 = vadd.f32 %v615, %v829
      %v831 = vpop.f32.mrf.mxu0
      %v832 = vadd.f32 %v617, %v831
      %833 = vmatprep.mubr.bf16.mxu0 0
      %834 = vmatmul.mubr.bf16.gmra.mxu0 %v466
      %v835 = vpop.f32.mrf.mxu0
      %v836 = vadd.f32 %v621, %v835
      %v837 = vpop.f32.mrf.mxu0
      %v838 = vadd.f32 %v623, %v837
      %v839 = vpop.f32.mrf.mxu0
      %v840 = vadd.f32 %v625, %v839
      %v841 = vpop.f32.mrf.mxu0
      %v842 = vadd.f32 %v627, %v841
      %843 = vmatprep.mubr.bf16.mxu0 0
      %844 = vmatmul.mubr.bf16.gmra.mxu0 %v469
      %v845 = vpop.f32.mrf.mxu0
      %v846 = vadd.f32 %v631, %v845
      %v847 = vpop.f32.mrf.mxu0
      %v848 = vadd.f32 %v633, %v847
      %v849 = vpop.f32.mrf.mxu0
      %v850 = vadd.f32 %v635, %v849
      %v851 = vpop.f32.mrf.mxu0
      %v852 = vadd.f32 %v637, %v851
      %853 = vmatprep.mubr.bf16.mxu0 0
      %854 = vmatmul.mubr.bf16.gmra.mxu0 %v472
      %v855 = vpop.f32.mrf.mxu0
      %v856 = vadd.f32 %v641, %v855
      %v857 = vpop.f32.mrf.mxu0
      %v858 = vadd.f32 %v643, %v857
      %v859 = vpop.f32.mrf.mxu0
      %v860 = vadd.f32 %v645, %v859
      %v861 = vpop.f32.mrf.mxu0
      %v862 = vadd.f32 %v647, %v861
      %863 = vmatprep.mubr.bf16.mxu0 0
      %864 = vmatmul.mubr.bf16.gmra.mxu0 %v475
      %v865 = vpop.f32.mrf.mxu0
      %v866 = vadd.f32 %v651, %v865
      %v867 = vpop.f32.mrf.mxu0
      %v868 = vadd.f32 %v653, %v867
      %v869 = vpop.f32.mrf.mxu0
      %v870 = vadd.f32 %v655, %v869
      %v871 = vpop.f32.mrf.mxu0
      %v872 = vadd.f32 %v657, %v871
      %873 = vmatprep.mubr.bf16.mxu0 0
      %874 = vmatmul.mubr.bf16.gmra.mxu0 %v478
      %v875 = vpop.f32.mrf.mxu0
      %v876 = vadd.f32 %v661, %v875
      %v877 = vpop.f32.mrf.mxu0
      %v878 = vadd.f32 %v663, %v877
      %v879 = vpop.f32.mrf.mxu0
      %v880 = vadd.f32 %v665, %v879
      %v881 = vpop.f32.mrf.mxu0
      %v882 = vadd.f32 %v667, %v881
      %883 = vmatprep.mubr.bf16.mxu0 0
      %884 = vmatmul.mubr.bf16.gmra.mxu0 %v481
      %v885 = vpop.f32.mrf.mxu0
      %v886 = vadd.f32 %v671, %v885
      %v887 = vpop.f32.mrf.mxu0
      %v888 = vadd.f32 %v673, %v887
      %v889 = vpop.f32.mrf.mxu0
      %v890 = vadd.f32 %v675, %v889
      %v891 = vpop.f32.mrf.mxu0
      %v892 = vadd.f32 %v677, %v891
      %893 = vmatprep.mubr.bf16.mxu0 0
      %894 = vmatmul.mubr.bf16.gmra.mxu0 %v484
      %v895 = vpop.f32.mrf.mxu0
      %v896 = vadd.f32 %v681, %v895
      %v897 = vpop.f32.mrf.mxu0
      %v898 = vadd.f32 %v683, %v897
      %v899 = vpop.f32.mrf.mxu0
      %v900 = vadd.f32 %v685, %v899
      %v901 = vpop.f32.mrf.mxu0
      %v902 = vadd.f32 %v687, %v901
      %903 = vdwg.mxu0
      %v904 = vld [vmem:[%s304 + $0x10] sm:$0xf]
      %v905 = vld [vmem:[%s304 + $0x14] sm:$0xf]
      %v906 = vld [vmem:[%s304 + $0x18] sm:$0xf]
      %v907 = vld [vmem:[%s304 + $0x1c] sm:$0xf]
      %v908 = vld [vmem:[%s304 + $0x20] sm:$0xf]
      %v909 = vld [vmem:[%s304 + $0x24] sm:$0xf]
      %v910 = vld [vmem:[%s304 + $0x28] sm:$0xf]
      %v911 = vld [vmem:[%s304 + $0x2c] sm:$0xf]
      %v912 = vld [vmem:[%s304 + $0x30] sm:$0xf]
      %v913 = vld [vmem:[%s304 + $0x34] sm:$0xf]
      %v914 = vld [vmem:[%s304 + $0x38] sm:$0xf]
      %v915 = vld [vmem:[%s304 + $0x3c] sm:$0xf]
      %v916 = vld [vmem:[%s304 + $0x40] sm:$0xf]
      %v917 = vld [vmem:[%s304 + $0x44] sm:$0xf]
      %v918 = vld [vmem:[%s304 + $0x48] sm:$0xf]
      %v919 = vld [vmem:[%s304 + $0x4c] sm:$0xf]
      %v920 = vld [vmem:[%s304 + $0x50] sm:$0xf]
      %v921 = vld [vmem:[%s304 + $0x54] sm:$0xf]
      %v922 = vld [vmem:[%s304 + $0x58] sm:$0xf]
      %v923 = vld [vmem:[%s304 + $0x5c] sm:$0xf]
      %v924 = vld [vmem:[%s304 + $0x60] sm:$0xf]
      %v925 = vld [vmem:[%s304 + $0x64] sm:$0xf]
      %v926 = vld [vmem:[%s304 + $0x68] sm:$0xf]
      %v927 = vld [vmem:[%s304 + $0x6c] sm:$0xf]
      %v928 = vld [vmem:[%s304 + $0x70] sm:$0xf]
      %v929 = vld [vmem:[%s304 + $0x74] sm:$0xf]
      %v930 = vld [vmem:[%s304 + $0x78] sm:$0xf]
      %v931 = vld [vmem:[%s304 + $0x7c] sm:$0xf]
      %v932 = vld [vmem:[%s304 + $0x80] sm:$0xf]
      %v933 = vld [vmem:[%s304 + $0x84] sm:$0xf]
      %v934 = vld [vmem:[%s304 + $0x88] sm:$0xf]
      %v935 = vld [vmem:[%s304 + $0x8c] sm:$0xf]
      %s936 = scalar_lea.vmem %s1, 32
      %v937 = vld [vmem:[%s936] sm:$0xff]
      %v938 = vld [vmem:[%s936 + $0x8] sm:$0x33]
      %v971 = vunpack.c.l.b16 %v904
      %v972 = vunpack.c.l.b16 %v905
      %v973 = vunpack.c.l.b16 %v906
      %v974 = vunpack.c.l.b16 %v907
      %v975 = vunpack.c.l.b16 %v908
      %v976 = vunpack.c.l.b16 %v909
      %v977 = vunpack.c.l.b16 %v910
      %v978 = vunpack.c.l.b16 %v911
      %v979 = vunpack.c.l.b16 %v912
      %v980 = vunpack.c.l.b16 %v913
      %v981 = vunpack.c.l.b16 %v914
      %v982 = vunpack.c.l.b16 %v915
      %v983 = vunpack.c.l.b16 %v916
      %v984 = vunpack.c.l.b16 %v917
      %v985 = vunpack.c.l.b16 %v918
      %v986 = vunpack.c.l.b16 %v919
      %v987 = vunpack.c.l.b16 %v920
      %v988 = vunpack.c.l.b16 %v921
      %v989 = vunpack.c.l.b16 %v922
      %v990 = vunpack.c.l.b16 %v923
      %v991 = vunpack.c.l.b16 %v924
      %v992 = vunpack.c.l.b16 %v925
      %v993 = vunpack.c.l.b16 %v926
      %v994 = vunpack.c.l.b16 %v927
      %v995 = vunpack.c.l.b16 %v928
      %v996 = vunpack.c.l.b16 %v929
      %v997 = vunpack.c.l.b16 %v930
      %v998 = vunpack.c.l.b16 %v931
      %v999 = vunpack.c.l.b16 %v932
      %v1000 = vunpack.c.l.b16 %v933
      %v1001 = vunpack.c.l.b16 %v934
      %v1002 = vunpack.c.l.b16 %v935
      %v1003 = vpack.c.b16 %v972, %v971
      %v1004 = vpack.c.b16 %v974, %v973
      %v1005 = vpack.c.b16 %v976, %v975
      %v1006 = vpack.c.b16 %v978, %v977
      %v1007 = vpack.c.b16 %v980, %v979
      %v1008 = vpack.c.b16 %v982, %v981
      %v1009 = vpack.c.b16 %v984, %v983
      %v1010 = vpack.c.b16 %v986, %v985
      %v1011 = vpack.c.b16 %v988, %v987
      %v1012 = vpack.c.b16 %v990, %v989
      %v1013 = vpack.c.b16 %v992, %v991
      %v1014 = vpack.c.b16 %v994, %v993
      %v1015 = vpack.c.b16 %v996, %v995
      %v1016 = vpack.c.b16 %v998, %v997
      %v1017 = vpack.c.b16 %v1000, %v999
      %v1018 = vpack.c.b16 %v1002, %v1001
      %v1021 = vunpack.c.l.b16 %v937
      %v1022 = vunpack.c.h.b16 %v937
      %v1023 = vunpack.c.l.b16 %v938
      %v1024 = vunpack.c.h.b16 %v938
      %v1025 = vpack.c.b16 %v1023, %v1021
      %v1026 = vpack.c.b16 %v1024, %v1022
      %v1028 = vsel %vm440, %v1003, 0
      %v1031 = vsel %vm440, %v1004, 0
      %v1034 = vsel %vm440, %v1005, 0
      %v1037 = vsel %vm440, %v1006, 0
      %v1040 = vsel %vm440, %v1007, 0
      %v1043 = vsel %vm440, %v1008, 0
      %v1046 = vsel %vm440, %v1009, 0
      %v1049 = vsel %vm440, %v1010, 0
      %v1052 = vsel %vm440, %v1011, 0
      %v1055 = vsel %vm440, %v1012, 0
      %v1058 = vsel %vm440, %v1013, 0
      %v1061 = vsel %vm440, %v1014, 0
      %v1064 = vsel %vm440, %v1015, 0
      %v1067 = vsel %vm440, %v1016, 0
      %v1070 = vsel %vm440, %v1017, 0
      %v1073 = vsel %vm440, %v1018, 0
      %v1076 = vsel %vm489, %v1025, 0
      %v1079 = vsel %vm489, %v1026, 0
      %1081 = vmatprep.subr.bf16.mxu0 0
      %1082 = vmatpush1.bf16.msra.mxu0 0
      %1083 = vmatprep.subr.bf16.mxu0 0
      %1084 = vmatpush1.bf16.msra.mxu0 0
      %1085 = vmatprep.subr.bf16.mxu0 0
      %1086 = vmatpush1.bf16.msra.mxu0 0
      %1087 = vmatprep.subr.bf16.mxu0 0
      %1088 = vmatpush1.bf16.msra.mxu0 0
      %1089 = vmatprep.subr.bf16.mxu0 0
      %1090 = vmatpush1.bf16.msra.mxu0 0
      %1091 = vmatprep.subr.bf16.mxu0 0
      %1092 = vmatpush1.bf16.msra.mxu0 0
      %1093 = vmatprep.subr.bf16.mxu0 0
      %1094 = vmatpush1.bf16.msra.mxu0 0
      %1095 = vmatprep.subr.bf16.mxu0 %v1079
      %1096 = vmatpush1.bf16.msra.mxu0 %v1076
      %1097 = vmatprep.subr.bf16.mxu0 0
      %1098 = vmatpush2.bf16.msra.mxu0 0
      %1099 = vmatprep.subr.bf16.mxu0 0
      %1100 = vmatpush2.bf16.msra.mxu0 0
      %1101 = vmatprep.subr.bf16.mxu0 0
      %1102 = vmatpush2.bf16.msra.mxu0 0
      %1103 = vmatprep.subr.bf16.mxu0 0
      %1104 = vmatpush2.bf16.msra.mxu0 0
      %1105 = vmatprep.subr.bf16.mxu0 0
      %1106 = vmatpush2.bf16.msra.mxu0 0
      %1107 = vmatprep.subr.bf16.mxu0 0
      %1108 = vmatpush2.bf16.msra.mxu0 0
      %1109 = vmatprep.subr.bf16.mxu0 0
      %1110 = vmatpush2.bf16.msra.mxu0 0
      %1111 = vmatprep.subr.bf16.mxu0 0
      %1112 = vmatpush2.bf16.msra.mxu0 0
      %1113 = vmatprep.mubr.bf16.mxu0 0
      %1114 = vmatmul.mubr.bf16.gmra.mxu0 %v1028
      %v1115 = vpop.f32.mrf.mxu0
      %v1116 = vadd.f32 0.0, %v1115
      %v1117 = vpop.f32.mrf.mxu0
      %v1118 = vadd.f32 0.0, %v1117
      %v1119 = vpop.f32.mrf.mxu0
      %v1120 = vadd.f32 0.0, %v1119
      %v1121 = vpop.f32.mrf.mxu0
      %v1122 = vadd.f32 0.0, %v1121
      %1123 = vmatprep.mubr.bf16.mxu0 0
      %1124 = vmatmul.mubr.bf16.gmra.mxu0 %v1031
      %v1125 = vpop.f32.mrf.mxu0
      %v1126 = vadd.f32 0.0, %v1125
      %v1127 = vpop.f32.mrf.mxu0
      %v1128 = vadd.f32 0.0, %v1127
      %v1129 = vpop.f32.mrf.mxu0
      %v1130 = vadd.f32 0.0, %v1129
      %v1131 = vpop.f32.mrf.mxu0
      %v1132 = vadd.f32 0.0, %v1131
      %1133 = vmatprep.mubr.bf16.mxu0 0
      %1134 = vmatmul.mubr.bf16.gmra.mxu0 %v1034
      %v1135 = vpop.f32.mrf.mxu0
      %v1136 = vadd.f32 0.0, %v1135
      %v1137 = vpop.f32.mrf.mxu0
      %v1138 = vadd.f32 0.0, %v1137
      %v1139 = vpop.f32.mrf.mxu0
      %v1140 = vadd.f32 0.0, %v1139
      %v1141 = vpop.f32.mrf.mxu0
      %v1142 = vadd.f32 0.0, %v1141
      %1143 = vmatprep.mubr.bf16.mxu0 0
      %1144 = vmatmul.mubr.bf16.gmra.mxu0 %v1037
      %v1145 = vpop.f32.mrf.mxu0
      %v1146 = vadd.f32 0.0, %v1145
      %v1147 = vpop.f32.mrf.mxu0
      %v1148 = vadd.f32 0.0, %v1147
      %v1149 = vpop.f32.mrf.mxu0
      %v1150 = vadd.f32 0.0, %v1149
      %v1151 = vpop.f32.mrf.mxu0
      %v1152 = vadd.f32 0.0, %v1151
      %1153 = vmatprep.mubr.bf16.mxu0 0
      %1154 = vmatmul.mubr.bf16.gmra.mxu0 %v1040
      %v1155 = vpop.f32.mrf.mxu0
      %v1156 = vadd.f32 0.0, %v1155
      %v1157 = vpop.f32.mrf.mxu0
      %v1158 = vadd.f32 0.0, %v1157
      %v1159 = vpop.f32.mrf.mxu0
      %v1160 = vadd.f32 0.0, %v1159
      %v1161 = vpop.f32.mrf.mxu0
      %v1162 = vadd.f32 0.0, %v1161
      %1163 = vmatprep.mubr.bf16.mxu0 0
      %1164 = vmatmul.mubr.bf16.gmra.mxu0 %v1043
      %v1165 = vpop.f32.mrf.mxu0
      %v1166 = vadd.f32 0.0, %v1165
      %v1167 = vpop.f32.mrf.mxu0
      %v1168 = vadd.f32 0.0, %v1167
      %v1169 = vpop.f32.mrf.mxu0
      %v1170 = vadd.f32 0.0, %v1169
      %v1171 = vpop.f32.mrf.mxu0
      %v1172 = vadd.f32 0.0, %v1171
      %1173 = vmatprep.mubr.bf16.mxu0 0
      %1174 = vmatmul.mubr.bf16.gmra.mxu0 %v1046
      %v1175 = vpop.f32.mrf.mxu0
      %v1176 = vadd.f32 0.0, %v1175
      %v1177 = vpop.f32.mrf.mxu0
      %v1178 = vadd.f32 0.0, %v1177
      %v1179 = vpop.f32.mrf.mxu0
      %v1180 = vadd.f32 0.0, %v1179
      %v1181 = vpop.f32.mrf.mxu0
      %v1182 = vadd.f32 0.0, %v1181
      %1183 = vmatprep.mubr.bf16.mxu0 0
      %1184 = vmatmul.mubr.bf16.gmra.mxu0 %v1049
      %v1185 = vpop.f32.mrf.mxu0
      %v1186 = vadd.f32 0.0, %v1185
      %v1187 = vpop.f32.mrf.mxu0
      %v1188 = vadd.f32 0.0, %v1187
      %v1189 = vpop.f32.mrf.mxu0
      %v1190 = vadd.f32 0.0, %v1189
      %v1191 = vpop.f32.mrf.mxu0
      %v1192 = vadd.f32 0.0, %v1191
      %1193 = vmatprep.mubr.bf16.mxu0 0
      %1194 = vmatmul.mubr.bf16.gmra.mxu0 %v1052
      %v1195 = vpop.f32.mrf.mxu0
      %v1196 = vadd.f32 0.0, %v1195
      %v1197 = vpop.f32.mrf.mxu0
      %v1198 = vadd.f32 0.0, %v1197
      %v1199 = vpop.f32.mrf.mxu0
      %v1200 = vadd.f32 0.0, %v1199
      %v1201 = vpop.f32.mrf.mxu0
      %v1202 = vadd.f32 0.0, %v1201
      %1203 = vmatprep.mubr.bf16.mxu0 0
      %1204 = vmatmul.mubr.bf16.gmra.mxu0 %v1055
      %v1205 = vpop.f32.mrf.mxu0
      %v1206 = vadd.f32 0.0, %v1205
      %v1207 = vpop.f32.mrf.mxu0
      %v1208 = vadd.f32 0.0, %v1207
      %v1209 = vpop.f32.mrf.mxu0
      %v1210 = vadd.f32 0.0, %v1209
      %v1211 = vpop.f32.mrf.mxu0
      %v1212 = vadd.f32 0.0, %v1211
      %1213 = vmatprep.mubr.bf16.mxu0 0
      %1214 = vmatmul.mubr.bf16.gmra.mxu0 %v1058
      %v1215 = vpop.f32.mrf.mxu0
      %v1216 = vadd.f32 0.0, %v1215
      %v1217 = vpop.f32.mrf.mxu0
      %v1218 = vadd.f32 0.0, %v1217
      %v1219 = vpop.f32.mrf.mxu0
      %v1220 = vadd.f32 0.0, %v1219
      %v1221 = vpop.f32.mrf.mxu0
      %v1222 = vadd.f32 0.0, %v1221
      %1223 = vmatprep.mubr.bf16.mxu0 0
      %1224 = vmatmul.mubr.bf16.gmra.mxu0 %v1061
      %v1225 = vpop.f32.mrf.mxu0
      %v1226 = vadd.f32 0.0, %v1225
      %v1227 = vpop.f32.mrf.mxu0
      %v1228 = vadd.f32 0.0, %v1227
      %v1229 = vpop.f32.mrf.mxu0
      %v1230 = vadd.f32 0.0, %v1229
      %v1231 = vpop.f32.mrf.mxu0
      %v1232 = vadd.f32 0.0, %v1231
      %1233 = vmatprep.mubr.bf16.mxu0 0
      %1234 = vmatmul.mubr.bf16.gmra.mxu0 %v1064
      %v1235 = vpop.f32.mrf.mxu0
      %v1236 = vadd.f32 0.0, %v1235
      %v1237 = vpop.f32.mrf.mxu0
      %v1238 = vadd.f32 0.0, %v1237
      %v1239 = vpop.f32.mrf.mxu0
      %v1240 = vadd.f32 0.0, %v1239
      %v1241 = vpop.f32.mrf.mxu0
      %v1242 = vadd.f32 0.0, %v1241
      %1243 = vmatprep.mubr.bf16.mxu0 0
      %1244 = vmatmul.mubr.bf16.gmra.mxu0 %v1067
      %v1245 = vpop.f32.mrf.mxu0
      %v1246 = vadd.f32 0.0, %v1245
      %v1247 = vpop.f32.mrf.mxu0
      %v1248 = vadd.f32 0.0, %v1247
      %v1249 = vpop.f32.mrf.mxu0
      %v1250 = vadd.f32 0.0, %v1249
      %v1251 = vpop.f32.mrf.mxu0
      %v1252 = vadd.f32 0.0, %v1251
      %1253 = vmatprep.mubr.bf16.mxu0 0
      %1254 = vmatmul.mubr.bf16.gmra.mxu0 %v1070
      %v1255 = vpop.f32.mrf.mxu0
      %v1256 = vadd.f32 0.0, %v1255
      %v1257 = vpop.f32.mrf.mxu0
      %v1258 = vadd.f32 0.0, %v1257
      %v1259 = vpop.f32.mrf.mxu0
      %v1260 = vadd.f32 0.0, %v1259
      %v1261 = vpop.f32.mrf.mxu0
      %v1262 = vadd.f32 0.0, %v1261
      %1263 = vmatprep.mubr.bf16.mxu0 0
      %1264 = vmatmul.mubr.bf16.gmra.mxu0 %v1073
      %v1265 = vpop.f32.mrf.mxu0
      %v1266 = vadd.f32 0.0, %v1265
      %v1267 = vpop.f32.mrf.mxu0
      %v1268 = vadd.f32 0.0, %v1267
      %v1269 = vpop.f32.mrf.mxu0
      %v1270 = vadd.f32 0.0, %v1269
      %v1271 = vpop.f32.mrf.mxu0
      %v1272 = vadd.f32 0.0, %v1271
      %1273 = vdwg.mxu0
      %v1274 = vadd.f32 %v746, %v1116
      %v1275 = vadd.f32 %v748, %v1118
      %v1276 = vadd.f32 %v750, %v1120
      %v1277 = vadd.f32 %v752, %v1122
      %v1278 = vadd.f32 %v756, %v1126
      %v1279 = vadd.f32 %v758, %v1128
      %v1280 = vadd.f32 %v760, %v1130
      %v1281 = vadd.f32 %v762, %v1132
      %v1282 = vadd.f32 %v766, %v1136
      %v1283 = vadd.f32 %v768, %v1138
      %v1284 = vadd.f32 %v770, %v1140
      %v1285 = vadd.f32 %v772, %v1142
      %v1286 = vadd.f32 %v776, %v1146
      %v1287 = vadd.f32 %v778, %v1148
      %v1288 = vadd.f32 %v780, %v1150
      %v1289 = vadd.f32 %v782, %v1152
      %v1290 = vadd.f32 %v786, %v1156
      %v1291 = vadd.f32 %v788, %v1158
      %v1292 = vadd.f32 %v790, %v1160
      %v1293 = vadd.f32 %v792, %v1162
      %v1294 = vadd.f32 %v796, %v1166
      %v1295 = vadd.f32 %v798, %v1168
      %v1296 = vadd.f32 %v800, %v1170
      %v1297 = vadd.f32 %v802, %v1172
      %v1298 = vadd.f32 %v806, %v1176
      %v1299 = vadd.f32 %v808, %v1178
      %v1300 = vadd.f32 %v810, %v1180
      %v1301 = vadd.f32 %v812, %v1182
      %v1302 = vadd.f32 %v816, %v1186
      %v1303 = vadd.f32 %v818, %v1188
      %v1304 = vadd.f32 %v820, %v1190
      %v1305 = vadd.f32 %v822, %v1192
      %v1306 = vadd.f32 %v826, %v1196
      %v1307 = vadd.f32 %v828, %v1198
      %v1308 = vadd.f32 %v830, %v1200
      %v1309 = vadd.f32 %v832, %v1202
      %v1310 = vadd.f32 %v836, %v1206
      %v1311 = vadd.f32 %v838, %v1208
      %v1312 = vadd.f32 %v840, %v1210
      %v1313 = vadd.f32 %v842, %v1212
      %v1314 = vadd.f32 %v846, %v1216
      %v1315 = vadd.f32 %v848, %v1218
      %v1316 = vadd.f32 %v850, %v1220
      %v1317 = vadd.f32 %v852, %v1222
      %v1318 = vadd.f32 %v856, %v1226
      %v1319 = vadd.f32 %v858, %v1228
      %v1320 = vadd.f32 %v860, %v1230
      %v1321 = vadd.f32 %v862, %v1232
      %v1322 = vadd.f32 %v866, %v1236
      %v1323 = vadd.f32 %v868, %v1238
      %v1324 = vadd.f32 %v870, %v1240
      %v1325 = vadd.f32 %v872, %v1242
      %v1326 = vadd.f32 %v876, %v1246
      %v1327 = vadd.f32 %v878, %v1248
      %v1328 = vadd.f32 %v880, %v1250
      %v1329 = vadd.f32 %v882, %v1252
      %v1330 = vadd.f32 %v886, %v1256
      %v1331 = vadd.f32 %v888, %v1258
      %v1332 = vadd.f32 %v890, %v1260
      %v1333 = vadd.f32 %v892, %v1262
      %v1334 = vadd.f32 %v896, %v1266
      %v1335 = vadd.f32 %v898, %v1268
      %v1336 = vadd.f32 %v900, %v1270
      %v1337 = vadd.f32 %v902, %v1272
      %v1339 = vlaneseq
      %v1340 = vshrl.u32 %v1339, 7
      %v1341 = vsub.s32 0, %v1340
      %v1342 = vrot.slane %v312, %v1341
      %v1343 = vlaneseq
      %v1344 = vshrl.u32 %v1343, 7
      %v1345 = vsub.s32 1, %v1344
      %v1346 = vrot.slane %v312, %v1345
      %v1349 = vadd.f32 %v1274, %v1342
      %v1350 = vadd.f32 %v1275, %v1346
      %v1351 = vadd.f32 %v1276, %v1342
      %v1352 = vadd.f32 %v1277, %v1346
      %v1353 = vadd.f32 %v1278, %v1342
      %v1354 = vadd.f32 %v1279, %v1346
      %v1355 = vadd.f32 %v1280, %v1342
      %v1356 = vadd.f32 %v1281, %v1346
      %v1357 = vadd.f32 %v1282, %v1342
      %v1358 = vadd.f32 %v1283, %v1346
      %v1359 = vadd.f32 %v1284, %v1342
      %v1360 = vadd.f32 %v1285, %v1346
      %v1361 = vadd.f32 %v1286, %v1342
      %v1362 = vadd.f32 %v1287, %v1346
      %v1363 = vadd.f32 %v1288, %v1342
      %v1364 = vadd.f32 %v1289, %v1346
      %v1365 = vadd.f32 %v1290, %v1342
      %v1366 = vadd.f32 %v1291, %v1346
      %v1367 = vadd.f32 %v1292, %v1342
      %v1368 = vadd.f32 %v1293, %v1346
      %v1369 = vadd.f32 %v1294, %v1342
      %v1370 = vadd.f32 %v1295, %v1346
      %v1371 = vadd.f32 %v1296, %v1342
      %v1372 = vadd.f32 %v1297, %v1346
      %v1373 = vadd.f32 %v1298, %v1342
      %v1374 = vadd.f32 %v1299, %v1346
      %v1375 = vadd.f32 %v1300, %v1342
      %v1376 = vadd.f32 %v1301, %v1346
      %v1377 = vadd.f32 %v1302, %v1342
      %v1378 = vadd.f32 %v1303, %v1346
      %v1379 = vadd.f32 %v1304, %v1342
      %v1380 = vadd.f32 %v1305, %v1346
      %v1381 = vadd.f32 %v1306, %v1342
      %v1382 = vadd.f32 %v1307, %v1346
      %v1383 = vadd.f32 %v1308, %v1342
      %v1384 = vadd.f32 %v1309, %v1346
      %v1385 = vadd.f32 %v1310, %v1342
      %v1386 = vadd.f32 %v1311, %v1346
      %v1387 = vadd.f32 %v1312, %v1342
      %v1388 = vadd.f32 %v1313, %v1346
      %v1389 = vadd.f32 %v1314, %v1342
      %v1390 = vadd.f32 %v1315, %v1346
      %v1391 = vadd.f32 %v1316, %v1342
      %v1392 = vadd.f32 %v1317, %v1346
      %v1393 = vadd.f32 %v1318, %v1342
      %v1394 = vadd.f32 %v1319, %v1346
      %v1395 = vadd.f32 %v1320, %v1342
      %v1396 = vadd.f32 %v1321, %v1346
      %v1397 = vadd.f32 %v1322, %v1342
      %v1398 = vadd.f32 %v1323, %v1346
      %v1399 = vadd.f32 %v1324, %v1342
      %v1400 = vadd.f32 %v1325, %v1346
      %v1401 = vadd.f32 %v1326, %v1342
      %v1402 = vadd.f32 %v1327, %v1346
      %v1403 = vadd.f32 %v1328, %v1342
      %v1404 = vadd.f32 %v1329, %v1346
      %v1405 = vadd.f32 %v1330, %v1342
      %v1406 = vadd.f32 %v1331, %v1346
      %v1407 = vadd.f32 %v1332, %v1342
      %v1408 = vadd.f32 %v1333, %v1346
      %v1409 = vadd.f32 %v1334, %v1342
      %v1410 = vadd.f32 %v1335, %v1346
      %v1411 = vadd.f32 %v1336, %v1342
      %v1412 = vadd.f32 %v1337, %v1346
      %v1413 = vmax.f32 %v1349, 0.0
      %v1414 = vmax.f32 %v1350, 0.0
      %v1415 = vmax.f32 %v1351, 0.0
      %v1416 = vmax.f32 %v1352, 0.0
      %v1417 = vmax.f32 %v1353, 0.0
      %v1418 = vmax.f32 %v1354, 0.0
      %v1419 = vmax.f32 %v1355, 0.0
      %v1420 = vmax.f32 %v1356, 0.0
      %v1421 = vmax.f32 %v1357, 0.0
      %v1422 = vmax.f32 %v1358, 0.0
      %v1423 = vmax.f32 %v1359, 0.0
      %v1424 = vmax.f32 %v1360, 0.0
      %v1425 = vmax.f32 %v1361, 0.0
      %v1426 = vmax.f32 %v1362, 0.0
      %v1427 = vmax.f32 %v1363, 0.0
      %v1428 = vmax.f32 %v1364, 0.0
      %v1429 = vmax.f32 %v1365, 0.0
      %v1430 = vmax.f32 %v1366, 0.0
      %v1431 = vmax.f32 %v1367, 0.0
      %v1432 = vmax.f32 %v1368, 0.0
      %v1433 = vmax.f32 %v1369, 0.0
      %v1434 = vmax.f32 %v1370, 0.0
      %v1435 = vmax.f32 %v1371, 0.0
      %v1436 = vmax.f32 %v1372, 0.0
      %v1437 = vmax.f32 %v1373, 0.0
      %v1438 = vmax.f32 %v1374, 0.0
      %v1439 = vmax.f32 %v1375, 0.0
      %v1440 = vmax.f32 %v1376, 0.0
      %v1441 = vmax.f32 %v1377, 0.0
      %v1442 = vmax.f32 %v1378, 0.0
      %v1443 = vmax.f32 %v1379, 0.0
      %v1444 = vmax.f32 %v1380, 0.0
      %v1445 = vmax.f32 %v1381, 0.0
      %v1446 = vmax.f32 %v1382, 0.0
      %v1447 = vmax.f32 %v1383, 0.0
      %v1448 = vmax.f32 %v1384, 0.0
      %v1449 = vmax.f32 %v1385, 0.0
      %v1450 = vmax.f32 %v1386, 0.0
      %v1451 = vmax.f32 %v1387, 0.0
      %v1452 = vmax.f32 %v1388, 0.0
      %v1453 = vmax.f32 %v1389, 0.0
      %v1454 = vmax.f32 %v1390, 0.0
      %v1455 = vmax.f32 %v1391, 0.0
      %v1456 = vmax.f32 %v1392, 0.0
      %v1457 = vmax.f32 %v1393, 0.0
      %v1458 = vmax.f32 %v1394, 0.0
      %v1459 = vmax.f32 %v1395, 0.0
      %v1460 = vmax.f32 %v1396, 0.0
      %v1461 = vmax.f32 %v1397, 0.0
      %v1462 = vmax.f32 %v1398, 0.0
      %v1463 = vmax.f32 %v1399, 0.0
      %v1464 = vmax.f32 %v1400, 0.0
      %v1465 = vmax.f32 %v1401, 0.0
      %v1466 = vmax.f32 %v1402, 0.0
      %v1467 = vmax.f32 %v1403, 0.0
      %v1468 = vmax.f32 %v1404, 0.0
      %v1469 = vmax.f32 %v1405, 0.0
      %v1470 = vmax.f32 %v1406, 0.0
      %v1471 = vmax.f32 %v1407, 0.0
      %v1472 = vmax.f32 %v1408, 0.0
      %v1473 = vmax.f32 %v1409, 0.0
      %v1474 = vmax.f32 %v1410, 0.0
      %v1475 = vmax.f32 %v1411, 0.0
      %v1476 = vmax.f32 %v1412, 0.0
      %v1477 = vadd.f32 %v1413, %v1415
      %v1478 = vadd.f32 %v1477, %v1417
      %v1479 = vadd.f32 %v1478, %v1419
      %v1480 = vadd.f32 %v1479, %v1421
      %v1481 = vadd.f32 %v1480, %v1423
      %v1482 = vadd.f32 %v1481, %v1425
      %v1483 = vadd.f32 %v1482, %v1427
      %v1484 = vadd.f32 %v1483, %v1429
      %v1485 = vadd.f32 %v1484, %v1431
      %v1486 = vadd.f32 %v1485, %v1433
      %v1487 = vadd.f32 %v1486, %v1435
      %v1488 = vadd.f32 %v1487, %v1437
      %v1489 = vadd.f32 %v1488, %v1439
      %v1490 = vadd.f32 %v1489, %v1441
      %v1491 = vadd.f32 %v1490, %v1443
      %v1492 = vadd.f32 %v1491, %v1445
      %v1493 = vadd.f32 %v1492, %v1447
      %v1494 = vadd.f32 %v1493, %v1449
      %v1495 = vadd.f32 %v1494, %v1451
      %v1496 = vadd.f32 %v1495, %v1453
      %v1497 = vadd.f32 %v1496, %v1455
      %v1498 = vadd.f32 %v1497, %v1457
      %v1499 = vadd.f32 %v1498, %v1459
      %v1500 = vadd.f32 %v1499, %v1461
      %v1501 = vadd.f32 %v1500, %v1463
      %v1502 = vadd.f32 %v1501, %v1465
      %v1503 = vadd.f32 %v1502, %v1467
      %v1504 = vadd.f32 %v1503, %v1469
      %v1505 = vadd.f32 %v1504, %v1471
      %v1506 = vadd.f32 %v1505, %v1473
      %v1507 = vadd.f32 %v1506, %v1475
      %v1508 = vrot.slane %v1507, 4
      %v1509 = vadd.f32 %v1507, %v1508
      %v1510 = vrot.slane %v1509, 2
      %v1511 = vadd.f32 %v1509, %v1510
      %v1512 = vrot.slane %v1511, 1
      %v1513 = vadd.f32 %v1511, %v1512
      %v1514 = vadd.f32 %v1414, %v1416
      %v1515 = vadd.f32 %v1514, %v1418
      %v1516 = vadd.f32 %v1515, %v1420
      %v1517 = vadd.f32 %v1516, %v1422
      %v1518 = vadd.f32 %v1517, %v1424
      %v1519 = vadd.f32 %v1518, %v1426
      %v1520 = vadd.f32 %v1519, %v1428
      %v1521 = vadd.f32 %v1520, %v1430
      %v1522 = vadd.f32 %v1521, %v1432
      %v1523 = vadd.f32 %v1522, %v1434
      %v1524 = vadd.f32 %v1523, %v1436
      %v1525 = vadd.f32 %v1524, %v1438
      %v1526 = vadd.f32 %v1525, %v1440
      %v1527 = vadd.f32 %v1526, %v1442
      %v1528 = vadd.f32 %v1527, %v1444
      %v1529 = vadd.f32 %v1528, %v1446
      %v1530 = vadd.f32 %v1529, %v1448
      %v1531 = vadd.f32 %v1530, %v1450
      %v1532 = vadd.f32 %v1531, %v1452
      %v1533 = vadd.f32 %v1532, %v1454
      %v1534 = vadd.f32 %v1533, %v1456
      %v1535 = vadd.f32 %v1534, %v1458
      %v1536 = vadd.f32 %v1535, %v1460
      %v1537 = vadd.f32 %v1536, %v1462
      %v1538 = vadd.f32 %v1537, %v1464
      %v1539 = vadd.f32 %v1538, %v1466
      %v1540 = vadd.f32 %v1539, %v1468
      %v1541 = vadd.f32 %v1540, %v1470
      %v1542 = vadd.f32 %v1541, %v1472
      %v1543 = vadd.f32 %v1542, %v1474
      %v1544 = vadd.f32 %v1543, %v1476
      %v1545 = vrot.slane %v1544, 4
      %v1546 = vadd.f32 %v1544, %v1545
      %v1547 = vrot.slane %v1546, 2
      %v1548 = vadd.f32 %v1546, %v1547
      %v1549 = vrot.slane %v1548, 1
      %v1550 = vadd.f32 %v1548, %v1549
      %s1551 = scalar_lea.vmem %s304, 144
      %v1552 = vld [vmem:[%s1551] sm:$0xf]
      %v1553 = vld [vmem:[%s1551 + $0x4] sm:$0xf]
      %v1554 = vld [vmem:[%s1551 + $0x8] sm:$0xf]
      %v1555 = vld [vmem:[%s1551 + $0xc] sm:$0xf]
      %v1556 = vld [vmem:[%s1551 + $0x10] sm:$0xf]
      %v1557 = vld [vmem:[%s1551 + $0x14] sm:$0xf]
      %v1558 = vld [vmem:[%s1551 + $0x18] sm:$0xf]
      %v1559 = vld [vmem:[%s1551 + $0x1c] sm:$0xf]
      %v1560 = vld [vmem:[%s1551 + $0x20] sm:$0xf]
      %v1561 = vld [vmem:[%s1551 + $0x24] sm:$0xf]
      %v1562 = vld [vmem:[%s1551 + $0x28] sm:$0xf]
      %v1563 = vld [vmem:[%s1551 + $0x2c] sm:$0xf]
      %v1564 = vld [vmem:[%s1551 + $0x30] sm:$0xf]
      %v1565 = vld [vmem:[%s1551 + $0x34] sm:$0xf]
      %v1566 = vld [vmem:[%s1551 + $0x38] sm:$0xf]
      %v1567 = vld [vmem:[%s1551 + $0x3c] sm:$0xf]
      %v1568 = vld [vmem:[%s1551 + $0x40] sm:$0xf]
      %v1569 = vld [vmem:[%s1551 + $0x44] sm:$0xf]
      %v1570 = vld [vmem:[%s1551 + $0x48] sm:$0xf]
      %v1571 = vld [vmem:[%s1551 + $0x4c] sm:$0xf]
      %v1572 = vld [vmem:[%s1551 + $0x50] sm:$0xf]
      %v1573 = vld [vmem:[%s1551 + $0x54] sm:$0xf]
      %v1574 = vld [vmem:[%s1551 + $0x58] sm:$0xf]
      %v1575 = vld [vmem:[%s1551 + $0x5c] sm:$0xf]
      %v1576 = vld [vmem:[%s1551 + $0x60] sm:$0xf]
      %v1577 = vld [vmem:[%s1551 + $0x64] sm:$0xf]
      %v1578 = vld [vmem:[%s1551 + $0x68] sm:$0xf]
      %v1579 = vld [vmem:[%s1551 + $0x6c] sm:$0xf]
      %v1580 = vld [vmem:[%s1551 + $0x70] sm:$0xf]
      %v1581 = vld [vmem:[%s1551 + $0x74] sm:$0xf]
      %v1582 = vld [vmem:[%s1551 + $0x78] sm:$0xf]
      %v1583 = vld [vmem:[%s1551 + $0x7c] sm:$0xf]
      %v1584 = vld [vmem:[%s1551 + $0x80] sm:$0xf]
      %v1585 = vld [vmem:[%s1551 + $0x84] sm:$0xf]
      %v1618 = vunpack.c.l.b16 %v1554
      %v1619 = vunpack.c.l.b16 %v1555
      %v1620 = vunpack.c.l.b16 %v1556
      %v1621 = vunpack.c.l.b16 %v1557
      %v1622 = vunpack.c.l.b16 %v1558
      %v1623 = vunpack.c.l.b16 %v1559
      %v1624 = vunpack.c.l.b16 %v1560
      %v1625 = vunpack.c.l.b16 %v1561
      %v1626 = vunpack.c.l.b16 %v1562
      %v1627 = vunpack.c.l.b16 %v1563
      %v1628 = vunpack.c.l.b16 %v1564
      %v1629 = vunpack.c.l.b16 %v1565
      %v1630 = vunpack.c.l.b16 %v1566
      %v1631 = vunpack.c.l.b16 %v1567
      %v1632 = vunpack.c.l.b16 %v1568
      %v1633 = vunpack.c.l.b16 %v1569
      %v1634 = vunpack.c.l.b16 %v1570
      %v1635 = vunpack.c.l.b16 %v1571
      %v1636 = vunpack.c.l.b16 %v1572
      %v1637 = vunpack.c.l.b16 %v1573
      %v1638 = vunpack.c.l.b16 %v1574
      %v1639 = vunpack.c.l.b16 %v1575
      %v1640 = vunpack.c.l.b16 %v1576
      %v1641 = vunpack.c.l.b16 %v1577
      %v1642 = vunpack.c.l.b16 %v1578
      %v1643 = vunpack.c.l.b16 %v1579
      %v1644 = vunpack.c.l.b16 %v1580
      %v1645 = vunpack.c.l.b16 %v1581
      %v1646 = vunpack.c.l.b16 %v1582
      %v1647 = vunpack.c.l.b16 %v1583
      %v1648 = vunpack.c.l.b16 %v1584
      %v1649 = vunpack.c.l.b16 %v1585
      %v1650 = vpack.c.b16 %v1619, %v1618
      %v1651 = vpack.c.b16 %v1621, %v1620
      %v1652 = vpack.c.b16 %v1623, %v1622
      %v1653 = vpack.c.b16 %v1625, %v1624
      %v1654 = vpack.c.b16 %v1627, %v1626
      %v1655 = vpack.c.b16 %v1629, %v1628
      %v1656 = vpack.c.b16 %v1631, %v1630
      %v1657 = vpack.c.b16 %v1633, %v1632
      %v1658 = vpack.c.b16 %v1635, %v1634
      %v1659 = vpack.c.b16 %v1637, %v1636
      %v1660 = vpack.c.b16 %v1639, %v1638
      %v1661 = vpack.c.b16 %v1641, %v1640
      %v1662 = vpack.c.b16 %v1643, %v1642
      %v1663 = vpack.c.b16 %v1645, %v1644
      %v1664 = vpack.c.b16 %v1647, %v1646
      %v1665 = vpack.c.b16 %v1649, %v1648
      %v1667 = vsel %vm440, %v1650, 0
      %v1670 = vsel %vm440, %v1651, 0
      %v1673 = vsel %vm440, %v1652, 0
      %v1676 = vsel %vm440, %v1653, 0
      %v1679 = vsel %vm440, %v1654, 0
      %v1682 = vsel %vm440, %v1655, 0
      %v1685 = vsel %vm440, %v1656, 0
      %v1688 = vsel %vm440, %v1657, 0
      %v1691 = vsel %vm440, %v1658, 0
      %v1694 = vsel %vm440, %v1659, 0
      %v1697 = vsel %vm440, %v1660, 0
      %v1700 = vsel %vm440, %v1661, 0
      %v1703 = vsel %vm440, %v1662, 0
      %v1706 = vsel %vm440, %v1663, 0
      %v1709 = vsel %vm440, %v1664, 0
      %v1712 = vsel %vm440, %v1665, 0
      %1714 = vmatprep.subr.bf16.mxu0 0
      %1715 = vmatpush1.bf16.msra.mxu0 0
      %1716 = vmatprep.subr.bf16.mxu0 0
      %1717 = vmatpush1.bf16.msra.mxu0 0
      %1718 = vmatprep.subr.bf16.mxu0 0
      %1719 = vmatpush1.bf16.msra.mxu0 0
      %1720 = vmatprep.subr.bf16.mxu0 0
      %1721 = vmatpush1.bf16.msra.mxu0 0
      %1722 = vmatprep.subr.bf16.mxu0 0
      %1723 = vmatpush1.bf16.msra.mxu0 0
      %1724 = vmatprep.subr.bf16.mxu0 0
      %1725 = vmatpush1.bf16.msra.mxu0 0
      %1726 = vmatprep.subr.bf16.mxu0 0
      %1727 = vmatpush1.bf16.msra.mxu0 0
      %1728 = vmatprep.subr.bf16.mxu0 %v494
      %1729 = vmatpush1.bf16.msra.mxu0 %v491
      %1730 = vmatprep.subr.bf16.mxu0 0
      %1731 = vmatpush2.bf16.msra.mxu0 0
      %1732 = vmatprep.subr.bf16.mxu0 0
      %1733 = vmatpush2.bf16.msra.mxu0 0
      %1734 = vmatprep.subr.bf16.mxu0 0
      %1735 = vmatpush2.bf16.msra.mxu0 0
      %1736 = vmatprep.subr.bf16.mxu0 0
      %1737 = vmatpush2.bf16.msra.mxu0 0
      %1738 = vmatprep.subr.bf16.mxu0 0
      %1739 = vmatpush2.bf16.msra.mxu0 0
      %1740 = vmatprep.subr.bf16.mxu0 0
      %1741 = vmatpush2.bf16.msra.mxu0 0
      %1742 = vmatprep.subr.bf16.mxu0 0
      %1743 = vmatpush2.bf16.msra.mxu0 0
      %1744 = vmatprep.subr.bf16.mxu0 0
      %1745 = vmatpush2.bf16.msra.mxu0 0
      %1746 = vmatprep.mubr.bf16.mxu0 0
      %1747 = vmatmul.mubr.bf16.gmra.mxu0 %v1667
      %v1748 = vpop.f32.mrf.mxu0
      %v1749 = vadd.f32 0.0, %v1748
      %v1750 = vpop.f32.mrf.mxu0
      %v1751 = vadd.f32 0.0, %v1750
      %v1752 = vpop.f32.mrf.mxu0
      %v1753 = vadd.f32 0.0, %v1752
      %v1754 = vpop.f32.mrf.mxu0
      %v1755 = vadd.f32 0.0, %v1754
      %1756 = vmatprep.mubr.bf16.mxu0 0
      %1757 = vmatmul.mubr.bf16.gmra.mxu0 %v1670
      %v1758 = vpop.f32.mrf.mxu0
      %v1759 = vadd.f32 0.0, %v1758
      %v1760 = vpop.f32.mrf.mxu0
      %v1761 = vadd.f32 0.0, %v1760
      %v1762 = vpop.f32.mrf.mxu0
      %v1763 = vadd.f32 0.0, %v1762
      %v1764 = vpop.f32.mrf.mxu0
      %v1765 = vadd.f32 0.0, %v1764
      %1766 = vmatprep.mubr.bf16.mxu0 0
      %1767 = vmatmul.mubr.bf16.gmra.mxu0 %v1673
      %v1768 = vpop.f32.mrf.mxu0
      %v1769 = vadd.f32 0.0, %v1768
      %v1770 = vpop.f32.mrf.mxu0
      %v1771 = vadd.f32 0.0, %v1770
      %v1772 = vpop.f32.mrf.mxu0
      %v1773 = vadd.f32 0.0, %v1772
      %v1774 = vpop.f32.mrf.mxu0
      %v1775 = vadd.f32 0.0, %v1774
      %1776 = vmatprep.mubr.bf16.mxu0 0
      %1777 = vmatmul.mubr.bf16.gmra.mxu0 %v1676
      %v1778 = vpop.f32.mrf.mxu0
      %v1779 = vadd.f32 0.0, %v1778
      %v1780 = vpop.f32.mrf.mxu0
      %v1781 = vadd.f32 0.0, %v1780
      %v1782 = vpop.f32.mrf.mxu0
      %v1783 = vadd.f32 0.0, %v1782
      %v1784 = vpop.f32.mrf.mxu0
      %v1785 = vadd.f32 0.0, %v1784
      %1786 = vmatprep.mubr.bf16.mxu0 0
      %1787 = vmatmul.mubr.bf16.gmra.mxu0 %v1679
      %v1788 = vpop.f32.mrf.mxu0
      %v1789 = vadd.f32 0.0, %v1788
      %v1790 = vpop.f32.mrf.mxu0
      %v1791 = vadd.f32 0.0, %v1790
      %v1792 = vpop.f32.mrf.mxu0
      %v1793 = vadd.f32 0.0, %v1792
      %v1794 = vpop.f32.mrf.mxu0
      %v1795 = vadd.f32 0.0, %v1794
      %1796 = vmatprep.mubr.bf16.mxu0 0
      %1797 = vmatmul.mubr.bf16.gmra.mxu0 %v1682
      %v1798 = vpop.f32.mrf.mxu0
      %v1799 = vadd.f32 0.0, %v1798
      %v1800 = vpop.f32.mrf.mxu0
      %v1801 = vadd.f32 0.0, %v1800
      %v1802 = vpop.f32.mrf.mxu0
      %v1803 = vadd.f32 0.0, %v1802
      %v1804 = vpop.f32.mrf.mxu0
      %v1805 = vadd.f32 0.0, %v1804
      %1806 = vmatprep.mubr.bf16.mxu0 0
      %1807 = vmatmul.mubr.bf16.gmra.mxu0 %v1685
      %v1808 = vpop.f32.mrf.mxu0
      %v1809 = vadd.f32 0.0, %v1808
      %v1810 = vpop.f32.mrf.mxu0
      %v1811 = vadd.f32 0.0, %v1810
      %v1812 = vpop.f32.mrf.mxu0
      %v1813 = vadd.f32 0.0, %v1812
      %v1814 = vpop.f32.mrf.mxu0
      %v1815 = vadd.f32 0.0, %v1814
      %1816 = vmatprep.mubr.bf16.mxu0 0
      %1817 = vmatmul.mubr.bf16.gmra.mxu0 %v1688
      %v1818 = vpop.f32.mrf.mxu0
      %v1819 = vadd.f32 0.0, %v1818
      %v1820 = vpop.f32.mrf.mxu0
      %v1821 = vadd.f32 0.0, %v1820
      %v1822 = vpop.f32.mrf.mxu0
      %v1823 = vadd.f32 0.0, %v1822
      %v1824 = vpop.f32.mrf.mxu0
      %v1825 = vadd.f32 0.0, %v1824
      %1826 = vmatprep.mubr.bf16.mxu0 0
      %1827 = vmatmul.mubr.bf16.gmra.mxu0 %v1691
      %v1828 = vpop.f32.mrf.mxu0
      %v1829 = vadd.f32 0.0, %v1828
      %v1830 = vpop.f32.mrf.mxu0
      %v1831 = vadd.f32 0.0, %v1830
      %v1832 = vpop.f32.mrf.mxu0
      %v1833 = vadd.f32 0.0, %v1832
      %v1834 = vpop.f32.mrf.mxu0
      %v1835 = vadd.f32 0.0, %v1834
      %1836 = vmatprep.mubr.bf16.mxu0 0
      %1837 = vmatmul.mubr.bf16.gmra.mxu0 %v1694
      %v1838 = vpop.f32.mrf.mxu0
      %v1839 = vadd.f32 0.0, %v1838
      %v1840 = vpop.f32.mrf.mxu0
      %v1841 = vadd.f32 0.0, %v1840
      %v1842 = vpop.f32.mrf.mxu0
      %v1843 = vadd.f32 0.0, %v1842
      %v1844 = vpop.f32.mrf.mxu0
      %v1845 = vadd.f32 0.0, %v1844
      %1846 = vmatprep.mubr.bf16.mxu0 0
      %1847 = vmatmul.mubr.bf16.gmra.mxu0 %v1697
      %v1848 = vpop.f32.mrf.mxu0
      %v1849 = vadd.f32 0.0, %v1848
      %v1850 = vpop.f32.mrf.mxu0
      %v1851 = vadd.f32 0.0, %v1850
      %v1852 = vpop.f32.mrf.mxu0
      %v1853 = vadd.f32 0.0, %v1852
      %v1854 = vpop.f32.mrf.mxu0
      %v1855 = vadd.f32 0.0, %v1854
      %1856 = vmatprep.mubr.bf16.mxu0 0
      %1857 = vmatmul.mubr.bf16.gmra.mxu0 %v1700
      %v1858 = vpop.f32.mrf.mxu0
      %v1859 = vadd.f32 0.0, %v1858
      %v1860 = vpop.f32.mrf.mxu0
      %v1861 = vadd.f32 0.0, %v1860
      %v1862 = vpop.f32.mrf.mxu0
      %v1863 = vadd.f32 0.0, %v1862
      %v1864 = vpop.f32.mrf.mxu0
      %v1865 = vadd.f32 0.0, %v1864
      %1866 = vmatprep.mubr.bf16.mxu0 0
      %1867 = vmatmul.mubr.bf16.gmra.mxu0 %v1703
      %v1868 = vpop.f32.mrf.mxu0
      %v1869 = vadd.f32 0.0, %v1868
      %v1870 = vpop.f32.mrf.mxu0
      %v1871 = vadd.f32 0.0, %v1870
      %v1872 = vpop.f32.mrf.mxu0
      %v1873 = vadd.f32 0.0, %v1872
      %v1874 = vpop.f32.mrf.mxu0
      %v1875 = vadd.f32 0.0, %v1874
      %1876 = vmatprep.mubr.bf16.mxu0 0
      %1877 = vmatmul.mubr.bf16.gmra.mxu0 %v1706
      %v1878 = vpop.f32.mrf.mxu0
      %v1879 = vadd.f32 0.0, %v1878
      %v1880 = vpop.f32.mrf.mxu0
      %v1881 = vadd.f32 0.0, %v1880
      %v1882 = vpop.f32.mrf.mxu0
      %v1883 = vadd.f32 0.0, %v1882
      %v1884 = vpop.f32.mrf.mxu0
      %v1885 = vadd.f32 0.0, %v1884
      %1886 = vmatprep.mubr.bf16.mxu0 0
      %1887 = vmatmul.mubr.bf16.gmra.mxu0 %v1709
      %v1888 = vpop.f32.mrf.mxu0
      %v1889 = vadd.f32 0.0, %v1888
      %v1890 = vpop.f32.mrf.mxu0
      %v1891 = vadd.f32 0.0, %v1890
      %v1892 = vpop.f32.mrf.mxu0
      %v1893 = vadd.f32 0.0, %v1892
      %v1894 = vpop.f32.mrf.mxu0
      %v1895 = vadd.f32 0.0, %v1894
      %1896 = vmatprep.mubr.bf16.mxu0 0
      %1897 = vmatmul.mubr.bf16.gmra.mxu0 %v1712
      %v1898 = vpop.f32.mrf.mxu0
      %v1899 = vadd.f32 0.0, %v1898
      %v1900 = vpop.f32.mrf.mxu0
      %v1901 = vadd.f32 0.0, %v1900
      %v1902 = vpop.f32.mrf.mxu0
      %v1903 = vadd.f32 0.0, %v1902
      %v1904 = vpop.f32.mrf.mxu0
      %v1905 = vadd.f32 0.0, %v1904
      %1906 = vdwg.mxu0
      %v1909 = vunpack.c.l.b16 %v1552
      %v1910 = vunpack.c.l.b16 %v1553
      %v1911 = vpack.c.b16 %v1910, %v1909
      %v1913 = vsel %vm440, %v1911, 0
      %1915 = vmatprep.subr.bf16.mxu0 0
      %1916 = vmatpush1.bf16.msra.mxu0 0
      %1917 = vmatprep.subr.bf16.mxu0 0
      %1918 = vmatpush1.bf16.msra.mxu0 0
      %1919 = vmatprep.subr.bf16.mxu0 0
      %1920 = vmatpush1.bf16.msra.mxu0 0
      %1921 = vmatprep.subr.bf16.mxu0 0
      %1922 = vmatpush1.bf16.msra.mxu0 0
      %1923 = vmatprep.subr.bf16.mxu0 0
      %1924 = vmatpush1.bf16.msra.mxu0 0
      %1925 = vmatprep.subr.bf16.mxu0 0
      %1926 = vmatpush1.bf16.msra.mxu0 0
      %1927 = vmatprep.subr.bf16.mxu0 0
      %1928 = vmatpush1.bf16.msra.mxu0 0
      %1929 = vmatprep.subr.bf16.mxu0 %v709
      %1930 = vmatpush1.bf16.msra.mxu0 %v706
      %1931 = vmatprep.subr.bf16.mxu0 0
      %1932 = vmatpush2.bf16.msra.mxu0 0
      %1933 = vmatprep.subr.bf16.mxu0 0
      %1934 = vmatpush2.bf16.msra.mxu0 0
      %1935 = vmatprep.subr.bf16.mxu0 0
      %1936 = vmatpush2.bf16.msra.mxu0 0
      %1937 = vmatprep.subr.bf16.mxu0 0
      %1938 = vmatpush2.bf16.msra.mxu0 0
      %1939 = vmatprep.subr.bf16.mxu0 0
      %1940 = vmatpush2.bf16.msra.mxu0 0
      %1941 = vmatprep.subr.bf16.mxu0 0
      %1942 = vmatpush2.bf16.msra.mxu0 0
      %1943 = vmatprep.subr.bf16.mxu0 0
      %1944 = vmatpush2.bf16.msra.mxu0 0
      %1945 = vmatprep.subr.bf16.mxu0 0
      %1946 = vmatpush2.bf16.msra.mxu0 0
      %1947 = vmatprep.mubr.bf16.mxu0 0
      %1948 = vmatmul.mubr.bf16.gmra.mxu0 %v1913
      %v1949 = vpop.f32.mrf.mxu0
      %v1950 = vadd.f32 %v1749, %v1949
      %v1951 = vpop.f32.mrf.mxu0
      %v1952 = vadd.f32 %v1751, %v1951
      %v1953 = vpop.f32.mrf.mxu0
      %v1954 = vadd.f32 %v1753, %v1953
      %v1955 = vpop.f32.mrf.mxu0
      %v1956 = vadd.f32 %v1755, %v1955
      %1957 = vmatprep.mubr.bf16.mxu0 0
      %1958 = vmatmul.mubr.bf16.gmra.mxu0 %v1667
      %v1959 = vpop.f32.mrf.mxu0
      %v1960 = vadd.f32 %v1759, %v1959
      %v1961 = vpop.f32.mrf.mxu0
      %v1962 = vadd.f32 %v1761, %v1961
      %v1963 = vpop.f32.mrf.mxu0
      %v1964 = vadd.f32 %v1763, %v1963
      %v1965 = vpop.f32.mrf.mxu0
      %v1966 = vadd.f32 %v1765, %v1965
      %1967 = vmatprep.mubr.bf16.mxu0 0
      %1968 = vmatmul.mubr.bf16.gmra.mxu0 %v1670
      %v1969 = vpop.f32.mrf.mxu0
      %v1970 = vadd.f32 %v1769, %v1969
      %v1971 = vpop.f32.mrf.mxu0
      %v1972 = vadd.f32 %v1771, %v1971
      %v1973 = vpop.f32.mrf.mxu0
      %v1974 = vadd.f32 %v1773, %v1973
      %v1975 = vpop.f32.mrf.mxu0
      %v1976 = vadd.f32 %v1775, %v1975
      %1977 = vmatprep.mubr.bf16.mxu0 0
      %1978 = vmatmul.mubr.bf16.gmra.mxu0 %v1673
      %v1979 = vpop.f32.mrf.mxu0
      %v1980 = vadd.f32 %v1779, %v1979
      %v1981 = vpop.f32.mrf.mxu0
      %v1982 = vadd.f32 %v1781, %v1981
      %v1983 = vpop.f32.mrf.mxu0
      %v1984 = vadd.f32 %v1783, %v1983
      %v1985 = vpop.f32.mrf.mxu0
      %v1986 = vadd.f32 %v1785, %v1985
      %1987 = vmatprep.mubr.bf16.mxu0 0
      %1988 = vmatmul.mubr.bf16.gmra.mxu0 %v1676
      %v1989 = vpop.f32.mrf.mxu0
      %v1990 = vadd.f32 %v1789, %v1989
      %v1991 = vpop.f32.mrf.mxu0
      %v1992 = vadd.f32 %v1791, %v1991
      %v1993 = vpop.f32.mrf.mxu0
      %v1994 = vadd.f32 %v1793, %v1993
      %v1995 = vpop.f32.mrf.mxu0
      %v1996 = vadd.f32 %v1795, %v1995
      %1997 = vmatprep.mubr.bf16.mxu0 0
      %1998 = vmatmul.mubr.bf16.gmra.mxu0 %v1679
      %v1999 = vpop.f32.mrf.mxu0
      %v2000 = vadd.f32 %v1799, %v1999
      %v2001 = vpop.f32.mrf.mxu0
      %v2002 = vadd.f32 %v1801, %v2001
      %v2003 = vpop.f32.mrf.mxu0
      %v2004 = vadd.f32 %v1803, %v2003
      %v2005 = vpop.f32.mrf.mxu0
      %v2006 = vadd.f32 %v1805, %v2005
      %2007 = vmatprep.mubr.bf16.mxu0 0
      %2008 = vmatmul.mubr.bf16.gmra.mxu0 %v1682
      %v2009 = vpop.f32.mrf.mxu0
      %v2010 = vadd.f32 %v1809, %v2009
      %v2011 = vpop.f32.mrf.mxu0
      %v2012 = vadd.f32 %v1811, %v2011
      %v2013 = vpop.f32.mrf.mxu0
      %v2014 = vadd.f32 %v1813, %v2013
      %v2015 = vpop.f32.mrf.mxu0
      %v2016 = vadd.f32 %v1815, %v2015
      %2017 = vmatprep.mubr.bf16.mxu0 0
      %2018 = vmatmul.mubr.bf16.gmra.mxu0 %v1685
      %v2019 = vpop.f32.mrf.mxu0
      %v2020 = vadd.f32 %v1819, %v2019
      %v2021 = vpop.f32.mrf.mxu0
      %v2022 = vadd.f32 %v1821, %v2021
      %v2023 = vpop.f32.mrf.mxu0
      %v2024 = vadd.f32 %v1823, %v2023
      %v2025 = vpop.f32.mrf.mxu0
      %v2026 = vadd.f32 %v1825, %v2025
      %2027 = vmatprep.mubr.bf16.mxu0 0
      %2028 = vmatmul.mubr.bf16.gmra.mxu0 %v1688
      %v2029 = vpop.f32.mrf.mxu0
      %v2030 = vadd.f32 %v1829, %v2029
      %v2031 = vpop.f32.mrf.mxu0
      %v2032 = vadd.f32 %v1831, %v2031
      %v2033 = vpop.f32.mrf.mxu0
      %v2034 = vadd.f32 %v1833, %v2033
      %v2035 = vpop.f32.mrf.mxu0
      %v2036 = vadd.f32 %v1835, %v2035
      %2037 = vmatprep.mubr.bf16.mxu0 0
      %2038 = vmatmul.mubr.bf16.gmra.mxu0 %v1691
      %v2039 = vpop.f32.mrf.mxu0
      %v2040 = vadd.f32 %v1839, %v2039
      %v2041 = vpop.f32.mrf.mxu0
      %v2042 = vadd.f32 %v1841, %v2041
      %v2043 = vpop.f32.mrf.mxu0
      %v2044 = vadd.f32 %v1843, %v2043
      %v2045 = vpop.f32.mrf.mxu0
      %v2046 = vadd.f32 %v1845, %v2045
      %2047 = vmatprep.mubr.bf16.mxu0 0
      %2048 = vmatmul.mubr.bf16.gmra.mxu0 %v1694
      %v2049 = vpop.f32.mrf.mxu0
      %v2050 = vadd.f32 %v1849, %v2049
      %v2051 = vpop.f32.mrf.mxu0
      %v2052 = vadd.f32 %v1851, %v2051
      %v2053 = vpop.f32.mrf.mxu0
      %v2054 = vadd.f32 %v1853, %v2053
      %v2055 = vpop.f32.mrf.mxu0
      %v2056 = vadd.f32 %v1855, %v2055
      %2057 = vmatprep.mubr.bf16.mxu0 0
      %2058 = vmatmul.mubr.bf16.gmra.mxu0 %v1697
      %v2059 = vpop.f32.mrf.mxu0
      %v2060 = vadd.f32 %v1859, %v2059
      %v2061 = vpop.f32.mrf.mxu0
      %v2062 = vadd.f32 %v1861, %v2061
      %v2063 = vpop.f32.mrf.mxu0
      %v2064 = vadd.f32 %v1863, %v2063
      %v2065 = vpop.f32.mrf.mxu0
      %v2066 = vadd.f32 %v1865, %v2065
      %2067 = vmatprep.mubr.bf16.mxu0 0
      %2068 = vmatmul.mubr.bf16.gmra.mxu0 %v1700
      %v2069 = vpop.f32.mrf.mxu0
      %v2070 = vadd.f32 %v1869, %v2069
      %v2071 = vpop.f32.mrf.mxu0
      %v2072 = vadd.f32 %v1871, %v2071
      %v2073 = vpop.f32.mrf.mxu0
      %v2074 = vadd.f32 %v1873, %v2073
      %v2075 = vpop.f32.mrf.mxu0
      %v2076 = vadd.f32 %v1875, %v2075
      %2077 = vmatprep.mubr.bf16.mxu0 0
      %2078 = vmatmul.mubr.bf16.gmra.mxu0 %v1703
      %v2079 = vpop.f32.mrf.mxu0
      %v2080 = vadd.f32 %v1879, %v2079
      %v2081 = vpop.f32.mrf.mxu0
      %v2082 = vadd.f32 %v1881, %v2081
      %v2083 = vpop.f32.mrf.mxu0
      %v2084 = vadd.f32 %v1883, %v2083
      %v2085 = vpop.f32.mrf.mxu0
      %v2086 = vadd.f32 %v1885, %v2085
      %2087 = vmatprep.mubr.bf16.mxu0 0
      %2088 = vmatmul.mubr.bf16.gmra.mxu0 %v1706
      %v2089 = vpop.f32.mrf.mxu0
      %v2090 = vadd.f32 %v1889, %v2089
      %v2091 = vpop.f32.mrf.mxu0
      %v2092 = vadd.f32 %v1891, %v2091
      %v2093 = vpop.f32.mrf.mxu0
      %v2094 = vadd.f32 %v1893, %v2093
      %v2095 = vpop.f32.mrf.mxu0
      %v2096 = vadd.f32 %v1895, %v2095
      %2097 = vmatprep.mubr.bf16.mxu0 0
      %2098 = vmatmul.mubr.bf16.gmra.mxu0 %v1709
      %v2099 = vpop.f32.mrf.mxu0
      %v2100 = vadd.f32 %v1899, %v2099
      %v2101 = vpop.f32.mrf.mxu0
      %v2102 = vadd.f32 %v1901, %v2101
      %v2103 = vpop.f32.mrf.mxu0
      %v2104 = vadd.f32 %v1903, %v2103
      %v2105 = vpop.f32.mrf.mxu0
      %v2106 = vadd.f32 %v1905, %v2105
      %2107 = vdwg.mxu0
      %v2108 = vld [vmem:[%s1551 + $0x10] sm:$0xf]
      %v2109 = vld [vmem:[%s1551 + $0x14] sm:$0xf]
      %v2110 = vld [vmem:[%s1551 + $0x18] sm:$0xf]
      %v2111 = vld [vmem:[%s1551 + $0x1c] sm:$0xf]
      %v2112 = vld [vmem:[%s1551 + $0x20] sm:$0xf]
      %v2113 = vld [vmem:[%s1551 + $0x24] sm:$0xf]
      %v2114 = vld [vmem:[%s1551 + $0x28] sm:$0xf]
      %v2115 = vld [vmem:[%s1551 + $0x2c] sm:$0xf]
      %v2116 = vld [vmem:[%s1551 + $0x30] sm:$0xf]
      %v2117 = vld [vmem:[%s1551 + $0x34] sm:$0xf]
      %v2118 = vld [vmem:[%s1551 + $0x38] sm:$0xf]
      %v2119 = vld [vmem:[%s1551 + $0x3c] sm:$0xf]
      %v2120 = vld [vmem:[%s1551 + $0x40] sm:$0xf]
      %v2121 = vld [vmem:[%s1551 + $0x44] sm:$0xf]
      %v2122 = vld [vmem:[%s1551 + $0x48] sm:$0xf]
      %v2123 = vld [vmem:[%s1551 + $0x4c] sm:$0xf]
      %v2124 = vld [vmem:[%s1551 + $0x50] sm:$0xf]
      %v2125 = vld [vmem:[%s1551 + $0x54] sm:$0xf]
      %v2126 = vld [vmem:[%s1551 + $0x58] sm:$0xf]
      %v2127 = vld [vmem:[%s1551 + $0x5c] sm:$0xf]
      %v2128 = vld [vmem:[%s1551 + $0x60] sm:$0xf]
      %v2129 = vld [vmem:[%s1551 + $0x64] sm:$0xf]
      %v2130 = vld [vmem:[%s1551 + $0x68] sm:$0xf]
      %v2131 = vld [vmem:[%s1551 + $0x6c] sm:$0xf]
      %v2132 = vld [vmem:[%s1551 + $0x70] sm:$0xf]
      %v2133 = vld [vmem:[%s1551 + $0x74] sm:$0xf]
      %v2134 = vld [vmem:[%s1551 + $0x78] sm:$0xf]
      %v2135 = vld [vmem:[%s1551 + $0x7c] sm:$0xf]
      %v2136 = vld [vmem:[%s1551 + $0x80] sm:$0xf]
      %v2137 = vld [vmem:[%s1551 + $0x84] sm:$0xf]
      %v2138 = vld [vmem:[%s1551 + $0x88] sm:$0xf]
      %v2139 = vld [vmem:[%s1551 + $0x8c] sm:$0xf]
      %v2172 = vunpack.c.l.b16 %v2108
      %v2173 = vunpack.c.l.b16 %v2109
      %v2174 = vunpack.c.l.b16 %v2110
      %v2175 = vunpack.c.l.b16 %v2111
      %v2176 = vunpack.c.l.b16 %v2112
      %v2177 = vunpack.c.l.b16 %v2113
      %v2178 = vunpack.c.l.b16 %v2114
      %v2179 = vunpack.c.l.b16 %v2115
      %v2180 = vunpack.c.l.b16 %v2116
      %v2181 = vunpack.c.l.b16 %v2117
      %v2182 = vunpack.c.l.b16 %v2118
      %v2183 = vunpack.c.l.b16 %v2119
      %v2184 = vunpack.c.l.b16 %v2120
      %v2185 = vunpack.c.l.b16 %v2121
      %v2186 = vunpack.c.l.b16 %v2122
      %v2187 = vunpack.c.l.b16 %v2123
      %v2188 = vunpack.c.l.b16 %v2124
      %v2189 = vunpack.c.l.b16 %v2125
      %v2190 = vunpack.c.l.b16 %v2126
      %v2191 = vunpack.c.l.b16 %v2127
      %v2192 = vunpack.c.l.b16 %v2128
      %v2193 = vunpack.c.l.b16 %v2129
      %v2194 = vunpack.c.l.b16 %v2130
      %v2195 = vunpack.c.l.b16 %v2131
      %v2196 = vunpack.c.l.b16 %v2132
      %v2197 = vunpack.c.l.b16 %v2133
      %v2198 = vunpack.c.l.b16 %v2134
      %v2199 = vunpack.c.l.b16 %v2135
      %v2200 = vunpack.c.l.b16 %v2136
      %v2201 = vunpack.c.l.b16 %v2137
      %v2202 = vunpack.c.l.b16 %v2138
      %v2203 = vunpack.c.l.b16 %v2139
      %v2204 = vpack.c.b16 %v2173, %v2172
      %v2205 = vpack.c.b16 %v2175, %v2174
      %v2206 = vpack.c.b16 %v2177, %v2176
      %v2207 = vpack.c.b16 %v2179, %v2178
      %v2208 = vpack.c.b16 %v2181, %v2180
      %v2209 = vpack.c.b16 %v2183, %v2182
      %v2210 = vpack.c.b16 %v2185, %v2184
      %v2211 = vpack.c.b16 %v2187, %v2186
      %v2212 = vpack.c.b16 %v2189, %v2188
      %v2213 = vpack.c.b16 %v2191, %v2190
      %v2214 = vpack.c.b16 %v2193, %v2192
      %v2215 = vpack.c.b16 %v2195, %v2194
      %v2216 = vpack.c.b16 %v2197, %v2196
      %v2217 = vpack.c.b16 %v2199, %v2198
      %v2218 = vpack.c.b16 %v2201, %v2200
      %v2219 = vpack.c.b16 %v2203, %v2202
      %v2221 = vsel %vm440, %v2204, 0
      %v2224 = vsel %vm440, %v2205, 0
      %v2227 = vsel %vm440, %v2206, 0
      %v2230 = vsel %vm440, %v2207, 0
      %v2233 = vsel %vm440, %v2208, 0
      %v2236 = vsel %vm440, %v2209, 0
      %v2239 = vsel %vm440, %v2210, 0
      %v2242 = vsel %vm440, %v2211, 0
      %v2245 = vsel %vm440, %v2212, 0
      %v2248 = vsel %vm440, %v2213, 0
      %v2251 = vsel %vm440, %v2214, 0
      %v2254 = vsel %vm440, %v2215, 0
      %v2257 = vsel %vm440, %v2216, 0
      %v2260 = vsel %vm440, %v2217, 0
      %v2263 = vsel %vm440, %v2218, 0
      %v2266 = vsel %vm440, %v2219, 0
      %2268 = vmatprep.subr.bf16.mxu0 0
      %2269 = vmatpush1.bf16.msra.mxu0 0
      %2270 = vmatprep.subr.bf16.mxu0 0
      %2271 = vmatpush1.bf16.msra.mxu0 0
      %2272 = vmatprep.subr.bf16.mxu0 0
      %2273 = vmatpush1.bf16.msra.mxu0 0
      %2274 = vmatprep.subr.bf16.mxu0 0
      %2275 = vmatpush1.bf16.msra.mxu0 0
      %2276 = vmatprep.subr.bf16.mxu0 0
      %2277 = vmatpush1.bf16.msra.mxu0 0
      %2278 = vmatprep.subr.bf16.mxu0 0
      %2279 = vmatpush1.bf16.msra.mxu0 0
      %2280 = vmatprep.subr.bf16.mxu0 0
      %2281 = vmatpush1.bf16.msra.mxu0 0
      %2282 = vmatprep.subr.bf16.mxu0 %v1079
      %2283 = vmatpush1.bf16.msra.mxu0 %v1076
      %2284 = vmatprep.subr.bf16.mxu0 0
      %2285 = vmatpush2.bf16.msra.mxu0 0
      %2286 = vmatprep.subr.bf16.mxu0 0
      %2287 = vmatpush2.bf16.msra.mxu0 0
      %2288 = vmatprep.subr.bf16.mxu0 0
      %2289 = vmatpush2.bf16.msra.mxu0 0
      %2290 = vmatprep.subr.bf16.mxu0 0
      %2291 = vmatpush2.bf16.msra.mxu0 0
      %2292 = vmatprep.subr.bf16.mxu0 0
      %2293 = vmatpush2.bf16.msra.mxu0 0
      %2294 = vmatprep.subr.bf16.mxu0 0
      %2295 = vmatpush2.bf16.msra.mxu0 0
      %2296 = vmatprep.subr.bf16.mxu0 0
      %2297 = vmatpush2.bf16.msra.mxu0 0
      %2298 = vmatprep.subr.bf16.mxu0 0
      %2299 = vmatpush2.bf16.msra.mxu0 0
      %2300 = vmatprep.mubr.bf16.mxu0 0
      %2301 = vmatmul.mubr.bf16.gmra.mxu0 %v2221
      %v2302 = vpop.f32.mrf.mxu0
      %v2303 = vadd.f32 0.0, %v2302
      %v2304 = vpop.f32.mrf.mxu0
      %v2305 = vadd.f32 0.0, %v2304
      %v2306 = vpop.f32.mrf.mxu0
      %v2307 = vadd.f32 0.0, %v2306
      %v2308 = vpop.f32.mrf.mxu0
      %v2309 = vadd.f32 0.0, %v2308
      %2310 = vmatprep.mubr.bf16.mxu0 0
      %2311 = vmatmul.mubr.bf16.gmra.mxu0 %v2224
      %v2312 = vpop.f32.mrf.mxu0
      %v2313 = vadd.f32 0.0, %v2312
      %v2314 = vpop.f32.mrf.mxu0
      %v2315 = vadd.f32 0.0, %v2314
      %v2316 = vpop.f32.mrf.mxu0
      %v2317 = vadd.f32 0.0, %v2316
      %v2318 = vpop.f32.mrf.mxu0
      %v2319 = vadd.f32 0.0, %v2318
      %2320 = vmatprep.mubr.bf16.mxu0 0
      %2321 = vmatmul.mubr.bf16.gmra.mxu0 %v2227
      %v2322 = vpop.f32.mrf.mxu0
      %v2323 = vadd.f32 0.0, %v2322
      %v2324 = vpop.f32.mrf.mxu0
      %v2325 = vadd.f32 0.0, %v2324
      %v2326 = vpop.f32.mrf.mxu0
      %v2327 = vadd.f32 0.0, %v2326
      %v2328 = vpop.f32.mrf.mxu0
      %v2329 = vadd.f32 0.0, %v2328
      %2330 = vmatprep.mubr.bf16.mxu0 0
      %2331 = vmatmul.mubr.bf16.gmra.mxu0 %v2230
      %v2332 = vpop.f32.mrf.mxu0
      %v2333 = vadd.f32 0.0, %v2332
      %v2334 = vpop.f32.mrf.mxu0
      %v2335 = vadd.f32 0.0, %v2334
      %v2336 = vpop.f32.mrf.mxu0
      %v2337 = vadd.f32 0.0, %v2336
      %v2338 = vpop.f32.mrf.mxu0
      %v2339 = vadd.f32 0.0, %v2338
      %2340 = vmatprep.mubr.bf16.mxu0 0
      %2341 = vmatmul.mubr.bf16.gmra.mxu0 %v2233
      %v2342 = vpop.f32.mrf.mxu0
      %v2343 = vadd.f32 0.0, %v2342
      %v2344 = vpop.f32.mrf.mxu0
      %v2345 = vadd.f32 0.0, %v2344
      %v2346 = vpop.f32.mrf.mxu0
      %v2347 = vadd.f32 0.0, %v2346
      %v2348 = vpop.f32.mrf.mxu0
      %v2349 = vadd.f32 0.0, %v2348
      %2350 = vmatprep.mubr.bf16.mxu0 0
      %2351 = vmatmul.mubr.bf16.gmra.mxu0 %v2236
      %v2352 = vpop.f32.mrf.mxu0
      %v2353 = vadd.f32 0.0, %v2352
      %v2354 = vpop.f32.mrf.mxu0
      %v2355 = vadd.f32 0.0, %v2354
      %v2356 = vpop.f32.mrf.mxu0
      %v2357 = vadd.f32 0.0, %v2356
      %v2358 = vpop.f32.mrf.mxu0
      %v2359 = vadd.f32 0.0, %v2358
      %2360 = vmatprep.mubr.bf16.mxu0 0
      %2361 = vmatmul.mubr.bf16.gmra.mxu0 %v2239
      %v2362 = vpop.f32.mrf.mxu0
      %v2363 = vadd.f32 0.0, %v2362
      %v2364 = vpop.f32.mrf.mxu0
      %v2365 = vadd.f32 0.0, %v2364
      %v2366 = vpop.f32.mrf.mxu0
      %v2367 = vadd.f32 0.0, %v2366
      %v2368 = vpop.f32.mrf.mxu0
      %v2369 = vadd.f32 0.0, %v2368
      %2370 = vmatprep.mubr.bf16.mxu0 0
      %2371 = vmatmul.mubr.bf16.gmra.mxu0 %v2242
      %v2372 = vpop.f32.mrf.mxu0
      %v2373 = vadd.f32 0.0, %v2372
      %v2374 = vpop.f32.mrf.mxu0
      %v2375 = vadd.f32 0.0, %v2374
      %v2376 = vpop.f32.mrf.mxu0
      %v2377 = vadd.f32 0.0, %v2376
      %v2378 = vpop.f32.mrf.mxu0
      %v2379 = vadd.f32 0.0, %v2378
      %2380 = vmatprep.mubr.bf16.mxu0 0
      %2381 = vmatmul.mubr.bf16.gmra.mxu0 %v2245
      %v2382 = vpop.f32.mrf.mxu0
      %v2383 = vadd.f32 0.0, %v2382
      %v2384 = vpop.f32.mrf.mxu0
      %v2385 = vadd.f32 0.0, %v2384
      %v2386 = vpop.f32.mrf.mxu0
      %v2387 = vadd.f32 0.0, %v2386
      %v2388 = vpop.f32.mrf.mxu0
      %v2389 = vadd.f32 0.0, %v2388
      %2390 = vmatprep.mubr.bf16.mxu0 0
      %2391 = vmatmul.mubr.bf16.gmra.mxu0 %v2248
      %v2392 = vpop.f32.mrf.mxu0
      %v2393 = vadd.f32 0.0, %v2392
      %v2394 = vpop.f32.mrf.mxu0
      %v2395 = vadd.f32 0.0, %v2394
      %v2396 = vpop.f32.mrf.mxu0
      %v2397 = vadd.f32 0.0, %v2396
      %v2398 = vpop.f32.mrf.mxu0
      %v2399 = vadd.f32 0.0, %v2398
      %2400 = vmatprep.mubr.bf16.mxu0 0
      %2401 = vmatmul.mubr.bf16.gmra.mxu0 %v2251
      %v2402 = vpop.f32.mrf.mxu0
      %v2403 = vadd.f32 0.0, %v2402
      %v2404 = vpop.f32.mrf.mxu0
      %v2405 = vadd.f32 0.0, %v2404
      %v2406 = vpop.f32.mrf.mxu0
      %v2407 = vadd.f32 0.0, %v2406
      %v2408 = vpop.f32.mrf.mxu0
      %v2409 = vadd.f32 0.0, %v2408
      %2410 = vmatprep.mubr.bf16.mxu0 0
      %2411 = vmatmul.mubr.bf16.gmra.mxu0 %v2254
      %v2412 = vpop.f32.mrf.mxu0
      %v2413 = vadd.f32 0.0, %v2412
      %v2414 = vpop.f32.mrf.mxu0
      %v2415 = vadd.f32 0.0, %v2414
      %v2416 = vpop.f32.mrf.mxu0
      %v2417 = vadd.f32 0.0, %v2416
      %v2418 = vpop.f32.mrf.mxu0
      %v2419 = vadd.f32 0.0, %v2418
      %2420 = vmatprep.mubr.bf16.mxu0 0
      %2421 = vmatmul.mubr.bf16.gmra.mxu0 %v2257
      %v2422 = vpop.f32.mrf.mxu0
      %v2423 = vadd.f32 0.0, %v2422
      %v2424 = vpop.f32.mrf.mxu0
      %v2425 = vadd.f32 0.0, %v2424
      %v2426 = vpop.f32.mrf.mxu0
      %v2427 = vadd.f32 0.0, %v2426
      %v2428 = vpop.f32.mrf.mxu0
      %v2429 = vadd.f32 0.0, %v2428
      %2430 = vmatprep.mubr.bf16.mxu0 0
      %2431 = vmatmul.mubr.bf16.gmra.mxu0 %v2260
      %v2432 = vpop.f32.mrf.mxu0
      %v2433 = vadd.f32 0.0, %v2432
      %v2434 = vpop.f32.mrf.mxu0
      %v2435 = vadd.f32 0.0, %v2434
      %v2436 = vpop.f32.mrf.mxu0
      %v2437 = vadd.f32 0.0, %v2436
      %v2438 = vpop.f32.mrf.mxu0
      %v2439 = vadd.f32 0.0, %v2438
      %2440 = vmatprep.mubr.bf16.mxu0 0
      %2441 = vmatmul.mubr.bf16.gmra.mxu0 %v2263
      %v2442 = vpop.f32.mrf.mxu0
      %v2443 = vadd.f32 0.0, %v2442
      %v2444 = vpop.f32.mrf.mxu0
      %v2445 = vadd.f32 0.0, %v2444
      %v2446 = vpop.f32.mrf.mxu0
      %v2447 = vadd.f32 0.0, %v2446
      %v2448 = vpop.f32.mrf.mxu0
      %v2449 = vadd.f32 0.0, %v2448
      %2450 = vmatprep.mubr.bf16.mxu0 0
      %2451 = vmatmul.mubr.bf16.gmra.mxu0 %v2266
      %v2452 = vpop.f32.mrf.mxu0
      %v2453 = vadd.f32 0.0, %v2452
      %v2454 = vpop.f32.mrf.mxu0
      %v2455 = vadd.f32 0.0, %v2454
      %v2456 = vpop.f32.mrf.mxu0
      %v2457 = vadd.f32 0.0, %v2456
      %v2458 = vpop.f32.mrf.mxu0
      %v2459 = vadd.f32 0.0, %v2458
      %2460 = vdwg.mxu0
      %v2461 = vadd.f32 %v1950, %v2303
      %v2462 = vadd.f32 %v1952, %v2305
      %v2463 = vadd.f32 %v1954, %v2307
      %v2464 = vadd.f32 %v1956, %v2309
      %v2465 = vadd.f32 %v1960, %v2313
      %v2466 = vadd.f32 %v1962, %v2315
      %v2467 = vadd.f32 %v1964, %v2317
      %v2468 = vadd.f32 %v1966, %v2319
      %v2469 = vadd.f32 %v1970, %v2323
      %v2470 = vadd.f32 %v1972, %v2325
      %v2471 = vadd.f32 %v1974, %v2327
      %v2472 = vadd.f32 %v1976, %v2329
      %v2473 = vadd.f32 %v1980, %v2333
      %v2474 = vadd.f32 %v1982, %v2335
      %v2475 = vadd.f32 %v1984, %v2337
      %v2476 = vadd.f32 %v1986, %v2339
      %v2477 = vadd.f32 %v1990, %v2343
      %v2478 = vadd.f32 %v1992, %v2345
      %v2479 = vadd.f32 %v1994, %v2347
      %v2480 = vadd.f32 %v1996, %v2349
      %v2481 = vadd.f32 %v2000, %v2353
      %v2482 = vadd.f32 %v2002, %v2355
      %v2483 = vadd.f32 %v2004, %v2357
      %v2484 = vadd.f32 %v2006, %v2359
      %v2485 = vadd.f32 %v2010, %v2363
      %v2486 = vadd.f32 %v2012, %v2365
      %v2487 = vadd.f32 %v2014, %v2367
      %v2488 = vadd.f32 %v2016, %v2369
      %v2489 = vadd.f32 %v2020, %v2373
      %v2490 = vadd.f32 %v2022, %v2375
      %v2491 = vadd.f32 %v2024, %v2377
      %v2492 = vadd.f32 %v2026, %v2379
      %v2493 = vadd.f32 %v2030, %v2383
      %v2494 = vadd.f32 %v2032, %v2385
      %v2495 = vadd.f32 %v2034, %v2387
      %v2496 = vadd.f32 %v2036, %v2389
      %v2497 = vadd.f32 %v2040, %v2393
      %v2498 = vadd.f32 %v2042, %v2395
      %v2499 = vadd.f32 %v2044, %v2397
      %v2500 = vadd.f32 %v2046, %v2399
      %v2501 = vadd.f32 %v2050, %v2403
      %v2502 = vadd.f32 %v2052, %v2405
      %v2503 = vadd.f32 %v2054, %v2407
      %v2504 = vadd.f32 %v2056, %v2409
      %v2505 = vadd.f32 %v2060, %v2413
      %v2506 = vadd.f32 %v2062, %v2415
      %v2507 = vadd.f32 %v2064, %v2417
      %v2508 = vadd.f32 %v2066, %v2419
      %v2509 = vadd.f32 %v2070, %v2423
      %v2510 = vadd.f32 %v2072, %v2425
      %v2511 = vadd.f32 %v2074, %v2427
      %v2512 = vadd.f32 %v2076, %v2429
      %v2513 = vadd.f32 %v2080, %v2433
      %v2514 = vadd.f32 %v2082, %v2435
      %v2515 = vadd.f32 %v2084, %v2437
      %v2516 = vadd.f32 %v2086, %v2439
      %v2517 = vadd.f32 %v2090, %v2443
      %v2518 = vadd.f32 %v2092, %v2445
      %v2519 = vadd.f32 %v2094, %v2447
      %v2520 = vadd.f32 %v2096, %v2449
      %v2521 = vadd.f32 %v2100, %v2453
      %v2522 = vadd.f32 %v2102, %v2455
      %v2523 = vadd.f32 %v2104, %v2457
      %v2524 = vadd.f32 %v2106, %v2459
      %v2525 = vadd.f32 %v2461, %v1342
      %v2526 = vadd.f32 %v2462, %v1346
      %v2527 = vadd.f32 %v2463, %v1342
      %v2528 = vadd.f32 %v2464, %v1346
      %v2529 = vadd.f32 %v2465, %v1342
      %v2530 = vadd.f32 %v2466, %v1346
      %v2531 = vadd.f32 %v2467, %v1342
      %v2532 = vadd.f32 %v2468, %v1346
      %v2533 = vadd.f32 %v2469, %v1342
      %v2534 = vadd.f32 %v2470, %v1346
      %v2535 = vadd.f32 %v2471, %v1342
      %v2536 = vadd.f32 %v2472, %v1346
      %v2537 = vadd.f32 %v2473, %v1342
      %v2538 = vadd.f32 %v2474, %v1346
      %v2539 = vadd.f32 %v2475, %v1342
      %v2540 = vadd.f32 %v2476, %v1346
      %v2541 = vadd.f32 %v2477, %v1342
      %v2542 = vadd.f32 %v2478, %v1346
      %v2543 = vadd.f32 %v2479, %v1342
      %v2544 = vadd.f32 %v2480, %v1346
      %v2545 = vadd.f32 %v2481, %v1342
      %v2546 = vadd.f32 %v2482, %v1346
      %v2547 = vadd.f32 %v2483, %v1342
      %v2548 = vadd.f32 %v2484, %v1346
      %v2549 = vadd.f32 %v2485, %v1342
      %v2550 = vadd.f32 %v2486, %v1346
      %v2551 = vadd.f32 %v2487, %v1342
      %v2552 = vadd.f32 %v2488, %v1346
      %v2553 = vadd.f32 %v2489, %v1342
      %v2554 = vadd.f32 %v2490, %v1346
      %v2555 = vadd.f32 %v2491, %v1342
      %v2556 = vadd.f32 %v2492, %v1346
      %v2557 = vadd.f32 %v2493, %v1342
      %v2558 = vadd.f32 %v2494, %v1346
      %v2559 = vadd.f32 %v2495, %v1342
      %v2560 = vadd.f32 %v2496, %v1346
      %v2561 = vadd.f32 %v2497, %v1342
      %v2562 = vadd.f32 %v2498, %v1346
      %v2563 = vadd.f32 %v2499, %v1342
      %v2564 = vadd.f32 %v2500, %v1346
      %v2565 = vadd.f32 %v2501, %v1342
      %v2566 = vadd.f32 %v2502, %v1346
      %v2567 = vadd.f32 %v2503, %v1342
      %v2568 = vadd.f32 %v2504, %v1346
      %v2569 = vadd.f32 %v2505, %v1342
      %v2570 = vadd.f32 %v2506, %v1346
      %v2571 = vadd.f32 %v2507, %v1342
      %v2572 = vadd.f32 %v2508, %v1346
      %v2573 = vadd.f32 %v2509, %v1342
      %v2574 = vadd.f32 %v2510, %v1346
      %v2575 = vadd.f32 %v2511, %v1342
      %v2576 = vadd.f32 %v2512, %v1346
      %v2577 = vadd.f32 %v2513, %v1342
      %v2578 = vadd.f32 %v2514, %v1346
      %v2579 = vadd.f32 %v2515, %v1342
      %v2580 = vadd.f32 %v2516, %v1346
      %v2581 = vadd.f32 %v2517, %v1342
      %v2582 = vadd.f32 %v2518, %v1346
      %v2583 = vadd.f32 %v2519, %v1342
      %v2584 = vadd.f32 %v2520, %v1346
      %v2585 = vadd.f32 %v2521, %v1342
      %v2586 = vadd.f32 %v2522, %v1346
      %v2587 = vadd.f32 %v2523, %v1342
      %v2588 = vadd.f32 %v2524, %v1346
      %v2589 = vmax.f32 %v2525, 0.0
      %v2590 = vmax.f32 %v2526, 0.0
      %v2591 = vmax.f32 %v2527, 0.0
      %v2592 = vmax.f32 %v2528, 0.0
      %v2593 = vmax.f32 %v2529, 0.0
      %v2594 = vmax.f32 %v2530, 0.0
      %v2595 = vmax.f32 %v2531, 0.0
      %v2596 = vmax.f32 %v2532, 0.0
      %v2597 = vmax.f32 %v2533, 0.0
      %v2598 = vmax.f32 %v2534, 0.0
      %v2599 = vmax.f32 %v2535, 0.0
      %v2600 = vmax.f32 %v2536, 0.0
      %v2601 = vmax.f32 %v2537, 0.0
      %v2602 = vmax.f32 %v2538, 0.0
      %v2603 = vmax.f32 %v2539, 0.0
      %v2604 = vmax.f32 %v2540, 0.0
      %v2605 = vmax.f32 %v2541, 0.0
      %v2606 = vmax.f32 %v2542, 0.0
      %v2607 = vmax.f32 %v2543, 0.0
      %v2608 = vmax.f32 %v2544, 0.0
      %v2609 = vmax.f32 %v2545, 0.0
      %v2610 = vmax.f32 %v2546, 0.0
      %v2611 = vmax.f32 %v2547, 0.0
      %v2612 = vmax.f32 %v2548, 0.0
      %v2613 = vmax.f32 %v2549, 0.0
      %v2614 = vmax.f32 %v2550, 0.0
      %v2615 = vmax.f32 %v2551, 0.0
      %v2616 = vmax.f32 %v2552, 0.0
      %v2617 = vmax.f32 %v2553, 0.0
      %v2618 = vmax.f32 %v2554, 0.0
      %v2619 = vmax.f32 %v2555, 0.0
      %v2620 = vmax.f32 %v2556, 0.0
      %v2621 = vmax.f32 %v2557, 0.0
      %v2622 = vmax.f32 %v2558, 0.0
      %v2623 = vmax.f32 %v2559, 0.0
      %v2624 = vmax.f32 %v2560, 0.0
      %v2625 = vmax.f32 %v2561, 0.0
      %v2626 = vmax.f32 %v2562, 0.0
      %v2627 = vmax.f32 %v2563, 0.0
      %v2628 = vmax.f32 %v2564, 0.0
      %v2629 = vmax.f32 %v2565, 0.0
      %v2630 = vmax.f32 %v2566, 0.0
      %v2631 = vmax.f32 %v2567, 0.0
      %v2632 = vmax.f32 %v2568, 0.0
      %v2633 = vmax.f32 %v2569, 0.0
      %v2634 = vmax.f32 %v2570, 0.0
      %v2635 = vmax.f32 %v2571, 0.0
      %v2636 = vmax.f32 %v2572, 0.0
      %v2637 = vmax.f32 %v2573, 0.0
      %v2638 = vmax.f32 %v2574, 0.0
      %v2639 = vmax.f32 %v2575, 0.0
      %v2640 = vmax.f32 %v2576, 0.0
      %v2641 = vmax.f32 %v2577, 0.0
      %v2642 = vmax.f32 %v2578, 0.0
      %v2643 = vmax.f32 %v2579, 0.0
      %v2644 = vmax.f32 %v2580, 0.0
      %v2645 = vmax.f32 %v2581, 0.0
      %v2646 = vmax.f32 %v2582, 0.0
      %v2647 = vmax.f32 %v2583, 0.0
      %v2648 = vmax.f32 %v2584, 0.0
      %v2649 = vmax.f32 %v2585, 0.0
      %v2650 = vmax.f32 %v2586, 0.0
      %v2651 = vmax.f32 %v2587, 0.0
      %v2652 = vmax.f32 %v2588, 0.0
      %v2653 = vadd.f32 %v2589, %v2591
      %v2654 = vadd.f32 %v2653, %v2593
      %v2655 = vadd.f32 %v2654, %v2595
      %v2656 = vadd.f32 %v2655, %v2597
      %v2657 = vadd.f32 %v2656, %v2599
      %v2658 = vadd.f32 %v2657, %v2601
      %v2659 = vadd.f32 %v2658, %v2603
      %v2660 = vadd.f32 %v2659, %v2605
      %v2661 = vadd.f32 %v2660, %v2607
      %v2662 = vadd.f32 %v2661, %v2609
      %v2663 = vadd.f32 %v2662, %v2611
      %v2664 = vadd.f32 %v2663, %v2613
      %v2665 = vadd.f32 %v2664, %v2615
      %v2666 = vadd.f32 %v2665, %v2617
      %v2667 = vadd.f32 %v2666, %v2619
      %v2668 = vadd.f32 %v2667, %v2621
      %v2669 = vadd.f32 %v2668, %v2623
      %v2670 = vadd.f32 %v2669, %v2625
      %v2671 = vadd.f32 %v2670, %v2627
      %v2672 = vadd.f32 %v2671, %v2629
      %v2673 = vadd.f32 %v2672, %v2631
      %v2674 = vadd.f32 %v2673, %v2633
      %v2675 = vadd.f32 %v2674, %v2635
      %v2676 = vadd.f32 %v2675, %v2637
      %v2677 = vadd.f32 %v2676, %v2639
      %v2678 = vadd.f32 %v2677, %v2641
      %v2679 = vadd.f32 %v2678, %v2643
      %v2680 = vadd.f32 %v2679, %v2645
      %v2681 = vadd.f32 %v2680, %v2647
      %v2682 = vadd.f32 %v2681, %v2649
      %v2683 = vadd.f32 %v2682, %v2651
      %v2684 = vrot.slane %v2683, 4
      %v2685 = vadd.f32 %v2683, %v2684
      %v2686 = vrot.slane %v2685, 2
      %v2687 = vadd.f32 %v2685, %v2686
      %v2688 = vrot.slane %v2687, 1
      %v2689 = vadd.f32 %v2687, %v2688
      %v2690 = vadd.f32 %v2590, %v2592
      %v2691 = vadd.f32 %v2690, %v2594
      %v2692 = vadd.f32 %v2691, %v2596
      %v2693 = vadd.f32 %v2692, %v2598
      %v2694 = vadd.f32 %v2693, %v2600
      %v2695 = vadd.f32 %v2694, %v2602
      %v2696 = vadd.f32 %v2695, %v2604
      %v2697 = vadd.f32 %v2696, %v2606
      %v2698 = vadd.f32 %v2697, %v2608
      %v2699 = vadd.f32 %v2698, %v2610
      %v2700 = vadd.f32 %v2699, %v2612
      %v2701 = vadd.f32 %v2700, %v2614
      %v2702 = vadd.f32 %v2701, %v2616
      %v2703 = vadd.f32 %v2702, %v2618
      %v2704 = vadd.f32 %v2703, %v2620
      %v2705 = vadd.f32 %v2704, %v2622
      %v2706 = vadd.f32 %v2705, %v2624
      %v2707 = vadd.f32 %v2706, %v2626
      %v2708 = vadd.f32 %v2707, %v2628
      %v2709 = vadd.f32 %v2708, %v2630
      %v2710 = vadd.f32 %v2709, %v2632
      %v2711 = vadd.f32 %v2710, %v2634
      %v2712 = vadd.f32 %v2711, %v2636
      %v2713 = vadd.f32 %v2712, %v2638
      %v2714 = vadd.f32 %v2713, %v2640
      %v2715 = vadd.f32 %v2714, %v2642
      %v2716 = vadd.f32 %v2715, %v2644
      %v2717 = vadd.f32 %v2716, %v2646
      %v2718 = vadd.f32 %v2717, %v2648
      %v2719 = vadd.f32 %v2718, %v2650
      %v2720 = vadd.f32 %v2719, %v2652
      %v2721 = vrot.slane %v2720, 4
      %v2722 = vadd.f32 %v2720, %v2721
      %v2723 = vrot.slane %v2722, 2
      %v2724 = vadd.f32 %v2722, %v2723
      %v2725 = vrot.slane %v2724, 1
      %v2726 = vadd.f32 %v2724, %v2725
      %s2727 = scalar_lea.vmem %s304, 288
      %v2728 = vld [vmem:[%s2727] sm:$0xf]
      %v2729 = vld [vmem:[%s2727 + $0x4] sm:$0xf]
      %v2730 = vld [vmem:[%s2727 + $0x8] sm:$0xf]
      %v2731 = vld [vmem:[%s2727 + $0xc] sm:$0xf]
      %v2732 = vld [vmem:[%s2727 + $0x10] sm:$0xf]
      %v2733 = vld [vmem:[%s2727 + $0x14] sm:$0xf]
      %v2734 = vld [vmem:[%s2727 + $0x18] sm:$0xf]
      %v2735 = vld [vmem:[%s2727 + $0x1c] sm:$0xf]
      %v2736 = vld [vmem:[%s2727 + $0x20] sm:$0xf]
      %v2737 = vld [vmem:[%s2727 + $0x24] sm:$0xf]
      %v2738 = vld [vmem:[%s2727 + $0x28] sm:$0xf]
      %v2739 = vld [vmem:[%s2727 + $0x2c] sm:$0xf]
      %v2740 = vld [vmem:[%s2727 + $0x30] sm:$0xf]
      %v2741 = vld [vmem:[%s2727 + $0x34] sm:$0xf]
      %v2742 = vld [vmem:[%s2727 + $0x38] sm:$0xf]
      %v2743 = vld [vmem:[%s2727 + $0x3c] sm:$0xf]
      %v2744 = vld [vmem:[%s2727 + $0x40] sm:$0xf]
      %v2745 = vld [vmem:[%s2727 + $0x44] sm:$0xf]
      %v2746 = vld [vmem:[%s2727 + $0x48] sm:$0xf]
      %v2747 = vld [vmem:[%s2727 + $0x4c] sm:$0xf]
      %v2748 = vld [vmem:[%s2727 + $0x50] sm:$0xf]
      %v2749 = vld [vmem:[%s2727 + $0x54] sm:$0xf]
      %v2750 = vld [vmem:[%s2727 + $0x58] sm:$0xf]
      %v2751 = vld [vmem:[%s2727 + $0x5c] sm:$0xf]
      %v2752 = vld [vmem:[%s2727 + $0x60] sm:$0xf]
      %v2753 = vld [vmem:[%s2727 + $0x64] sm:$0xf]
      %v2754 = vld [vmem:[%s2727 + $0x68] sm:$0xf]
      %v2755 = vld [vmem:[%s2727 + $0x6c] sm:$0xf]
      %v2756 = vld [vmem:[%s2727 + $0x70] sm:$0xf]
      %v2757 = vld [vmem:[%s2727 + $0x74] sm:$0xf]
      %v2758 = vld [vmem:[%s2727 + $0x78] sm:$0xf]
      %v2759 = vld [vmem:[%s2727 + $0x7c] sm:$0xf]
      %v2760 = vld [vmem:[%s2727 + $0x80] sm:$0xf]
      %v2761 = vld [vmem:[%s2727 + $0x84] sm:$0xf]
      %v2794 = vunpack.c.l.b16 %v2730
      %v2795 = vunpack.c.l.b16 %v2731
      %v2796 = vunpack.c.l.b16 %v2732
      %v2797 = vunpack.c.l.b16 %v2733
      %v2798 = vunpack.c.l.b16 %v2734
      %v2799 = vunpack.c.l.b16 %v2735
      %v2800 = vunpack.c.l.b16 %v2736
      %v2801 = vunpack.c.l.b16 %v2737
      %v2802 = vunpack.c.l.b16 %v2738
      %v2803 = vunpack.c.l.b16 %v2739
      %v2804 = vunpack.c.l.b16 %v2740
      %v2805 = vunpack.c.l.b16 %v2741
      %v2806 = vunpack.c.l.b16 %v2742
      %v2807 = vunpack.c.l.b16 %v2743
      %v2808 = vunpack.c.l.b16 %v2744
      %v2809 = vunpack.c.l.b16 %v2745
      %v2810 = vunpack.c.l.b16 %v2746
      %v2811 = vunpack.c.l.b16 %v2747
      %v2812 = vunpack.c.l.b16 %v2748
      %v2813 = vunpack.c.l.b16 %v2749
      %v2814 = vunpack.c.l.b16 %v2750
      %v2815 = vunpack.c.l.b16 %v2751
      %v2816 = vunpack.c.l.b16 %v2752
      %v2817 = vunpack.c.l.b16 %v2753
      %v2818 = vunpack.c.l.b16 %v2754
      %v2819 = vunpack.c.l.b16 %v2755
      %v2820 = vunpack.c.l.b16 %v2756
      %v2821 = vunpack.c.l.b16 %v2757
      %v2822 = vunpack.c.l.b16 %v2758
      %v2823 = vunpack.c.l.b16 %v2759
      %v2824 = vunpack.c.l.b16 %v2760
      %v2825 = vunpack.c.l.b16 %v2761
      %v2826 = vpack.c.b16 %v2795, %v2794
      %v2827 = vpack.c.b16 %v2797, %v2796
      %v2828 = vpack.c.b16 %v2799, %v2798
      %v2829 = vpack.c.b16 %v2801, %v2800
      %v2830 = vpack.c.b16 %v2803, %v2802
      %v2831 = vpack.c.b16 %v2805, %v2804
      %v2832 = vpack.c.b16 %v2807, %v2806
      %v2833 = vpack.c.b16 %v2809, %v2808
      %v2834 = vpack.c.b16 %v2811, %v2810
      %v2835 = vpack.c.b16 %v2813, %v2812
      %v2836 = vpack.c.b16 %v2815, %v2814
      %v2837 = vpack.c.b16 %v2817, %v2816
      %v2838 = vpack.c.b16 %v2819, %v2818
      %v2839 = vpack.c.b16 %v2821, %v2820
      %v2840 = vpack.c.b16 %v2823, %v2822
      %v2841 = vpack.c.b16 %v2825, %v2824
      %v2843 = vsel %vm440, %v2826, 0
      %v2846 = vsel %vm440, %v2827, 0
      %v2849 = vsel %vm440, %v2828, 0
      %v2852 = vsel %vm440, %v2829, 0
      %v2855 = vsel %vm440, %v2830, 0
      %v2858 = vsel %vm440, %v2831, 0
      %v2861 = vsel %vm440, %v2832, 0
      %v2864 = vsel %vm440, %v2833, 0
      %v2867 = vsel %vm440, %v2834, 0
      %v2870 = vsel %vm440, %v2835, 0
      %v2873 = vsel %vm440, %v2836, 0
      %v2876 = vsel %vm440, %v2837, 0
      %v2879 = vsel %vm440, %v2838, 0
      %v2882 = vsel %vm440, %v2839, 0
      %v2885 = vsel %vm440, %v2840, 0
      %v2888 = vsel %vm440, %v2841, 0
      %2890 = vmatprep.subr.bf16.mxu0 0
      %2891 = vmatpush1.bf16.msra.mxu0 0
      %2892 = vmatprep.subr.bf16.mxu0 0
      %2893 = vmatpush1.bf16.msra.mxu0 0
      %2894 = vmatprep.subr.bf16.mxu0 0
      %2895 = vmatpush1.bf16.msra.mxu0 0
      %2896 = vmatprep.subr.bf16.mxu0 0
      %2897 = vmatpush1.bf16.msra.mxu0 0
      %2898 = vmatprep.subr.bf16.mxu0 0
      %2899 = vmatpush1.bf16.msra.mxu0 0
      %2900 = vmatprep.subr.bf16.mxu0 0
      %2901 = vmatpush1.bf16.msra.mxu0 0
      %2902 = vmatprep.subr.bf16.mxu0 0
      %2903 = vmatpush1.bf16.msra.mxu0 0
      %2904 = vmatprep.subr.bf16.mxu0 %v494
      %2905 = vmatpush1.bf16.msra.mxu0 %v491
      %2906 = vmatprep.subr.bf16.mxu0 0
      %2907 = vmatpush2.bf16.msra.mxu0 0
      %2908 = vmatprep.subr.bf16.mxu0 0
      %2909 = vmatpush2.bf16.msra.mxu0 0
      %2910 = vmatprep.subr.bf16.mxu0 0
      %2911 = vmatpush2.bf16.msra.mxu0 0
      %2912 = vmatprep.subr.bf16.mxu0 0
      %2913 = vmatpush2.bf16.msra.mxu0 0
      %2914 = vmatprep.subr.bf16.mxu0 0
      %2915 = vmatpush2.bf16.msra.mxu0 0
      %2916 = vmatprep.subr.bf16.mxu0 0
      %2917 = vmatpush2.bf16.msra.mxu0 0
      %2918 = vmatprep.subr.bf16.mxu0 0
      %2919 = vmatpush2.bf16.msra.mxu0 0
      %2920 = vmatprep.subr.bf16.mxu0 0
      %2921 = vmatpush2.bf16.msra.mxu0 0
      %2922 = vmatprep.mubr.bf16.mxu0 0
      %2923 = vmatmul.mubr.bf16.gmra.mxu0 %v2843
      %v2924 = vpop.f32.mrf.mxu0
      %v2925 = vadd.f32 0.0, %v2924
      %v2926 = vpop.f32.mrf.mxu0
      %v2927 = vadd.f32 0.0, %v2926
      %v2928 = vpop.f32.mrf.mxu0
      %v2929 = vadd.f32 0.0, %v2928
      %v2930 = vpop.f32.mrf.mxu0
      %v2931 = vadd.f32 0.0, %v2930
      %2932 = vmatprep.mubr.bf16.mxu0 0
      %2933 = vmatmul.mubr.bf16.gmra.mxu0 %v2846
      %v2934 = vpop.f32.mrf.mxu0
      %v2935 = vadd.f32 0.0, %v2934
      %v2936 = vpop.f32.mrf.mxu0
      %v2937 = vadd.f32 0.0, %v2936
      %v2938 = vpop.f32.mrf.mxu0
      %v2939 = vadd.f32 0.0, %v2938
      %v2940 = vpop.f32.mrf.mxu0
      %v2941 = vadd.f32 0.0, %v2940
      %2942 = vmatprep.mubr.bf16.mxu0 0
      %2943 = vmatmul.mubr.bf16.gmra.mxu0 %v2849
      %v2944 = vpop.f32.mrf.mxu0
      %v2945 = vadd.f32 0.0, %v2944
      %v2946 = vpop.f32.mrf.mxu0
      %v2947 = vadd.f32 0.0, %v2946
      %v2948 = vpop.f32.mrf.mxu0
      %v2949 = vadd.f32 0.0, %v2948
      %v2950 = vpop.f32.mrf.mxu0
      %v2951 = vadd.f32 0.0, %v2950
      %2952 = vmatprep.mubr.bf16.mxu0 0
      %2953 = vmatmul.mubr.bf16.gmra.mxu0 %v2852
      %v2954 = vpop.f32.mrf.mxu0
      %v2955 = vadd.f32 0.0, %v2954
      %v2956 = vpop.f32.mrf.mxu0
      %v2957 = vadd.f32 0.0, %v2956
      %v2958 = vpop.f32.mrf.mxu0
      %v2959 = vadd.f32 0.0, %v2958
      %v2960 = vpop.f32.mrf.mxu0
      %v2961 = vadd.f32 0.0, %v2960
      %2962 = vmatprep.mubr.bf16.mxu0 0
      %2963 = vmatmul.mubr.bf16.gmra.mxu0 %v2855
      %v2964 = vpop.f32.mrf.mxu0
      %v2965 = vadd.f32 0.0, %v2964
      %v2966 = vpop.f32.mrf.mxu0
      %v2967 = vadd.f32 0.0, %v2966
      %v2968 = vpop.f32.mrf.mxu0
      %v2969 = vadd.f32 0.0, %v2968
      %v2970 = vpop.f32.mrf.mxu0
      %v2971 = vadd.f32 0.0, %v2970
      %2972 = vmatprep.mubr.bf16.mxu0 0
      %2973 = vmatmul.mubr.bf16.gmra.mxu0 %v2858
      %v2974 = vpop.f32.mrf.mxu0
      %v2975 = vadd.f32 0.0, %v2974
      %v2976 = vpop.f32.mrf.mxu0
      %v2977 = vadd.f32 0.0, %v2976
      %v2978 = vpop.f32.mrf.mxu0
      %v2979 = vadd.f32 0.0, %v2978
      %v2980 = vpop.f32.mrf.mxu0
      %v2981 = vadd.f32 0.0, %v2980
      %2982 = vmatprep.mubr.bf16.mxu0 0
      %2983 = vmatmul.mubr.bf16.gmra.mxu0 %v2861
      %v2984 = vpop.f32.mrf.mxu0
      %v2985 = vadd.f32 0.0, %v2984
      %v2986 = vpop.f32.mrf.mxu0
      %v2987 = vadd.f32 0.0, %v2986
      %v2988 = vpop.f32.mrf.mxu0
      %v2989 = vadd.f32 0.0, %v2988
      %v2990 = vpop.f32.mrf.mxu0
      %v2991 = vadd.f32 0.0, %v2990
      %2992 = vmatprep.mubr.bf16.mxu0 0
      %2993 = vmatmul.mubr.bf16.gmra.mxu0 %v2864
      %v2994 = vpop.f32.mrf.mxu0
      %v2995 = vadd.f32 0.0, %v2994
      %v2996 = vpop.f32.mrf.mxu0
      %v2997 = vadd.f32 0.0, %v2996
      %v2998 = vpop.f32.mrf.mxu0
      %v2999 = vadd.f32 0.0, %v2998
      %v3000 = vpop.f32.mrf.mxu0
      %v3001 = vadd.f32 0.0, %v3000
      %3002 = vmatprep.mubr.bf16.mxu0 0
      %3003 = vmatmul.mubr.bf16.gmra.mxu0 %v2867
      %v3004 = vpop.f32.mrf.mxu0
      %v3005 = vadd.f32 0.0, %v3004
      %v3006 = vpop.f32.mrf.mxu0
      %v3007 = vadd.f32 0.0, %v3006
      %v3008 = vpop.f32.mrf.mxu0
      %v3009 = vadd.f32 0.0, %v3008
      %v3010 = vpop.f32.mrf.mxu0
      %v3011 = vadd.f32 0.0, %v3010
      %3012 = vmatprep.mubr.bf16.mxu0 0
      %3013 = vmatmul.mubr.bf16.gmra.mxu0 %v2870
      %v3014 = vpop.f32.mrf.mxu0
      %v3015 = vadd.f32 0.0, %v3014
      %v3016 = vpop.f32.mrf.mxu0
      %v3017 = vadd.f32 0.0, %v3016
      %v3018 = vpop.f32.mrf.mxu0
      %v3019 = vadd.f32 0.0, %v3018
      %v3020 = vpop.f32.mrf.mxu0
      %v3021 = vadd.f32 0.0, %v3020
      %3022 = vmatprep.mubr.bf16.mxu0 0
      %3023 = vmatmul.mubr.bf16.gmra.mxu0 %v2873
      %v3024 = vpop.f32.mrf.mxu0
      %v3025 = vadd.f32 0.0, %v3024
      %v3026 = vpop.f32.mrf.mxu0
      %v3027 = vadd.f32 0.0, %v3026
      %v3028 = vpop.f32.mrf.mxu0
      %v3029 = vadd.f32 0.0, %v3028
      %v3030 = vpop.f32.mrf.mxu0
      %v3031 = vadd.f32 0.0, %v3030
      %3032 = vmatprep.mubr.bf16.mxu0 0
      %3033 = vmatmul.mubr.bf16.gmra.mxu0 %v2876
      %v3034 = vpop.f32.mrf.mxu0
      %v3035 = vadd.f32 0.0, %v3034
      %v3036 = vpop.f32.mrf.mxu0
      %v3037 = vadd.f32 0.0, %v3036
      %v3038 = vpop.f32.mrf.mxu0
      %v3039 = vadd.f32 0.0, %v3038
      %v3040 = vpop.f32.mrf.mxu0
      %v3041 = vadd.f32 0.0, %v3040
      %3042 = vmatprep.mubr.bf16.mxu0 0
      %3043 = vmatmul.mubr.bf16.gmra.mxu0 %v2879
      %v3044 = vpop.f32.mrf.mxu0
      %v3045 = vadd.f32 0.0, %v3044
      %v3046 = vpop.f32.mrf.mxu0
      %v3047 = vadd.f32 0.0, %v3046
      %v3048 = vpop.f32.mrf.mxu0
      %v3049 = vadd.f32 0.0, %v3048
      %v3050 = vpop.f32.mrf.mxu0
      %v3051 = vadd.f32 0.0, %v3050
      %3052 = vmatprep.mubr.bf16.mxu0 0
      %3053 = vmatmul.mubr.bf16.gmra.mxu0 %v2882
      %v3054 = vpop.f32.mrf.mxu0
      %v3055 = vadd.f32 0.0, %v3054
      %v3056 = vpop.f32.mrf.mxu0
      %v3057 = vadd.f32 0.0, %v3056
      %v3058 = vpop.f32.mrf.mxu0
      %v3059 = vadd.f32 0.0, %v3058
      %v3060 = vpop.f32.mrf.mxu0
      %v3061 = vadd.f32 0.0, %v3060
      %3062 = vmatprep.mubr.bf16.mxu0 0
      %3063 = vmatmul.mubr.bf16.gmra.mxu0 %v2885
      %v3064 = vpop.f32.mrf.mxu0
      %v3065 = vadd.f32 0.0, %v3064
      %v3066 = vpop.f32.mrf.mxu0
      %v3067 = vadd.f32 0.0, %v3066
      %v3068 = vpop.f32.mrf.mxu0
      %v3069 = vadd.f32 0.0, %v3068
      %v3070 = vpop.f32.mrf.mxu0
      %v3071 = vadd.f32 0.0, %v3070
      %3072 = vmatprep.mubr.bf16.mxu0 0
      %3073 = vmatmul.mubr.bf16.gmra.mxu0 %v2888
      %v3074 = vpop.f32.mrf.mxu0
      %v3075 = vadd.f32 0.0, %v3074
      %v3076 = vpop.f32.mrf.mxu0
      %v3077 = vadd.f32 0.0, %v3076
      %v3078 = vpop.f32.mrf.mxu0
      %v3079 = vadd.f32 0.0, %v3078
      %v3080 = vpop.f32.mrf.mxu0
      %v3081 = vadd.f32 0.0, %v3080
      %3082 = vdwg.mxu0
      %v3085 = vunpack.c.l.b16 %v2728
      %v3086 = vunpack.c.l.b16 %v2729
      %v3087 = vpack.c.b16 %v3086, %v3085
      %v3089 = vsel %vm440, %v3087, 0
      %3091 = vmatprep.subr.bf16.mxu0 0
      %3092 = vmatpush1.bf16.msra.mxu0 0
      %3093 = vmatprep.subr.bf16.mxu0 0
      %3094 = vmatpush1.bf16.msra.mxu0 0
      %3095 = vmatprep.subr.bf16.mxu0 0
      %3096 = vmatpush1.bf16.msra.mxu0 0
      %3097 = vmatprep.subr.bf16.mxu0 0
      %3098 = vmatpush1.bf16.msra.mxu0 0
      %3099 = vmatprep.subr.bf16.mxu0 0
      %3100 = vmatpush1.bf16.msra.mxu0 0
      %3101 = vmatprep.subr.bf16.mxu0 0
      %3102 = vmatpush1.bf16.msra.mxu0 0
      %3103 = vmatprep.subr.bf16.mxu0 0
      %3104 = vmatpush1.bf16.msra.mxu0 0
      %3105 = vmatprep.subr.bf16.mxu0 %v709
      %3106 = vmatpush1.bf16.msra.mxu0 %v706
      %3107 = vmatprep.subr.bf16.mxu0 0
      %3108 = vmatpush2.bf16.msra.mxu0 0
      %3109 = vmatprep.subr.bf16.mxu0 0
      %3110 = vmatpush2.bf16.msra.mxu0 0
      %3111 = vmatprep.subr.bf16.mxu0 0
      %3112 = vmatpush2.bf16.msra.mxu0 0
      %3113 = vmatprep.subr.bf16.mxu0 0
      %3114 = vmatpush2.bf16.msra.mxu0 0
      %3115 = vmatprep.subr.bf16.mxu0 0
      %3116 = vmatpush2.bf16.msra.mxu0 0
      %3117 = vmatprep.subr.bf16.mxu0 0
      %3118 = vmatpush2.bf16.msra.mxu0 0
      %3119 = vmatprep.subr.bf16.mxu0 0
      %3120 = vmatpush2.bf16.msra.mxu0 0
      %3121 = vmatprep.subr.bf16.mxu0 0
      %3122 = vmatpush2.bf16.msra.mxu0 0
      %3123 = vmatprep.mubr.bf16.mxu0 0
      %3124 = vmatmul.mubr.bf16.gmra.mxu0 %v3089
      %v3125 = vpop.f32.mrf.mxu0
      %v3126 = vadd.f32 %v2925, %v3125
      %v3127 = vpop.f32.mrf.mxu0
      %v3128 = vadd.f32 %v2927, %v3127
      %v3129 = vpop.f32.mrf.mxu0
      %v3130 = vadd.f32 %v2929, %v3129
      %v3131 = vpop.f32.mrf.mxu0
      %v3132 = vadd.f32 %v2931, %v3131
      %3133 = vmatprep.mubr.bf16.mxu0 0
      %3134 = vmatmul.mubr.bf16.gmra.mxu0 %v2843
      %v3135 = vpop.f32.mrf.mxu0
      %v3136 = vadd.f32 %v2935, %v3135
      %v3137 = vpop.f32.mrf.mxu0
      %v3138 = vadd.f32 %v2937, %v3137
      %v3139 = vpop.f32.mrf.mxu0
      %v3140 = vadd.f32 %v2939, %v3139
      %v3141 = vpop.f32.mrf.mxu0
      %v3142 = vadd.f32 %v2941, %v3141
      %3143 = vmatprep.mubr.bf16.mxu0 0
      %3144 = vmatmul.mubr.bf16.gmra.mxu0 %v2846
      %v3145 = vpop.f32.mrf.mxu0
      %v3146 = vadd.f32 %v2945, %v3145
      %v3147 = vpop.f32.mrf.mxu0
      %v3148 = vadd.f32 %v2947, %v3147
      %v3149 = vpop.f32.mrf.mxu0
      %v3150 = vadd.f32 %v2949, %v3149
      %v3151 = vpop.f32.mrf.mxu0
      %v3152 = vadd.f32 %v2951, %v3151
      %3153 = vmatprep.mubr.bf16.mxu0 0
      %3154 = vmatmul.mubr.bf16.gmra.mxu0 %v2849
      %v3155 = vpop.f32.mrf.mxu0
      %v3156 = vadd.f32 %v2955, %v3155
      %v3157 = vpop.f32.mrf.mxu0
      %v3158 = vadd.f32 %v2957, %v3157
      %v3159 = vpop.f32.mrf.mxu0
      %v3160 = vadd.f32 %v2959, %v3159
      %v3161 = vpop.f32.mrf.mxu0
      %v3162 = vadd.f32 %v2961, %v3161
      %3163 = vmatprep.mubr.bf16.mxu0 0
      %3164 = vmatmul.mubr.bf16.gmra.mxu0 %v2852
      %v3165 = vpop.f32.mrf.mxu0
      %v3166 = vadd.f32 %v2965, %v3165
      %v3167 = vpop.f32.mrf.mxu0
      %v3168 = vadd.f32 %v2967, %v3167
      %v3169 = vpop.f32.mrf.mxu0
      %v3170 = vadd.f32 %v2969, %v3169
      %v3171 = vpop.f32.mrf.mxu0
      %v3172 = vadd.f32 %v2971, %v3171
      %3173 = vmatprep.mubr.bf16.mxu0 0
      %3174 = vmatmul.mubr.bf16.gmra.mxu0 %v2855
      %v3175 = vpop.f32.mrf.mxu0
      %v3176 = vadd.f32 %v2975, %v3175
      %v3177 = vpop.f32.mrf.mxu0
      %v3178 = vadd.f32 %v2977, %v3177
      %v3179 = vpop.f32.mrf.mxu0
      %v3180 = vadd.f32 %v2979, %v3179
      %v3181 = vpop.f32.mrf.mxu0
      %v3182 = vadd.f32 %v2981, %v3181
      %3183 = vmatprep.mubr.bf16.mxu0 0
      %3184 = vmatmul.mubr.bf16.gmra.mxu0 %v2858
      %v3185 = vpop.f32.mrf.mxu0
      %v3186 = vadd.f32 %v2985, %v3185
      %v3187 = vpop.f32.mrf.mxu0
      %v3188 = vadd.f32 %v2987, %v3187
      %v3189 = vpop.f32.mrf.mxu0
      %v3190 = vadd.f32 %v2989, %v3189
      %v3191 = vpop.f32.mrf.mxu0
      %v3192 = vadd.f32 %v2991, %v3191
      %3193 = vmatprep.mubr.bf16.mxu0 0
      %3194 = vmatmul.mubr.bf16.gmra.mxu0 %v2861
      %v3195 = vpop.f32.mrf.mxu0
      %v3196 = vadd.f32 %v2995, %v3195
      %v3197 = vpop.f32.mrf.mxu0
      %v3198 = vadd.f32 %v2997, %v3197
      %v3199 = vpop.f32.mrf.mxu0
      %v3200 = vadd.f32 %v2999, %v3199
      %v3201 = vpop.f32.mrf.mxu0
      %v3202 = vadd.f32 %v3001, %v3201
      %3203 = vmatprep.mubr.bf16.mxu0 0
      %3204 = vmatmul.mubr.bf16.gmra.mxu0 %v2864
      %v3205 = vpop.f32.mrf.mxu0
      %v3206 = vadd.f32 %v3005, %v3205
      %v3207 = vpop.f32.mrf.mxu0
      %v3208 = vadd.f32 %v3007, %v3207
      %v3209 = vpop.f32.mrf.mxu0
      %v3210 = vadd.f32 %v3009, %v3209
      %v3211 = vpop.f32.mrf.mxu0
      %v3212 = vadd.f32 %v3011, %v3211
      %3213 = vmatprep.mubr.bf16.mxu0 0
      %3214 = vmatmul.mubr.bf16.gmra.mxu0 %v2867
      %v3215 = vpop.f32.mrf.mxu0
      %v3216 = vadd.f32 %v3015, %v3215
      %v3217 = vpop.f32.mrf.mxu0
      %v3218 = vadd.f32 %v3017, %v3217
      %v3219 = vpop.f32.mrf.mxu0
      %v3220 = vadd.f32 %v3019, %v3219
      %v3221 = vpop.f32.mrf.mxu0
      %v3222 = vadd.f32 %v3021, %v3221
      %3223 = vmatprep.mubr.bf16.mxu0 0
      %3224 = vmatmul.mubr.bf16.gmra.mxu0 %v2870
      %v3225 = vpop.f32.mrf.mxu0
      %v3226 = vadd.f32 %v3025, %v3225
      %v3227 = vpop.f32.mrf.mxu0
      %v3228 = vadd.f32 %v3027, %v3227
      %v3229 = vpop.f32.mrf.mxu0
      %v3230 = vadd.f32 %v3029, %v3229
      %v3231 = vpop.f32.mrf.mxu0
      %v3232 = vadd.f32 %v3031, %v3231
      %3233 = vmatprep.mubr.bf16.mxu0 0
      %3234 = vmatmul.mubr.bf16.gmra.mxu0 %v2873
      %v3235 = vpop.f32.mrf.mxu0
      %v3236 = vadd.f32 %v3035, %v3235
      %v3237 = vpop.f32.mrf.mxu0
      %v3238 = vadd.f32 %v3037, %v3237
      %v3239 = vpop.f32.mrf.mxu0
      %v3240 = vadd.f32 %v3039, %v3239
      %v3241 = vpop.f32.mrf.mxu0
      %v3242 = vadd.f32 %v3041, %v3241
      %3243 = vmatprep.mubr.bf16.mxu0 0
      %3244 = vmatmul.mubr.bf16.gmra.mxu0 %v2876
      %v3245 = vpop.f32.mrf.mxu0
      %v3246 = vadd.f32 %v3045, %v3245
      %v3247 = vpop.f32.mrf.mxu0
      %v3248 = vadd.f32 %v3047, %v3247
      %v3249 = vpop.f32.mrf.mxu0
      %v3250 = vadd.f32 %v3049, %v3249
      %v3251 = vpop.f32.mrf.mxu0
      %v3252 = vadd.f32 %v3051, %v3251
      %3253 = vmatprep.mubr.bf16.mxu0 0
      %3254 = vmatmul.mubr.bf16.gmra.mxu0 %v2879
      %v3255 = vpop.f32.mrf.mxu0
      %v3256 = vadd.f32 %v3055, %v3255
      %v3257 = vpop.f32.mrf.mxu0
      %v3258 = vadd.f32 %v3057, %v3257
      %v3259 = vpop.f32.mrf.mxu0
      %v3260 = vadd.f32 %v3059, %v3259
      %v3261 = vpop.f32.mrf.mxu0
      %v3262 = vadd.f32 %v3061, %v3261
      %3263 = vmatprep.mubr.bf16.mxu0 0
      %3264 = vmatmul.mubr.bf16.gmra.mxu0 %v2882
      %v3265 = vpop.f32.mrf.mxu0
      %v3266 = vadd.f32 %v3065, %v3265
      %v3267 = vpop.f32.mrf.mxu0
      %v3268 = vadd.f32 %v3067, %v3267
      %v3269 = vpop.f32.mrf.mxu0
      %v3270 = vadd.f32 %v3069, %v3269
      %v3271 = vpop.f32.mrf.mxu0
      %v3272 = vadd.f32 %v3071, %v3271
      %3273 = vmatprep.mubr.bf16.mxu0 0
      %3274 = vmatmul.mubr.bf16.gmra.mxu0 %v2885
      %v3275 = vpop.f32.mrf.mxu0
      %v3276 = vadd.f32 %v3075, %v3275
      %v3277 = vpop.f32.mrf.mxu0
      %v3278 = vadd.f32 %v3077, %v3277
      %v3279 = vpop.f32.mrf.mxu0
      %v3280 = vadd.f32 %v3079, %v3279
      %v3281 = vpop.f32.mrf.mxu0
      %v3282 = vadd.f32 %v3081, %v3281
      %3283 = vdwg.mxu0
      %v3284 = vld [vmem:[%s2727 + $0x10] sm:$0xf]
      %v3285 = vld [vmem:[%s2727 + $0x14] sm:$0xf]
      %v3286 = vld [vmem:[%s2727 + $0x18] sm:$0xf]
      %v3287 = vld [vmem:[%s2727 + $0x1c] sm:$0xf]
      %v3288 = vld [vmem:[%s2727 + $0x20] sm:$0xf]
      %v3289 = vld [vmem:[%s2727 + $0x24] sm:$0xf]
      %v3290 = vld [vmem:[%s2727 + $0x28] sm:$0xf]
      %v3291 = vld [vmem:[%s2727 + $0x2c] sm:$0xf]
      %v3292 = vld [vmem:[%s2727 + $0x30] sm:$0xf]
      %v3293 = vld [vmem:[%s2727 + $0x34] sm:$0xf]
      %v3294 = vld [vmem:[%s2727 + $0x38] sm:$0xf]
      %v3295 = vld [vmem:[%s2727 + $0x3c] sm:$0xf]
      %v3296 = vld [vmem:[%s2727 + $0x40] sm:$0xf]
      %v3297 = vld [vmem:[%s2727 + $0x44] sm:$0xf]
      %v3298 = vld [vmem:[%s2727 + $0x48] sm:$0xf]
      %v3299 = vld [vmem:[%s2727 + $0x4c] sm:$0xf]
      %v3300 = vld [vmem:[%s2727 + $0x50] sm:$0xf]
      %v3301 = vld [vmem:[%s2727 + $0x54] sm:$0xf]
      %v3302 = vld [vmem:[%s2727 + $0x58] sm:$0xf]
      %v3303 = vld [vmem:[%s2727 + $0x5c] sm:$0xf]
      %v3304 = vld [vmem:[%s2727 + $0x60] sm:$0xf]
      %v3305 = vld [vmem:[%s2727 + $0x64] sm:$0xf]
      %v3306 = vld [vmem:[%s2727 + $0x68] sm:$0xf]
      %v3307 = vld [vmem:[%s2727 + $0x6c] sm:$0xf]
      %v3308 = vld [vmem:[%s2727 + $0x70] sm:$0xf]
      %v3309 = vld [vmem:[%s2727 + $0x74] sm:$0xf]
      %v3310 = vld [vmem:[%s2727 + $0x78] sm:$0xf]
      %v3311 = vld [vmem:[%s2727 + $0x7c] sm:$0xf]
      %v3312 = vld [vmem:[%s2727 + $0x80] sm:$0xf]
      %v3313 = vld [vmem:[%s2727 + $0x84] sm:$0xf]
      %v3314 = vld [vmem:[%s2727 + $0x88] sm:$0xf]
      %v3315 = vld [vmem:[%s2727 + $0x8c] sm:$0xf]
      %v3348 = vunpack.c.l.b16 %v3284
      %v3349 = vunpack.c.l.b16 %v3285
      %v3350 = vunpack.c.l.b16 %v3286
      %v3351 = vunpack.c.l.b16 %v3287
      %v3352 = vunpack.c.l.b16 %v3288
      %v3353 = vunpack.c.l.b16 %v3289
      %v3354 = vunpack.c.l.b16 %v3290
      %v3355 = vunpack.c.l.b16 %v3291
      %v3356 = vunpack.c.l.b16 %v3292
      %v3357 = vunpack.c.l.b16 %v3293
      %v3358 = vunpack.c.l.b16 %v3294
      %v3359 = vunpack.c.l.b16 %v3295
      %v3360 = vunpack.c.l.b16 %v3296
      %v3361 = vunpack.c.l.b16 %v3297
      %v3362 = vunpack.c.l.b16 %v3298
      %v3363 = vunpack.c.l.b16 %v3299
      %v3364 = vunpack.c.l.b16 %v3300
      %v3365 = vunpack.c.l.b16 %v3301
      %v3366 = vunpack.c.l.b16 %v3302
      %v3367 = vunpack.c.l.b16 %v3303
      %v3368 = vunpack.c.l.b16 %v3304
      %v3369 = vunpack.c.l.b16 %v3305
      %v3370 = vunpack.c.l.b16 %v3306
      %v3371 = vunpack.c.l.b16 %v3307
      %v3372 = vunpack.c.l.b16 %v3308
      %v3373 = vunpack.c.l.b16 %v3309
      %v3374 = vunpack.c.l.b16 %v3310
      %v3375 = vunpack.c.l.b16 %v3311
      %v3376 = vunpack.c.l.b16 %v3312
      %v3377 = vunpack.c.l.b16 %v3313
      %v3378 = vunpack.c.l.b16 %v3314
      %v3379 = vunpack.c.l.b16 %v3315
      %v3380 = vpack.c.b16 %v3349, %v3348
      %v3381 = vpack.c.b16 %v3351, %v3350
      %v3382 = vpack.c.b16 %v3353, %v3352
      %v3383 = vpack.c.b16 %v3355, %v3354
      %v3384 = vpack.c.b16 %v3357, %v3356
      %v3385 = vpack.c.b16 %v3359, %v3358
      %v3386 = vpack.c.b16 %v3361, %v3360
      %v3387 = vpack.c.b16 %v3363, %v3362
      %v3388 = vpack.c.b16 %v3365, %v3364
      %v3389 = vpack.c.b16 %v3367, %v3366
      %v3390 = vpack.c.b16 %v3369, %v3368
      %v3391 = vpack.c.b16 %v3371, %v3370
      %v3392 = vpack.c.b16 %v3373, %v3372
      %v3393 = vpack.c.b16 %v3375, %v3374
      %v3394 = vpack.c.b16 %v3377, %v3376
      %v3395 = vpack.c.b16 %v3379, %v3378
      %v3397 = vsel %vm440, %v3380, 0
      %v3400 = vsel %vm440, %v3381, 0
      %v3403 = vsel %vm440, %v3382, 0
      %v3406 = vsel %vm440, %v3383, 0
      %v3409 = vsel %vm440, %v3384, 0
      %v3412 = vsel %vm440, %v3385, 0
      %v3415 = vsel %vm440, %v3386, 0
      %v3418 = vsel %vm440, %v3387, 0
      %v3421 = vsel %vm440, %v3388, 0
      %v3424 = vsel %vm440, %v3389, 0
      %v3427 = vsel %vm440, %v3390, 0
      %v3430 = vsel %vm440, %v3391, 0
      %v3433 = vsel %vm440, %v3392, 0
      %v3436 = vsel %vm440, %v3393, 0
      %v3439 = vsel %vm440, %v3394, 0
      %v3442 = vsel %vm440, %v3395, 0
      %3444 = vmatprep.subr.bf16.mxu0 0
      %3445 = vmatpush1.bf16.msra.mxu0 0
      %3446 = vmatprep.subr.bf16.mxu0 0
      %3447 = vmatpush1.bf16.msra.mxu0 0
      %3448 = vmatprep.subr.bf16.mxu0 0
      %3449 = vmatpush1.bf16.msra.mxu0 0
      %3450 = vmatprep.subr.bf16.mxu0 0
      %3451 = vmatpush1.bf16.msra.mxu0 0
      %3452 = vmatprep.subr.bf16.mxu0 0
      %3453 = vmatpush1.bf16.msra.mxu0 0
      %3454 = vmatprep.subr.bf16.mxu0 0
      %3455 = vmatpush1.bf16.msra.mxu0 0
      %3456 = vmatprep.subr.bf16.mxu0 0
      %3457 = vmatpush1.bf16.msra.mxu0 0
      %3458 = vmatprep.subr.bf16.mxu0 %v1079
      %3459 = vmatpush1.bf16.msra.mxu0 %v1076
      %3460 = vmatprep.subr.bf16.mxu0 0
      %3461 = vmatpush2.bf16.msra.mxu0 0
      %3462 = vmatprep.subr.bf16.mxu0 0
      %3463 = vmatpush2.bf16.msra.mxu0 0
      %3464 = vmatprep.subr.bf16.mxu0 0
      %3465 = vmatpush2.bf16.msra.mxu0 0
      %3466 = vmatprep.subr.bf16.mxu0 0
      %3467 = vmatpush2.bf16.msra.mxu0 0
      %3468 = vmatprep.subr.bf16.mxu0 0
      %3469 = vmatpush2.bf16.msra.mxu0 0
      %3470 = vmatprep.subr.bf16.mxu0 0
      %3471 = vmatpush2.bf16.msra.mxu0 0
      %3472 = vmatprep.subr.bf16.mxu0 0
      %3473 = vmatpush2.bf16.msra.mxu0 0
      %3474 = vmatprep.subr.bf16.mxu0 0
      %3475 = vmatpush2.bf16.msra.mxu0 0
      %3476 = vmatprep.mubr.bf16.mxu0 0
      %3477 = vmatmul.mubr.bf16.gmra.mxu0 %v3397
      %v3478 = vpop.f32.mrf.mxu0
      %v3479 = vadd.f32 0.0, %v3478
      %v3480 = vpop.f32.mrf.mxu0
      %v3481 = vadd.f32 0.0, %v3480
      %v3482 = vpop.f32.mrf.mxu0
      %v3483 = vadd.f32 0.0, %v3482
      %v3484 = vpop.f32.mrf.mxu0
      %v3485 = vadd.f32 0.0, %v3484
      %3486 = vmatprep.mubr.bf16.mxu0 0
      %3487 = vmatmul.mubr.bf16.gmra.mxu0 %v3400
      %v3488 = vpop.f32.mrf.mxu0
      %v3489 = vadd.f32 0.0, %v3488
      %v3490 = vpop.f32.mrf.mxu0
      %v3491 = vadd.f32 0.0, %v3490
      %v3492 = vpop.f32.mrf.mxu0
      %v3493 = vadd.f32 0.0, %v3492
      %v3494 = vpop.f32.mrf.mxu0
      %v3495 = vadd.f32 0.0, %v3494
      %3496 = vmatprep.mubr.bf16.mxu0 0
      %3497 = vmatmul.mubr.bf16.gmra.mxu0 %v3403
      %v3498 = vpop.f32.mrf.mxu0
      %v3499 = vadd.f32 0.0, %v3498
      %v3500 = vpop.f32.mrf.mxu0
      %v3501 = vadd.f32 0.0, %v3500
      %v3502 = vpop.f32.mrf.mxu0
      %v3503 = vadd.f32 0.0, %v3502
      %v3504 = vpop.f32.mrf.mxu0
      %v3505 = vadd.f32 0.0, %v3504
      %3506 = vmatprep.mubr.bf16.mxu0 0
      %3507 = vmatmul.mubr.bf16.gmra.mxu0 %v3406
      %v3508 = vpop.f32.mrf.mxu0
      %v3509 = vadd.f32 0.0, %v3508
      %v3510 = vpop.f32.mrf.mxu0
      %v3511 = vadd.f32 0.0, %v3510
      %v3512 = vpop.f32.mrf.mxu0
      %v3513 = vadd.f32 0.0, %v3512
      %v3514 = vpop.f32.mrf.mxu0
      %v3515 = vadd.f32 0.0, %v3514
      %3516 = vmatprep.mubr.bf16.mxu0 0
      %3517 = vmatmul.mubr.bf16.gmra.mxu0 %v3409
      %v3518 = vpop.f32.mrf.mxu0
      %v3519 = vadd.f32 0.0, %v3518
      %v3520 = vpop.f32.mrf.mxu0
      %v3521 = vadd.f32 0.0, %v3520
      %v3522 = vpop.f32.mrf.mxu0
      %v3523 = vadd.f32 0.0, %v3522
      %v3524 = vpop.f32.mrf.mxu0
      %v3525 = vadd.f32 0.0, %v3524
      %3526 = vmatprep.mubr.bf16.mxu0 0
      %3527 = vmatmul.mubr.bf16.gmra.mxu0 %v3412
      %v3528 = vpop.f32.mrf.mxu0
      %v3529 = vadd.f32 0.0, %v3528
      %v3530 = vpop.f32.mrf.mxu0
      %v3531 = vadd.f32 0.0, %v3530
      %v3532 = vpop.f32.mrf.mxu0
      %v3533 = vadd.f32 0.0, %v3532
      %v3534 = vpop.f32.mrf.mxu0
      %v3535 = vadd.f32 0.0, %v3534
      %3536 = vmatprep.mubr.bf16.mxu0 0
      %3537 = vmatmul.mubr.bf16.gmra.mxu0 %v3415
      %v3538 = vpop.f32.mrf.mxu0
      %v3539 = vadd.f32 0.0, %v3538
      %v3540 = vpop.f32.mrf.mxu0
      %v3541 = vadd.f32 0.0, %v3540
      %v3542 = vpop.f32.mrf.mxu0
      %v3543 = vadd.f32 0.0, %v3542
      %v3544 = vpop.f32.mrf.mxu0
      %v3545 = vadd.f32 0.0, %v3544
      %3546 = vmatprep.mubr.bf16.mxu0 0
      %3547 = vmatmul.mubr.bf16.gmra.mxu0 %v3418
      %v3548 = vpop.f32.mrf.mxu0
      %v3549 = vadd.f32 0.0, %v3548
      %v3550 = vpop.f32.mrf.mxu0
      %v3551 = vadd.f32 0.0, %v3550
      %v3552 = vpop.f32.mrf.mxu0
      %v3553 = vadd.f32 0.0, %v3552
      %v3554 = vpop.f32.mrf.mxu0
      %v3555 = vadd.f32 0.0, %v3554
      %3556 = vmatprep.mubr.bf16.mxu0 0
      %3557 = vmatmul.mubr.bf16.gmra.mxu0 %v3421
      %v3558 = vpop.f32.mrf.mxu0
      %v3559 = vadd.f32 0.0, %v3558
      %v3560 = vpop.f32.mrf.mxu0
      %v3561 = vadd.f32 0.0, %v3560
      %v3562 = vpop.f32.mrf.mxu0
      %v3563 = vadd.f32 0.0, %v3562
      %v3564 = vpop.f32.mrf.mxu0
      %v3565 = vadd.f32 0.0, %v3564
      %3566 = vmatprep.mubr.bf16.mxu0 0
      %3567 = vmatmul.mubr.bf16.gmra.mxu0 %v3424
      %v3568 = vpop.f32.mrf.mxu0
      %v3569 = vadd.f32 0.0, %v3568
      %v3570 = vpop.f32.mrf.mxu0
      %v3571 = vadd.f32 0.0, %v3570
      %v3572 = vpop.f32.mrf.mxu0
      %v3573 = vadd.f32 0.0, %v3572
      %v3574 = vpop.f32.mrf.mxu0
      %v3575 = vadd.f32 0.0, %v3574
      %3576 = vmatprep.mubr.bf16.mxu0 0
      %3577 = vmatmul.mubr.bf16.gmra.mxu0 %v3427
      %v3578 = vpop.f32.mrf.mxu0
      %v3579 = vadd.f32 0.0, %v3578
      %v3580 = vpop.f32.mrf.mxu0
      %v3581 = vadd.f32 0.0, %v3580
      %v3582 = vpop.f32.mrf.mxu0
      %v3583 = vadd.f32 0.0, %v3582
      %v3584 = vpop.f32.mrf.mxu0
      %v3585 = vadd.f32 0.0, %v3584
      %3586 = vmatprep.mubr.bf16.mxu0 0
      %3587 = vmatmul.mubr.bf16.gmra.mxu0 %v3430
      %v3588 = vpop.f32.mrf.mxu0
      %v3589 = vadd.f32 0.0, %v3588
      %v3590 = vpop.f32.mrf.mxu0
      %v3591 = vadd.f32 0.0, %v3590
      %v3592 = vpop.f32.mrf.mxu0
      %v3593 = vadd.f32 0.0, %v3592
      %v3594 = vpop.f32.mrf.mxu0
      %v3595 = vadd.f32 0.0, %v3594
      %3596 = vmatprep.mubr.bf16.mxu0 0
      %3597 = vmatmul.mubr.bf16.gmra.mxu0 %v3433
      %v3598 = vpop.f32.mrf.mxu0
      %v3599 = vadd.f32 0.0, %v3598
      %v3600 = vpop.f32.mrf.mxu0
      %v3601 = vadd.f32 0.0, %v3600
      %v3602 = vpop.f32.mrf.mxu0
      %v3603 = vadd.f32 0.0, %v3602
      %v3604 = vpop.f32.mrf.mxu0
      %v3605 = vadd.f32 0.0, %v3604
      %3606 = vmatprep.mubr.bf16.mxu0 0
      %3607 = vmatmul.mubr.bf16.gmra.mxu0 %v3436
      %v3608 = vpop.f32.mrf.mxu0
      %v3609 = vadd.f32 0.0, %v3608
      %v3610 = vpop.f32.mrf.mxu0
      %v3611 = vadd.f32 0.0, %v3610
      %v3612 = vpop.f32.mrf.mxu0
      %v3613 = vadd.f32 0.0, %v3612
      %v3614 = vpop.f32.mrf.mxu0
      %v3615 = vadd.f32 0.0, %v3614
      %3616 = vmatprep.mubr.bf16.mxu0 0
      %3617 = vmatmul.mubr.bf16.gmra.mxu0 %v3439
      %v3618 = vpop.f32.mrf.mxu0
      %v3619 = vadd.f32 0.0, %v3618
      %v3620 = vpop.f32.mrf.mxu0
      %v3621 = vadd.f32 0.0, %v3620
      %v3622 = vpop.f32.mrf.mxu0
      %v3623 = vadd.f32 0.0, %v3622
      %v3624 = vpop.f32.mrf.mxu0
      %v3625 = vadd.f32 0.0, %v3624
      %3626 = vmatprep.mubr.bf16.mxu0 0
      %3627 = vmatmul.mubr.bf16.gmra.mxu0 %v3442
      %v3628 = vpop.f32.mrf.mxu0
      %v3629 = vadd.f32 0.0, %v3628
      %v3630 = vpop.f32.mrf.mxu0
      %v3631 = vadd.f32 0.0, %v3630
      %v3632 = vpop.f32.mrf.mxu0
      %v3633 = vadd.f32 0.0, %v3632
      %v3634 = vpop.f32.mrf.mxu0
      %v3635 = vadd.f32 0.0, %v3634
      %3636 = vdwg.mxu0
      %v3637 = vadd.f32 %v3126, %v3479
      %v3638 = vadd.f32 %v3128, %v3481
      %v3639 = vadd.f32 %v3130, %v3483
      %v3640 = vadd.f32 %v3132, %v3485
      %v3641 = vadd.f32 %v3136, %v3489
      %v3642 = vadd.f32 %v3138, %v3491
      %v3643 = vadd.f32 %v3140, %v3493
      %v3644 = vadd.f32 %v3142, %v3495
      %v3645 = vadd.f32 %v3146, %v3499
      %v3646 = vadd.f32 %v3148, %v3501
      %v3647 = vadd.f32 %v3150, %v3503
      %v3648 = vadd.f32 %v3152, %v3505
      %v3649 = vadd.f32 %v3156, %v3509
      %v3650 = vadd.f32 %v3158, %v3511
      %v3651 = vadd.f32 %v3160, %v3513
      %v3652 = vadd.f32 %v3162, %v3515
      %v3653 = vadd.f32 %v3166, %v3519
      %v3654 = vadd.f32 %v3168, %v3521
      %v3655 = vadd.f32 %v3170, %v3523
      %v3656 = vadd.f32 %v3172, %v3525
      %v3657 = vadd.f32 %v3176, %v3529
      %v3658 = vadd.f32 %v3178, %v3531
      %v3659 = vadd.f32 %v3180, %v3533
      %v3660 = vadd.f32 %v3182, %v3535
      %v3661 = vadd.f32 %v3186, %v3539
      %v3662 = vadd.f32 %v3188, %v3541
      %v3663 = vadd.f32 %v3190, %v3543
      %v3664 = vadd.f32 %v3192, %v3545
      %v3665 = vadd.f32 %v3196, %v3549
      %v3666 = vadd.f32 %v3198, %v3551
      %v3667 = vadd.f32 %v3200, %v3553
      %v3668 = vadd.f32 %v3202, %v3555
      %v3669 = vadd.f32 %v3206, %v3559
      %v3670 = vadd.f32 %v3208, %v3561
      %v3671 = vadd.f32 %v3210, %v3563
      %v3672 = vadd.f32 %v3212, %v3565
      %v3673 = vadd.f32 %v3216, %v3569
      %v3674 = vadd.f32 %v3218, %v3571
      %v3675 = vadd.f32 %v3220, %v3573
      %v3676 = vadd.f32 %v3222, %v3575
      %v3677 = vadd.f32 %v3226, %v3579
      %v3678 = vadd.f32 %v3228, %v3581
      %v3679 = vadd.f32 %v3230, %v3583
      %v3680 = vadd.f32 %v3232, %v3585
      %v3681 = vadd.f32 %v3236, %v3589
      %v3682 = vadd.f32 %v3238, %v3591
      %v3683 = vadd.f32 %v3240, %v3593
      %v3684 = vadd.f32 %v3242, %v3595
      %v3685 = vadd.f32 %v3246, %v3599
      %v3686 = vadd.f32 %v3248, %v3601
      %v3687 = vadd.f32 %v3250, %v3603
      %v3688 = vadd.f32 %v3252, %v3605
      %v3689 = vadd.f32 %v3256, %v3609
      %v3690 = vadd.f32 %v3258, %v3611
      %v3691 = vadd.f32 %v3260, %v3613
      %v3692 = vadd.f32 %v3262, %v3615
      %v3693 = vadd.f32 %v3266, %v3619
      %v3694 = vadd.f32 %v3268, %v3621
      %v3695 = vadd.f32 %v3270, %v3623
      %v3696 = vadd.f32 %v3272, %v3625
      %v3697 = vadd.f32 %v3276, %v3629
      %v3698 = vadd.f32 %v3278, %v3631
      %v3699 = vadd.f32 %v3280, %v3633
      %v3700 = vadd.f32 %v3282, %v3635
      %v3701 = vadd.f32 %v3637, %v1342
      %v3702 = vadd.f32 %v3638, %v1346
      %v3703 = vadd.f32 %v3639, %v1342
      %v3704 = vadd.f32 %v3640, %v1346
      %v3705 = vadd.f32 %v3641, %v1342
      %v3706 = vadd.f32 %v3642, %v1346
      %v3707 = vadd.f32 %v3643, %v1342
      %v3708 = vadd.f32 %v3644, %v1346
      %v3709 = vadd.f32 %v3645, %v1342
      %v3710 = vadd.f32 %v3646, %v1346
      %v3711 = vadd.f32 %v3647, %v1342
      %v3712 = vadd.f32 %v3648, %v1346
      %v3713 = vadd.f32 %v3649, %v1342
      %v3714 = vadd.f32 %v3650, %v1346
      %v3715 = vadd.f32 %v3651, %v1342
      %v3716 = vadd.f32 %v3652, %v1346
      %v3717 = vadd.f32 %v3653, %v1342
      %v3718 = vadd.f32 %v3654, %v1346
      %v3719 = vadd.f32 %v3655, %v1342
      %v3720 = vadd.f32 %v3656, %v1346
      %v3721 = vadd.f32 %v3657, %v1342
      %v3722 = vadd.f32 %v3658, %v1346
      %v3723 = vadd.f32 %v3659, %v1342
      %v3724 = vadd.f32 %v3660, %v1346
      %v3725 = vadd.f32 %v3661, %v1342
      %v3726 = vadd.f32 %v3662, %v1346
      %v3727 = vadd.f32 %v3663, %v1342
      %v3728 = vadd.f32 %v3664, %v1346
      %v3729 = vadd.f32 %v3665, %v1342
      %v3730 = vadd.f32 %v3666, %v1346
      %v3731 = vadd.f32 %v3667, %v1342
      %v3732 = vadd.f32 %v3668, %v1346
      %v3733 = vadd.f32 %v3669, %v1342
      %v3734 = vadd.f32 %v3670, %v1346
      %v3735 = vadd.f32 %v3671, %v1342
      %v3736 = vadd.f32 %v3672, %v1346
      %v3737 = vadd.f32 %v3673, %v1342
      %v3738 = vadd.f32 %v3674, %v1346
      %v3739 = vadd.f32 %v3675, %v1342
      %v3740 = vadd.f32 %v3676, %v1346
      %v3741 = vadd.f32 %v3677, %v1342
      %v3742 = vadd.f32 %v3678, %v1346
      %v3743 = vadd.f32 %v3679, %v1342
      %v3744 = vadd.f32 %v3680, %v1346
      %v3745 = vadd.f32 %v3681, %v1342
      %v3746 = vadd.f32 %v3682, %v1346
      %v3747 = vadd.f32 %v3683, %v1342
      %v3748 = vadd.f32 %v3684, %v1346
      %v3749 = vadd.f32 %v3685, %v1342
      %v3750 = vadd.f32 %v3686, %v1346
      %v3751 = vadd.f32 %v3687, %v1342
      %v3752 = vadd.f32 %v3688, %v1346
      %v3753 = vadd.f32 %v3689, %v1342
      %v3754 = vadd.f32 %v3690, %v1346
      %v3755 = vadd.f32 %v3691, %v1342
      %v3756 = vadd.f32 %v3692, %v1346
      %v3757 = vadd.f32 %v3693, %v1342
      %v3758 = vadd.f32 %v3694, %v1346
      %v3759 = vadd.f32 %v3695, %v1342
      %v3760 = vadd.f32 %v3696, %v1346
      %v3761 = vadd.f32 %v3697, %v1342
      %v3762 = vadd.f32 %v3698, %v1346
      %v3763 = vadd.f32 %v3699, %v1342
      %v3764 = vadd.f32 %v3700, %v1346
      %v3765 = vmax.f32 %v3701, 0.0
      %v3766 = vmax.f32 %v3702, 0.0
      %v3767 = vmax.f32 %v3703, 0.0
      %v3768 = vmax.f32 %v3704, 0.0
      %v3769 = vmax.f32 %v3705, 0.0
      %v3770 = vmax.f32 %v3706, 0.0
      %v3771 = vmax.f32 %v3707, 0.0
      %v3772 = vmax.f32 %v3708, 0.0
      %v3773 = vmax.f32 %v3709, 0.0
      %v3774 = vmax.f32 %v3710, 0.0
      %v3775 = vmax.f32 %v3711, 0.0
      %v3776 = vmax.f32 %v3712, 0.0
      %v3777 = vmax.f32 %v3713, 0.0
      %v3778 = vmax.f32 %v3714, 0.0
      %v3779 = vmax.f32 %v3715, 0.0
      %v3780 = vmax.f32 %v3716, 0.0
      %v3781 = vmax.f32 %v3717, 0.0
      %v3782 = vmax.f32 %v3718, 0.0
      %v3783 = vmax.f32 %v3719, 0.0
      %v3784 = vmax.f32 %v3720, 0.0
      %v3785 = vmax.f32 %v3721, 0.0
      %v3786 = vmax.f32 %v3722, 0.0
      %v3787 = vmax.f32 %v3723, 0.0
      %v3788 = vmax.f32 %v3724, 0.0
      %v3789 = vmax.f32 %v3725, 0.0
      %v3790 = vmax.f32 %v3726, 0.0
      %v3791 = vmax.f32 %v3727, 0.0
      %v3792 = vmax.f32 %v3728, 0.0
      %v3793 = vmax.f32 %v3729, 0.0
      %v3794 = vmax.f32 %v3730, 0.0
      %v3795 = vmax.f32 %v3731, 0.0
      %v3796 = vmax.f32 %v3732, 0.0
      %v3797 = vmax.f32 %v3733, 0.0
      %v3798 = vmax.f32 %v3734, 0.0
      %v3799 = vmax.f32 %v3735, 0.0
      %v3800 = vmax.f32 %v3736, 0.0
      %v3801 = vmax.f32 %v3737, 0.0
      %v3802 = vmax.f32 %v3738, 0.0
      %v3803 = vmax.f32 %v3739, 0.0
      %v3804 = vmax.f32 %v3740, 0.0
      %v3805 = vmax.f32 %v3741, 0.0
      %v3806 = vmax.f32 %v3742, 0.0
      %v3807 = vmax.f32 %v3743, 0.0
      %v3808 = vmax.f32 %v3744, 0.0
      %v3809 = vmax.f32 %v3745, 0.0
      %v3810 = vmax.f32 %v3746, 0.0
      %v3811 = vmax.f32 %v3747, 0.0
      %v3812 = vmax.f32 %v3748, 0.0
      %v3813 = vmax.f32 %v3749, 0.0
      %v3814 = vmax.f32 %v3750, 0.0
      %v3815 = vmax.f32 %v3751, 0.0
      %v3816 = vmax.f32 %v3752, 0.0
      %v3817 = vmax.f32 %v3753, 0.0
      %v3818 = vmax.f32 %v3754, 0.0
      %v3819 = vmax.f32 %v3755, 0.0
      %v3820 = vmax.f32 %v3756, 0.0
      %v3821 = vmax.f32 %v3757, 0.0
      %v3822 = vmax.f32 %v3758, 0.0
      %v3823 = vmax.f32 %v3759, 0.0
      %v3824 = vmax.f32 %v3760, 0.0
      %v3825 = vmax.f32 %v3761, 0.0
      %v3826 = vmax.f32 %v3762, 0.0
      %v3827 = vmax.f32 %v3763, 0.0
      %v3828 = vmax.f32 %v3764, 0.0
      %v3829 = vadd.f32 %v3765, %v3767
      %v3830 = vadd.f32 %v3829, %v3769
      %v3831 = vadd.f32 %v3830, %v3771
      %v3832 = vadd.f32 %v3831, %v3773
      %v3833 = vadd.f32 %v3832, %v3775
      %v3834 = vadd.f32 %v3833, %v3777
      %v3835 = vadd.f32 %v3834, %v3779
      %v3836 = vadd.f32 %v3835, %v3781
      %v3837 = vadd.f32 %v3836, %v3783
      %v3838 = vadd.f32 %v3837, %v3785
      %v3839 = vadd.f32 %v3838, %v3787
      %v3840 = vadd.f32 %v3839, %v3789
      %v3841 = vadd.f32 %v3840, %v3791
      %v3842 = vadd.f32 %v3841, %v3793
      %v3843 = vadd.f32 %v3842, %v3795
      %v3844 = vadd.f32 %v3843, %v3797
      %v3845 = vadd.f32 %v3844, %v3799
      %v3846 = vadd.f32 %v3845, %v3801
      %v3847 = vadd.f32 %v3846, %v3803
      %v3848 = vadd.f32 %v3847, %v3805
      %v3849 = vadd.f32 %v3848, %v3807
      %v3850 = vadd.f32 %v3849, %v3809
      %v3851 = vadd.f32 %v3850, %v3811
      %v3852 = vadd.f32 %v3851, %v3813
      %v3853 = vadd.f32 %v3852, %v3815
      %v3854 = vadd.f32 %v3853, %v3817
      %v3855 = vadd.f32 %v3854, %v3819
      %v3856 = vadd.f32 %v3855, %v3821
      %v3857 = vadd.f32 %v3856, %v3823
      %v3858 = vadd.f32 %v3857, %v3825
      %v3859 = vadd.f32 %v3858, %v3827
      %v3860 = vrot.slane %v3859, 4
      %v3861 = vadd.f32 %v3859, %v3860
      %v3862 = vrot.slane %v3861, 2
      %v3863 = vadd.f32 %v3861, %v3862
      %v3864 = vrot.slane %v3863, 1
      %v3865 = vadd.f32 %v3863, %v3864
      %v3866 = vadd.f32 %v3766, %v3768
      %v3867 = vadd.f32 %v3866, %v3770
      %v3868 = vadd.f32 %v3867, %v3772
      %v3869 = vadd.f32 %v3868, %v3774
      %v3870 = vadd.f32 %v3869, %v3776
      %v3871 = vadd.f32 %v3870, %v3778
      %v3872 = vadd.f32 %v3871, %v3780
      %v3873 = vadd.f32 %v3872, %v3782
      %v3874 = vadd.f32 %v3873, %v3784
      %v3875 = vadd.f32 %v3874, %v3786
      %v3876 = vadd.f32 %v3875, %v3788
      %v3877 = vadd.f32 %v3876, %v3790
      %v3878 = vadd.f32 %v3877, %v3792
      %v3879 = vadd.f32 %v3878, %v3794
      %v3880 = vadd.f32 %v3879, %v3796
      %v3881 = vadd.f32 %v3880, %v3798
      %v3882 = vadd.f32 %v3881, %v3800
      %v3883 = vadd.f32 %v3882, %v3802
      %v3884 = vadd.f32 %v3883, %v3804
      %v3885 = vadd.f32 %v3884, %v3806
      %v3886 = vadd.f32 %v3885, %v3808
      %v3887 = vadd.f32 %v3886, %v3810
      %v3888 = vadd.f32 %v3887, %v3812
      %v3889 = vadd.f32 %v3888, %v3814
      %v3890 = vadd.f32 %v3889, %v3816
      %v3891 = vadd.f32 %v3890, %v3818
      %v3892 = vadd.f32 %v3891, %v3820
      %v3893 = vadd.f32 %v3892, %v3822
      %v3894 = vadd.f32 %v3893, %v3824
      %v3895 = vadd.f32 %v3894, %v3826
      %v3896 = vadd.f32 %v3895, %v3828
      %v3897 = vrot.slane %v3896, 4
      %v3898 = vadd.f32 %v3896, %v3897
      %v3899 = vrot.slane %v3898, 2
      %v3900 = vadd.f32 %v3898, %v3899
      %v3901 = vrot.slane %v3900, 1
      %v3902 = vadd.f32 %v3900, %v3901
      %s3903 = scalar_lea.vmem %s304, 432
      %v3904 = vld [vmem:[%s3903] sm:$0xf]
      %v3905 = vld [vmem:[%s3903 + $0x4] sm:$0xf]
      %v3906 = vld [vmem:[%s3903 + $0x8] sm:$0xf]
      %v3907 = vld [vmem:[%s3903 + $0xc] sm:$0xf]
      %v3908 = vld [vmem:[%s3903 + $0x10] sm:$0xf]
      %v3909 = vld [vmem:[%s3903 + $0x14] sm:$0xf]
      %v3910 = vld [vmem:[%s3903 + $0x18] sm:$0xf]
      %v3911 = vld [vmem:[%s3903 + $0x1c] sm:$0xf]
      %v3912 = vld [vmem:[%s3903 + $0x20] sm:$0xf]
      %v3913 = vld [vmem:[%s3903 + $0x24] sm:$0xf]
      %v3914 = vld [vmem:[%s3903 + $0x28] sm:$0xf]
      %v3915 = vld [vmem:[%s3903 + $0x2c] sm:$0xf]
      %v3916 = vld [vmem:[%s3903 + $0x30] sm:$0xf]
      %v3917 = vld [vmem:[%s3903 + $0x34] sm:$0xf]
      %v3918 = vld [vmem:[%s3903 + $0x38] sm:$0xf]
      %v3919 = vld [vmem:[%s3903 + $0x3c] sm:$0xf]
      %v3920 = vld [vmem:[%s3903 + $0x40] sm:$0xf]
      %v3921 = vld [vmem:[%s3903 + $0x44] sm:$0xf]
      %v3922 = vld [vmem:[%s3903 + $0x48] sm:$0xf]
      %v3923 = vld [vmem:[%s3903 + $0x4c] sm:$0xf]
      %v3924 = vld [vmem:[%s3903 + $0x50] sm:$0xf]
      %v3925 = vld [vmem:[%s3903 + $0x54] sm:$0xf]
      %v3926 = vld [vmem:[%s3903 + $0x58] sm:$0xf]
      %v3927 = vld [vmem:[%s3903 + $0x5c] sm:$0xf]
      %v3928 = vld [vmem:[%s3903 + $0x60] sm:$0xf]
      %v3929 = vld [vmem:[%s3903 + $0x64] sm:$0xf]
      %v3930 = vld [vmem:[%s3903 + $0x68] sm:$0xf]
      %v3931 = vld [vmem:[%s3903 + $0x6c] sm:$0xf]
      %v3932 = vld [vmem:[%s3903 + $0x70] sm:$0xf]
      %v3933 = vld [vmem:[%s3903 + $0x74] sm:$0xf]
      %v3934 = vld [vmem:[%s3903 + $0x78] sm:$0xf]
      %v3935 = vld [vmem:[%s3903 + $0x7c] sm:$0xf]
      %v3936 = vld [vmem:[%s3903 + $0x80] sm:$0xf]
      %v3937 = vld [vmem:[%s3903 + $0x84] sm:$0xf]
      %v3970 = vunpack.c.l.b16 %v3906
      %v3971 = vunpack.c.l.b16 %v3907
      %v3972 = vunpack.c.l.b16 %v3908
      %v3973 = vunpack.c.l.b16 %v3909
      %v3974 = vunpack.c.l.b16 %v3910
      %v3975 = vunpack.c.l.b16 %v3911
      %v3976 = vunpack.c.l.b16 %v3912
      %v3977 = vunpack.c.l.b16 %v3913
      %v3978 = vunpack.c.l.b16 %v3914
      %v3979 = vunpack.c.l.b16 %v3915
      %v3980 = vunpack.c.l.b16 %v3916
      %v3981 = vunpack.c.l.b16 %v3917
      %v3982 = vunpack.c.l.b16 %v3918
      %v3983 = vunpack.c.l.b16 %v3919
      %v3984 = vunpack.c.l.b16 %v3920
      %v3985 = vunpack.c.l.b16 %v3921
      %v3986 = vunpack.c.l.b16 %v3922
      %v3987 = vunpack.c.l.b16 %v3923
      %v3988 = vunpack.c.l.b16 %v3924
      %v3989 = vunpack.c.l.b16 %v3925
      %v3990 = vunpack.c.l.b16 %v3926
      %v3991 = vunpack.c.l.b16 %v3927
      %v3992 = vunpack.c.l.b16 %v3928
      %v3993 = vunpack.c.l.b16 %v3929
      %v3994 = vunpack.c.l.b16 %v3930
      %v3995 = vunpack.c.l.b16 %v3931
      %v3996 = vunpack.c.l.b16 %v3932
      %v3997 = vunpack.c.l.b16 %v3933
      %v3998 = vunpack.c.l.b16 %v3934
      %v3999 = vunpack.c.l.b16 %v3935
      %v4000 = vunpack.c.l.b16 %v3936
      %v4001 = vunpack.c.l.b16 %v3937
      %v4002 = vpack.c.b16 %v3971, %v3970
      %v4003 = vpack.c.b16 %v3973, %v3972
      %v4004 = vpack.c.b16 %v3975, %v3974
      %v4005 = vpack.c.b16 %v3977, %v3976
      %v4006 = vpack.c.b16 %v3979, %v3978
      %v4007 = vpack.c.b16 %v3981, %v3980
      %v4008 = vpack.c.b16 %v3983, %v3982
      %v4009 = vpack.c.b16 %v3985, %v3984
      %v4010 = vpack.c.b16 %v3987, %v3986
      %v4011 = vpack.c.b16 %v3989, %v3988
      %v4012 = vpack.c.b16 %v3991, %v3990
      %v4013 = vpack.c.b16 %v3993, %v3992
      %v4014 = vpack.c.b16 %v3995, %v3994
      %v4015 = vpack.c.b16 %v3997, %v3996
      %v4016 = vpack.c.b16 %v3999, %v3998
      %v4017 = vpack.c.b16 %v4001, %v4000
      %v4019 = vsel %vm440, %v4002, 0
      %v4022 = vsel %vm440, %v4003, 0
      %v4025 = vsel %vm440, %v4004, 0
      %v4028 = vsel %vm440, %v4005, 0
      %v4031 = vsel %vm440, %v4006, 0
      %v4034 = vsel %vm440, %v4007, 0
      %v4037 = vsel %vm440, %v4008, 0
      %v4040 = vsel %vm440, %v4009, 0
      %v4043 = vsel %vm440, %v4010, 0
      %v4046 = vsel %vm440, %v4011, 0
      %v4049 = vsel %vm440, %v4012, 0
      %v4052 = vsel %vm440, %v4013, 0
      %v4055 = vsel %vm440, %v4014, 0
      %v4058 = vsel %vm440, %v4015, 0
      %v4061 = vsel %vm440, %v4016, 0
      %v4064 = vsel %vm440, %v4017, 0
      %4066 = vmatprep.subr.bf16.mxu0 0
      %4067 = vmatpush1.bf16.msra.mxu0 0
      %4068 = vmatprep.subr.bf16.mxu0 0
      %4069 = vmatpush1.bf16.msra.mxu0 0
      %4070 = vmatprep.subr.bf16.mxu0 0
      %4071 = vmatpush1.bf16.msra.mxu0 0
      %4072 = vmatprep.subr.bf16.mxu0 0
      %4073 = vmatpush1.bf16.msra.mxu0 0
      %4074 = vmatprep.subr.bf16.mxu0 0
      %4075 = vmatpush1.bf16.msra.mxu0 0
      %4076 = vmatprep.subr.bf16.mxu0 0
      %4077 = vmatpush1.bf16.msra.mxu0 0
      %4078 = vmatprep.subr.bf16.mxu0 0
      %4079 = vmatpush1.bf16.msra.mxu0 0
      %4080 = vmatprep.subr.bf16.mxu0 %v494
      %4081 = vmatpush1.bf16.msra.mxu0 %v491
      %4082 = vmatprep.subr.bf16.mxu0 0
      %4083 = vmatpush2.bf16.msra.mxu0 0
      %4084 = vmatprep.subr.bf16.mxu0 0
      %4085 = vmatpush2.bf16.msra.mxu0 0
      %4086 = vmatprep.subr.bf16.mxu0 0
      %4087 = vmatpush2.bf16.msra.mxu0 0
      %4088 = vmatprep.subr.bf16.mxu0 0
      %4089 = vmatpush2.bf16.msra.mxu0 0
      %4090 = vmatprep.subr.bf16.mxu0 0
      %4091 = vmatpush2.bf16.msra.mxu0 0
      %4092 = vmatprep.subr.bf16.mxu0 0
      %4093 = vmatpush2.bf16.msra.mxu0 0
      %4094 = vmatprep.subr.bf16.mxu0 0
      %4095 = vmatpush2.bf16.msra.mxu0 0
      %4096 = vmatprep.subr.bf16.mxu0 0
      %4097 = vmatpush2.bf16.msra.mxu0 0
      %4098 = vmatprep.mubr.bf16.mxu0 0
      %4099 = vmatmul.mubr.bf16.gmra.mxu0 %v4019
      %v4100 = vpop.f32.mrf.mxu0
      %v4101 = vadd.f32 0.0, %v4100
      %v4102 = vpop.f32.mrf.mxu0
      %v4103 = vadd.f32 0.0, %v4102
      %v4104 = vpop.f32.mrf.mxu0
      %v4105 = vadd.f32 0.0, %v4104
      %v4106 = vpop.f32.mrf.mxu0
      %v4107 = vadd.f32 0.0, %v4106
      %4108 = vmatprep.mubr.bf16.mxu0 0
      %4109 = vmatmul.mubr.bf16.gmra.mxu0 %v4022
      %v4110 = vpop.f32.mrf.mxu0
      %v4111 = vadd.f32 0.0, %v4110
      %v4112 = vpop.f32.mrf.mxu0
      %v4113 = vadd.f32 0.0, %v4112
      %v4114 = vpop.f32.mrf.mxu0
      %v4115 = vadd.f32 0.0, %v4114
      %v4116 = vpop.f32.mrf.mxu0
      %v4117 = vadd.f32 0.0, %v4116
      %4118 = vmatprep.mubr.bf16.mxu0 0
      %4119 = vmatmul.mubr.bf16.gmra.mxu0 %v4025
      %v4120 = vpop.f32.mrf.mxu0
      %v4121 = vadd.f32 0.0, %v4120
      %v4122 = vpop.f32.mrf.mxu0
      %v4123 = vadd.f32 0.0, %v4122
      %v4124 = vpop.f32.mrf.mxu0
      %v4125 = vadd.f32 0.0, %v4124
      %v4126 = vpop.f32.mrf.mxu0
      %v4127 = vadd.f32 0.0, %v4126
      %4128 = vmatprep.mubr.bf16.mxu0 0
      %4129 = vmatmul.mubr.bf16.gmra.mxu0 %v4028
      %v4130 = vpop.f32.mrf.mxu0
      %v4131 = vadd.f32 0.0, %v4130
      %v4132 = vpop.f32.mrf.mxu0
      %v4133 = vadd.f32 0.0, %v4132
      %v4134 = vpop.f32.mrf.mxu0
      %v4135 = vadd.f32 0.0, %v4134
      %v4136 = vpop.f32.mrf.mxu0
      %v4137 = vadd.f32 0.0, %v4136
      %4138 = vmatprep.mubr.bf16.mxu0 0
      %4139 = vmatmul.mubr.bf16.gmra.mxu0 %v4031
      %v4140 = vpop.f32.mrf.mxu0
      %v4141 = vadd.f32 0.0, %v4140
      %v4142 = vpop.f32.mrf.mxu0
      %v4143 = vadd.f32 0.0, %v4142
      %v4144 = vpop.f32.mrf.mxu0
      %v4145 = vadd.f32 0.0, %v4144
      %v4146 = vpop.f32.mrf.mxu0
      %v4147 = vadd.f32 0.0, %v4146
      %4148 = vmatprep.mubr.bf16.mxu0 0
      %4149 = vmatmul.mubr.bf16.gmra.mxu0 %v4034
      %v4150 = vpop.f32.mrf.mxu0
      %v4151 = vadd.f32 0.0, %v4150
      %v4152 = vpop.f32.mrf.mxu0
      %v4153 = vadd.f32 0.0, %v4152
      %v4154 = vpop.f32.mrf.mxu0
      %v4155 = vadd.f32 0.0, %v4154
      %v4156 = vpop.f32.mrf.mxu0
      %v4157 = vadd.f32 0.0, %v4156
      %4158 = vmatprep.mubr.bf16.mxu0 0
      %4159 = vmatmul.mubr.bf16.gmra.mxu0 %v4037
      %v4160 = vpop.f32.mrf.mxu0
      %v4161 = vadd.f32 0.0, %v4160
      %v4162 = vpop.f32.mrf.mxu0
      %v4163 = vadd.f32 0.0, %v4162
      %v4164 = vpop.f32.mrf.mxu0
      %v4165 = vadd.f32 0.0, %v4164
      %v4166 = vpop.f32.mrf.mxu0
      %v4167 = vadd.f32 0.0, %v4166
      %4168 = vmatprep.mubr.bf16.mxu0 0
      %4169 = vmatmul.mubr.bf16.gmra.mxu0 %v4040
      %v4170 = vpop.f32.mrf.mxu0
      %v4171 = vadd.f32 0.0, %v4170
      %v4172 = vpop.f32.mrf.mxu0
      %v4173 = vadd.f32 0.0, %v4172
      %v4174 = vpop.f32.mrf.mxu0
      %v4175 = vadd.f32 0.0, %v4174
      %v4176 = vpop.f32.mrf.mxu0
      %v4177 = vadd.f32 0.0, %v4176
      %4178 = vmatprep.mubr.bf16.mxu0 0
      %4179 = vmatmul.mubr.bf16.gmra.mxu0 %v4043
      %v4180 = vpop.f32.mrf.mxu0
      %v4181 = vadd.f32 0.0, %v4180
      %v4182 = vpop.f32.mrf.mxu0
      %v4183 = vadd.f32 0.0, %v4182
      %v4184 = vpop.f32.mrf.mxu0
      %v4185 = vadd.f32 0.0, %v4184
      %v4186 = vpop.f32.mrf.mxu0
      %v4187 = vadd.f32 0.0, %v4186
      %4188 = vmatprep.mubr.bf16.mxu0 0
      %4189 = vmatmul.mubr.bf16.gmra.mxu0 %v4046
      %v4190 = vpop.f32.mrf.mxu0
      %v4191 = vadd.f32 0.0, %v4190
      %v4192 = vpop.f32.mrf.mxu0
      %v4193 = vadd.f32 0.0, %v4192
      %v4194 = vpop.f32.mrf.mxu0
      %v4195 = vadd.f32 0.0, %v4194
      %v4196 = vpop.f32.mrf.mxu0
      %v4197 = vadd.f32 0.0, %v4196
      %4198 = vmatprep.mubr.bf16.mxu0 0
      %4199 = vmatmul.mubr.bf16.gmra.mxu0 %v4049
      %v4200 = vpop.f32.mrf.mxu0
      %v4201 = vadd.f32 0.0, %v4200
      %v4202 = vpop.f32.mrf.mxu0
      %v4203 = vadd.f32 0.0, %v4202
      %v4204 = vpop.f32.mrf.mxu0
      %v4205 = vadd.f32 0.0, %v4204
      %v4206 = vpop.f32.mrf.mxu0
      %v4207 = vadd.f32 0.0, %v4206
      %4208 = vmatprep.mubr.bf16.mxu0 0
      %4209 = vmatmul.mubr.bf16.gmra.mxu0 %v4052
      %v4210 = vpop.f32.mrf.mxu0
      %v4211 = vadd.f32 0.0, %v4210
      %v4212 = vpop.f32.mrf.mxu0
      %v4213 = vadd.f32 0.0, %v4212
      %v4214 = vpop.f32.mrf.mxu0
      %v4215 = vadd.f32 0.0, %v4214
      %v4216 = vpop.f32.mrf.mxu0
      %v4217 = vadd.f32 0.0, %v4216
      %4218 = vmatprep.mubr.bf16.mxu0 0
      %4219 = vmatmul.mubr.bf16.gmra.mxu0 %v4055
      %v4220 = vpop.f32.mrf.mxu0
      %v4221 = vadd.f32 0.0, %v4220
      %v4222 = vpop.f32.mrf.mxu0
      %v4223 = vadd.f32 0.0, %v4222
      %v4224 = vpop.f32.mrf.mxu0
      %v4225 = vadd.f32 0.0, %v4224
      %v4226 = vpop.f32.mrf.mxu0
      %v4227 = vadd.f32 0.0, %v4226
      %4228 = vmatprep.mubr.bf16.mxu0 0
      %4229 = vmatmul.mubr.bf16.gmra.mxu0 %v4058
      %v4230 = vpop.f32.mrf.mxu0
      %v4231 = vadd.f32 0.0, %v4230
      %v4232 = vpop.f32.mrf.mxu0
      %v4233 = vadd.f32 0.0, %v4232
      %v4234 = vpop.f32.mrf.mxu0
      %v4235 = vadd.f32 0.0, %v4234
      %v4236 = vpop.f32.mrf.mxu0
      %v4237 = vadd.f32 0.0, %v4236
      %4238 = vmatprep.mubr.bf16.mxu0 0
      %4239 = vmatmul.mubr.bf16.gmra.mxu0 %v4061
      %v4240 = vpop.f32.mrf.mxu0
      %v4241 = vadd.f32 0.0, %v4240
      %v4242 = vpop.f32.mrf.mxu0
      %v4243 = vadd.f32 0.0, %v4242
      %v4244 = vpop.f32.mrf.mxu0
      %v4245 = vadd.f32 0.0, %v4244
      %v4246 = vpop.f32.mrf.mxu0
      %v4247 = vadd.f32 0.0, %v4246
      %4248 = vmatprep.mubr.bf16.mxu0 0
      %4249 = vmatmul.mubr.bf16.gmra.mxu0 %v4064
      %v4250 = vpop.f32.mrf.mxu0
      %v4251 = vadd.f32 0.0, %v4250
      %v4252 = vpop.f32.mrf.mxu0
      %v4253 = vadd.f32 0.0, %v4252
      %v4254 = vpop.f32.mrf.mxu0
      %v4255 = vadd.f32 0.0, %v4254
      %v4256 = vpop.f32.mrf.mxu0
      %v4257 = vadd.f32 0.0, %v4256
      %4258 = vdwg.mxu0
      %v4261 = vunpack.c.l.b16 %v3904
      %v4262 = vunpack.c.l.b16 %v3905
      %v4263 = vpack.c.b16 %v4262, %v4261
      %v4265 = vsel %vm440, %v4263, 0
      %4267 = vmatprep.subr.bf16.mxu0 0
      %4268 = vmatpush1.bf16.msra.mxu0 0
      %4269 = vmatprep.subr.bf16.mxu0 0
      %4270 = vmatpush1.bf16.msra.mxu0 0
      %4271 = vmatprep.subr.bf16.mxu0 0
      %4272 = vmatpush1.bf16.msra.mxu0 0
      %4273 = vmatprep.subr.bf16.mxu0 0
      %4274 = vmatpush1.bf16.msra.mxu0 0
      %4275 = vmatprep.subr.bf16.mxu0 0
      %4276 = vmatpush1.bf16.msra.mxu0 0
      %4277 = vmatprep.subr.bf16.mxu0 0
      %4278 = vmatpush1.bf16.msra.mxu0 0
      %4279 = vmatprep.subr.bf16.mxu0 0
      %4280 = vmatpush1.bf16.msra.mxu0 0
      %4281 = vmatprep.subr.bf16.mxu0 %v709
      %4282 = vmatpush1.bf16.msra.mxu0 %v706
      %4283 = vmatprep.subr.bf16.mxu0 0
      %4284 = vmatpush2.bf16.msra.mxu0 0
      %4285 = vmatprep.subr.bf16.mxu0 0
      %4286 = vmatpush2.bf16.msra.mxu0 0
      %4287 = vmatprep.subr.bf16.mxu0 0
      %4288 = vmatpush2.bf16.msra.mxu0 0
      %4289 = vmatprep.subr.bf16.mxu0 0
      %4290 = vmatpush2.bf16.msra.mxu0 0
      %4291 = vmatprep.subr.bf16.mxu0 0
      %4292 = vmatpush2.bf16.msra.mxu0 0
      %4293 = vmatprep.subr.bf16.mxu0 0
      %4294 = vmatpush2.bf16.msra.mxu0 0
      %4295 = vmatprep.subr.bf16.mxu0 0
      %4296 = vmatpush2.bf16.msra.mxu0 0
      %4297 = vmatprep.subr.bf16.mxu0 0
      %4298 = vmatpush2.bf16.msra.mxu0 0
      %4299 = vmatprep.mubr.bf16.mxu0 0
      %4300 = vmatmul.mubr.bf16.gmra.mxu0 %v4265
      %v4301 = vpop.f32.mrf.mxu0
      %v4302 = vadd.f32 %v4101, %v4301
      %v4303 = vpop.f32.mrf.mxu0
      %v4304 = vadd.f32 %v4103, %v4303
      %v4305 = vpop.f32.mrf.mxu0
      %v4306 = vadd.f32 %v4105, %v4305
      %v4307 = vpop.f32.mrf.mxu0
      %v4308 = vadd.f32 %v4107, %v4307
      %4309 = vmatprep.mubr.bf16.mxu0 0
      %4310 = vmatmul.mubr.bf16.gmra.mxu0 %v4019
      %v4311 = vpop.f32.mrf.mxu0
      %v4312 = vadd.f32 %v4111, %v4311
      %v4313 = vpop.f32.mrf.mxu0
      %v4314 = vadd.f32 %v4113, %v4313
      %v4315 = vpop.f32.mrf.mxu0
      %v4316 = vadd.f32 %v4115, %v4315
      %v4317 = vpop.f32.mrf.mxu0
      %v4318 = vadd.f32 %v4117, %v4317
      %4319 = vmatprep.mubr.bf16.mxu0 0
      %4320 = vmatmul.mubr.bf16.gmra.mxu0 %v4022
      %v4321 = vpop.f32.mrf.mxu0
      %v4322 = vadd.f32 %v4121, %v4321
      %v4323 = vpop.f32.mrf.mxu0
      %v4324 = vadd.f32 %v4123, %v4323
      %v4325 = vpop.f32.mrf.mxu0
      %v4326 = vadd.f32 %v4125, %v4325
      %v4327 = vpop.f32.mrf.mxu0
      %v4328 = vadd.f32 %v4127, %v4327
      %4329 = vmatprep.mubr.bf16.mxu0 0
      %4330 = vmatmul.mubr.bf16.gmra.mxu0 %v4025
      %v4331 = vpop.f32.mrf.mxu0
      %v4332 = vadd.f32 %v4131, %v4331
      %v4333 = vpop.f32.mrf.mxu0
      %v4334 = vadd.f32 %v4133, %v4333
      %v4335 = vpop.f32.mrf.mxu0
      %v4336 = vadd.f32 %v4135, %v4335
      %v4337 = vpop.f32.mrf.mxu0
      %v4338 = vadd.f32 %v4137, %v4337
      %4339 = vmatprep.mubr.bf16.mxu0 0
      %4340 = vmatmul.mubr.bf16.gmra.mxu0 %v4028
      %v4341 = vpop.f32.mrf.mxu0
      %v4342 = vadd.f32 %v4141, %v4341
      %v4343 = vpop.f32.mrf.mxu0
      %v4344 = vadd.f32 %v4143, %v4343
      %v4345 = vpop.f32.mrf.mxu0
      %v4346 = vadd.f32 %v4145, %v4345
      %v4347 = vpop.f32.mrf.mxu0
      %v4348 = vadd.f32 %v4147, %v4347
      %4349 = vmatprep.mubr.bf16.mxu0 0
      %4350 = vmatmul.mubr.bf16.gmra.mxu0 %v4031
      %v4351 = vpop.f32.mrf.mxu0
      %v4352 = vadd.f32 %v4151, %v4351
      %v4353 = vpop.f32.mrf.mxu0
      %v4354 = vadd.f32 %v4153, %v4353
      %v4355 = vpop.f32.mrf.mxu0
      %v4356 = vadd.f32 %v4155, %v4355
      %v4357 = vpop.f32.mrf.mxu0
      %v4358 = vadd.f32 %v4157, %v4357
      %4359 = vmatprep.mubr.bf16.mxu0 0
      %4360 = vmatmul.mubr.bf16.gmra.mxu0 %v4034
      %v4361 = vpop.f32.mrf.mxu0
      %v4362 = vadd.f32 %v4161, %v4361
      %v4363 = vpop.f32.mrf.mxu0
      %v4364 = vadd.f32 %v4163, %v4363
      %v4365 = vpop.f32.mrf.mxu0
      %v4366 = vadd.f32 %v4165, %v4365
      %v4367 = vpop.f32.mrf.mxu0
      %v4368 = vadd.f32 %v4167, %v4367
      %4369 = vmatprep.mubr.bf16.mxu0 0
      %4370 = vmatmul.mubr.bf16.gmra.mxu0 %v4037
      %v4371 = vpop.f32.mrf.mxu0
      %v4372 = vadd.f32 %v4171, %v4371
      %v4373 = vpop.f32.mrf.mxu0
      %v4374 = vadd.f32 %v4173, %v4373
      %v4375 = vpop.f32.mrf.mxu0
      %v4376 = vadd.f32 %v4175, %v4375
      %v4377 = vpop.f32.mrf.mxu0
      %v4378 = vadd.f32 %v4177, %v4377
      %4379 = vmatprep.mubr.bf16.mxu0 0
      %4380 = vmatmul.mubr.bf16.gmra.mxu0 %v4040
      %v4381 = vpop.f32.mrf.mxu0
      %v4382 = vadd.f32 %v4181, %v4381
      %v4383 = vpop.f32.mrf.mxu0
      %v4384 = vadd.f32 %v4183, %v4383
      %v4385 = vpop.f32.mrf.mxu0
      %v4386 = vadd.f32 %v4185, %v4385
      %v4387 = vpop.f32.mrf.mxu0
      %v4388 = vadd.f32 %v4187, %v4387
      %4389 = vmatprep.mubr.bf16.mxu0 0
      %4390 = vmatmul.mubr.bf16.gmra.mxu0 %v4043
      %v4391 = vpop.f32.mrf.mxu0
      %v4392 = vadd.f32 %v4191, %v4391
      %v4393 = vpop.f32.mrf.mxu0
      %v4394 = vadd.f32 %v4193, %v4393
      %v4395 = vpop.f32.mrf.mxu0
      %v4396 = vadd.f32 %v4195, %v4395
      %v4397 = vpop.f32.mrf.mxu0
      %v4398 = vadd.f32 %v4197, %v4397
      %4399 = vmatprep.mubr.bf16.mxu0 0
      %4400 = vmatmul.mubr.bf16.gmra.mxu0 %v4046
      %v4401 = vpop.f32.mrf.mxu0
      %v4402 = vadd.f32 %v4201, %v4401
      %v4403 = vpop.f32.mrf.mxu0
      %v4404 = vadd.f32 %v4203, %v4403
      %v4405 = vpop.f32.mrf.mxu0
      %v4406 = vadd.f32 %v4205, %v4405
      %v4407 = vpop.f32.mrf.mxu0
      %v4408 = vadd.f32 %v4207, %v4407
      %4409 = vmatprep.mubr.bf16.mxu0 0
      %4410 = vmatmul.mubr.bf16.gmra.mxu0 %v4049
      %v4411 = vpop.f32.mrf.mxu0
      %v4412 = vadd.f32 %v4211, %v4411
      %v4413 = vpop.f32.mrf.mxu0
      %v4414 = vadd.f32 %v4213, %v4413
      %v4415 = vpop.f32.mrf.mxu0
      %v4416 = vadd.f32 %v4215, %v4415
      %v4417 = vpop.f32.mrf.mxu0
      %v4418 = vadd.f32 %v4217, %v4417
      %4419 = vmatprep.mubr.bf16.mxu0 0
      %4420 = vmatmul.mubr.bf16.gmra.mxu0 %v4052
      %v4421 = vpop.f32.mrf.mxu0
      %v4422 = vadd.f32 %v4221, %v4421
      %v4423 = vpop.f32.mrf.mxu0
      %v4424 = vadd.f32 %v4223, %v4423
      %v4425 = vpop.f32.mrf.mxu0
      %v4426 = vadd.f32 %v4225, %v4425
      %v4427 = vpop.f32.mrf.mxu0
      %v4428 = vadd.f32 %v4227, %v4427
      %4429 = vmatprep.mubr.bf16.mxu0 0
      %4430 = vmatmul.mubr.bf16.gmra.mxu0 %v4055
      %v4431 = vpop.f32.mrf.mxu0
      %v4432 = vadd.f32 %v4231, %v4431
      %v4433 = vpop.f32.mrf.mxu0
      %v4434 = vadd.f32 %v4233, %v4433
      %v4435 = vpop.f32.mrf.mxu0
      %v4436 = vadd.f32 %v4235, %v4435
      %v4437 = vpop.f32.mrf.mxu0
      %v4438 = vadd.f32 %v4237, %v4437
      %4439 = vmatprep.mubr.bf16.mxu0 0
      %4440 = vmatmul.mubr.bf16.gmra.mxu0 %v4058
      %v4441 = vpop.f32.mrf.mxu0
      %v4442 = vadd.f32 %v4241, %v4441
      %v4443 = vpop.f32.mrf.mxu0
      %v4444 = vadd.f32 %v4243, %v4443
      %v4445 = vpop.f32.mrf.mxu0
      %v4446 = vadd.f32 %v4245, %v4445
      %v4447 = vpop.f32.mrf.mxu0
      %v4448 = vadd.f32 %v4247, %v4447
      %4449 = vmatprep.mubr.bf16.mxu0 0
      %4450 = vmatmul.mubr.bf16.gmra.mxu0 %v4061
      %v4451 = vpop.f32.mrf.mxu0
      %v4452 = vadd.f32 %v4251, %v4451
      %v4453 = vpop.f32.mrf.mxu0
      %v4454 = vadd.f32 %v4253, %v4453
      %v4455 = vpop.f32.mrf.mxu0
      %v4456 = vadd.f32 %v4255, %v4455
      %v4457 = vpop.f32.mrf.mxu0
      %v4458 = vadd.f32 %v4257, %v4457
      %4459 = vdwg.mxu0
      %v4460 = vld [vmem:[%s3903 + $0x10] sm:$0xf]
      %v4461 = vld [vmem:[%s3903 + $0x14] sm:$0xf]
      %v4462 = vld [vmem:[%s3903 + $0x18] sm:$0xf]
      %v4463 = vld [vmem:[%s3903 + $0x1c] sm:$0xf]
      %v4464 = vld [vmem:[%s3903 + $0x20] sm:$0xf]
      %v4465 = vld [vmem:[%s3903 + $0x24] sm:$0xf]
      %v4466 = vld [vmem:[%s3903 + $0x28] sm:$0xf]
      %v4467 = vld [vmem:[%s3903 + $0x2c] sm:$0xf]
      %v4468 = vld [vmem:[%s3903 + $0x30] sm:$0xf]
      %v4469 = vld [vmem:[%s3903 + $0x34] sm:$0xf]
      %v4470 = vld [vmem:[%s3903 + $0x38] sm:$0xf]
      %v4471 = vld [vmem:[%s3903 + $0x3c] sm:$0xf]
      %v4472 = vld [vmem:[%s3903 + $0x40] sm:$0xf]
      %v4473 = vld [vmem:[%s3903 + $0x44] sm:$0xf]
      %v4474 = vld [vmem:[%s3903 + $0x48] sm:$0xf]
      %v4475 = vld [vmem:[%s3903 + $0x4c] sm:$0xf]
      %v4476 = vld [vmem:[%s3903 + $0x50] sm:$0xf]
      %v4477 = vld [vmem:[%s3903 + $0x54] sm:$0xf]
      %v4478 = vld [vmem:[%s3903 + $0x58] sm:$0xf]
      %v4479 = vld [vmem:[%s3903 + $0x5c] sm:$0xf]
      %v4480 = vld [vmem:[%s3903 + $0x60] sm:$0xf]
      %v4481 = vld [vmem:[%s3903 + $0x64] sm:$0xf]
      %v4482 = vld [vmem:[%s3903 + $0x68] sm:$0xf]
      %v4483 = vld [vmem:[%s3903 + $0x6c] sm:$0xf]
      %v4484 = vld [vmem:[%s3903 + $0x70] sm:$0xf]
      %v4485 = vld [vmem:[%s3903 + $0x74] sm:$0xf]
      %v4486 = vld [vmem:[%s3903 + $0x78] sm:$0xf]
      %v4487 = vld [vmem:[%s3903 + $0x7c] sm:$0xf]
      %v4488 = vld [vmem:[%s3903 + $0x80] sm:$0xf]
      %v4489 = vld [vmem:[%s3903 + $0x84] sm:$0xf]
      %v4490 = vld [vmem:[%s3903 + $0x88] sm:$0xf]
      %v4491 = vld [vmem:[%s3903 + $0x8c] sm:$0xf]
      %v4524 = vunpack.c.l.b16 %v4460
      %v4525 = vunpack.c.l.b16 %v4461
      %v4526 = vunpack.c.l.b16 %v4462
      %v4527 = vunpack.c.l.b16 %v4463
      %v4528 = vunpack.c.l.b16 %v4464
      %v4529 = vunpack.c.l.b16 %v4465
      %v4530 = vunpack.c.l.b16 %v4466
      %v4531 = vunpack.c.l.b16 %v4467
      %v4532 = vunpack.c.l.b16 %v4468
      %v4533 = vunpack.c.l.b16 %v4469
      %v4534 = vunpack.c.l.b16 %v4470
      %v4535 = vunpack.c.l.b16 %v4471
      %v4536 = vunpack.c.l.b16 %v4472
      %v4537 = vunpack.c.l.b16 %v4473
      %v4538 = vunpack.c.l.b16 %v4474
      %v4539 = vunpack.c.l.b16 %v4475
      %v4540 = vunpack.c.l.b16 %v4476
      %v4541 = vunpack.c.l.b16 %v4477
      %v4542 = vunpack.c.l.b16 %v4478
      %v4543 = vunpack.c.l.b16 %v4479
      %v4544 = vunpack.c.l.b16 %v4480
      %v4545 = vunpack.c.l.b16 %v4481
      %v4546 = vunpack.c.l.b16 %v4482
      %v4547 = vunpack.c.l.b16 %v4483
      %v4548 = vunpack.c.l.b16 %v4484
      %v4549 = vunpack.c.l.b16 %v4485
      %v4550 = vunpack.c.l.b16 %v4486
      %v4551 = vunpack.c.l.b16 %v4487
      %v4552 = vunpack.c.l.b16 %v4488
      %v4553 = vunpack.c.l.b16 %v4489
      %v4554 = vunpack.c.l.b16 %v4490
      %v4555 = vunpack.c.l.b16 %v4491
      %v4556 = vpack.c.b16 %v4525, %v4524
      %v4557 = vpack.c.b16 %v4527, %v4526
      %v4558 = vpack.c.b16 %v4529, %v4528
      %v4559 = vpack.c.b16 %v4531, %v4530
      %v4560 = vpack.c.b16 %v4533, %v4532
      %v4561 = vpack.c.b16 %v4535, %v4534
      %v4562 = vpack.c.b16 %v4537, %v4536
      %v4563 = vpack.c.b16 %v4539, %v4538
      %v4564 = vpack.c.b16 %v4541, %v4540
      %v4565 = vpack.c.b16 %v4543, %v4542
      %v4566 = vpack.c.b16 %v4545, %v4544
      %v4567 = vpack.c.b16 %v4547, %v4546
      %v4568 = vpack.c.b16 %v4549, %v4548
      %v4569 = vpack.c.b16 %v4551, %v4550
      %v4570 = vpack.c.b16 %v4553, %v4552
      %v4571 = vpack.c.b16 %v4555, %v4554
      %v4573 = vsel %vm440, %v4556, 0
      %v4576 = vsel %vm440, %v4557, 0
      %v4579 = vsel %vm440, %v4558, 0
      %v4582 = vsel %vm440, %v4559, 0
      %v4585 = vsel %vm440, %v4560, 0
      %v4588 = vsel %vm440, %v4561, 0
      %v4591 = vsel %vm440, %v4562, 0
      %v4594 = vsel %vm440, %v4563, 0
      %v4597 = vsel %vm440, %v4564, 0
      %v4600 = vsel %vm440, %v4565, 0
      %v4603 = vsel %vm440, %v4566, 0
      %v4606 = vsel %vm440, %v4567, 0
      %v4609 = vsel %vm440, %v4568, 0
      %v4612 = vsel %vm440, %v4569, 0
      %v4615 = vsel %vm440, %v4570, 0
      %v4618 = vsel %vm440, %v4571, 0
      %4620 = vmatprep.subr.bf16.mxu0 0
      %4621 = vmatpush1.bf16.msra.mxu0 0
      %4622 = vmatprep.subr.bf16.mxu0 0
      %4623 = vmatpush1.bf16.msra.mxu0 0
      %4624 = vmatprep.subr.bf16.mxu0 0
      %4625 = vmatpush1.bf16.msra.mxu0 0
      %4626 = vmatprep.subr.bf16.mxu0 0
      %4627 = vmatpush1.bf16.msra.mxu0 0
      %4628 = vmatprep.subr.bf16.mxu0 0
      %4629 = vmatpush1.bf16.msra.mxu0 0
      %4630 = vmatprep.subr.bf16.mxu0 0
      %4631 = vmatpush1.bf16.msra.mxu0 0
      %4632 = vmatprep.subr.bf16.mxu0 0
      %4633 = vmatpush1.bf16.msra.mxu0 0
      %4634 = vmatprep.subr.bf16.mxu0 %v1079
      %4635 = vmatpush1.bf16.msra.mxu0 %v1076
      %4636 = vmatprep.subr.bf16.mxu0 0
      %4637 = vmatpush2.bf16.msra.mxu0 0
      %4638 = vmatprep.subr.bf16.mxu0 0
      %4639 = vmatpush2.bf16.msra.mxu0 0
      %4640 = vmatprep.subr.bf16.mxu0 0
      %4641 = vmatpush2.bf16.msra.mxu0 0
      %4642 = vmatprep.subr.bf16.mxu0 0
      %4643 = vmatpush2.bf16.msra.mxu0 0
      %4644 = vmatprep.subr.bf16.mxu0 0
      %4645 = vmatpush2.bf16.msra.mxu0 0
      %4646 = vmatprep.subr.bf16.mxu0 0
      %4647 = vmatpush2.bf16.msra.mxu0 0
      %4648 = vmatprep.subr.bf16.mxu0 0
      %4649 = vmatpush2.bf16.msra.mxu0 0
      %4650 = vmatprep.subr.bf16.mxu0 0
      %4651 = vmatpush2.bf16.msra.mxu0 0
      %4652 = vmatprep.mubr.bf16.mxu0 0
      %4653 = vmatmul.mubr.bf16.gmra.mxu0 %v4573
      %v4654 = vpop.f32.mrf.mxu0
      %v4655 = vadd.f32 0.0, %v4654
      %v4656 = vpop.f32.mrf.mxu0
      %v4657 = vadd.f32 0.0, %v4656
      %v4658 = vpop.f32.mrf.mxu0
      %v4659 = vadd.f32 0.0, %v4658
      %v4660 = vpop.f32.mrf.mxu0
      %v4661 = vadd.f32 0.0, %v4660
      %4662 = vmatprep.mubr.bf16.mxu0 0
      %4663 = vmatmul.mubr.bf16.gmra.mxu0 %v4576
      %v4664 = vpop.f32.mrf.mxu0
      %v4665 = vadd.f32 0.0, %v4664
      %v4666 = vpop.f32.mrf.mxu0
      %v4667 = vadd.f32 0.0, %v4666
      %v4668 = vpop.f32.mrf.mxu0
      %v4669 = vadd.f32 0.0, %v4668
      %v4670 = vpop.f32.mrf.mxu0
      %v4671 = vadd.f32 0.0, %v4670
      %4672 = vmatprep.mubr.bf16.mxu0 0
      %4673 = vmatmul.mubr.bf16.gmra.mxu0 %v4579
      %v4674 = vpop.f32.mrf.mxu0
      %v4675 = vadd.f32 0.0, %v4674
      %v4676 = vpop.f32.mrf.mxu0
      %v4677 = vadd.f32 0.0, %v4676
      %v4678 = vpop.f32.mrf.mxu0
      %v4679 = vadd.f32 0.0, %v4678
      %v4680 = vpop.f32.mrf.mxu0
      %v4681 = vadd.f32 0.0, %v4680
      %4682 = vmatprep.mubr.bf16.mxu0 0
      %4683 = vmatmul.mubr.bf16.gmra.mxu0 %v4582
      %v4684 = vpop.f32.mrf.mxu0
      %v4685 = vadd.f32 0.0, %v4684
      %v4686 = vpop.f32.mrf.mxu0
      %v4687 = vadd.f32 0.0, %v4686
      %v4688 = vpop.f32.mrf.mxu0
      %v4689 = vadd.f32 0.0, %v4688
      %v4690 = vpop.f32.mrf.mxu0
      %v4691 = vadd.f32 0.0, %v4690
      %4692 = vmatprep.mubr.bf16.mxu0 0
      %4693 = vmatmul.mubr.bf16.gmra.mxu0 %v4585
      %v4694 = vpop.f32.mrf.mxu0
      %v4695 = vadd.f32 0.0, %v4694
      %v4696 = vpop.f32.mrf.mxu0
      %v4697 = vadd.f32 0.0, %v4696
      %v4698 = vpop.f32.mrf.mxu0
      %v4699 = vadd.f32 0.0, %v4698
      %v4700 = vpop.f32.mrf.mxu0
      %v4701 = vadd.f32 0.0, %v4700
      %4702 = vmatprep.mubr.bf16.mxu0 0
      %4703 = vmatmul.mubr.bf16.gmra.mxu0 %v4588
      %v4704 = vpop.f32.mrf.mxu0
      %v4705 = vadd.f32 0.0, %v4704
      %v4706 = vpop.f32.mrf.mxu0
      %v4707 = vadd.f32 0.0, %v4706
      %v4708 = vpop.f32.mrf.mxu0
      %v4709 = vadd.f32 0.0, %v4708
      %v4710 = vpop.f32.mrf.mxu0
      %v4711 = vadd.f32 0.0, %v4710
      %4712 = vmatprep.mubr.bf16.mxu0 0
      %4713 = vmatmul.mubr.bf16.gmra.mxu0 %v4591
      %v4714 = vpop.f32.mrf.mxu0
      %v4715 = vadd.f32 0.0, %v4714
      %v4716 = vpop.f32.mrf.mxu0
      %v4717 = vadd.f32 0.0, %v4716
      %v4718 = vpop.f32.mrf.mxu0
      %v4719 = vadd.f32 0.0, %v4718
      %v4720 = vpop.f32.mrf.mxu0
      %v4721 = vadd.f32 0.0, %v4720
      %4722 = vmatprep.mubr.bf16.mxu0 0
      %4723 = vmatmul.mubr.bf16.gmra.mxu0 %v4594
      %v4724 = vpop.f32.mrf.mxu0
      %v4725 = vadd.f32 0.0, %v4724
      %v4726 = vpop.f32.mrf.mxu0
      %v4727 = vadd.f32 0.0, %v4726
      %v4728 = vpop.f32.mrf.mxu0
      %v4729 = vadd.f32 0.0, %v4728
      %v4730 = vpop.f32.mrf.mxu0
      %v4731 = vadd.f32 0.0, %v4730
      %4732 = vmatprep.mubr.bf16.mxu0 0
      %4733 = vmatmul.mubr.bf16.gmra.mxu0 %v4597
      %v4734 = vpop.f32.mrf.mxu0
      %v4735 = vadd.f32 0.0, %v4734
      %v4736 = vpop.f32.mrf.mxu0
      %v4737 = vadd.f32 0.0, %v4736
      %v4738 = vpop.f32.mrf.mxu0
      %v4739 = vadd.f32 0.0, %v4738
      %v4740 = vpop.f32.mrf.mxu0
      %v4741 = vadd.f32 0.0, %v4740
      %4742 = vmatprep.mubr.bf16.mxu0 0
      %4743 = vmatmul.mubr.bf16.gmra.mxu0 %v4600
      %v4744 = vpop.f32.mrf.mxu0
      %v4745 = vadd.f32 0.0, %v4744
      %v4746 = vpop.f32.mrf.mxu0
      %v4747 = vadd.f32 0.0, %v4746
      %v4748 = vpop.f32.mrf.mxu0
      %v4749 = vadd.f32 0.0, %v4748
      %v4750 = vpop.f32.mrf.mxu0
      %v4751 = vadd.f32 0.0, %v4750
      %4752 = vmatprep.mubr.bf16.mxu0 0
      %4753 = vmatmul.mubr.bf16.gmra.mxu0 %v4603
      %v4754 = vpop.f32.mrf.mxu0
      %v4755 = vadd.f32 0.0, %v4754
      %v4756 = vpop.f32.mrf.mxu0
      %v4757 = vadd.f32 0.0, %v4756
      %v4758 = vpop.f32.mrf.mxu0
      %v4759 = vadd.f32 0.0, %v4758
      %v4760 = vpop.f32.mrf.mxu0
      %v4761 = vadd.f32 0.0, %v4760
      %4762 = vmatprep.mubr.bf16.mxu0 0
      %4763 = vmatmul.mubr.bf16.gmra.mxu0 %v4606
      %v4764 = vpop.f32.mrf.mxu0
      %v4765 = vadd.f32 0.0, %v4764
      %v4766 = vpop.f32.mrf.mxu0
      %v4767 = vadd.f32 0.0, %v4766
      %v4768 = vpop.f32.mrf.mxu0
      %v4769 = vadd.f32 0.0, %v4768
      %v4770 = vpop.f32.mrf.mxu0
      %v4771 = vadd.f32 0.0, %v4770
      %4772 = vmatprep.mubr.bf16.mxu0 0
      %4773 = vmatmul.mubr.bf16.gmra.mxu0 %v4609
      %v4774 = vpop.f32.mrf.mxu0
      %v4775 = vadd.f32 0.0, %v4774
      %v4776 = vpop.f32.mrf.mxu0
      %v4777 = vadd.f32 0.0, %v4776
      %v4778 = vpop.f32.mrf.mxu0
      %v4779 = vadd.f32 0.0, %v4778
      %v4780 = vpop.f32.mrf.mxu0
      %v4781 = vadd.f32 0.0, %v4780
      %4782 = vmatprep.mubr.bf16.mxu0 0
      %4783 = vmatmul.mubr.bf16.gmra.mxu0 %v4612
      %v4784 = vpop.f32.mrf.mxu0
      %v4785 = vadd.f32 0.0, %v4784
      %v4786 = vpop.f32.mrf.mxu0
      %v4787 = vadd.f32 0.0, %v4786
      %v4788 = vpop.f32.mrf.mxu0
      %v4789 = vadd.f32 0.0, %v4788
      %v4790 = vpop.f32.mrf.mxu0
      %v4791 = vadd.f32 0.0, %v4790
      %4792 = vmatprep.mubr.bf16.mxu0 0
      %4793 = vmatmul.mubr.bf16.gmra.mxu0 %v4615
      %v4794 = vpop.f32.mrf.mxu0
      %v4795 = vadd.f32 0.0, %v4794
      %v4796 = vpop.f32.mrf.mxu0
      %v4797 = vadd.f32 0.0, %v4796
      %v4798 = vpop.f32.mrf.mxu0
      %v4799 = vadd.f32 0.0, %v4798
      %v4800 = vpop.f32.mrf.mxu0
      %v4801 = vadd.f32 0.0, %v4800
      %4802 = vmatprep.mubr.bf16.mxu0 0
      %4803 = vmatmul.mubr.bf16.gmra.mxu0 %v4618
      %v4804 = vpop.f32.mrf.mxu0
      %v4805 = vadd.f32 0.0, %v4804
      %v4806 = vpop.f32.mrf.mxu0
      %v4807 = vadd.f32 0.0, %v4806
      %v4808 = vpop.f32.mrf.mxu0
      %v4809 = vadd.f32 0.0, %v4808
      %v4810 = vpop.f32.mrf.mxu0
      %v4811 = vadd.f32 0.0, %v4810
      %4812 = vdwg.mxu0
      %v4813 = vadd.f32 %v4302, %v4655
      %v4814 = vadd.f32 %v4304, %v4657
      %v4815 = vadd.f32 %v4306, %v4659
      %v4816 = vadd.f32 %v4308, %v4661
      %v4817 = vadd.f32 %v4312, %v4665
      %v4818 = vadd.f32 %v4314, %v4667
      %v4819 = vadd.f32 %v4316, %v4669
      %v4820 = vadd.f32 %v4318, %v4671
      %v4821 = vadd.f32 %v4322, %v4675
      %v4822 = vadd.f32 %v4324, %v4677
      %v4823 = vadd.f32 %v4326, %v4679
      %v4824 = vadd.f32 %v4328, %v4681
      %v4825 = vadd.f32 %v4332, %v4685
      %v4826 = vadd.f32 %v4334, %v4687
      %v4827 = vadd.f32 %v4336, %v4689
      %v4828 = vadd.f32 %v4338, %v4691
      %v4829 = vadd.f32 %v4342, %v4695
      %v4830 = vadd.f32 %v4344, %v4697
      %v4831 = vadd.f32 %v4346, %v4699
      %v4832 = vadd.f32 %v4348, %v4701
      %v4833 = vadd.f32 %v4352, %v4705
      %v4834 = vadd.f32 %v4354, %v4707
      %v4835 = vadd.f32 %v4356, %v4709
      %v4836 = vadd.f32 %v4358, %v4711
      %v4837 = vadd.f32 %v4362, %v4715
      %v4838 = vadd.f32 %v4364, %v4717
      %v4839 = vadd.f32 %v4366, %v4719
      %v4840 = vadd.f32 %v4368, %v4721
      %v4841 = vadd.f32 %v4372, %v4725
      %v4842 = vadd.f32 %v4374, %v4727
      %v4843 = vadd.f32 %v4376, %v4729
      %v4844 = vadd.f32 %v4378, %v4731
      %v4845 = vadd.f32 %v4382, %v4735
      %v4846 = vadd.f32 %v4384, %v4737
      %v4847 = vadd.f32 %v4386, %v4739
      %v4848 = vadd.f32 %v4388, %v4741
      %v4849 = vadd.f32 %v4392, %v4745
      %v4850 = vadd.f32 %v4394, %v4747
      %v4851 = vadd.f32 %v4396, %v4749
      %v4852 = vadd.f32 %v4398, %v4751
      %v4853 = vadd.f32 %v4402, %v4755
      %v4854 = vadd.f32 %v4404, %v4757
      %v4855 = vadd.f32 %v4406, %v4759
      %v4856 = vadd.f32 %v4408, %v4761
      %v4857 = vadd.f32 %v4412, %v4765
      %v4858 = vadd.f32 %v4414, %v4767
      %v4859 = vadd.f32 %v4416, %v4769
      %v4860 = vadd.f32 %v4418, %v4771
      %v4861 = vadd.f32 %v4422, %v4775
      %v4862 = vadd.f32 %v4424, %v4777
      %v4863 = vadd.f32 %v4426, %v4779
      %v4864 = vadd.f32 %v4428, %v4781
      %v4865 = vadd.f32 %v4432, %v4785
      %v4866 = vadd.f32 %v4434, %v4787
      %v4867 = vadd.f32 %v4436, %v4789
      %v4868 = vadd.f32 %v4438, %v4791
      %v4869 = vadd.f32 %v4442, %v4795
      %v4870 = vadd.f32 %v4444, %v4797
      %v4871 = vadd.f32 %v4446, %v4799
      %v4872 = vadd.f32 %v4448, %v4801
      %v4873 = vadd.f32 %v4452, %v4805
      %v4874 = vadd.f32 %v4454, %v4807
      %v4875 = vadd.f32 %v4456, %v4809
      %v4876 = vadd.f32 %v4458, %v4811
      %v4877 = vadd.f32 %v4813, %v1342
      %v4878 = vadd.f32 %v4814, %v1346
      %v4879 = vadd.f32 %v4815, %v1342
      %v4880 = vadd.f32 %v4816, %v1346
      %v4881 = vadd.f32 %v4817, %v1342
      %v4882 = vadd.f32 %v4818, %v1346
      %v4883 = vadd.f32 %v4819, %v1342
      %v4884 = vadd.f32 %v4820, %v1346
      %v4885 = vadd.f32 %v4821, %v1342
      %v4886 = vadd.f32 %v4822, %v1346
      %v4887 = vadd.f32 %v4823, %v1342
      %v4888 = vadd.f32 %v4824, %v1346
      %v4889 = vadd.f32 %v4825, %v1342
      %v4890 = vadd.f32 %v4826, %v1346
      %v4891 = vadd.f32 %v4827, %v1342
      %v4892 = vadd.f32 %v4828, %v1346
      %v4893 = vadd.f32 %v4829, %v1342
      %v4894 = vadd.f32 %v4830, %v1346
      %v4895 = vadd.f32 %v4831, %v1342
      %v4896 = vadd.f32 %v4832, %v1346
      %v4897 = vadd.f32 %v4833, %v1342
      %v4898 = vadd.f32 %v4834, %v1346
      %v4899 = vadd.f32 %v4835, %v1342
      %v4900 = vadd.f32 %v4836, %v1346
      %v4901 = vadd.f32 %v4837, %v1342
      %v4902 = vadd.f32 %v4838, %v1346
      %v4903 = vadd.f32 %v4839, %v1342
      %v4904 = vadd.f32 %v4840, %v1346
      %v4905 = vadd.f32 %v4841, %v1342
      %v4906 = vadd.f32 %v4842, %v1346
      %v4907 = vadd.f32 %v4843, %v1342
      %v4908 = vadd.f32 %v4844, %v1346
      %v4909 = vadd.f32 %v4845, %v1342
      %v4910 = vadd.f32 %v4846, %v1346
      %v4911 = vadd.f32 %v4847, %v1342
      %v4912 = vadd.f32 %v4848, %v1346
      %v4913 = vadd.f32 %v4849, %v1342
      %v4914 = vadd.f32 %v4850, %v1346
      %v4915 = vadd.f32 %v4851, %v1342
      %v4916 = vadd.f32 %v4852, %v1346
      %v4917 = vadd.f32 %v4853, %v1342
      %v4918 = vadd.f32 %v4854, %v1346
      %v4919 = vadd.f32 %v4855, %v1342
      %v4920 = vadd.f32 %v4856, %v1346
      %v4921 = vadd.f32 %v4857, %v1342
      %v4922 = vadd.f32 %v4858, %v1346
      %v4923 = vadd.f32 %v4859, %v1342
      %v4924 = vadd.f32 %v4860, %v1346
      %v4925 = vadd.f32 %v4861, %v1342
      %v4926 = vadd.f32 %v4862, %v1346
      %v4927 = vadd.f32 %v4863, %v1342
      %v4928 = vadd.f32 %v4864, %v1346
      %v4929 = vadd.f32 %v4865, %v1342
      %v4930 = vadd.f32 %v4866, %v1346
      %v4931 = vadd.f32 %v4867, %v1342
      %v4932 = vadd.f32 %v4868, %v1346
      %v4933 = vadd.f32 %v4869, %v1342
      %v4934 = vadd.f32 %v4870, %v1346
      %v4935 = vadd.f32 %v4871, %v1342
      %v4936 = vadd.f32 %v4872, %v1346
      %v4937 = vadd.f32 %v4873, %v1342
      %v4938 = vadd.f32 %v4874, %v1346
      %v4939 = vadd.f32 %v4875, %v1342
      %v4940 = vadd.f32 %v4876, %v1346
      %v4941 = vmax.f32 %v4877, 0.0
      %v4942 = vmax.f32 %v4878, 0.0
      %v4943 = vmax.f32 %v4879, 0.0
      %v4944 = vmax.f32 %v4880, 0.0
      %v4945 = vmax.f32 %v4881, 0.0
      %v4946 = vmax.f32 %v4882, 0.0
      %v4947 = vmax.f32 %v4883, 0.0
      %v4948 = vmax.f32 %v4884, 0.0
      %v4949 = vmax.f32 %v4885, 0.0
      %v4950 = vmax.f32 %v4886, 0.0
      %v4951 = vmax.f32 %v4887, 0.0
      %v4952 = vmax.f32 %v4888, 0.0
      %v4953 = vmax.f32 %v4889, 0.0
      %v4954 = vmax.f32 %v4890, 0.0
      %v4955 = vmax.f32 %v4891, 0.0
      %v4956 = vmax.f32 %v4892, 0.0
      %v4957 = vmax.f32 %v4893, 0.0
      %v4958 = vmax.f32 %v4894, 0.0
      %v4959 = vmax.f32 %v4895, 0.0
      %v4960 = vmax.f32 %v4896, 0.0
      %v4961 = vmax.f32 %v4897, 0.0
      %v4962 = vmax.f32 %v4898, 0.0
      %v4963 = vmax.f32 %v4899, 0.0
      %v4964 = vmax.f32 %v4900, 0.0
      %v4965 = vmax.f32 %v4901, 0.0
      %v4966 = vmax.f32 %v4902, 0.0
      %v4967 = vmax.f32 %v4903, 0.0
      %v4968 = vmax.f32 %v4904, 0.0
      %v4969 = vmax.f32 %v4905, 0.0
      %v4970 = vmax.f32 %v4906, 0.0
      %v4971 = vmax.f32 %v4907, 0.0
      %v4972 = vmax.f32 %v4908, 0.0
      %v4973 = vmax.f32 %v4909, 0.0
      %v4974 = vmax.f32 %v4910, 0.0
      %v4975 = vmax.f32 %v4911, 0.0
      %v4976 = vmax.f32 %v4912, 0.0
      %v4977 = vmax.f32 %v4913, 0.0
      %v4978 = vmax.f32 %v4914, 0.0
      %v4979 = vmax.f32 %v4915, 0.0
      %v4980 = vmax.f32 %v4916, 0.0
      %v4981 = vmax.f32 %v4917, 0.0
      %v4982 = vmax.f32 %v4918, 0.0
      %v4983 = vmax.f32 %v4919, 0.0
      %v4984 = vmax.f32 %v4920, 0.0
      %v4985 = vmax.f32 %v4921, 0.0
      %v4986 = vmax.f32 %v4922, 0.0
      %v4987 = vmax.f32 %v4923, 0.0
      %v4988 = vmax.f32 %v4924, 0.0
      %v4989 = vmax.f32 %v4925, 0.0
      %v4990 = vmax.f32 %v4926, 0.0
      %v4991 = vmax.f32 %v4927, 0.0
      %v4992 = vmax.f32 %v4928, 0.0
      %v4993 = vmax.f32 %v4929, 0.0
      %v4994 = vmax.f32 %v4930, 0.0
      %v4995 = vmax.f32 %v4931, 0.0
      %v4996 = vmax.f32 %v4932, 0.0
      %v4997 = vmax.f32 %v4933, 0.0
      %v4998 = vmax.f32 %v4934, 0.0
      %v4999 = vmax.f32 %v4935, 0.0
      %v5000 = vmax.f32 %v4936, 0.0
      %v5001 = vmax.f32 %v4937, 0.0
      %v5002 = vmax.f32 %v4938, 0.0
      %v5003 = vmax.f32 %v4939, 0.0
      %v5004 = vmax.f32 %v4940, 0.0
      %v5005 = vadd.f32 %v4941, %v4943
      %v5006 = vadd.f32 %v5005, %v4945
      %v5007 = vadd.f32 %v5006, %v4947
      %v5008 = vadd.f32 %v5007, %v4949
      %v5009 = vadd.f32 %v5008, %v4951
      %v5010 = vadd.f32 %v5009, %v4953
      %v5011 = vadd.f32 %v5010, %v4955
      %v5012 = vadd.f32 %v5011, %v4957
      %v5013 = vadd.f32 %v5012, %v4959
      %v5014 = vadd.f32 %v5013, %v4961
      %v5015 = vadd.f32 %v5014, %v4963
      %v5016 = vadd.f32 %v5015, %v4965
      %v5017 = vadd.f32 %v5016, %v4967
      %v5018 = vadd.f32 %v5017, %v4969
      %v5019 = vadd.f32 %v5018, %v4971
      %v5020 = vadd.f32 %v5019, %v4973
      %v5021 = vadd.f32 %v5020, %v4975
      %v5022 = vadd.f32 %v5021, %v4977
      %v5023 = vadd.f32 %v5022, %v4979
      %v5024 = vadd.f32 %v5023, %v4981
      %v5025 = vadd.f32 %v5024, %v4983
      %v5026 = vadd.f32 %v5025, %v4985
      %v5027 = vadd.f32 %v5026, %v4987
      %v5028 = vadd.f32 %v5027, %v4989
      %v5029 = vadd.f32 %v5028, %v4991
      %v5030 = vadd.f32 %v5029, %v4993
      %v5031 = vadd.f32 %v5030, %v4995
      %v5032 = vadd.f32 %v5031, %v4997
      %v5033 = vadd.f32 %v5032, %v4999
      %v5034 = vadd.f32 %v5033, %v5001
      %v5035 = vadd.f32 %v5034, %v5003
      %v5036 = vrot.slane %v5035, 4
      %v5037 = vadd.f32 %v5035, %v5036
      %v5038 = vrot.slane %v5037, 2
      %v5039 = vadd.f32 %v5037, %v5038
      %v5040 = vrot.slane %v5039, 1
      %v5041 = vadd.f32 %v5039, %v5040
      %v5042 = vadd.f32 %v4942, %v4944
      %v5043 = vadd.f32 %v5042, %v4946
      %v5044 = vadd.f32 %v5043, %v4948
      %v5045 = vadd.f32 %v5044, %v4950
      %v5046 = vadd.f32 %v5045, %v4952
      %v5047 = vadd.f32 %v5046, %v4954
      %v5048 = vadd.f32 %v5047, %v4956
      %v5049 = vadd.f32 %v5048, %v4958
      %v5050 = vadd.f32 %v5049, %v4960
      %v5051 = vadd.f32 %v5050, %v4962
      %v5052 = vadd.f32 %v5051, %v4964
      %v5053 = vadd.f32 %v5052, %v4966
      %v5054 = vadd.f32 %v5053, %v4968
      %v5055 = vadd.f32 %v5054, %v4970
      %v5056 = vadd.f32 %v5055, %v4972
      %v5057 = vadd.f32 %v5056, %v4974
      %v5058 = vadd.f32 %v5057, %v4976
      %v5059 = vadd.f32 %v5058, %v4978
      %v5060 = vadd.f32 %v5059, %v4980
      %v5061 = vadd.f32 %v5060, %v4982
      %v5062 = vadd.f32 %v5061, %v4984
      %v5063 = vadd.f32 %v5062, %v4986
      %v5064 = vadd.f32 %v5063, %v4988
      %v5065 = vadd.f32 %v5064, %v4990
      %v5066 = vadd.f32 %v5065, %v4992
      %v5067 = vadd.f32 %v5066, %v4994
      %v5068 = vadd.f32 %v5067, %v4996
      %v5069 = vadd.f32 %v5068, %v4998
      %v5070 = vadd.f32 %v5069, %v5000
      %v5071 = vadd.f32 %v5070, %v5002
      %v5072 = vadd.f32 %v5071, %v5004
      %v5073 = vrot.slane %v5072, 4
      %v5074 = vadd.f32 %v5072, %v5073
      %v5075 = vrot.slane %v5074, 2
      %v5076 = vadd.f32 %v5074, %v5075
      %v5077 = vrot.slane %v5076, 1
      %v5078 = vadd.f32 %v5076, %v5077
      %s5079 = scalar_lea.vmem %s304, 576
      %v5080 = vld [vmem:[%s5079] sm:$0xf]
      %v5081 = vld [vmem:[%s5079 + $0x4] sm:$0xf]
      %v5082 = vld [vmem:[%s5079 + $0x8] sm:$0xf]
      %v5083 = vld [vmem:[%s5079 + $0xc] sm:$0xf]
      %v5084 = vld [vmem:[%s5079 + $0x10] sm:$0xf]
      %v5085 = vld [vmem:[%s5079 + $0x14] sm:$0xf]
      %v5086 = vld [vmem:[%s5079 + $0x18] sm:$0xf]
      %v5087 = vld [vmem:[%s5079 + $0x1c] sm:$0xf]
      %v5088 = vld [vmem:[%s5079 + $0x20] sm:$0xf]
      %v5089 = vld [vmem:[%s5079 + $0x24] sm:$0xf]
      %v5090 = vld [vmem:[%s5079 + $0x28] sm:$0xf]
      %v5091 = vld [vmem:[%s5079 + $0x2c] sm:$0xf]
      %v5092 = vld [vmem:[%s5079 + $0x30] sm:$0xf]
      %v5093 = vld [vmem:[%s5079 + $0x34] sm:$0xf]
      %v5094 = vld [vmem:[%s5079 + $0x38] sm:$0xf]
      %v5095 = vld [vmem:[%s5079 + $0x3c] sm:$0xf]
      %v5096 = vld [vmem:[%s5079 + $0x40] sm:$0xf]
      %v5097 = vld [vmem:[%s5079 + $0x44] sm:$0xf]
      %v5098 = vld [vmem:[%s5079 + $0x48] sm:$0xf]
      %v5099 = vld [vmem:[%s5079 + $0x4c] sm:$0xf]
      %v5100 = vld [vmem:[%s5079 + $0x50] sm:$0xf]
      %v5101 = vld [vmem:[%s5079 + $0x54] sm:$0xf]
      %v5102 = vld [vmem:[%s5079 + $0x58] sm:$0xf]
      %v5103 = vld [vmem:[%s5079 + $0x5c] sm:$0xf]
      %v5104 = vld [vmem:[%s5079 + $0x60] sm:$0xf]
      %v5105 = vld [vmem:[%s5079 + $0x64] sm:$0xf]
      %v5106 = vld [vmem:[%s5079 + $0x68] sm:$0xf]
      %v5107 = vld [vmem:[%s5079 + $0x6c] sm:$0xf]
      %v5108 = vld [vmem:[%s5079 + $0x70] sm:$0xf]
      %v5109 = vld [vmem:[%s5079 + $0x74] sm:$0xf]
      %v5110 = vld [vmem:[%s5079 + $0x78] sm:$0xf]
      %v5111 = vld [vmem:[%s5079 + $0x7c] sm:$0xf]
      %v5112 = vld [vmem:[%s5079 + $0x80] sm:$0xf]
      %v5113 = vld [vmem:[%s5079 + $0x84] sm:$0xf]
      %v5146 = vunpack.c.l.b16 %v5082
      %v5147 = vunpack.c.l.b16 %v5083
      %v5148 = vunpack.c.l.b16 %v5084
      %v5149 = vunpack.c.l.b16 %v5085
      %v5150 = vunpack.c.l.b16 %v5086
      %v5151 = vunpack.c.l.b16 %v5087
      %v5152 = vunpack.c.l.b16 %v5088
      %v5153 = vunpack.c.l.b16 %v5089
      %v5154 = vunpack.c.l.b16 %v5090
      %v5155 = vunpack.c.l.b16 %v5091
      %v5156 = vunpack.c.l.b16 %v5092
      %v5157 = vunpack.c.l.b16 %v5093
      %v5158 = vunpack.c.l.b16 %v5094
      %v5159 = vunpack.c.l.b16 %v5095
      %v5160 = vunpack.c.l.b16 %v5096
      %v5161 = vunpack.c.l.b16 %v5097
      %v5162 = vunpack.c.l.b16 %v5098
      %v5163 = vunpack.c.l.b16 %v5099
      %v5164 = vunpack.c.l.b16 %v5100
      %v5165 = vunpack.c.l.b16 %v5101
      %v5166 = vunpack.c.l.b16 %v5102
      %v5167 = vunpack.c.l.b16 %v5103
      %v5168 = vunpack.c.l.b16 %v5104
      %v5169 = vunpack.c.l.b16 %v5105
      %v5170 = vunpack.c.l.b16 %v5106
      %v5171 = vunpack.c.l.b16 %v5107
      %v5172 = vunpack.c.l.b16 %v5108
      %v5173 = vunpack.c.l.b16 %v5109
      %v5174 = vunpack.c.l.b16 %v5110
      %v5175 = vunpack.c.l.b16 %v5111
      %v5176 = vunpack.c.l.b16 %v5112
      %v5177 = vunpack.c.l.b16 %v5113
      %v5178 = vpack.c.b16 %v5147, %v5146
      %v5179 = vpack.c.b16 %v5149, %v5148
      %v5180 = vpack.c.b16 %v5151, %v5150
      %v5181 = vpack.c.b16 %v5153, %v5152
      %v5182 = vpack.c.b16 %v5155, %v5154
      %v5183 = vpack.c.b16 %v5157, %v5156
      %v5184 = vpack.c.b16 %v5159, %v5158
      %v5185 = vpack.c.b16 %v5161, %v5160
      %v5186 = vpack.c.b16 %v5163, %v5162
      %v5187 = vpack.c.b16 %v5165, %v5164
      %v5188 = vpack.c.b16 %v5167, %v5166
      %v5189 = vpack.c.b16 %v5169, %v5168
      %v5190 = vpack.c.b16 %v5171, %v5170
      %v5191 = vpack.c.b16 %v5173, %v5172
      %v5192 = vpack.c.b16 %v5175, %v5174
      %v5193 = vpack.c.b16 %v5177, %v5176
      %v5195 = vsel %vm440, %v5178, 0
      %v5198 = vsel %vm440, %v5179, 0
      %v5201 = vsel %vm440, %v5180, 0
      %v5204 = vsel %vm440, %v5181, 0
      %v5207 = vsel %vm440, %v5182, 0
      %v5210 = vsel %vm440, %v5183, 0
      %v5213 = vsel %vm440, %v5184, 0
      %v5216 = vsel %vm440, %v5185, 0
      %v5219 = vsel %vm440, %v5186, 0
      %v5222 = vsel %vm440, %v5187, 0
      %v5225 = vsel %vm440, %v5188, 0
      %v5228 = vsel %vm440, %v5189, 0
      %v5231 = vsel %vm440, %v5190, 0
      %v5234 = vsel %vm440, %v5191, 0
      %v5237 = vsel %vm440, %v5192, 0
      %v5240 = vsel %vm440, %v5193, 0
      %5242 = vmatprep.subr.bf16.mxu0 0
      %5243 = vmatpush1.bf16.msra.mxu0 0
      %5244 = vmatprep.subr.bf16.mxu0 0
      %5245 = vmatpush1.bf16.msra.mxu0 0
      %5246 = vmatprep.subr.bf16.mxu0 0
      %5247 = vmatpush1.bf16.msra.mxu0 0
      %5248 = vmatprep.subr.bf16.mxu0 0
      %5249 = vmatpush1.bf16.msra.mxu0 0
      %5250 = vmatprep.subr.bf16.mxu0 0
      %5251 = vmatpush1.bf16.msra.mxu0 0
      %5252 = vmatprep.subr.bf16.mxu0 0
      %5253 = vmatpush1.bf16.msra.mxu0 0
      %5254 = vmatprep.subr.bf16.mxu0 0
      %5255 = vmatpush1.bf16.msra.mxu0 0
      %5256 = vmatprep.subr.bf16.mxu0 %v494
      %5257 = vmatpush1.bf16.msra.mxu0 %v491
      %5258 = vmatprep.subr.bf16.mxu0 0
      %5259 = vmatpush2.bf16.msra.mxu0 0
      %5260 = vmatprep.subr.bf16.mxu0 0
      %5261 = vmatpush2.bf16.msra.mxu0 0
      %5262 = vmatprep.subr.bf16.mxu0 0
      %5263 = vmatpush2.bf16.msra.mxu0 0
      %5264 = vmatprep.subr.bf16.mxu0 0
      %5265 = vmatpush2.bf16.msra.mxu0 0
      %5266 = vmatprep.subr.bf16.mxu0 0
      %5267 = vmatpush2.bf16.msra.mxu0 0
      %5268 = vmatprep.subr.bf16.mxu0 0
      %5269 = vmatpush2.bf16.msra.mxu0 0
      %5270 = vmatprep.subr.bf16.mxu0 0
      %5271 = vmatpush2.bf16.msra.mxu0 0
      %5272 = vmatprep.subr.bf16.mxu0 0
      %5273 = vmatpush2.bf16.msra.mxu0 0
      %5274 = vmatprep.mubr.bf16.mxu0 0
      %5275 = vmatmul.mubr.bf16.gmra.mxu0 %v5195
      %v5276 = vpop.f32.mrf.mxu0
      %v5277 = vadd.f32 0.0, %v5276
      %v5278 = vpop.f32.mrf.mxu0
      %v5279 = vadd.f32 0.0, %v5278
      %v5280 = vpop.f32.mrf.mxu0
      %v5281 = vadd.f32 0.0, %v5280
      %v5282 = vpop.f32.mrf.mxu0
      %v5283 = vadd.f32 0.0, %v5282
      %5284 = vmatprep.mubr.bf16.mxu0 0
      %5285 = vmatmul.mubr.bf16.gmra.mxu0 %v5198
      %v5286 = vpop.f32.mrf.mxu0
      %v5287 = vadd.f32 0.0, %v5286
      %v5288 = vpop.f32.mrf.mxu0
      %v5289 = vadd.f32 0.0, %v5288
      %v5290 = vpop.f32.mrf.mxu0
      %v5291 = vadd.f32 0.0, %v5290
      %v5292 = vpop.f32.mrf.mxu0
      %v5293 = vadd.f32 0.0, %v5292
      %5294 = vmatprep.mubr.bf16.mxu0 0
      %5295 = vmatmul.mubr.bf16.gmra.mxu0 %v5201
      %v5296 = vpop.f32.mrf.mxu0
      %v5297 = vadd.f32 0.0, %v5296
      %v5298 = vpop.f32.mrf.mxu0
      %v5299 = vadd.f32 0.0, %v5298
      %v5300 = vpop.f32.mrf.mxu0
      %v5301 = vadd.f32 0.0, %v5300
      %v5302 = vpop.f32.mrf.mxu0
      %v5303 = vadd.f32 0.0, %v5302
      %5304 = vmatprep.mubr.bf16.mxu0 0
      %5305 = vmatmul.mubr.bf16.gmra.mxu0 %v5204
      %v5306 = vpop.f32.mrf.mxu0
      %v5307 = vadd.f32 0.0, %v5306
      %v5308 = vpop.f32.mrf.mxu0
      %v5309 = vadd.f32 0.0, %v5308
      %v5310 = vpop.f32.mrf.mxu0
      %v5311 = vadd.f32 0.0, %v5310
      %v5312 = vpop.f32.mrf.mxu0
      %v5313 = vadd.f32 0.0, %v5312
      %5314 = vmatprep.mubr.bf16.mxu0 0
      %5315 = vmatmul.mubr.bf16.gmra.mxu0 %v5207
      %v5316 = vpop.f32.mrf.mxu0
      %v5317 = vadd.f32 0.0, %v5316
      %v5318 = vpop.f32.mrf.mxu0
      %v5319 = vadd.f32 0.0, %v5318
      %v5320 = vpop.f32.mrf.mxu0
      %v5321 = vadd.f32 0.0, %v5320
      %v5322 = vpop.f32.mrf.mxu0
      %v5323 = vadd.f32 0.0, %v5322
      %5324 = vmatprep.mubr.bf16.mxu0 0
      %5325 = vmatmul.mubr.bf16.gmra.mxu0 %v5210
      %v5326 = vpop.f32.mrf.mxu0
      %v5327 = vadd.f32 0.0, %v5326
      %v5328 = vpop.f32.mrf.mxu0
      %v5329 = vadd.f32 0.0, %v5328
      %v5330 = vpop.f32.mrf.mxu0
      %v5331 = vadd.f32 0.0, %v5330
      %v5332 = vpop.f32.mrf.mxu0
      %v5333 = vadd.f32 0.0, %v5332
      %5334 = vmatprep.mubr.bf16.mxu0 0
      %5335 = vmatmul.mubr.bf16.gmra.mxu0 %v5213
      %v5336 = vpop.f32.mrf.mxu0
      %v5337 = vadd.f32 0.0, %v5336
      %v5338 = vpop.f32.mrf.mxu0
      %v5339 = vadd.f32 0.0, %v5338
      %v5340 = vpop.f32.mrf.mxu0
      %v5341 = vadd.f32 0.0, %v5340
      %v5342 = vpop.f32.mrf.mxu0
      %v5343 = vadd.f32 0.0, %v5342
      %5344 = vmatprep.mubr.bf16.mxu0 0
      %5345 = vmatmul.mubr.bf16.gmra.mxu0 %v5216
      %v5346 = vpop.f32.mrf.mxu0
      %v5347 = vadd.f32 0.0, %v5346
      %v5348 = vpop.f32.mrf.mxu0
      %v5349 = vadd.f32 0.0, %v5348
      %v5350 = vpop.f32.mrf.mxu0
      %v5351 = vadd.f32 0.0, %v5350
      %v5352 = vpop.f32.mrf.mxu0
      %v5353 = vadd.f32 0.0, %v5352
      %5354 = vmatprep.mubr.bf16.mxu0 0
      %5355 = vmatmul.mubr.bf16.gmra.mxu0 %v5219
      %v5356 = vpop.f32.mrf.mxu0
      %v5357 = vadd.f32 0.0, %v5356
      %v5358 = vpop.f32.mrf.mxu0
      %v5359 = vadd.f32 0.0, %v5358
      %v5360 = vpop.f32.mrf.mxu0
      %v5361 = vadd.f32 0.0, %v5360
      %v5362 = vpop.f32.mrf.mxu0
      %v5363 = vadd.f32 0.0, %v5362
      %5364 = vmatprep.mubr.bf16.mxu0 0
      %5365 = vmatmul.mubr.bf16.gmra.mxu0 %v5222
      %v5366 = vpop.f32.mrf.mxu0
      %v5367 = vadd.f32 0.0, %v5366
      %v5368 = vpop.f32.mrf.mxu0
      %v5369 = vadd.f32 0.0, %v5368
      %v5370 = vpop.f32.mrf.mxu0
      %v5371 = vadd.f32 0.0, %v5370
      %v5372 = vpop.f32.mrf.mxu0
      %v5373 = vadd.f32 0.0, %v5372
      %5374 = vmatprep.mubr.bf16.mxu0 0
      %5375 = vmatmul.mubr.bf16.gmra.mxu0 %v5225
      %v5376 = vpop.f32.mrf.mxu0
      %v5377 = vadd.f32 0.0, %v5376
      %v5378 = vpop.f32.mrf.mxu0
      %v5379 = vadd.f32 0.0, %v5378
      %v5380 = vpop.f32.mrf.mxu0
      %v5381 = vadd.f32 0.0, %v5380
      %v5382 = vpop.f32.mrf.mxu0
      %v5383 = vadd.f32 0.0, %v5382
      %5384 = vmatprep.mubr.bf16.mxu0 0
      %5385 = vmatmul.mubr.bf16.gmra.mxu0 %v5228
      %v5386 = vpop.f32.mrf.mxu0
      %v5387 = vadd.f32 0.0, %v5386
      %v5388 = vpop.f32.mrf.mxu0
      %v5389 = vadd.f32 0.0, %v5388
      %v5390 = vpop.f32.mrf.mxu0
      %v5391 = vadd.f32 0.0, %v5390
      %v5392 = vpop.f32.mrf.mxu0
      %v5393 = vadd.f32 0.0, %v5392
      %5394 = vmatprep.mubr.bf16.mxu0 0
      %5395 = vmatmul.mubr.bf16.gmra.mxu0 %v5231
      %v5396 = vpop.f32.mrf.mxu0
      %v5397 = vadd.f32 0.0, %v5396
      %v5398 = vpop.f32.mrf.mxu0
      %v5399 = vadd.f32 0.0, %v5398
      %v5400 = vpop.f32.mrf.mxu0
      %v5401 = vadd.f32 0.0, %v5400
      %v5402 = vpop.f32.mrf.mxu0
      %v5403 = vadd.f32 0.0, %v5402
      %5404 = vmatprep.mubr.bf16.mxu0 0
      %5405 = vmatmul.mubr.bf16.gmra.mxu0 %v5234
      %v5406 = vpop.f32.mrf.mxu0
      %v5407 = vadd.f32 0.0, %v5406
      %v5408 = vpop.f32.mrf.mxu0
      %v5409 = vadd.f32 0.0, %v5408
      %v5410 = vpop.f32.mrf.mxu0
      %v5411 = vadd.f32 0.0, %v5410
      %v5412 = vpop.f32.mrf.mxu0
      %v5413 = vadd.f32 0.0, %v5412
      %5414 = vmatprep.mubr.bf16.mxu0 0
      %5415 = vmatmul.mubr.bf16.gmra.mxu0 %v5237
      %v5416 = vpop.f32.mrf.mxu0
      %v5417 = vadd.f32 0.0, %v5416
      %v5418 = vpop.f32.mrf.mxu0
      %v5419 = vadd.f32 0.0, %v5418
      %v5420 = vpop.f32.mrf.mxu0
      %v5421 = vadd.f32 0.0, %v5420
      %v5422 = vpop.f32.mrf.mxu0
      %v5423 = vadd.f32 0.0, %v5422
      %5424 = vmatprep.mubr.bf16.mxu0 0
      %5425 = vmatmul.mubr.bf16.gmra.mxu0 %v5240
      %v5426 = vpop.f32.mrf.mxu0
      %v5427 = vadd.f32 0.0, %v5426
      %v5428 = vpop.f32.mrf.mxu0
      %v5429 = vadd.f32 0.0, %v5428
      %v5430 = vpop.f32.mrf.mxu0
      %v5431 = vadd.f32 0.0, %v5430
      %v5432 = vpop.f32.mrf.mxu0
      %v5433 = vadd.f32 0.0, %v5432
      %5434 = vdwg.mxu0
      %v5437 = vunpack.c.l.b16 %v5080
      %v5438 = vunpack.c.l.b16 %v5081
      %v5439 = vpack.c.b16 %v5438, %v5437
      %v5441 = vsel %vm440, %v5439, 0
      %5443 = vmatprep.subr.bf16.mxu0 0
      %5444 = vmatpush1.bf16.msra.mxu0 0
      %5445 = vmatprep.subr.bf16.mxu0 0
      %5446 = vmatpush1.bf16.msra.mxu0 0
      %5447 = vmatprep.subr.bf16.mxu0 0
      %5448 = vmatpush1.bf16.msra.mxu0 0
      %5449 = vmatprep.subr.bf16.mxu0 0
      %5450 = vmatpush1.bf16.msra.mxu0 0
      %5451 = vmatprep.subr.bf16.mxu0 0
      %5452 = vmatpush1.bf16.msra.mxu0 0
      %5453 = vmatprep.subr.bf16.mxu0 0
      %5454 = vmatpush1.bf16.msra.mxu0 0
      %5455 = vmatprep.subr.bf16.mxu0 0
      %5456 = vmatpush1.bf16.msra.mxu0 0
      %5457 = vmatprep.subr.bf16.mxu0 %v709
      %5458 = vmatpush1.bf16.msra.mxu0 %v706
      %5459 = vmatprep.subr.bf16.mxu0 0
      %5460 = vmatpush2.bf16.msra.mxu0 0
      %5461 = vmatprep.subr.bf16.mxu0 0
      %5462 = vmatpush2.bf16.msra.mxu0 0
      %5463 = vmatprep.subr.bf16.mxu0 0
      %5464 = vmatpush2.bf16.msra.mxu0 0
      %5465 = vmatprep.subr.bf16.mxu0 0
      %5466 = vmatpush2.bf16.msra.mxu0 0
      %5467 = vmatprep.subr.bf16.mxu0 0
      %5468 = vmatpush2.bf16.msra.mxu0 0
      %5469 = vmatprep.subr.bf16.mxu0 0
      %5470 = vmatpush2.bf16.msra.mxu0 0
      %5471 = vmatprep.subr.bf16.mxu0 0
      %5472 = vmatpush2.bf16.msra.mxu0 0
      %5473 = vmatprep.subr.bf16.mxu0 0
      %5474 = vmatpush2.bf16.msra.mxu0 0
      %5475 = vmatprep.mubr.bf16.mxu0 0
      %5476 = vmatmul.mubr.bf16.gmra.mxu0 %v5441
      %v5477 = vpop.f32.mrf.mxu0
      %v5478 = vadd.f32 %v5277, %v5477
      %v5479 = vpop.f32.mrf.mxu0
      %v5480 = vadd.f32 %v5279, %v5479
      %v5481 = vpop.f32.mrf.mxu0
      %v5482 = vadd.f32 %v5281, %v5481
      %v5483 = vpop.f32.mrf.mxu0
      %v5484 = vadd.f32 %v5283, %v5483
      %5485 = vmatprep.mubr.bf16.mxu0 0
      %5486 = vmatmul.mubr.bf16.gmra.mxu0 %v5195
      %v5487 = vpop.f32.mrf.mxu0
      %v5488 = vadd.f32 %v5287, %v5487
      %v5489 = vpop.f32.mrf.mxu0
      %v5490 = vadd.f32 %v5289, %v5489
      %v5491 = vpop.f32.mrf.mxu0
      %v5492 = vadd.f32 %v5291, %v5491
      %v5493 = vpop.f32.mrf.mxu0
      %v5494 = vadd.f32 %v5293, %v5493
      %5495 = vmatprep.mubr.bf16.mxu0 0
      %5496 = vmatmul.mubr.bf16.gmra.mxu0 %v5198
      %v5497 = vpop.f32.mrf.mxu0
      %v5498 = vadd.f32 %v5297, %v5497
      %v5499 = vpop.f32.mrf.mxu0
      %v5500 = vadd.f32 %v5299, %v5499
      %v5501 = vpop.f32.mrf.mxu0
      %v5502 = vadd.f32 %v5301, %v5501
      %v5503 = vpop.f32.mrf.mxu0
      %v5504 = vadd.f32 %v5303, %v5503
      %5505 = vmatprep.mubr.bf16.mxu0 0
      %5506 = vmatmul.mubr.bf16.gmra.mxu0 %v5201
      %v5507 = vpop.f32.mrf.mxu0
      %v5508 = vadd.f32 %v5307, %v5507
      %v5509 = vpop.f32.mrf.mxu0
      %v5510 = vadd.f32 %v5309, %v5509
      %v5511 = vpop.f32.mrf.mxu0
      %v5512 = vadd.f32 %v5311, %v5511
      %v5513 = vpop.f32.mrf.mxu0
      %v5514 = vadd.f32 %v5313, %v5513
      %5515 = vmatprep.mubr.bf16.mxu0 0
      %5516 = vmatmul.mubr.bf16.gmra.mxu0 %v5204
      %v5517 = vpop.f32.mrf.mxu0
      %v5518 = vadd.f32 %v5317, %v5517
      %v5519 = vpop.f32.mrf.mxu0
      %v5520 = vadd.f32 %v5319, %v5519
      %v5521 = vpop.f32.mrf.mxu0
      %v5522 = vadd.f32 %v5321, %v5521
      %v5523 = vpop.f32.mrf.mxu0
      %v5524 = vadd.f32 %v5323, %v5523
      %5525 = vmatprep.mubr.bf16.mxu0 0
      %5526 = vmatmul.mubr.bf16.gmra.mxu0 %v5207
      %v5527 = vpop.f32.mrf.mxu0
      %v5528 = vadd.f32 %v5327, %v5527
      %v5529 = vpop.f32.mrf.mxu0
      %v5530 = vadd.f32 %v5329, %v5529
      %v5531 = vpop.f32.mrf.mxu0
      %v5532 = vadd.f32 %v5331, %v5531
      %v5533 = vpop.f32.mrf.mxu0
      %v5534 = vadd.f32 %v5333, %v5533
      %5535 = vmatprep.mubr.bf16.mxu0 0
      %5536 = vmatmul.mubr.bf16.gmra.mxu0 %v5210
      %v5537 = vpop.f32.mrf.mxu0
      %v5538 = vadd.f32 %v5337, %v5537
      %v5539 = vpop.f32.mrf.mxu0
      %v5540 = vadd.f32 %v5339, %v5539
      %v5541 = vpop.f32.mrf.mxu0
      %v5542 = vadd.f32 %v5341, %v5541
      %v5543 = vpop.f32.mrf.mxu0
      %v5544 = vadd.f32 %v5343, %v5543
      %5545 = vmatprep.mubr.bf16.mxu0 0
      %5546 = vmatmul.mubr.bf16.gmra.mxu0 %v5213
      %v5547 = vpop.f32.mrf.mxu0
      %v5548 = vadd.f32 %v5347, %v5547
      %v5549 = vpop.f32.mrf.mxu0
      %v5550 = vadd.f32 %v5349, %v5549
      %v5551 = vpop.f32.mrf.mxu0
      %v5552 = vadd.f32 %v5351, %v5551
      %v5553 = vpop.f32.mrf.mxu0
      %v5554 = vadd.f32 %v5353, %v5553
      %5555 = vmatprep.mubr.bf16.mxu0 0
      %5556 = vmatmul.mubr.bf16.gmra.mxu0 %v5216
      %v5557 = vpop.f32.mrf.mxu0
      %v5558 = vadd.f32 %v5357, %v5557
      %v5559 = vpop.f32.mrf.mxu0
      %v5560 = vadd.f32 %v5359, %v5559
      %v5561 = vpop.f32.mrf.mxu0
      %v5562 = vadd.f32 %v5361, %v5561
      %v5563 = vpop.f32.mrf.mxu0
      %v5564 = vadd.f32 %v5363, %v5563
      %5565 = vmatprep.mubr.bf16.mxu0 0
      %5566 = vmatmul.mubr.bf16.gmra.mxu0 %v5219
      %v5567 = vpop.f32.mrf.mxu0
      %v5568 = vadd.f32 %v5367, %v5567
      %v5569 = vpop.f32.mrf.mxu0
      %v5570 = vadd.f32 %v5369, %v5569
      %v5571 = vpop.f32.mrf.mxu0
      %v5572 = vadd.f32 %v5371, %v5571
      %v5573 = vpop.f32.mrf.mxu0
      %v5574 = vadd.f32 %v5373, %v5573
      %5575 = vmatprep.mubr.bf16.mxu0 0
      %5576 = vmatmul.mubr.bf16.gmra.mxu0 %v5222
      %v5577 = vpop.f32.mrf.mxu0
      %v5578 = vadd.f32 %v5377, %v5577
      %v5579 = vpop.f32.mrf.mxu0
      %v5580 = vadd.f32 %v5379, %v5579
      %v5581 = vpop.f32.mrf.mxu0
      %v5582 = vadd.f32 %v5381, %v5581
      %v5583 = vpop.f32.mrf.mxu0
      %v5584 = vadd.f32 %v5383, %v5583
      %5585 = vmatprep.mubr.bf16.mxu0 0
      %5586 = vmatmul.mubr.bf16.gmra.mxu0 %v5225
      %v5587 = vpop.f32.mrf.mxu0
      %v5588 = vadd.f32 %v5387, %v5587
      %v5589 = vpop.f32.mrf.mxu0
      %v5590 = vadd.f32 %v5389, %v5589
      %v5591 = vpop.f32.mrf.mxu0
      %v5592 = vadd.f32 %v5391, %v5591
      %v5593 = vpop.f32.mrf.mxu0
      %v5594 = vadd.f32 %v5393, %v5593
      %5595 = vmatprep.mubr.bf16.mxu0 0
      %5596 = vmatmul.mubr.bf16.gmra.mxu0 %v5228
      %v5597 = vpop.f32.mrf.mxu0
      %v5598 = vadd.f32 %v5397, %v5597
      %v5599 = vpop.f32.mrf.mxu0
      %v5600 = vadd.f32 %v5399, %v5599
      %v5601 = vpop.f32.mrf.mxu0
      %v5602 = vadd.f32 %v5401, %v5601
      %v5603 = vpop.f32.mrf.mxu0
      %v5604 = vadd.f32 %v5403, %v5603
      %5605 = vmatprep.mubr.bf16.mxu0 0
      %5606 = vmatmul.mubr.bf16.gmra.mxu0 %v5231
      %v5607 = vpop.f32.mrf.mxu0
      %v5608 = vadd.f32 %v5407, %v5607
      %v5609 = vpop.f32.mrf.mxu0
      %v5610 = vadd.f32 %v5409, %v5609
      %v5611 = vpop.f32.mrf.mxu0
      %v5612 = vadd.f32 %v5411, %v5611
      %v5613 = vpop.f32.mrf.mxu0
      %v5614 = vadd.f32 %v5413, %v5613
      %5615 = vmatprep.mubr.bf16.mxu0 0
      %5616 = vmatmul.mubr.bf16.gmra.mxu0 %v5234
      %v5617 = vpop.f32.mrf.mxu0
      %v5618 = vadd.f32 %v5417, %v5617
      %v5619 = vpop.f32.mrf.mxu0
      %v5620 = vadd.f32 %v5419, %v5619
      %v5621 = vpop.f32.mrf.mxu0
      %v5622 = vadd.f32 %v5421, %v5621
      %v5623 = vpop.f32.mrf.mxu0
      %v5624 = vadd.f32 %v5423, %v5623
      %5625 = vmatprep.mubr.bf16.mxu0 0
      %5626 = vmatmul.mubr.bf16.gmra.mxu0 %v5237
      %v5627 = vpop.f32.mrf.mxu0
      %v5628 = vadd.f32 %v5427, %v5627
      %v5629 = vpop.f32.mrf.mxu0
      %v5630 = vadd.f32 %v5429, %v5629
      %v5631 = vpop.f32.mrf.mxu0
      %v5632 = vadd.f32 %v5431, %v5631
      %v5633 = vpop.f32.mrf.mxu0
      %v5634 = vadd.f32 %v5433, %v5633
      %5635 = vdwg.mxu0
      %v5636 = vld [vmem:[%s5079 + $0x10] sm:$0xf]
      %v5637 = vld [vmem:[%s5079 + $0x14] sm:$0xf]
      %v5638 = vld [vmem:[%s5079 + $0x18] sm:$0xf]
      %v5639 = vld [vmem:[%s5079 + $0x1c] sm:$0xf]
      %v5640 = vld [vmem:[%s5079 + $0x20] sm:$0xf]
      %v5641 = vld [vmem:[%s5079 + $0x24] sm:$0xf]
      %v5642 = vld [vmem:[%s5079 + $0x28] sm:$0xf]
      %v5643 = vld [vmem:[%s5079 + $0x2c] sm:$0xf]
      %v5644 = vld [vmem:[%s5079 + $0x30] sm:$0xf]
      %v5645 = vld [vmem:[%s5079 + $0x34] sm:$0xf]
      %v5646 = vld [vmem:[%s5079 + $0x38] sm:$0xf]
      %v5647 = vld [vmem:[%s5079 + $0x3c] sm:$0xf]
      %v5648 = vld [vmem:[%s5079 + $0x40] sm:$0xf]
      %v5649 = vld [vmem:[%s5079 + $0x44] sm:$0xf]
      %v5650 = vld [vmem:[%s5079 + $0x48] sm:$0xf]
      %v5651 = vld [vmem:[%s5079 + $0x4c] sm:$0xf]
      %v5652 = vld [vmem:[%s5079 + $0x50] sm:$0xf]
      %v5653 = vld [vmem:[%s5079 + $0x54] sm:$0xf]
      %v5654 = vld [vmem:[%s5079 + $0x58] sm:$0xf]
      %v5655 = vld [vmem:[%s5079 + $0x5c] sm:$0xf]
      %v5656 = vld [vmem:[%s5079 + $0x60] sm:$0xf]
      %v5657 = vld [vmem:[%s5079 + $0x64] sm:$0xf]
      %v5658 = vld [vmem:[%s5079 + $0x68] sm:$0xf]
      %v5659 = vld [vmem:[%s5079 + $0x6c] sm:$0xf]
      %v5660 = vld [vmem:[%s5079 + $0x70] sm:$0xf]
      %v5661 = vld [vmem:[%s5079 + $0x74] sm:$0xf]
      %v5662 = vld [vmem:[%s5079 + $0x78] sm:$0xf]
      %v5663 = vld [vmem:[%s5079 + $0x7c] sm:$0xf]
      %v5664 = vld [vmem:[%s5079 + $0x80] sm:$0xf]
      %v5665 = vld [vmem:[%s5079 + $0x84] sm:$0xf]
      %v5666 = vld [vmem:[%s5079 + $0x88] sm:$0xf]
      %v5667 = vld [vmem:[%s5079 + $0x8c] sm:$0xf]
      %v5700 = vunpack.c.l.b16 %v5636
      %v5701 = vunpack.c.l.b16 %v5637
      %v5702 = vunpack.c.l.b16 %v5638
      %v5703 = vunpack.c.l.b16 %v5639
      %v5704 = vunpack.c.l.b16 %v5640
      %v5705 = vunpack.c.l.b16 %v5641
      %v5706 = vunpack.c.l.b16 %v5642
      %v5707 = vunpack.c.l.b16 %v5643
      %v5708 = vunpack.c.l.b16 %v5644
      %v5709 = vunpack.c.l.b16 %v5645
      %v5710 = vunpack.c.l.b16 %v5646
      %v5711 = vunpack.c.l.b16 %v5647
      %v5712 = vunpack.c.l.b16 %v5648
      %v5713 = vunpack.c.l.b16 %v5649
      %v5714 = vunpack.c.l.b16 %v5650
      %v5715 = vunpack.c.l.b16 %v5651
      %v5716 = vunpack.c.l.b16 %v5652
      %v5717 = vunpack.c.l.b16 %v5653
      %v5718 = vunpack.c.l.b16 %v5654
      %v5719 = vunpack.c.l.b16 %v5655
      %v5720 = vunpack.c.l.b16 %v5656
      %v5721 = vunpack.c.l.b16 %v5657
      %v5722 = vunpack.c.l.b16 %v5658
      %v5723 = vunpack.c.l.b16 %v5659
      %v5724 = vunpack.c.l.b16 %v5660
      %v5725 = vunpack.c.l.b16 %v5661
      %v5726 = vunpack.c.l.b16 %v5662
      %v5727 = vunpack.c.l.b16 %v5663
      %v5728 = vunpack.c.l.b16 %v5664
      %v5729 = vunpack.c.l.b16 %v5665
      %v5730 = vunpack.c.l.b16 %v5666
      %v5731 = vunpack.c.l.b16 %v5667
      %v5732 = vpack.c.b16 %v5701, %v5700
      %v5733 = vpack.c.b16 %v5703, %v5702
      %v5734 = vpack.c.b16 %v5705, %v5704
      %v5735 = vpack.c.b16 %v5707, %v5706
      %v5736 = vpack.c.b16 %v5709, %v5708
      %v5737 = vpack.c.b16 %v5711, %v5710
      %v5738 = vpack.c.b16 %v5713, %v5712
      %v5739 = vpack.c.b16 %v5715, %v5714
      %v5740 = vpack.c.b16 %v5717, %v5716
      %v5741 = vpack.c.b16 %v5719, %v5718
      %v5742 = vpack.c.b16 %v5721, %v5720
      %v5743 = vpack.c.b16 %v5723, %v5722
      %v5744 = vpack.c.b16 %v5725, %v5724
      %v5745 = vpack.c.b16 %v5727, %v5726
      %v5746 = vpack.c.b16 %v5729, %v5728
      %v5747 = vpack.c.b16 %v5731, %v5730
      %v5749 = vsel %vm440, %v5732, 0
      %v5752 = vsel %vm440, %v5733, 0
      %v5755 = vsel %vm440, %v5734, 0
      %v5758 = vsel %vm440, %v5735, 0
      %v5761 = vsel %vm440, %v5736, 0
      %v5764 = vsel %vm440, %v5737, 0
      %v5767 = vsel %vm440, %v5738, 0
      %v5770 = vsel %vm440, %v5739, 0
      %v5773 = vsel %vm440, %v5740, 0
      %v5776 = vsel %vm440, %v5741, 0
      %v5779 = vsel %vm440, %v5742, 0
      %v5782 = vsel %vm440, %v5743, 0
      %v5785 = vsel %vm440, %v5744, 0
      %v5788 = vsel %vm440, %v5745, 0
      %v5791 = vsel %vm440, %v5746, 0
      %v5794 = vsel %vm440, %v5747, 0
      %5796 = vmatprep.subr.bf16.mxu0 0
      %5797 = vmatpush1.bf16.msra.mxu0 0
      %5798 = vmatprep.subr.bf16.mxu0 0
      %5799 = vmatpush1.bf16.msra.mxu0 0
      %5800 = vmatprep.subr.bf16.mxu0 0
      %5801 = vmatpush1.bf16.msra.mxu0 0
      %5802 = vmatprep.subr.bf16.mxu0 0
      %5803 = vmatpush1.bf16.msra.mxu0 0
      %5804 = vmatprep.subr.bf16.mxu0 0
      %5805 = vmatpush1.bf16.msra.mxu0 0
      %5806 = vmatprep.subr.bf16.mxu0 0
      %5807 = vmatpush1.bf16.msra.mxu0 0
      %5808 = vmatprep.subr.bf16.mxu0 0
      %5809 = vmatpush1.bf16.msra.mxu0 0
      %5810 = vmatprep.subr.bf16.mxu0 %v1079
      %5811 = vmatpush1.bf16.msra.mxu0 %v1076
      %5812 = vmatprep.subr.bf16.mxu0 0
      %5813 = vmatpush2.bf16.msra.mxu0 0
      %5814 = vmatprep.subr.bf16.mxu0 0
      %5815 = vmatpush2.bf16.msra.mxu0 0
      %5816 = vmatprep.subr.bf16.mxu0 0
      %5817 = vmatpush2.bf16.msra.mxu0 0
      %5818 = vmatprep.subr.bf16.mxu0 0
      %5819 = vmatpush2.bf16.msra.mxu0 0
      %5820 = vmatprep.subr.bf16.mxu0 0
      %5821 = vmatpush2.bf16.msra.mxu0 0
      %5822 = vmatprep.subr.bf16.mxu0 0
      %5823 = vmatpush2.bf16.msra.mxu0 0
      %5824 = vmatprep.subr.bf16.mxu0 0
      %5825 = vmatpush2.bf16.msra.mxu0 0
      %5826 = vmatprep.subr.bf16.mxu0 0
      %5827 = vmatpush2.bf16.msra.mxu0 0
      %5828 = vmatprep.mubr.bf16.mxu0 0
      %5829 = vmatmul.mubr.bf16.gmra.mxu0 %v5749
      %v5830 = vpop.f32.mrf.mxu0
      %v5831 = vadd.f32 0.0, %v5830
      %v5832 = vpop.f32.mrf.mxu0
      %v5833 = vadd.f32 0.0, %v5832
      %v5834 = vpop.f32.mrf.mxu0
      %v5835 = vadd.f32 0.0, %v5834
      %v5836 = vpop.f32.mrf.mxu0
      %v5837 = vadd.f32 0.0, %v5836
      %5838 = vmatprep.mubr.bf16.mxu0 0
      %5839 = vmatmul.mubr.bf16.gmra.mxu0 %v5752
      %v5840 = vpop.f32.mrf.mxu0
      %v5841 = vadd.f32 0.0, %v5840
      %v5842 = vpop.f32.mrf.mxu0
      %v5843 = vadd.f32 0.0, %v5842
      %v5844 = vpop.f32.mrf.mxu0
      %v5845 = vadd.f32 0.0, %v5844
      %v5846 = vpop.f32.mrf.mxu0
      %v5847 = vadd.f32 0.0, %v5846
      %5848 = vmatprep.mubr.bf16.mxu0 0
      %5849 = vmatmul.mubr.bf16.gmra.mxu0 %v5755
      %v5850 = vpop.f32.mrf.mxu0
      %v5851 = vadd.f32 0.0, %v5850
      %v5852 = vpop.f32.mrf.mxu0
      %v5853 = vadd.f32 0.0, %v5852
      %v5854 = vpop.f32.mrf.mxu0
      %v5855 = vadd.f32 0.0, %v5854
      %v5856 = vpop.f32.mrf.mxu0
      %v5857 = vadd.f32 0.0, %v5856
      %5858 = vmatprep.mubr.bf16.mxu0 0
      %5859 = vmatmul.mubr.bf16.gmra.mxu0 %v5758
      %v5860 = vpop.f32.mrf.mxu0
      %v5861 = vadd.f32 0.0, %v5860
      %v5862 = vpop.f32.mrf.mxu0
      %v5863 = vadd.f32 0.0, %v5862
      %v5864 = vpop.f32.mrf.mxu0
      %v5865 = vadd.f32 0.0, %v5864
      %v5866 = vpop.f32.mrf.mxu0
      %v5867 = vadd.f32 0.0, %v5866
      %5868 = vmatprep.mubr.bf16.mxu0 0
      %5869 = vmatmul.mubr.bf16.gmra.mxu0 %v5761
      %v5870 = vpop.f32.mrf.mxu0
      %v5871 = vadd.f32 0.0, %v5870
      %v5872 = vpop.f32.mrf.mxu0
      %v5873 = vadd.f32 0.0, %v5872
      %v5874 = vpop.f32.mrf.mxu0
      %v5875 = vadd.f32 0.0, %v5874
      %v5876 = vpop.f32.mrf.mxu0
      %v5877 = vadd.f32 0.0, %v5876
      %5878 = vmatprep.mubr.bf16.mxu0 0
      %5879 = vmatmul.mubr.bf16.gmra.mxu0 %v5764
      %v5880 = vpop.f32.mrf.mxu0
      %v5881 = vadd.f32 0.0, %v5880
      %v5882 = vpop.f32.mrf.mxu0
      %v5883 = vadd.f32 0.0, %v5882
      %v5884 = vpop.f32.mrf.mxu0
      %v5885 = vadd.f32 0.0, %v5884
      %v5886 = vpop.f32.mrf.mxu0
      %v5887 = vadd.f32 0.0, %v5886
      %5888 = vmatprep.mubr.bf16.mxu0 0
      %5889 = vmatmul.mubr.bf16.gmra.mxu0 %v5767
      %v5890 = vpop.f32.mrf.mxu0
      %v5891 = vadd.f32 0.0, %v5890
      %v5892 = vpop.f32.mrf.mxu0
      %v5893 = vadd.f32 0.0, %v5892
      %v5894 = vpop.f32.mrf.mxu0
      %v5895 = vadd.f32 0.0, %v5894
      %v5896 = vpop.f32.mrf.mxu0
      %v5897 = vadd.f32 0.0, %v5896
      %5898 = vmatprep.mubr.bf16.mxu0 0
      %5899 = vmatmul.mubr.bf16.gmra.mxu0 %v5770
      %v5900 = vpop.f32.mrf.mxu0
      %v5901 = vadd.f32 0.0, %v5900
      %v5902 = vpop.f32.mrf.mxu0
      %v5903 = vadd.f32 0.0, %v5902
      %v5904 = vpop.f32.mrf.mxu0
      %v5905 = vadd.f32 0.0, %v5904
      %v5906 = vpop.f32.mrf.mxu0
      %v5907 = vadd.f32 0.0, %v5906
      %5908 = vmatprep.mubr.bf16.mxu0 0
      %5909 = vmatmul.mubr.bf16.gmra.mxu0 %v5773
      %v5910 = vpop.f32.mrf.mxu0
      %v5911 = vadd.f32 0.0, %v5910
      %v5912 = vpop.f32.mrf.mxu0
      %v5913 = vadd.f32 0.0, %v5912
      %v5914 = vpop.f32.mrf.mxu0
      %v5915 = vadd.f32 0.0, %v5914
      %v5916 = vpop.f32.mrf.mxu0
      %v5917 = vadd.f32 0.0, %v5916
      %5918 = vmatprep.mubr.bf16.mxu0 0
      %5919 = vmatmul.mubr.bf16.gmra.mxu0 %v5776
      %v5920 = vpop.f32.mrf.mxu0
      %v5921 = vadd.f32 0.0, %v5920
      %v5922 = vpop.f32.mrf.mxu0
      %v5923 = vadd.f32 0.0, %v5922
      %v5924 = vpop.f32.mrf.mxu0
      %v5925 = vadd.f32 0.0, %v5924
      %v5926 = vpop.f32.mrf.mxu0
      %v5927 = vadd.f32 0.0, %v5926
      %5928 = vmatprep.mubr.bf16.mxu0 0
      %5929 = vmatmul.mubr.bf16.gmra.mxu0 %v5779
      %v5930 = vpop.f32.mrf.mxu0
      %v5931 = vadd.f32 0.0, %v5930
      %v5932 = vpop.f32.mrf.mxu0
      %v5933 = vadd.f32 0.0, %v5932
      %v5934 = vpop.f32.mrf.mxu0
      %v5935 = vadd.f32 0.0, %v5934
      %v5936 = vpop.f32.mrf.mxu0
      %v5937 = vadd.f32 0.0, %v5936
      %5938 = vmatprep.mubr.bf16.mxu0 0
      %5939 = vmatmul.mubr.bf16.gmra.mxu0 %v5782
      %v5940 = vpop.f32.mrf.mxu0
      %v5941 = vadd.f32 0.0, %v5940
      %v5942 = vpop.f32.mrf.mxu0
      %v5943 = vadd.f32 0.0, %v5942
      %v5944 = vpop.f32.mrf.mxu0
      %v5945 = vadd.f32 0.0, %v5944
      %v5946 = vpop.f32.mrf.mxu0
      %v5947 = vadd.f32 0.0, %v5946
      %5948 = vmatprep.mubr.bf16.mxu0 0
      %5949 = vmatmul.mubr.bf16.gmra.mxu0 %v5785
      %v5950 = vpop.f32.mrf.mxu0
      %v5951 = vadd.f32 0.0, %v5950
      %v5952 = vpop.f32.mrf.mxu0
      %v5953 = vadd.f32 0.0, %v5952
      %v5954 = vpop.f32.mrf.mxu0
      %v5955 = vadd.f32 0.0, %v5954
      %v5956 = vpop.f32.mrf.mxu0
      %v5957 = vadd.f32 0.0, %v5956
      %5958 = vmatprep.mubr.bf16.mxu0 0
      %5959 = vmatmul.mubr.bf16.gmra.mxu0 %v5788
      %v5960 = vpop.f32.mrf.mxu0
      %v5961 = vadd.f32 0.0, %v5960
      %v5962 = vpop.f32.mrf.mxu0
      %v5963 = vadd.f32 0.0, %v5962
      %v5964 = vpop.f32.mrf.mxu0
      %v5965 = vadd.f32 0.0, %v5964
      %v5966 = vpop.f32.mrf.mxu0
      %v5967 = vadd.f32 0.0, %v5966
      %5968 = vmatprep.mubr.bf16.mxu0 0
      %5969 = vmatmul.mubr.bf16.gmra.mxu0 %v5791
      %v5970 = vpop.f32.mrf.mxu0
      %v5971 = vadd.f32 0.0, %v5970
      %v5972 = vpop.f32.mrf.mxu0
      %v5973 = vadd.f32 0.0, %v5972
      %v5974 = vpop.f32.mrf.mxu0
      %v5975 = vadd.f32 0.0, %v5974
      %v5976 = vpop.f32.mrf.mxu0
      %v5977 = vadd.f32 0.0, %v5976
      %5978 = vmatprep.mubr.bf16.mxu0 0
      %5979 = vmatmul.mubr.bf16.gmra.mxu0 %v5794
      %v5980 = vpop.f32.mrf.mxu0
      %v5981 = vadd.f32 0.0, %v5980
      %v5982 = vpop.f32.mrf.mxu0
      %v5983 = vadd.f32 0.0, %v5982
      %v5984 = vpop.f32.mrf.mxu0
      %v5985 = vadd.f32 0.0, %v5984
      %v5986 = vpop.f32.mrf.mxu0
      %v5987 = vadd.f32 0.0, %v5986
      %5988 = vdwg.mxu0
      %v5989 = vadd.f32 %v5478, %v5831
      %v5990 = vadd.f32 %v5480, %v5833
      %v5991 = vadd.f32 %v5482, %v5835
      %v5992 = vadd.f32 %v5484, %v5837
      %v5993 = vadd.f32 %v5488, %v5841
      %v5994 = vadd.f32 %v5490, %v5843
      %v5995 = vadd.f32 %v5492, %v5845
      %v5996 = vadd.f32 %v5494, %v5847
      %v5997 = vadd.f32 %v5498, %v5851
      %v5998 = vadd.f32 %v5500, %v5853
      %v5999 = vadd.f32 %v5502, %v5855
      %v6000 = vadd.f32 %v5504, %v5857
      %v6001 = vadd.f32 %v5508, %v5861
      %v6002 = vadd.f32 %v5510, %v5863
      %v6003 = vadd.f32 %v5512, %v5865
      %v6004 = vadd.f32 %v5514, %v5867
      %v6005 = vadd.f32 %v5518, %v5871
      %v6006 = vadd.f32 %v5520, %v5873
      %v6007 = vadd.f32 %v5522, %v5875
      %v6008 = vadd.f32 %v5524, %v5877
      %v6009 = vadd.f32 %v5528, %v5881
      %v6010 = vadd.f32 %v5530, %v5883
      %v6011 = vadd.f32 %v5532, %v5885
      %v6012 = vadd.f32 %v5534, %v5887
      %v6013 = vadd.f32 %v5538, %v5891
      %v6014 = vadd.f32 %v5540, %v5893
      %v6015 = vadd.f32 %v5542, %v5895
      %v6016 = vadd.f32 %v5544, %v5897
      %v6017 = vadd.f32 %v5548, %v5901
      %v6018 = vadd.f32 %v5550, %v5903
      %v6019 = vadd.f32 %v5552, %v5905
      %v6020 = vadd.f32 %v5554, %v5907
      %v6021 = vadd.f32 %v5558, %v5911
      %v6022 = vadd.f32 %v5560, %v5913
      %v6023 = vadd.f32 %v5562, %v5915
      %v6024 = vadd.f32 %v5564, %v5917
      %v6025 = vadd.f32 %v5568, %v5921
      %v6026 = vadd.f32 %v5570, %v5923
      %v6027 = vadd.f32 %v5572, %v5925
      %v6028 = vadd.f32 %v5574, %v5927
      %v6029 = vadd.f32 %v5578, %v5931
      %v6030 = vadd.f32 %v5580, %v5933
      %v6031 = vadd.f32 %v5582, %v5935
      %v6032 = vadd.f32 %v5584, %v5937
      %v6033 = vadd.f32 %v5588, %v5941
      %v6034 = vadd.f32 %v5590, %v5943
      %v6035 = vadd.f32 %v5592, %v5945
      %v6036 = vadd.f32 %v5594, %v5947
      %v6037 = vadd.f32 %v5598, %v5951
      %v6038 = vadd.f32 %v5600, %v5953
      %v6039 = vadd.f32 %v5602, %v5955
      %v6040 = vadd.f32 %v5604, %v5957
      %v6041 = vadd.f32 %v5608, %v5961
      %v6042 = vadd.f32 %v5610, %v5963
      %v6043 = vadd.f32 %v5612, %v5965
      %v6044 = vadd.f32 %v5614, %v5967
      %v6045 = vadd.f32 %v5618, %v5971
      %v6046 = vadd.f32 %v5620, %v5973
      %v6047 = vadd.f32 %v5622, %v5975
      %v6048 = vadd.f32 %v5624, %v5977
      %v6049 = vadd.f32 %v5628, %v5981
      %v6050 = vadd.f32 %v5630, %v5983
      %v6051 = vadd.f32 %v5632, %v5985
      %v6052 = vadd.f32 %v5634, %v5987
      %v6053 = vadd.f32 %v5989, %v1342
      %v6054 = vadd.f32 %v5990, %v1346
      %v6055 = vadd.f32 %v5991, %v1342
      %v6056 = vadd.f32 %v5992, %v1346
      %v6057 = vadd.f32 %v5993, %v1342
      %v6058 = vadd.f32 %v5994, %v1346
      %v6059 = vadd.f32 %v5995, %v1342
      %v6060 = vadd.f32 %v5996, %v1346
      %v6061 = vadd.f32 %v5997, %v1342
      %v6062 = vadd.f32 %v5998, %v1346
      %v6063 = vadd.f32 %v5999, %v1342
      %v6064 = vadd.f32 %v6000, %v1346
      %v6065 = vadd.f32 %v6001, %v1342
      %v6066 = vadd.f32 %v6002, %v1346
      %v6067 = vadd.f32 %v6003, %v1342
      %v6068 = vadd.f32 %v6004, %v1346
      %v6069 = vadd.f32 %v6005, %v1342
      %v6070 = vadd.f32 %v6006, %v1346
      %v6071 = vadd.f32 %v6007, %v1342
      %v6072 = vadd.f32 %v6008, %v1346
      %v6073 = vadd.f32 %v6009, %v1342
      %v6074 = vadd.f32 %v6010, %v1346
      %v6075 = vadd.f32 %v6011, %v1342
      %v6076 = vadd.f32 %v6012, %v1346
      %v6077 = vadd.f32 %v6013, %v1342
      %v6078 = vadd.f32 %v6014, %v1346
      %v6079 = vadd.f32 %v6015, %v1342
      %v6080 = vadd.f32 %v6016, %v1346
      %v6081 = vadd.f32 %v6017, %v1342
      %v6082 = vadd.f32 %v6018, %v1346
      %v6083 = vadd.f32 %v6019, %v1342
      %v6084 = vadd.f32 %v6020, %v1346
      %v6085 = vadd.f32 %v6021, %v1342
      %v6086 = vadd.f32 %v6022, %v1346
      %v6087 = vadd.f32 %v6023, %v1342
      %v6088 = vadd.f32 %v6024, %v1346
      %v6089 = vadd.f32 %v6025, %v1342
      %v6090 = vadd.f32 %v6026, %v1346
      %v6091 = vadd.f32 %v6027, %v1342
      %v6092 = vadd.f32 %v6028, %v1346
      %v6093 = vadd.f32 %v6029, %v1342
      %v6094 = vadd.f32 %v6030, %v1346
      %v6095 = vadd.f32 %v6031, %v1342
      %v6096 = vadd.f32 %v6032, %v1346
      %v6097 = vadd.f32 %v6033, %v1342
      %v6098 = vadd.f32 %v6034, %v1346
      %v6099 = vadd.f32 %v6035, %v1342
      %v6100 = vadd.f32 %v6036, %v1346
      %v6101 = vadd.f32 %v6037, %v1342
      %v6102 = vadd.f32 %v6038, %v1346
      %v6103 = vadd.f32 %v6039, %v1342
      %v6104 = vadd.f32 %v6040, %v1346
      %v6105 = vadd.f32 %v6041, %v1342
      %v6106 = vadd.f32 %v6042, %v1346
      %v6107 = vadd.f32 %v6043, %v1342
      %v6108 = vadd.f32 %v6044, %v1346
      %v6109 = vadd.f32 %v6045, %v1342
      %v6110 = vadd.f32 %v6046, %v1346
      %v6111 = vadd.f32 %v6047, %v1342
      %v6112 = vadd.f32 %v6048, %v1346
      %v6113 = vadd.f32 %v6049, %v1342
      %v6114 = vadd.f32 %v6050, %v1346
      %v6115 = vadd.f32 %v6051, %v1342
      %v6116 = vadd.f32 %v6052, %v1346
      %v6117 = vmax.f32 %v6053, 0.0
      %v6118 = vmax.f32 %v6054, 0.0
      %v6119 = vmax.f32 %v6055, 0.0
      %v6120 = vmax.f32 %v6056, 0.0
      %v6121 = vmax.f32 %v6057, 0.0
      %v6122 = vmax.f32 %v6058, 0.0
      %v6123 = vmax.f32 %v6059, 0.0
      %v6124 = vmax.f32 %v6060, 0.0
      %v6125 = vmax.f32 %v6061, 0.0
      %v6126 = vmax.f32 %v6062, 0.0
      %v6127 = vmax.f32 %v6063, 0.0
      %v6128 = vmax.f32 %v6064, 0.0
      %v6129 = vmax.f32 %v6065, 0.0
      %v6130 = vmax.f32 %v6066, 0.0
      %v6131 = vmax.f32 %v6067, 0.0
      %v6132 = vmax.f32 %v6068, 0.0
      %v6133 = vmax.f32 %v6069, 0.0
      %v6134 = vmax.f32 %v6070, 0.0
      %v6135 = vmax.f32 %v6071, 0.0
      %v6136 = vmax.f32 %v6072, 0.0
      %v6137 = vmax.f32 %v6073, 0.0
      %v6138 = vmax.f32 %v6074, 0.0
      %v6139 = vmax.f32 %v6075, 0.0
      %v6140 = vmax.f32 %v6076, 0.0
      %v6141 = vmax.f32 %v6077, 0.0
      %v6142 = vmax.f32 %v6078, 0.0
      %v6143 = vmax.f32 %v6079, 0.0
      %v6144 = vmax.f32 %v6080, 0.0
      %v6145 = vmax.f32 %v6081, 0.0
      %v6146 = vmax.f32 %v6082, 0.0
      %v6147 = vmax.f32 %v6083, 0.0
      %v6148 = vmax.f32 %v6084, 0.0
      %v6149 = vmax.f32 %v6085, 0.0
      %v6150 = vmax.f32 %v6086, 0.0
      %v6151 = vmax.f32 %v6087, 0.0
      %v6152 = vmax.f32 %v6088, 0.0
      %v6153 = vmax.f32 %v6089, 0.0
      %v6154 = vmax.f32 %v6090, 0.0
      %v6155 = vmax.f32 %v6091, 0.0
      %v6156 = vmax.f32 %v6092, 0.0
      %v6157 = vmax.f32 %v6093, 0.0
      %v6158 = vmax.f32 %v6094, 0.0
      %v6159 = vmax.f32 %v6095, 0.0
      %v6160 = vmax.f32 %v6096, 0.0
      %v6161 = vmax.f32 %v6097, 0.0
      %v6162 = vmax.f32 %v6098, 0.0
      %v6163 = vmax.f32 %v6099, 0.0
      %v6164 = vmax.f32 %v6100, 0.0
      %v6165 = vmax.f32 %v6101, 0.0
      %v6166 = vmax.f32 %v6102, 0.0
      %v6167 = vmax.f32 %v6103, 0.0
      %v6168 = vmax.f32 %v6104, 0.0
      %v6169 = vmax.f32 %v6105, 0.0
      %v6170 = vmax.f32 %v6106, 0.0
      %v6171 = vmax.f32 %v6107, 0.0
      %v6172 = vmax.f32 %v6108, 0.0
      %v6173 = vmax.f32 %v6109, 0.0
      %v6174 = vmax.f32 %v6110, 0.0
      %v6175 = vmax.f32 %v6111, 0.0
      %v6176 = vmax.f32 %v6112, 0.0
      %v6177 = vmax.f32 %v6113, 0.0
      %v6178 = vmax.f32 %v6114, 0.0
      %v6179 = vmax.f32 %v6115, 0.0
      %v6180 = vmax.f32 %v6116, 0.0
      %v6181 = vadd.f32 %v6117, %v6119
      %v6182 = vadd.f32 %v6181, %v6121
      %v6183 = vadd.f32 %v6182, %v6123
      %v6184 = vadd.f32 %v6183, %v6125
      %v6185 = vadd.f32 %v6184, %v6127
      %v6186 = vadd.f32 %v6185, %v6129
      %v6187 = vadd.f32 %v6186, %v6131
      %v6188 = vadd.f32 %v6187, %v6133
      %v6189 = vadd.f32 %v6188, %v6135
      %v6190 = vadd.f32 %v6189, %v6137
      %v6191 = vadd.f32 %v6190, %v6139
      %v6192 = vadd.f32 %v6191, %v6141
      %v6193 = vadd.f32 %v6192, %v6143
      %v6194 = vadd.f32 %v6193, %v6145
      %v6195 = vadd.f32 %v6194, %v6147
      %v6196 = vadd.f32 %v6195, %v6149
      %v6197 = vadd.f32 %v6196, %v6151
      %v6198 = vadd.f32 %v6197, %v6153
      %v6199 = vadd.f32 %v6198, %v6155
      %v6200 = vadd.f32 %v6199, %v6157
      %v6201 = vadd.f32 %v6200, %v6159
      %v6202 = vadd.f32 %v6201, %v6161
      %v6203 = vadd.f32 %v6202, %v6163
      %v6204 = vadd.f32 %v6203, %v6165
      %v6205 = vadd.f32 %v6204, %v6167
      %v6206 = vadd.f32 %v6205, %v6169
      %v6207 = vadd.f32 %v6206, %v6171
      %v6208 = vadd.f32 %v6207, %v6173
      %v6209 = vadd.f32 %v6208, %v6175
      %v6210 = vadd.f32 %v6209, %v6177
      %v6211 = vadd.f32 %v6210, %v6179
      %v6212 = vrot.slane %v6211, 4
      %v6213 = vadd.f32 %v6211, %v6212
      %v6214 = vrot.slane %v6213, 2
      %v6215 = vadd.f32 %v6213, %v6214
      %v6216 = vrot.slane %v6215, 1
      %v6217 = vadd.f32 %v6215, %v6216
      %v6218 = vadd.f32 %v6118, %v6120
      %v6219 = vadd.f32 %v6218, %v6122
      %v6220 = vadd.f32 %v6219, %v6124
      %v6221 = vadd.f32 %v6220, %v6126
      %v6222 = vadd.f32 %v6221, %v6128
      %v6223 = vadd.f32 %v6222, %v6130
      %v6224 = vadd.f32 %v6223, %v6132
      %v6225 = vadd.f32 %v6224, %v6134
      %v6226 = vadd.f32 %v6225, %v6136
      %v6227 = vadd.f32 %v6226, %v6138
      %v6228 = vadd.f32 %v6227, %v6140
      %v6229 = vadd.f32 %v6228, %v6142
      %v6230 = vadd.f32 %v6229, %v6144
      %v6231 = vadd.f32 %v6230, %v6146
      %v6232 = vadd.f32 %v6231, %v6148
      %v6233 = vadd.f32 %v6232, %v6150
      %v6234 = vadd.f32 %v6233, %v6152
      %v6235 = vadd.f32 %v6234, %v6154
      %v6236 = vadd.f32 %v6235, %v6156
      %v6237 = vadd.f32 %v6236, %v6158
      %v6238 = vadd.f32 %v6237, %v6160
      %v6239 = vadd.f32 %v6238, %v6162
      %v6240 = vadd.f32 %v6239, %v6164
      %v6241 = vadd.f32 %v6240, %v6166
      %v6242 = vadd.f32 %v6241, %v6168
      %v6243 = vadd.f32 %v6242, %v6170
      %v6244 = vadd.f32 %v6243, %v6172
      %v6245 = vadd.f32 %v6244, %v6174
      %v6246 = vadd.f32 %v6245, %v6176
      %v6247 = vadd.f32 %v6246, %v6178
      %v6248 = vadd.f32 %v6247, %v6180
      %v6249 = vrot.slane %v6248, 4
      %v6250 = vadd.f32 %v6248, %v6249
      %v6251 = vrot.slane %v6250, 2
      %v6252 = vadd.f32 %v6250, %v6251
      %v6253 = vrot.slane %v6252, 1
      %v6254 = vadd.f32 %v6252, %v6253
      %s6255 = scalar_lea.vmem %s304, 720
      %v6256 = vld [vmem:[%s6255] sm:$0xf]
      %v6257 = vld [vmem:[%s6255 + $0x4] sm:$0xf]
      %v6258 = vld [vmem:[%s6255 + $0x8] sm:$0xf]
      %v6259 = vld [vmem:[%s6255 + $0xc] sm:$0xf]
      %v6260 = vld [vmem:[%s6255 + $0x10] sm:$0xf]
      %v6261 = vld [vmem:[%s6255 + $0x14] sm:$0xf]
      %v6262 = vld [vmem:[%s6255 + $0x18] sm:$0xf]
      %v6263 = vld [vmem:[%s6255 + $0x1c] sm:$0xf]
      %v6264 = vld [vmem:[%s6255 + $0x20] sm:$0xf]
      %v6265 = vld [vmem:[%s6255 + $0x24] sm:$0xf]
      %v6266 = vld [vmem:[%s6255 + $0x28] sm:$0xf]
      %v6267 = vld [vmem:[%s6255 + $0x2c] sm:$0xf]
      %v6268 = vld [vmem:[%s6255 + $0x30] sm:$0xf]
      %v6269 = vld [vmem:[%s6255 + $0x34] sm:$0xf]
      %v6270 = vld [vmem:[%s6255 + $0x38] sm:$0xf]
      %v6271 = vld [vmem:[%s6255 + $0x3c] sm:$0xf]
      %v6272 = vld [vmem:[%s6255 + $0x40] sm:$0xf]
      %v6273 = vld [vmem:[%s6255 + $0x44] sm:$0xf]
      %v6274 = vld [vmem:[%s6255 + $0x48] sm:$0xf]
      %v6275 = vld [vmem:[%s6255 + $0x4c] sm:$0xf]
      %v6276 = vld [vmem:[%s6255 + $0x50] sm:$0xf]
      %v6277 = vld [vmem:[%s6255 + $0x54] sm:$0xf]
      %v6278 = vld [vmem:[%s6255 + $0x58] sm:$0xf]
      %v6279 = vld [vmem:[%s6255 + $0x5c] sm:$0xf]
      %v6280 = vld [vmem:[%s6255 + $0x60] sm:$0xf]
      %v6281 = vld [vmem:[%s6255 + $0x64] sm:$0xf]
      %v6282 = vld [vmem:[%s6255 + $0x68] sm:$0xf]
      %v6283 = vld [vmem:[%s6255 + $0x6c] sm:$0xf]
      %v6284 = vld [vmem:[%s6255 + $0x70] sm:$0xf]
      %v6285 = vld [vmem:[%s6255 + $0x74] sm:$0xf]
      %v6286 = vld [vmem:[%s6255 + $0x78] sm:$0xf]
      %v6287 = vld [vmem:[%s6255 + $0x7c] sm:$0xf]
      %v6288 = vld [vmem:[%s6255 + $0x80] sm:$0xf]
      %v6289 = vld [vmem:[%s6255 + $0x84] sm:$0xf]
      %v6322 = vunpack.c.l.b16 %v6258
      %v6323 = vunpack.c.l.b16 %v6259
      %v6324 = vunpack.c.l.b16 %v6260
      %v6325 = vunpack.c.l.b16 %v6261
      %v6326 = vunpack.c.l.b16 %v6262
      %v6327 = vunpack.c.l.b16 %v6263
      %v6328 = vunpack.c.l.b16 %v6264
      %v6329 = vunpack.c.l.b16 %v6265
      %v6330 = vunpack.c.l.b16 %v6266
      %v6331 = vunpack.c.l.b16 %v6267
      %v6332 = vunpack.c.l.b16 %v6268
      %v6333 = vunpack.c.l.b16 %v6269
      %v6334 = vunpack.c.l.b16 %v6270
      %v6335 = vunpack.c.l.b16 %v6271
      %v6336 = vunpack.c.l.b16 %v6272
      %v6337 = vunpack.c.l.b16 %v6273
      %v6338 = vunpack.c.l.b16 %v6274
      %v6339 = vunpack.c.l.b16 %v6275
      %v6340 = vunpack.c.l.b16 %v6276
      %v6341 = vunpack.c.l.b16 %v6277
      %v6342 = vunpack.c.l.b16 %v6278
      %v6343 = vunpack.c.l.b16 %v6279
      %v6344 = vunpack.c.l.b16 %v6280
      %v6345 = vunpack.c.l.b16 %v6281
      %v6346 = vunpack.c.l.b16 %v6282
      %v6347 = vunpack.c.l.b16 %v6283
      %v6348 = vunpack.c.l.b16 %v6284
      %v6349 = vunpack.c.l.b16 %v6285
      %v6350 = vunpack.c.l.b16 %v6286
      %v6351 = vunpack.c.l.b16 %v6287
      %v6352 = vunpack.c.l.b16 %v6288
      %v6353 = vunpack.c.l.b16 %v6289
      %v6354 = vpack.c.b16 %v6323, %v6322
      %v6355 = vpack.c.b16 %v6325, %v6324
      %v6356 = vpack.c.b16 %v6327, %v6326
      %v6357 = vpack.c.b16 %v6329, %v6328
      %v6358 = vpack.c.b16 %v6331, %v6330
      %v6359 = vpack.c.b16 %v6333, %v6332
      %v6360 = vpack.c.b16 %v6335, %v6334
      %v6361 = vpack.c.b16 %v6337, %v6336
      %v6362 = vpack.c.b16 %v6339, %v6338
      %v6363 = vpack.c.b16 %v6341, %v6340
      %v6364 = vpack.c.b16 %v6343, %v6342
      %v6365 = vpack.c.b16 %v6345, %v6344
      %v6366 = vpack.c.b16 %v6347, %v6346
      %v6367 = vpack.c.b16 %v6349, %v6348
      %v6368 = vpack.c.b16 %v6351, %v6350
      %v6369 = vpack.c.b16 %v6353, %v6352
      %v6371 = vsel %vm440, %v6354, 0
      %v6374 = vsel %vm440, %v6355, 0
      %v6377 = vsel %vm440, %v6356, 0
      %v6380 = vsel %vm440, %v6357, 0
      %v6383 = vsel %vm440, %v6358, 0
      %v6386 = vsel %vm440, %v6359, 0
      %v6389 = vsel %vm440, %v6360, 0
      %v6392 = vsel %vm440, %v6361, 0
      %v6395 = vsel %vm440, %v6362, 0
      %v6398 = vsel %vm440, %v6363, 0
      %v6401 = vsel %vm440, %v6364, 0
      %v6404 = vsel %vm440, %v6365, 0
      %v6407 = vsel %vm440, %v6366, 0
      %v6410 = vsel %vm440, %v6367, 0
      %v6413 = vsel %vm440, %v6368, 0
      %v6416 = vsel %vm440, %v6369, 0
      %6418 = vmatprep.subr.bf16.mxu0 0
      %6419 = vmatpush1.bf16.msra.mxu0 0
      %6420 = vmatprep.subr.bf16.mxu0 0
      %6421 = vmatpush1.bf16.msra.mxu0 0
      %6422 = vmatprep.subr.bf16.mxu0 0
      %6423 = vmatpush1.bf16.msra.mxu0 0
      %6424 = vmatprep.subr.bf16.mxu0 0
      %6425 = vmatpush1.bf16.msra.mxu0 0
      %6426 = vmatprep.subr.bf16.mxu0 0
      %6427 = vmatpush1.bf16.msra.mxu0 0
      %6428 = vmatprep.subr.bf16.mxu0 0
      %6429 = vmatpush1.bf16.msra.mxu0 0
      %6430 = vmatprep.subr.bf16.mxu0 0
      %6431 = vmatpush1.bf16.msra.mxu0 0
      %6432 = vmatprep.subr.bf16.mxu0 %v494
      %6433 = vmatpush1.bf16.msra.mxu0 %v491
      %6434 = vmatprep.subr.bf16.mxu0 0
      %6435 = vmatpush2.bf16.msra.mxu0 0
      %6436 = vmatprep.subr.bf16.mxu0 0
      %6437 = vmatpush2.bf16.msra.mxu0 0
      %6438 = vmatprep.subr.bf16.mxu0 0
      %6439 = vmatpush2.bf16.msra.mxu0 0
      %6440 = vmatprep.subr.bf16.mxu0 0
      %6441 = vmatpush2.bf16.msra.mxu0 0
      %6442 = vmatprep.subr.bf16.mxu0 0
      %6443 = vmatpush2.bf16.msra.mxu0 0
      %6444 = vmatprep.subr.bf16.mxu0 0
      %6445 = vmatpush2.bf16.msra.mxu0 0
      %6446 = vmatprep.subr.bf16.mxu0 0
      %6447 = vmatpush2.bf16.msra.mxu0 0
      %6448 = vmatprep.subr.bf16.mxu0 0
      %6449 = vmatpush2.bf16.msra.mxu0 0
      %6450 = vmatprep.mubr.bf16.mxu0 0
      %6451 = vmatmul.mubr.bf16.gmra.mxu0 %v6371
      %v6452 = vpop.f32.mrf.mxu0
      %v6453 = vadd.f32 0.0, %v6452
      %v6454 = vpop.f32.mrf.mxu0
      %v6455 = vadd.f32 0.0, %v6454
      %v6456 = vpop.f32.mrf.mxu0
      %v6457 = vadd.f32 0.0, %v6456
      %v6458 = vpop.f32.mrf.mxu0
      %v6459 = vadd.f32 0.0, %v6458
      %6460 = vmatprep.mubr.bf16.mxu0 0
      %6461 = vmatmul.mubr.bf16.gmra.mxu0 %v6374
      %v6462 = vpop.f32.mrf.mxu0
      %v6463 = vadd.f32 0.0, %v6462
      %v6464 = vpop.f32.mrf.mxu0
      %v6465 = vadd.f32 0.0, %v6464
      %v6466 = vpop.f32.mrf.mxu0
      %v6467 = vadd.f32 0.0, %v6466
      %v6468 = vpop.f32.mrf.mxu0
      %v6469 = vadd.f32 0.0, %v6468
      %6470 = vmatprep.mubr.bf16.mxu0 0
      %6471 = vmatmul.mubr.bf16.gmra.mxu0 %v6377
      %v6472 = vpop.f32.mrf.mxu0
      %v6473 = vadd.f32 0.0, %v6472
      %v6474 = vpop.f32.mrf.mxu0
      %v6475 = vadd.f32 0.0, %v6474
      %v6476 = vpop.f32.mrf.mxu0
      %v6477 = vadd.f32 0.0, %v6476
      %v6478 = vpop.f32.mrf.mxu0
      %v6479 = vadd.f32 0.0, %v6478
      %6480 = vmatprep.mubr.bf16.mxu0 0
      %6481 = vmatmul.mubr.bf16.gmra.mxu0 %v6380
      %v6482 = vpop.f32.mrf.mxu0
      %v6483 = vadd.f32 0.0, %v6482
      %v6484 = vpop.f32.mrf.mxu0
      %v6485 = vadd.f32 0.0, %v6484
      %v6486 = vpop.f32.mrf.mxu0
      %v6487 = vadd.f32 0.0, %v6486
      %v6488 = vpop.f32.mrf.mxu0
      %v6489 = vadd.f32 0.0, %v6488
      %6490 = vmatprep.mubr.bf16.mxu0 0
      %6491 = vmatmul.mubr.bf16.gmra.mxu0 %v6383
      %v6492 = vpop.f32.mrf.mxu0
      %v6493 = vadd.f32 0.0, %v6492
      %v6494 = vpop.f32.mrf.mxu0
      %v6495 = vadd.f32 0.0, %v6494
      %v6496 = vpop.f32.mrf.mxu0
      %v6497 = vadd.f32 0.0, %v6496
      %v6498 = vpop.f32.mrf.mxu0
      %v6499 = vadd.f32 0.0, %v6498
      %6500 = vmatprep.mubr.bf16.mxu0 0
      %6501 = vmatmul.mubr.bf16.gmra.mxu0 %v6386
      %v6502 = vpop.f32.mrf.mxu0
      %v6503 = vadd.f32 0.0, %v6502
      %v6504 = vpop.f32.mrf.mxu0
      %v6505 = vadd.f32 0.0, %v6504
      %v6506 = vpop.f32.mrf.mxu0
      %v6507 = vadd.f32 0.0, %v6506
      %v6508 = vpop.f32.mrf.mxu0
      %v6509 = vadd.f32 0.0, %v6508
      %6510 = vmatprep.mubr.bf16.mxu0 0
      %6511 = vmatmul.mubr.bf16.gmra.mxu0 %v6389
      %v6512 = vpop.f32.mrf.mxu0
      %v6513 = vadd.f32 0.0, %v6512
      %v6514 = vpop.f32.mrf.mxu0
      %v6515 = vadd.f32 0.0, %v6514
      %v6516 = vpop.f32.mrf.mxu0
      %v6517 = vadd.f32 0.0, %v6516
      %v6518 = vpop.f32.mrf.mxu0
      %v6519 = vadd.f32 0.0, %v6518
      %6520 = vmatprep.mubr.bf16.mxu0 0
      %6521 = vmatmul.mubr.bf16.gmra.mxu0 %v6392
      %v6522 = vpop.f32.mrf.mxu0
      %v6523 = vadd.f32 0.0, %v6522
      %v6524 = vpop.f32.mrf.mxu0
      %v6525 = vadd.f32 0.0, %v6524
      %v6526 = vpop.f32.mrf.mxu0
      %v6527 = vadd.f32 0.0, %v6526
      %v6528 = vpop.f32.mrf.mxu0
      %v6529 = vadd.f32 0.0, %v6528
      %6530 = vmatprep.mubr.bf16.mxu0 0
      %6531 = vmatmul.mubr.bf16.gmra.mxu0 %v6395
      %v6532 = vpop.f32.mrf.mxu0
      %v6533 = vadd.f32 0.0, %v6532
      %v6534 = vpop.f32.mrf.mxu0
      %v6535 = vadd.f32 0.0, %v6534
      %v6536 = vpop.f32.mrf.mxu0
      %v6537 = vadd.f32 0.0, %v6536
      %v6538 = vpop.f32.mrf.mxu0
      %v6539 = vadd.f32 0.0, %v6538
      %6540 = vmatprep.mubr.bf16.mxu0 0
      %6541 = vmatmul.mubr.bf16.gmra.mxu0 %v6398
      %v6542 = vpop.f32.mrf.mxu0
      %v6543 = vadd.f32 0.0, %v6542
      %v6544 = vpop.f32.mrf.mxu0
      %v6545 = vadd.f32 0.0, %v6544
      %v6546 = vpop.f32.mrf.mxu0
      %v6547 = vadd.f32 0.0, %v6546
      %v6548 = vpop.f32.mrf.mxu0
      %v6549 = vadd.f32 0.0, %v6548
      %6550 = vmatprep.mubr.bf16.mxu0 0
      %6551 = vmatmul.mubr.bf16.gmra.mxu0 %v6401
      %v6552 = vpop.f32.mrf.mxu0
      %v6553 = vadd.f32 0.0, %v6552
      %v6554 = vpop.f32.mrf.mxu0
      %v6555 = vadd.f32 0.0, %v6554
      %v6556 = vpop.f32.mrf.mxu0
      %v6557 = vadd.f32 0.0, %v6556
      %v6558 = vpop.f32.mrf.mxu0
      %v6559 = vadd.f32 0.0, %v6558
      %6560 = vmatprep.mubr.bf16.mxu0 0
      %6561 = vmatmul.mubr.bf16.gmra.mxu0 %v6404
      %v6562 = vpop.f32.mrf.mxu0
      %v6563 = vadd.f32 0.0, %v6562
      %v6564 = vpop.f32.mrf.mxu0
      %v6565 = vadd.f32 0.0, %v6564
      %v6566 = vpop.f32.mrf.mxu0
      %v6567 = vadd.f32 0.0, %v6566
      %v6568 = vpop.f32.mrf.mxu0
      %v6569 = vadd.f32 0.0, %v6568
      %6570 = vmatprep.mubr.bf16.mxu0 0
      %6571 = vmatmul.mubr.bf16.gmra.mxu0 %v6407
      %v6572 = vpop.f32.mrf.mxu0
      %v6573 = vadd.f32 0.0, %v6572
      %v6574 = vpop.f32.mrf.mxu0
      %v6575 = vadd.f32 0.0, %v6574
      %v6576 = vpop.f32.mrf.mxu0
      %v6577 = vadd.f32 0.0, %v6576
      %v6578 = vpop.f32.mrf.mxu0
      %v6579 = vadd.f32 0.0, %v6578
      %6580 = vmatprep.mubr.bf16.mxu0 0
      %6581 = vmatmul.mubr.bf16.gmra.mxu0 %v6410
      %v6582 = vpop.f32.mrf.mxu0
      %v6583 = vadd.f32 0.0, %v6582
      %v6584 = vpop.f32.mrf.mxu0
      %v6585 = vadd.f32 0.0, %v6584
      %v6586 = vpop.f32.mrf.mxu0
      %v6587 = vadd.f32 0.0, %v6586
      %v6588 = vpop.f32.mrf.mxu0
      %v6589 = vadd.f32 0.0, %v6588
      %6590 = vmatprep.mubr.bf16.mxu0 0
      %6591 = vmatmul.mubr.bf16.gmra.mxu0 %v6413
      %v6592 = vpop.f32.mrf.mxu0
      %v6593 = vadd.f32 0.0, %v6592
      %v6594 = vpop.f32.mrf.mxu0
      %v6595 = vadd.f32 0.0, %v6594
      %v6596 = vpop.f32.mrf.mxu0
      %v6597 = vadd.f32 0.0, %v6596
      %v6598 = vpop.f32.mrf.mxu0
      %v6599 = vadd.f32 0.0, %v6598
      %6600 = vmatprep.mubr.bf16.mxu0 0
      %6601 = vmatmul.mubr.bf16.gmra.mxu0 %v6416
      %v6602 = vpop.f32.mrf.mxu0
      %v6603 = vadd.f32 0.0, %v6602
      %v6604 = vpop.f32.mrf.mxu0
      %v6605 = vadd.f32 0.0, %v6604
      %v6606 = vpop.f32.mrf.mxu0
      %v6607 = vadd.f32 0.0, %v6606
      %v6608 = vpop.f32.mrf.mxu0
      %v6609 = vadd.f32 0.0, %v6608
      %6610 = vdwg.mxu0
      %v6613 = vunpack.c.l.b16 %v6256
      %v6614 = vunpack.c.l.b16 %v6257
      %v6615 = vpack.c.b16 %v6614, %v6613
      %v6617 = vsel %vm440, %v6615, 0
      %6619 = vmatprep.subr.bf16.mxu0 0
      %6620 = vmatpush1.bf16.msra.mxu0 0
      %6621 = vmatprep.subr.bf16.mxu0 0
      %6622 = vmatpush1.bf16.msra.mxu0 0
      %6623 = vmatprep.subr.bf16.mxu0 0
      %6624 = vmatpush1.bf16.msra.mxu0 0
      %6625 = vmatprep.subr.bf16.mxu0 0
      %6626 = vmatpush1.bf16.msra.mxu0 0
      %6627 = vmatprep.subr.bf16.mxu0 0
      %6628 = vmatpush1.bf16.msra.mxu0 0
      %6629 = vmatprep.subr.bf16.mxu0 0
      %6630 = vmatpush1.bf16.msra.mxu0 0
      %6631 = vmatprep.subr.bf16.mxu0 0
      %6632 = vmatpush1.bf16.msra.mxu0 0
      %6633 = vmatprep.subr.bf16.mxu0 %v709
      %6634 = vmatpush1.bf16.msra.mxu0 %v706
      %6635 = vmatprep.subr.bf16.mxu0 0
      %6636 = vmatpush2.bf16.msra.mxu0 0
      %6637 = vmatprep.subr.bf16.mxu0 0
      %6638 = vmatpush2.bf16.msra.mxu0 0
      %6639 = vmatprep.subr.bf16.mxu0 0
      %6640 = vmatpush2.bf16.msra.mxu0 0
      %6641 = vmatprep.subr.bf16.mxu0 0
      %6642 = vmatpush2.bf16.msra.mxu0 0
      %6643 = vmatprep.subr.bf16.mxu0 0
      %6644 = vmatpush2.bf16.msra.mxu0 0
      %6645 = vmatprep.subr.bf16.mxu0 0
      %6646 = vmatpush2.bf16.msra.mxu0 0
      %6647 = vmatprep.subr.bf16.mxu0 0
      %6648 = vmatpush2.bf16.msra.mxu0 0
      %6649 = vmatprep.subr.bf16.mxu0 0
      %6650 = vmatpush2.bf16.msra.mxu0 0
      %6651 = vmatprep.mubr.bf16.mxu0 0
      %6652 = vmatmul.mubr.bf16.gmra.mxu0 %v6617
      %v6653 = vpop.f32.mrf.mxu0
      %v6654 = vadd.f32 %v6453, %v6653
      %v6655 = vpop.f32.mrf.mxu0
      %v6656 = vadd.f32 %v6455, %v6655
      %v6657 = vpop.f32.mrf.mxu0
      %v6658 = vadd.f32 %v6457, %v6657
      %v6659 = vpop.f32.mrf.mxu0
      %v6660 = vadd.f32 %v6459, %v6659
      %6661 = vmatprep.mubr.bf16.mxu0 0
      %6662 = vmatmul.mubr.bf16.gmra.mxu0 %v6371
      %v6663 = vpop.f32.mrf.mxu0
      %v6664 = vadd.f32 %v6463, %v6663
      %v6665 = vpop.f32.mrf.mxu0
      %v6666 = vadd.f32 %v6465, %v6665
      %v6667 = vpop.f32.mrf.mxu0
      %v6668 = vadd.f32 %v6467, %v6667
      %v6669 = vpop.f32.mrf.mxu0
      %v6670 = vadd.f32 %v6469, %v6669
      %6671 = vmatprep.mubr.bf16.mxu0 0
      %6672 = vmatmul.mubr.bf16.gmra.mxu0 %v6374
      %v6673 = vpop.f32.mrf.mxu0
      %v6674 = vadd.f32 %v6473, %v6673
      %v6675 = vpop.f32.mrf.mxu0
      %v6676 = vadd.f32 %v6475, %v6675
      %v6677 = vpop.f32.mrf.mxu0
      %v6678 = vadd.f32 %v6477, %v6677
      %v6679 = vpop.f32.mrf.mxu0
      %v6680 = vadd.f32 %v6479, %v6679
      %6681 = vmatprep.mubr.bf16.mxu0 0
      %6682 = vmatmul.mubr.bf16.gmra.mxu0 %v6377
      %v6683 = vpop.f32.mrf.mxu0
      %v6684 = vadd.f32 %v6483, %v6683
      %v6685 = vpop.f32.mrf.mxu0
      %v6686 = vadd.f32 %v6485, %v6685
      %v6687 = vpop.f32.mrf.mxu0
      %v6688 = vadd.f32 %v6487, %v6687
      %v6689 = vpop.f32.mrf.mxu0
      %v6690 = vadd.f32 %v6489, %v6689
      %6691 = vmatprep.mubr.bf16.mxu0 0
      %6692 = vmatmul.mubr.bf16.gmra.mxu0 %v6380
      %v6693 = vpop.f32.mrf.mxu0
      %v6694 = vadd.f32 %v6493, %v6693
      %v6695 = vpop.f32.mrf.mxu0
      %v6696 = vadd.f32 %v6495, %v6695
      %v6697 = vpop.f32.mrf.mxu0
      %v6698 = vadd.f32 %v6497, %v6697
      %v6699 = vpop.f32.mrf.mxu0
      %v6700 = vadd.f32 %v6499, %v6699
      %6701 = vmatprep.mubr.bf16.mxu0 0
      %6702 = vmatmul.mubr.bf16.gmra.mxu0 %v6383
      %v6703 = vpop.f32.mrf.mxu0
      %v6704 = vadd.f32 %v6503, %v6703
      %v6705 = vpop.f32.mrf.mxu0
      %v6706 = vadd.f32 %v6505, %v6705
      %v6707 = vpop.f32.mrf.mxu0
      %v6708 = vadd.f32 %v6507, %v6707
      %v6709 = vpop.f32.mrf.mxu0
      %v6710 = vadd.f32 %v6509, %v6709
      %6711 = vmatprep.mubr.bf16.mxu0 0
      %6712 = vmatmul.mubr.bf16.gmra.mxu0 %v6386
      %v6713 = vpop.f32.mrf.mxu0
      %v6714 = vadd.f32 %v6513, %v6713
      %v6715 = vpop.f32.mrf.mxu0
      %v6716 = vadd.f32 %v6515, %v6715
      %v6717 = vpop.f32.mrf.mxu0
      %v6718 = vadd.f32 %v6517, %v6717
      %v6719 = vpop.f32.mrf.mxu0
      %v6720 = vadd.f32 %v6519, %v6719
      %6721 = vmatprep.mubr.bf16.mxu0 0
      %6722 = vmatmul.mubr.bf16.gmra.mxu0 %v6389
      %v6723 = vpop.f32.mrf.mxu0
      %v6724 = vadd.f32 %v6523, %v6723
      %v6725 = vpop.f32.mrf.mxu0
      %v6726 = vadd.f32 %v6525, %v6725
      %v6727 = vpop.f32.mrf.mxu0
      %v6728 = vadd.f32 %v6527, %v6727
      %v6729 = vpop.f32.mrf.mxu0
      %v6730 = vadd.f32 %v6529, %v6729
      %6731 = vmatprep.mubr.bf16.mxu0 0
      %6732 = vmatmul.mubr.bf16.gmra.mxu0 %v6392
      %v6733 = vpop.f32.mrf.mxu0
      %v6734 = vadd.f32 %v6533, %v6733
      %v6735 = vpop.f32.mrf.mxu0
      %v6736 = vadd.f32 %v6535, %v6735
      %v6737 = vpop.f32.mrf.mxu0
      %v6738 = vadd.f32 %v6537, %v6737
      %v6739 = vpop.f32.mrf.mxu0
      %v6740 = vadd.f32 %v6539, %v6739
      %6741 = vmatprep.mubr.bf16.mxu0 0
      %6742 = vmatmul.mubr.bf16.gmra.mxu0 %v6395
      %v6743 = vpop.f32.mrf.mxu0
      %v6744 = vadd.f32 %v6543, %v6743
      %v6745 = vpop.f32.mrf.mxu0
      %v6746 = vadd.f32 %v6545, %v6745
      %v6747 = vpop.f32.mrf.mxu0
      %v6748 = vadd.f32 %v6547, %v6747
      %v6749 = vpop.f32.mrf.mxu0
      %v6750 = vadd.f32 %v6549, %v6749
      %6751 = vmatprep.mubr.bf16.mxu0 0
      %6752 = vmatmul.mubr.bf16.gmra.mxu0 %v6398
      %v6753 = vpop.f32.mrf.mxu0
      %v6754 = vadd.f32 %v6553, %v6753
      %v6755 = vpop.f32.mrf.mxu0
      %v6756 = vadd.f32 %v6555, %v6755
      %v6757 = vpop.f32.mrf.mxu0
      %v6758 = vadd.f32 %v6557, %v6757
      %v6759 = vpop.f32.mrf.mxu0
      %v6760 = vadd.f32 %v6559, %v6759
      %6761 = vmatprep.mubr.bf16.mxu0 0
      %6762 = vmatmul.mubr.bf16.gmra.mxu0 %v6401
      %v6763 = vpop.f32.mrf.mxu0
      %v6764 = vadd.f32 %v6563, %v6763
      %v6765 = vpop.f32.mrf.mxu0
      %v6766 = vadd.f32 %v6565, %v6765
      %v6767 = vpop.f32.mrf.mxu0
      %v6768 = vadd.f32 %v6567, %v6767
      %v6769 = vpop.f32.mrf.mxu0
      %v6770 = vadd.f32 %v6569, %v6769
      %6771 = vmatprep.mubr.bf16.mxu0 0
      %6772 = vmatmul.mubr.bf16.gmra.mxu0 %v6404
      %v6773 = vpop.f32.mrf.mxu0
      %v6774 = vadd.f32 %v6573, %v6773
      %v6775 = vpop.f32.mrf.mxu0
      %v6776 = vadd.f32 %v6575, %v6775
      %v6777 = vpop.f32.mrf.mxu0
      %v6778 = vadd.f32 %v6577, %v6777
      %v6779 = vpop.f32.mrf.mxu0
      %v6780 = vadd.f32 %v6579, %v6779
      %6781 = vmatprep.mubr.bf16.mxu0 0
      %6782 = vmatmul.mubr.bf16.gmra.mxu0 %v6407
      %v6783 = vpop.f32.mrf.mxu0
      %v6784 = vadd.f32 %v6583, %v6783
      %v6785 = vpop.f32.mrf.mxu0
      %v6786 = vadd.f32 %v6585, %v6785
      %v6787 = vpop.f32.mrf.mxu0
      %v6788 = vadd.f32 %v6587, %v6787
      %v6789 = vpop.f32.mrf.mxu0
      %v6790 = vadd.f32 %v6589, %v6789
      %6791 = vmatprep.mubr.bf16.mxu0 0
      %6792 = vmatmul.mubr.bf16.gmra.mxu0 %v6410
      %v6793 = vpop.f32.mrf.mxu0
      %v6794 = vadd.f32 %v6593, %v6793
      %v6795 = vpop.f32.mrf.mxu0
      %v6796 = vadd.f32 %v6595, %v6795
      %v6797 = vpop.f32.mrf.mxu0
      %v6798 = vadd.f32 %v6597, %v6797
      %v6799 = vpop.f32.mrf.mxu0
      %v6800 = vadd.f32 %v6599, %v6799
      %6801 = vmatprep.mubr.bf16.mxu0 0
      %6802 = vmatmul.mubr.bf16.gmra.mxu0 %v6413
      %v6803 = vpop.f32.mrf.mxu0
      %v6804 = vadd.f32 %v6603, %v6803
      %v6805 = vpop.f32.mrf.mxu0
      %v6806 = vadd.f32 %v6605, %v6805
      %v6807 = vpop.f32.mrf.mxu0
      %v6808 = vadd.f32 %v6607, %v6807
      %v6809 = vpop.f32.mrf.mxu0
      %v6810 = vadd.f32 %v6609, %v6809
      %6811 = vdwg.mxu0
      %v6812 = vld [vmem:[%s6255 + $0x10] sm:$0xf]
      %v6813 = vld [vmem:[%s6255 + $0x14] sm:$0xf]
      %v6814 = vld [vmem:[%s6255 + $0x18] sm:$0xf]
      %v6815 = vld [vmem:[%s6255 + $0x1c] sm:$0xf]
      %v6816 = vld [vmem:[%s6255 + $0x20] sm:$0xf]
      %v6817 = vld [vmem:[%s6255 + $0x24] sm:$0xf]
      %v6818 = vld [vmem:[%s6255 + $0x28] sm:$0xf]
      %v6819 = vld [vmem:[%s6255 + $0x2c] sm:$0xf]
      %v6820 = vld [vmem:[%s6255 + $0x30] sm:$0xf]
      %v6821 = vld [vmem:[%s6255 + $0x34] sm:$0xf]
      %v6822 = vld [vmem:[%s6255 + $0x38] sm:$0xf]
      %v6823 = vld [vmem:[%s6255 + $0x3c] sm:$0xf]
      %v6824 = vld [vmem:[%s6255 + $0x40] sm:$0xf]
      %v6825 = vld [vmem:[%s6255 + $0x44] sm:$0xf]
      %v6826 = vld [vmem:[%s6255 + $0x48] sm:$0xf]
      %v6827 = vld [vmem:[%s6255 + $0x4c] sm:$0xf]
      %v6828 = vld [vmem:[%s6255 + $0x50] sm:$0xf]
      %v6829 = vld [vmem:[%s6255 + $0x54] sm:$0xf]
      %v6830 = vld [vmem:[%s6255 + $0x58] sm:$0xf]
      %v6831 = vld [vmem:[%s6255 + $0x5c] sm:$0xf]
      %v6832 = vld [vmem:[%s6255 + $0x60] sm:$0xf]
      %v6833 = vld [vmem:[%s6255 + $0x64] sm:$0xf]
      %v6834 = vld [vmem:[%s6255 + $0x68] sm:$0xf]
      %v6835 = vld [vmem:[%s6255 + $0x6c] sm:$0xf]
      %v6836 = vld [vmem:[%s6255 + $0x70] sm:$0xf]
      %v6837 = vld [vmem:[%s6255 + $0x74] sm:$0xf]
      %v6838 = vld [vmem:[%s6255 + $0x78] sm:$0xf]
      %v6839 = vld [vmem:[%s6255 + $0x7c] sm:$0xf]
      %v6840 = vld [vmem:[%s6255 + $0x80] sm:$0xf]
      %v6841 = vld [vmem:[%s6255 + $0x84] sm:$0xf]
      %v6842 = vld [vmem:[%s6255 + $0x88] sm:$0xf]
      %v6843 = vld [vmem:[%s6255 + $0x8c] sm:$0xf]
      %v6876 = vunpack.c.l.b16 %v6812
      %v6877 = vunpack.c.l.b16 %v6813
      %v6878 = vunpack.c.l.b16 %v6814
      %v6879 = vunpack.c.l.b16 %v6815
      %v6880 = vunpack.c.l.b16 %v6816
      %v6881 = vunpack.c.l.b16 %v6817
      %v6882 = vunpack.c.l.b16 %v6818
      %v6883 = vunpack.c.l.b16 %v6819
      %v6884 = vunpack.c.l.b16 %v6820
      %v6885 = vunpack.c.l.b16 %v6821
      %v6886 = vunpack.c.l.b16 %v6822
      %v6887 = vunpack.c.l.b16 %v6823
      %v6888 = vunpack.c.l.b16 %v6824
      %v6889 = vunpack.c.l.b16 %v6825
      %v6890 = vunpack.c.l.b16 %v6826
      %v6891 = vunpack.c.l.b16 %v6827
      %v6892 = vunpack.c.l.b16 %v6828
      %v6893 = vunpack.c.l.b16 %v6829
      %v6894 = vunpack.c.l.b16 %v6830
      %v6895 = vunpack.c.l.b16 %v6831
      %v6896 = vunpack.c.l.b16 %v6832
      %v6897 = vunpack.c.l.b16 %v6833
      %v6898 = vunpack.c.l.b16 %v6834
      %v6899 = vunpack.c.l.b16 %v6835
      %v6900 = vunpack.c.l.b16 %v6836
      %v6901 = vunpack.c.l.b16 %v6837
      %v6902 = vunpack.c.l.b16 %v6838
      %v6903 = vunpack.c.l.b16 %v6839
      %v6904 = vunpack.c.l.b16 %v6840
      %v6905 = vunpack.c.l.b16 %v6841
      %v6906 = vunpack.c.l.b16 %v6842
      %v6907 = vunpack.c.l.b16 %v6843
      %v6908 = vpack.c.b16 %v6877, %v6876
      %v6909 = vpack.c.b16 %v6879, %v6878
      %v6910 = vpack.c.b16 %v6881, %v6880
      %v6911 = vpack.c.b16 %v6883, %v6882
      %v6912 = vpack.c.b16 %v6885, %v6884
      %v6913 = vpack.c.b16 %v6887, %v6886
      %v6914 = vpack.c.b16 %v6889, %v6888
      %v6915 = vpack.c.b16 %v6891, %v6890
      %v6916 = vpack.c.b16 %v6893, %v6892
      %v6917 = vpack.c.b16 %v6895, %v6894
      %v6918 = vpack.c.b16 %v6897, %v6896
      %v6919 = vpack.c.b16 %v6899, %v6898
      %v6920 = vpack.c.b16 %v6901, %v6900
      %v6921 = vpack.c.b16 %v6903, %v6902
      %v6922 = vpack.c.b16 %v6905, %v6904
      %v6923 = vpack.c.b16 %v6907, %v6906
      %v6925 = vsel %vm440, %v6908, 0
      %v6928 = vsel %vm440, %v6909, 0
      %v6931 = vsel %vm440, %v6910, 0
      %v6934 = vsel %vm440, %v6911, 0
      %v6937 = vsel %vm440, %v6912, 0
      %v6940 = vsel %vm440, %v6913, 0
      %v6943 = vsel %vm440, %v6914, 0
      %v6946 = vsel %vm440, %v6915, 0
      %v6949 = vsel %vm440, %v6916, 0
      %v6952 = vsel %vm440, %v6917, 0
      %v6955 = vsel %vm440, %v6918, 0
      %v6958 = vsel %vm440, %v6919, 0
      %v6961 = vsel %vm440, %v6920, 0
      %v6964 = vsel %vm440, %v6921, 0
      %v6967 = vsel %vm440, %v6922, 0
      %v6970 = vsel %vm440, %v6923, 0
      %6972 = vmatprep.subr.bf16.mxu0 0
      %6973 = vmatpush1.bf16.msra.mxu0 0
      %6974 = vmatprep.subr.bf16.mxu0 0
      %6975 = vmatpush1.bf16.msra.mxu0 0
      %6976 = vmatprep.subr.bf16.mxu0 0
      %6977 = vmatpush1.bf16.msra.mxu0 0
      %6978 = vmatprep.subr.bf16.mxu0 0
      %6979 = vmatpush1.bf16.msra.mxu0 0
      %6980 = vmatprep.subr.bf16.mxu0 0
      %6981 = vmatpush1.bf16.msra.mxu0 0
      %6982 = vmatprep.subr.bf16.mxu0 0
      %6983 = vmatpush1.bf16.msra.mxu0 0
      %6984 = vmatprep.subr.bf16.mxu0 0
      %6985 = vmatpush1.bf16.msra.mxu0 0
      %6986 = vmatprep.subr.bf16.mxu0 %v1079
      %6987 = vmatpush1.bf16.msra.mxu0 %v1076
      %6988 = vmatprep.subr.bf16.mxu0 0
      %6989 = vmatpush2.bf16.msra.mxu0 0
      %6990 = vmatprep.subr.bf16.mxu0 0
      %6991 = vmatpush2.bf16.msra.mxu0 0
      %6992 = vmatprep.subr.bf16.mxu0 0
      %6993 = vmatpush2.bf16.msra.mxu0 0
      %6994 = vmatprep.subr.bf16.mxu0 0
      %6995 = vmatpush2.bf16.msra.mxu0 0
      %6996 = vmatprep.subr.bf16.mxu0 0
      %6997 = vmatpush2.bf16.msra.mxu0 0
      %6998 = vmatprep.subr.bf16.mxu0 0
      %6999 = vmatpush2.bf16.msra.mxu0 0
      %7000 = vmatprep.subr.bf16.mxu0 0
      %7001 = vmatpush2.bf16.msra.mxu0 0
      %7002 = vmatprep.subr.bf16.mxu0 0
      %7003 = vmatpush2.bf16.msra.mxu0 0
      %7004 = vmatprep.mubr.bf16.mxu0 0
      %7005 = vmatmul.mubr.bf16.gmra.mxu0 %v6925
      %v7006 = vpop.f32.mrf.mxu0
      %v7007 = vadd.f32 0.0, %v7006
      %v7008 = vpop.f32.mrf.mxu0
      %v7009 = vadd.f32 0.0, %v7008
      %v7010 = vpop.f32.mrf.mxu0
      %v7011 = vadd.f32 0.0, %v7010
      %v7012 = vpop.f32.mrf.mxu0
      %v7013 = vadd.f32 0.0, %v7012
      %7014 = vmatprep.mubr.bf16.mxu0 0
      %7015 = vmatmul.mubr.bf16.gmra.mxu0 %v6928
      %v7016 = vpop.f32.mrf.mxu0
      %v7017 = vadd.f32 0.0, %v7016
      %v7018 = vpop.f32.mrf.mxu0
      %v7019 = vadd.f32 0.0, %v7018
      %v7020 = vpop.f32.mrf.mxu0
      %v7021 = vadd.f32 0.0, %v7020
      %v7022 = vpop.f32.mrf.mxu0
      %v7023 = vadd.f32 0.0, %v7022
      %7024 = vmatprep.mubr.bf16.mxu0 0
      %7025 = vmatmul.mubr.bf16.gmra.mxu0 %v6931
      %v7026 = vpop.f32.mrf.mxu0
      %v7027 = vadd.f32 0.0, %v7026
      %v7028 = vpop.f32.mrf.mxu0
      %v7029 = vadd.f32 0.0, %v7028
      %v7030 = vpop.f32.mrf.mxu0
      %v7031 = vadd.f32 0.0, %v7030
      %v7032 = vpop.f32.mrf.mxu0
      %v7033 = vadd.f32 0.0, %v7032
      %7034 = vmatprep.mubr.bf16.mxu0 0
      %7035 = vmatmul.mubr.bf16.gmra.mxu0 %v6934
      %v7036 = vpop.f32.mrf.mxu0
      %v7037 = vadd.f32 0.0, %v7036
      %v7038 = vpop.f32.mrf.mxu0
      %v7039 = vadd.f32 0.0, %v7038
      %v7040 = vpop.f32.mrf.mxu0
      %v7041 = vadd.f32 0.0, %v7040
      %v7042 = vpop.f32.mrf.mxu0
      %v7043 = vadd.f32 0.0, %v7042
      %7044 = vmatprep.mubr.bf16.mxu0 0
      %7045 = vmatmul.mubr.bf16.gmra.mxu0 %v6937
      %v7046 = vpop.f32.mrf.mxu0
      %v7047 = vadd.f32 0.0, %v7046
      %v7048 = vpop.f32.mrf.mxu0
      %v7049 = vadd.f32 0.0, %v7048
      %v7050 = vpop.f32.mrf.mxu0
      %v7051 = vadd.f32 0.0, %v7050
      %v7052 = vpop.f32.mrf.mxu0
      %v7053 = vadd.f32 0.0, %v7052
      %7054 = vmatprep.mubr.bf16.mxu0 0
      %7055 = vmatmul.mubr.bf16.gmra.mxu0 %v6940
      %v7056 = vpop.f32.mrf.mxu0
      %v7057 = vadd.f32 0.0, %v7056
      %v7058 = vpop.f32.mrf.mxu0
      %v7059 = vadd.f32 0.0, %v7058
      %v7060 = vpop.f32.mrf.mxu0
      %v7061 = vadd.f32 0.0, %v7060
      %v7062 = vpop.f32.mrf.mxu0
      %v7063 = vadd.f32 0.0, %v7062
      %7064 = vmatprep.mubr.bf16.mxu0 0
      %7065 = vmatmul.mubr.bf16.gmra.mxu0 %v6943
      %v7066 = vpop.f32.mrf.mxu0
      %v7067 = vadd.f32 0.0, %v7066
      %v7068 = vpop.f32.mrf.mxu0
      %v7069 = vadd.f32 0.0, %v7068
      %v7070 = vpop.f32.mrf.mxu0
      %v7071 = vadd.f32 0.0, %v7070
      %v7072 = vpop.f32.mrf.mxu0
      %v7073 = vadd.f32 0.0, %v7072
      %7074 = vmatprep.mubr.bf16.mxu0 0
      %7075 = vmatmul.mubr.bf16.gmra.mxu0 %v6946
      %v7076 = vpop.f32.mrf.mxu0
      %v7077 = vadd.f32 0.0, %v7076
      %v7078 = vpop.f32.mrf.mxu0
      %v7079 = vadd.f32 0.0, %v7078
      %v7080 = vpop.f32.mrf.mxu0
      %v7081 = vadd.f32 0.0, %v7080
      %v7082 = vpop.f32.mrf.mxu0
      %v7083 = vadd.f32 0.0, %v7082
      %7084 = vmatprep.mubr.bf16.mxu0 0
      %7085 = vmatmul.mubr.bf16.gmra.mxu0 %v6949
      %v7086 = vpop.f32.mrf.mxu0
      %v7087 = vadd.f32 0.0, %v7086
      %v7088 = vpop.f32.mrf.mxu0
      %v7089 = vadd.f32 0.0, %v7088
      %v7090 = vpop.f32.mrf.mxu0
      %v7091 = vadd.f32 0.0, %v7090
      %v7092 = vpop.f32.mrf.mxu0
      %v7093 = vadd.f32 0.0, %v7092
      %7094 = vmatprep.mubr.bf16.mxu0 0
      %7095 = vmatmul.mubr.bf16.gmra.mxu0 %v6952
      %v7096 = vpop.f32.mrf.mxu0
      %v7097 = vadd.f32 0.0, %v7096
      %v7098 = vpop.f32.mrf.mxu0
      %v7099 = vadd.f32 0.0, %v7098
      %v7100 = vpop.f32.mrf.mxu0
      %v7101 = vadd.f32 0.0, %v7100
      %v7102 = vpop.f32.mrf.mxu0
      %v7103 = vadd.f32 0.0, %v7102
      %7104 = vmatprep.mubr.bf16.mxu0 0
      %7105 = vmatmul.mubr.bf16.gmra.mxu0 %v6955
      %v7106 = vpop.f32.mrf.mxu0
      %v7107 = vadd.f32 0.0, %v7106
      %v7108 = vpop.f32.mrf.mxu0
      %v7109 = vadd.f32 0.0, %v7108
      %v7110 = vpop.f32.mrf.mxu0
      %v7111 = vadd.f32 0.0, %v7110
      %v7112 = vpop.f32.mrf.mxu0
      %v7113 = vadd.f32 0.0, %v7112
      %7114 = vmatprep.mubr.bf16.mxu0 0
      %7115 = vmatmul.mubr.bf16.gmra.mxu0 %v6958
      %v7116 = vpop.f32.mrf.mxu0
      %v7117 = vadd.f32 0.0, %v7116
      %v7118 = vpop.f32.mrf.mxu0
      %v7119 = vadd.f32 0.0, %v7118
      %v7120 = vpop.f32.mrf.mxu0
      %v7121 = vadd.f32 0.0, %v7120
      %v7122 = vpop.f32.mrf.mxu0
      %v7123 = vadd.f32 0.0, %v7122
      %7124 = vmatprep.mubr.bf16.mxu0 0
      %7125 = vmatmul.mubr.bf16.gmra.mxu0 %v6961
      %v7126 = vpop.f32.mrf.mxu0
      %v7127 = vadd.f32 0.0, %v7126
      %v7128 = vpop.f32.mrf.mxu0
      %v7129 = vadd.f32 0.0, %v7128
      %v7130 = vpop.f32.mrf.mxu0
      %v7131 = vadd.f32 0.0, %v7130
      %v7132 = vpop.f32.mrf.mxu0
      %v7133 = vadd.f32 0.0, %v7132
      %7134 = vmatprep.mubr.bf16.mxu0 0
      %7135 = vmatmul.mubr.bf16.gmra.mxu0 %v6964
      %v7136 = vpop.f32.mrf.mxu0
      %v7137 = vadd.f32 0.0, %v7136
      %v7138 = vpop.f32.mrf.mxu0
      %v7139 = vadd.f32 0.0, %v7138
      %v7140 = vpop.f32.mrf.mxu0
      %v7141 = vadd.f32 0.0, %v7140
      %v7142 = vpop.f32.mrf.mxu0
      %v7143 = vadd.f32 0.0, %v7142
      %7144 = vmatprep.mubr.bf16.mxu0 0
      %7145 = vmatmul.mubr.bf16.gmra.mxu0 %v6967
      %v7146 = vpop.f32.mrf.mxu0
      %v7147 = vadd.f32 0.0, %v7146
      %v7148 = vpop.f32.mrf.mxu0
      %v7149 = vadd.f32 0.0, %v7148
      %v7150 = vpop.f32.mrf.mxu0
      %v7151 = vadd.f32 0.0, %v7150
      %v7152 = vpop.f32.mrf.mxu0
      %v7153 = vadd.f32 0.0, %v7152
      %7154 = vmatprep.mubr.bf16.mxu0 0
      %7155 = vmatmul.mubr.bf16.gmra.mxu0 %v6970
      %v7156 = vpop.f32.mrf.mxu0
      %v7157 = vadd.f32 0.0, %v7156
      %v7158 = vpop.f32.mrf.mxu0
      %v7159 = vadd.f32 0.0, %v7158
      %v7160 = vpop.f32.mrf.mxu0
      %v7161 = vadd.f32 0.0, %v7160
      %v7162 = vpop.f32.mrf.mxu0
      %v7163 = vadd.f32 0.0, %v7162
      %7164 = vdwg.mxu0
      %v7165 = vadd.f32 %v6654, %v7007
      %v7166 = vadd.f32 %v6656, %v7009
      %v7167 = vadd.f32 %v6658, %v7011
      %v7168 = vadd.f32 %v6660, %v7013
      %v7169 = vadd.f32 %v6664, %v7017
      %v7170 = vadd.f32 %v6666, %v7019
      %v7171 = vadd.f32 %v6668, %v7021
      %v7172 = vadd.f32 %v6670, %v7023
      %v7173 = vadd.f32 %v6674, %v7027
      %v7174 = vadd.f32 %v6676, %v7029
      %v7175 = vadd.f32 %v6678, %v7031
      %v7176 = vadd.f32 %v6680, %v7033
      %v7177 = vadd.f32 %v6684, %v7037
      %v7178 = vadd.f32 %v6686, %v7039
      %v7179 = vadd.f32 %v6688, %v7041
      %v7180 = vadd.f32 %v6690, %v7043
      %v7181 = vadd.f32 %v6694, %v7047
      %v7182 = vadd.f32 %v6696, %v7049
      %v7183 = vadd.f32 %v6698, %v7051
      %v7184 = vadd.f32 %v6700, %v7053
      %v7185 = vadd.f32 %v6704, %v7057
      %v7186 = vadd.f32 %v6706, %v7059
      %v7187 = vadd.f32 %v6708, %v7061
      %v7188 = vadd.f32 %v6710, %v7063
      %v7189 = vadd.f32 %v6714, %v7067
      %v7190 = vadd.f32 %v6716, %v7069
      %v7191 = vadd.f32 %v6718, %v7071
      %v7192 = vadd.f32 %v6720, %v7073
      %v7193 = vadd.f32 %v6724, %v7077
      %v7194 = vadd.f32 %v6726, %v7079
      %v7195 = vadd.f32 %v6728, %v7081
      %v7196 = vadd.f32 %v6730, %v7083
      %v7197 = vadd.f32 %v6734, %v7087
      %v7198 = vadd.f32 %v6736, %v7089
      %v7199 = vadd.f32 %v6738, %v7091
      %v7200 = vadd.f32 %v6740, %v7093
      %v7201 = vadd.f32 %v6744, %v7097
      %v7202 = vadd.f32 %v6746, %v7099
      %v7203 = vadd.f32 %v6748, %v7101
      %v7204 = vadd.f32 %v6750, %v7103
      %v7205 = vadd.f32 %v6754, %v7107
      %v7206 = vadd.f32 %v6756, %v7109
      %v7207 = vadd.f32 %v6758, %v7111
      %v7208 = vadd.f32 %v6760, %v7113
      %v7209 = vadd.f32 %v6764, %v7117
      %v7210 = vadd.f32 %v6766, %v7119
      %v7211 = vadd.f32 %v6768, %v7121
      %v7212 = vadd.f32 %v6770, %v7123
      %v7213 = vadd.f32 %v6774, %v7127
      %v7214 = vadd.f32 %v6776, %v7129
      %v7215 = vadd.f32 %v6778, %v7131
      %v7216 = vadd.f32 %v6780, %v7133
      %v7217 = vadd.f32 %v6784, %v7137
      %v7218 = vadd.f32 %v6786, %v7139
      %v7219 = vadd.f32 %v6788, %v7141
      %v7220 = vadd.f32 %v6790, %v7143
      %v7221 = vadd.f32 %v6794, %v7147
      %v7222 = vadd.f32 %v6796, %v7149
      %v7223 = vadd.f32 %v6798, %v7151
      %v7224 = vadd.f32 %v6800, %v7153
      %v7225 = vadd.f32 %v6804, %v7157
      %v7226 = vadd.f32 %v6806, %v7159
      %v7227 = vadd.f32 %v6808, %v7161
      %v7228 = vadd.f32 %v6810, %v7163
      %v7229 = vadd.f32 %v7165, %v1342
      %v7230 = vadd.f32 %v7166, %v1346
      %v7231 = vadd.f32 %v7167, %v1342
      %v7232 = vadd.f32 %v7168, %v1346
      %v7233 = vadd.f32 %v7169, %v1342
      %v7234 = vadd.f32 %v7170, %v1346
      %v7235 = vadd.f32 %v7171, %v1342
      %v7236 = vadd.f32 %v7172, %v1346
      %v7237 = vadd.f32 %v7173, %v1342
      %v7238 = vadd.f32 %v7174, %v1346
      %v7239 = vadd.f32 %v7175, %v1342
      %v7240 = vadd.f32 %v7176, %v1346
      %v7241 = vadd.f32 %v7177, %v1342
      %v7242 = vadd.f32 %v7178, %v1346
      %v7243 = vadd.f32 %v7179, %v1342
      %v7244 = vadd.f32 %v7180, %v1346
      %v7245 = vadd.f32 %v7181, %v1342
      %v7246 = vadd.f32 %v7182, %v1346
      %v7247 = vadd.f32 %v7183, %v1342
      %v7248 = vadd.f32 %v7184, %v1346
      %v7249 = vadd.f32 %v7185, %v1342
      %v7250 = vadd.f32 %v7186, %v1346
      %v7251 = vadd.f32 %v7187, %v1342
      %v7252 = vadd.f32 %v7188, %v1346
      %v7253 = vadd.f32 %v7189, %v1342
      %v7254 = vadd.f32 %v7190, %v1346
      %v7255 = vadd.f32 %v7191, %v1342
      %v7256 = vadd.f32 %v7192, %v1346
      %v7257 = vadd.f32 %v7193, %v1342
      %v7258 = vadd.f32 %v7194, %v1346
      %v7259 = vadd.f32 %v7195, %v1342
      %v7260 = vadd.f32 %v7196, %v1346
      %v7261 = vadd.f32 %v7197, %v1342
      %v7262 = vadd.f32 %v7198, %v1346
      %v7263 = vadd.f32 %v7199, %v1342
      %v7264 = vadd.f32 %v7200, %v1346
      %v7265 = vadd.f32 %v7201, %v1342
      %v7266 = vadd.f32 %v7202, %v1346
      %v7267 = vadd.f32 %v7203, %v1342
      %v7268 = vadd.f32 %v7204, %v1346
      %v7269 = vadd.f32 %v7205, %v1342
      %v7270 = vadd.f32 %v7206, %v1346
      %v7271 = vadd.f32 %v7207, %v1342
      %v7272 = vadd.f32 %v7208, %v1346
      %v7273 = vadd.f32 %v7209, %v1342
      %v7274 = vadd.f32 %v7210, %v1346
      %v7275 = vadd.f32 %v7211, %v1342
      %v7276 = vadd.f32 %v7212, %v1346
      %v7277 = vadd.f32 %v7213, %v1342
      %v7278 = vadd.f32 %v7214, %v1346
      %v7279 = vadd.f32 %v7215, %v1342
      %v7280 = vadd.f32 %v7216, %v1346
      %v7281 = vadd.f32 %v7217, %v1342
      %v7282 = vadd.f32 %v7218, %v1346
      %v7283 = vadd.f32 %v7219, %v1342
      %v7284 = vadd.f32 %v7220, %v1346
      %v7285 = vadd.f32 %v7221, %v1342
      %v7286 = vadd.f32 %v7222, %v1346
      %v7287 = vadd.f32 %v7223, %v1342
      %v7288 = vadd.f32 %v7224, %v1346
      %v7289 = vadd.f32 %v7225, %v1342
      %v7290 = vadd.f32 %v7226, %v1346
      %v7291 = vadd.f32 %v7227, %v1342
      %v7292 = vadd.f32 %v7228, %v1346
      %v7293 = vmax.f32 %v7229, 0.0
      %v7294 = vmax.f32 %v7230, 0.0
      %v7295 = vmax.f32 %v7231, 0.0
      %v7296 = vmax.f32 %v7232, 0.0
      %v7297 = vmax.f32 %v7233, 0.0
      %v7298 = vmax.f32 %v7234, 0.0
      %v7299 = vmax.f32 %v7235, 0.0
      %v7300 = vmax.f32 %v7236, 0.0
      %v7301 = vmax.f32 %v7237, 0.0
      %v7302 = vmax.f32 %v7238, 0.0
      %v7303 = vmax.f32 %v7239, 0.0
      %v7304 = vmax.f32 %v7240, 0.0
      %v7305 = vmax.f32 %v7241, 0.0
      %v7306 = vmax.f32 %v7242, 0.0
      %v7307 = vmax.f32 %v7243, 0.0
      %v7308 = vmax.f32 %v7244, 0.0
      %v7309 = vmax.f32 %v7245, 0.0
      %v7310 = vmax.f32 %v7246, 0.0
      %v7311 = vmax.f32 %v7247, 0.0
      %v7312 = vmax.f32 %v7248, 0.0
      %v7313 = vmax.f32 %v7249, 0.0
      %v7314 = vmax.f32 %v7250, 0.0
      %v7315 = vmax.f32 %v7251, 0.0
      %v7316 = vmax.f32 %v7252, 0.0
      %v7317 = vmax.f32 %v7253, 0.0
      %v7318 = vmax.f32 %v7254, 0.0
      %v7319 = vmax.f32 %v7255, 0.0
      %v7320 = vmax.f32 %v7256, 0.0
      %v7321 = vmax.f32 %v7257, 0.0
      %v7322 = vmax.f32 %v7258, 0.0
      %v7323 = vmax.f32 %v7259, 0.0
      %v7324 = vmax.f32 %v7260, 0.0
      %v7325 = vmax.f32 %v7261, 0.0
      %v7326 = vmax.f32 %v7262, 0.0
      %v7327 = vmax.f32 %v7263, 0.0
      %v7328 = vmax.f32 %v7264, 0.0
      %v7329 = vmax.f32 %v7265, 0.0
      %v7330 = vmax.f32 %v7266, 0.0
      %v7331 = vmax.f32 %v7267, 0.0
      %v7332 = vmax.f32 %v7268, 0.0
      %v7333 = vmax.f32 %v7269, 0.0
      %v7334 = vmax.f32 %v7270, 0.0
      %v7335 = vmax.f32 %v7271, 0.0
      %v7336 = vmax.f32 %v7272, 0.0
      %v7337 = vmax.f32 %v7273, 0.0
      %v7338 = vmax.f32 %v7274, 0.0
      %v7339 = vmax.f32 %v7275, 0.0
      %v7340 = vmax.f32 %v7276, 0.0
      %v7341 = vmax.f32 %v7277, 0.0
      %v7342 = vmax.f32 %v7278, 0.0
      %v7343 = vmax.f32 %v7279, 0.0
      %v7344 = vmax.f32 %v7280, 0.0
      %v7345 = vmax.f32 %v7281, 0.0
      %v7346 = vmax.f32 %v7282, 0.0
      %v7347 = vmax.f32 %v7283, 0.0
      %v7348 = vmax.f32 %v7284, 0.0
      %v7349 = vmax.f32 %v7285, 0.0
      %v7350 = vmax.f32 %v7286, 0.0
      %v7351 = vmax.f32 %v7287, 0.0
      %v7352 = vmax.f32 %v7288, 0.0
      %v7353 = vmax.f32 %v7289, 0.0
      %v7354 = vmax.f32 %v7290, 0.0
      %v7355 = vmax.f32 %v7291, 0.0
      %v7356 = vmax.f32 %v7292, 0.0
      %v7357 = vadd.f32 %v7293, %v7295
      %v7358 = vadd.f32 %v7357, %v7297
      %v7359 = vadd.f32 %v7358, %v7299
      %v7360 = vadd.f32 %v7359, %v7301
      %v7361 = vadd.f32 %v7360, %v7303
      %v7362 = vadd.f32 %v7361, %v7305
      %v7363 = vadd.f32 %v7362, %v7307
      %v7364 = vadd.f32 %v7363, %v7309
      %v7365 = vadd.f32 %v7364, %v7311
      %v7366 = vadd.f32 %v7365, %v7313
      %v7367 = vadd.f32 %v7366, %v7315
      %v7368 = vadd.f32 %v7367, %v7317
      %v7369 = vadd.f32 %v7368, %v7319
      %v7370 = vadd.f32 %v7369, %v7321
      %v7371 = vadd.f32 %v7370, %v7323
      %v7372 = vadd.f32 %v7371, %v7325
      %v7373 = vadd.f32 %v7372, %v7327
      %v7374 = vadd.f32 %v7373, %v7329
      %v7375 = vadd.f32 %v7374, %v7331
      %v7376 = vadd.f32 %v7375, %v7333
      %v7377 = vadd.f32 %v7376, %v7335
      %v7378 = vadd.f32 %v7377, %v7337
      %v7379 = vadd.f32 %v7378, %v7339
      %v7380 = vadd.f32 %v7379, %v7341
      %v7381 = vadd.f32 %v7380, %v7343
      %v7382 = vadd.f32 %v7381, %v7345
      %v7383 = vadd.f32 %v7382, %v7347
      %v7384 = vadd.f32 %v7383, %v7349
      %v7385 = vadd.f32 %v7384, %v7351
      %v7386 = vadd.f32 %v7385, %v7353
      %v7387 = vadd.f32 %v7386, %v7355
      %v7388 = vrot.slane %v7387, 4
      %v7389 = vadd.f32 %v7387, %v7388
      %v7390 = vrot.slane %v7389, 2
      %v7391 = vadd.f32 %v7389, %v7390
      %v7392 = vrot.slane %v7391, 1
      %v7393 = vadd.f32 %v7391, %v7392
      %v7394 = vadd.f32 %v7294, %v7296
      %v7395 = vadd.f32 %v7394, %v7298
      %v7396 = vadd.f32 %v7395, %v7300
      %v7397 = vadd.f32 %v7396, %v7302
      %v7398 = vadd.f32 %v7397, %v7304
      %v7399 = vadd.f32 %v7398, %v7306
      %v7400 = vadd.f32 %v7399, %v7308
      %v7401 = vadd.f32 %v7400, %v7310
      %v7402 = vadd.f32 %v7401, %v7312
      %v7403 = vadd.f32 %v7402, %v7314
      %v7404 = vadd.f32 %v7403, %v7316
      %v7405 = vadd.f32 %v7404, %v7318
      %v7406 = vadd.f32 %v7405, %v7320
      %v7407 = vadd.f32 %v7406, %v7322
      %v7408 = vadd.f32 %v7407, %v7324
      %v7409 = vadd.f32 %v7408, %v7326
      %v7410 = vadd.f32 %v7409, %v7328
      %v7411 = vadd.f32 %v7410, %v7330
      %v7412 = vadd.f32 %v7411, %v7332
      %v7413 = vadd.f32 %v7412, %v7334
      %v7414 = vadd.f32 %v7413, %v7336
      %v7415 = vadd.f32 %v7414, %v7338
      %v7416 = vadd.f32 %v7415, %v7340
      %v7417 = vadd.f32 %v7416, %v7342
      %v7418 = vadd.f32 %v7417, %v7344
      %v7419 = vadd.f32 %v7418, %v7346
      %v7420 = vadd.f32 %v7419, %v7348
      %v7421 = vadd.f32 %v7420, %v7350
      %v7422 = vadd.f32 %v7421, %v7352
      %v7423 = vadd.f32 %v7422, %v7354
      %v7424 = vadd.f32 %v7423, %v7356
      %v7425 = vrot.slane %v7424, 4
      %v7426 = vadd.f32 %v7424, %v7425
      %v7427 = vrot.slane %v7426, 2
      %v7428 = vadd.f32 %v7426, %v7427
      %v7429 = vrot.slane %v7428, 1
      %v7430 = vadd.f32 %v7428, %v7429
      %s7431 = scalar_lea.vmem %s304, 864
      %v7432 = vld [vmem:[%s7431] sm:$0xf]
      %v7433 = vld [vmem:[%s7431 + $0x4] sm:$0xf]
      %v7434 = vld [vmem:[%s7431 + $0x8] sm:$0xf]
      %v7435 = vld [vmem:[%s7431 + $0xc] sm:$0xf]
      %v7436 = vld [vmem:[%s7431 + $0x10] sm:$0xf]
      %v7437 = vld [vmem:[%s7431 + $0x14] sm:$0xf]
      %v7438 = vld [vmem:[%s7431 + $0x18] sm:$0xf]
      %v7439 = vld [vmem:[%s7431 + $0x1c] sm:$0xf]
      %v7440 = vld [vmem:[%s7431 + $0x20] sm:$0xf]
      %v7441 = vld [vmem:[%s7431 + $0x24] sm:$0xf]
      %v7442 = vld [vmem:[%s7431 + $0x28] sm:$0xf]
      %v7443 = vld [vmem:[%s7431 + $0x2c] sm:$0xf]
      %v7444 = vld [vmem:[%s7431 + $0x30] sm:$0xf]
      %v7445 = vld [vmem:[%s7431 + $0x34] sm:$0xf]
      %v7446 = vld [vmem:[%s7431 + $0x38] sm:$0xf]
      %v7447 = vld [vmem:[%s7431 + $0x3c] sm:$0xf]
      %v7448 = vld [vmem:[%s7431 + $0x40] sm:$0xf]
      %v7449 = vld [vmem:[%s7431 + $0x44] sm:$0xf]
      %v7450 = vld [vmem:[%s7431 + $0x48] sm:$0xf]
      %v7451 = vld [vmem:[%s7431 + $0x4c] sm:$0xf]
      %v7452 = vld [vmem:[%s7431 + $0x50] sm:$0xf]
      %v7453 = vld [vmem:[%s7431 + $0x54] sm:$0xf]
      %v7454 = vld [vmem:[%s7431 + $0x58] sm:$0xf]
      %v7455 = vld [vmem:[%s7431 + $0x5c] sm:$0xf]
      %v7456 = vld [vmem:[%s7431 + $0x60] sm:$0xf]
      %v7457 = vld [vmem:[%s7431 + $0x64] sm:$0xf]
      %v7458 = vld [vmem:[%s7431 + $0x68] sm:$0xf]
      %v7459 = vld [vmem:[%s7431 + $0x6c] sm:$0xf]
      %v7460 = vld [vmem:[%s7431 + $0x70] sm:$0xf]
      %v7461 = vld [vmem:[%s7431 + $0x74] sm:$0xf]
      %v7462 = vld [vmem:[%s7431 + $0x78] sm:$0xf]
      %v7463 = vld [vmem:[%s7431 + $0x7c] sm:$0xf]
      %v7464 = vld [vmem:[%s7431 + $0x80] sm:$0xf]
      %v7465 = vld [vmem:[%s7431 + $0x84] sm:$0xf]
      %v7498 = vunpack.c.l.b16 %v7434
      %v7499 = vunpack.c.l.b16 %v7435
      %v7500 = vunpack.c.l.b16 %v7436
      %v7501 = vunpack.c.l.b16 %v7437
      %v7502 = vunpack.c.l.b16 %v7438
      %v7503 = vunpack.c.l.b16 %v7439
      %v7504 = vunpack.c.l.b16 %v7440
      %v7505 = vunpack.c.l.b16 %v7441
      %v7506 = vunpack.c.l.b16 %v7442
      %v7507 = vunpack.c.l.b16 %v7443
      %v7508 = vunpack.c.l.b16 %v7444
      %v7509 = vunpack.c.l.b16 %v7445
      %v7510 = vunpack.c.l.b16 %v7446
      %v7511 = vunpack.c.l.b16 %v7447
      %v7512 = vunpack.c.l.b16 %v7448
      %v7513 = vunpack.c.l.b16 %v7449
      %v7514 = vunpack.c.l.b16 %v7450
      %v7515 = vunpack.c.l.b16 %v7451
      %v7516 = vunpack.c.l.b16 %v7452
      %v7517 = vunpack.c.l.b16 %v7453
      %v7518 = vunpack.c.l.b16 %v7454
      %v7519 = vunpack.c.l.b16 %v7455
      %v7520 = vunpack.c.l.b16 %v7456
      %v7521 = vunpack.c.l.b16 %v7457
      %v7522 = vunpack.c.l.b16 %v7458
      %v7523 = vunpack.c.l.b16 %v7459
      %v7524 = vunpack.c.l.b16 %v7460
      %v7525 = vunpack.c.l.b16 %v7461
      %v7526 = vunpack.c.l.b16 %v7462
      %v7527 = vunpack.c.l.b16 %v7463
      %v7528 = vunpack.c.l.b16 %v7464
      %v7529 = vunpack.c.l.b16 %v7465
      %v7530 = vpack.c.b16 %v7499, %v7498
      %v7531 = vpack.c.b16 %v7501, %v7500
      %v7532 = vpack.c.b16 %v7503, %v7502
      %v7533 = vpack.c.b16 %v7505, %v7504
      %v7534 = vpack.c.b16 %v7507, %v7506
      %v7535 = vpack.c.b16 %v7509, %v7508
      %v7536 = vpack.c.b16 %v7511, %v7510
      %v7537 = vpack.c.b16 %v7513, %v7512
      %v7538 = vpack.c.b16 %v7515, %v7514
      %v7539 = vpack.c.b16 %v7517, %v7516
      %v7540 = vpack.c.b16 %v7519, %v7518
      %v7541 = vpack.c.b16 %v7521, %v7520
      %v7542 = vpack.c.b16 %v7523, %v7522
      %v7543 = vpack.c.b16 %v7525, %v7524
      %v7544 = vpack.c.b16 %v7527, %v7526
      %v7545 = vpack.c.b16 %v7529, %v7528
      %v7547 = vsel %vm440, %v7530, 0
      %v7550 = vsel %vm440, %v7531, 0
      %v7553 = vsel %vm440, %v7532, 0
      %v7556 = vsel %vm440, %v7533, 0
      %v7559 = vsel %vm440, %v7534, 0
      %v7562 = vsel %vm440, %v7535, 0
      %v7565 = vsel %vm440, %v7536, 0
      %v7568 = vsel %vm440, %v7537, 0
      %v7571 = vsel %vm440, %v7538, 0
      %v7574 = vsel %vm440, %v7539, 0
      %v7577 = vsel %vm440, %v7540, 0
      %v7580 = vsel %vm440, %v7541, 0
      %v7583 = vsel %vm440, %v7542, 0
      %v7586 = vsel %vm440, %v7543, 0
      %v7589 = vsel %vm440, %v7544, 0
      %v7592 = vsel %vm440, %v7545, 0
      %7594 = vmatprep.subr.bf16.mxu0 0
      %7595 = vmatpush1.bf16.msra.mxu0 0
      %7596 = vmatprep.subr.bf16.mxu0 0
      %7597 = vmatpush1.bf16.msra.mxu0 0
      %7598 = vmatprep.subr.bf16.mxu0 0
      %7599 = vmatpush1.bf16.msra.mxu0 0
      %7600 = vmatprep.subr.bf16.mxu0 0
      %7601 = vmatpush1.bf16.msra.mxu0 0
      %7602 = vmatprep.subr.bf16.mxu0 0
      %7603 = vmatpush1.bf16.msra.mxu0 0
      %7604 = vmatprep.subr.bf16.mxu0 0
      %7605 = vmatpush1.bf16.msra.mxu0 0
      %7606 = vmatprep.subr.bf16.mxu0 0
      %7607 = vmatpush1.bf16.msra.mxu0 0
      %7608 = vmatprep.subr.bf16.mxu0 %v494
      %7609 = vmatpush1.bf16.msra.mxu0 %v491
      %7610 = vmatprep.subr.bf16.mxu0 0
      %7611 = vmatpush2.bf16.msra.mxu0 0
      %7612 = vmatprep.subr.bf16.mxu0 0
      %7613 = vmatpush2.bf16.msra.mxu0 0
      %7614 = vmatprep.subr.bf16.mxu0 0
      %7615 = vmatpush2.bf16.msra.mxu0 0
      %7616 = vmatprep.subr.bf16.mxu0 0
      %7617 = vmatpush2.bf16.msra.mxu0 0
      %7618 = vmatprep.subr.bf16.mxu0 0
      %7619 = vmatpush2.bf16.msra.mxu0 0
      %7620 = vmatprep.subr.bf16.mxu0 0
      %7621 = vmatpush2.bf16.msra.mxu0 0
      %7622 = vmatprep.subr.bf16.mxu0 0
      %7623 = vmatpush2.bf16.msra.mxu0 0
      %7624 = vmatprep.subr.bf16.mxu0 0
      %7625 = vmatpush2.bf16.msra.mxu0 0
      %7626 = vmatprep.mubr.bf16.mxu0 0
      %7627 = vmatmul.mubr.bf16.gmra.mxu0 %v7547
      %v7628 = vpop.f32.mrf.mxu0
      %v7629 = vadd.f32 0.0, %v7628
      %v7630 = vpop.f32.mrf.mxu0
      %v7631 = vadd.f32 0.0, %v7630
      %v7632 = vpop.f32.mrf.mxu0
      %v7633 = vadd.f32 0.0, %v7632
      %v7634 = vpop.f32.mrf.mxu0
      %v7635 = vadd.f32 0.0, %v7634
      %7636 = vmatprep.mubr.bf16.mxu0 0
      %7637 = vmatmul.mubr.bf16.gmra.mxu0 %v7550
      %v7638 = vpop.f32.mrf.mxu0
      %v7639 = vadd.f32 0.0, %v7638
      %v7640 = vpop.f32.mrf.mxu0
      %v7641 = vadd.f32 0.0, %v7640
      %v7642 = vpop.f32.mrf.mxu0
      %v7643 = vadd.f32 0.0, %v7642
      %v7644 = vpop.f32.mrf.mxu0
      %v7645 = vadd.f32 0.0, %v7644
      %7646 = vmatprep.mubr.bf16.mxu0 0
      %7647 = vmatmul.mubr.bf16.gmra.mxu0 %v7553
      %v7648 = vpop.f32.mrf.mxu0
      %v7649 = vadd.f32 0.0, %v7648
      %v7650 = vpop.f32.mrf.mxu0
      %v7651 = vadd.f32 0.0, %v7650
      %v7652 = vpop.f32.mrf.mxu0
      %v7653 = vadd.f32 0.0, %v7652
      %v7654 = vpop.f32.mrf.mxu0
      %v7655 = vadd.f32 0.0, %v7654
      %7656 = vmatprep.mubr.bf16.mxu0 0
      %7657 = vmatmul.mubr.bf16.gmra.mxu0 %v7556
      %v7658 = vpop.f32.mrf.mxu0
      %v7659 = vadd.f32 0.0, %v7658
      %v7660 = vpop.f32.mrf.mxu0
      %v7661 = vadd.f32 0.0, %v7660
      %v7662 = vpop.f32.mrf.mxu0
      %v7663 = vadd.f32 0.0, %v7662
      %v7664 = vpop.f32.mrf.mxu0
      %v7665 = vadd.f32 0.0, %v7664
      %7666 = vmatprep.mubr.bf16.mxu0 0
      %7667 = vmatmul.mubr.bf16.gmra.mxu0 %v7559
      %v7668 = vpop.f32.mrf.mxu0
      %v7669 = vadd.f32 0.0, %v7668
      %v7670 = vpop.f32.mrf.mxu0
      %v7671 = vadd.f32 0.0, %v7670
      %v7672 = vpop.f32.mrf.mxu0
      %v7673 = vadd.f32 0.0, %v7672
      %v7674 = vpop.f32.mrf.mxu0
      %v7675 = vadd.f32 0.0, %v7674
      %7676 = vmatprep.mubr.bf16.mxu0 0
      %7677 = vmatmul.mubr.bf16.gmra.mxu0 %v7562
      %v7678 = vpop.f32.mrf.mxu0
      %v7679 = vadd.f32 0.0, %v7678
      %v7680 = vpop.f32.mrf.mxu0
      %v7681 = vadd.f32 0.0, %v7680
      %v7682 = vpop.f32.mrf.mxu0
      %v7683 = vadd.f32 0.0, %v7682
      %v7684 = vpop.f32.mrf.mxu0
      %v7685 = vadd.f32 0.0, %v7684
      %7686 = vmatprep.mubr.bf16.mxu0 0
      %7687 = vmatmul.mubr.bf16.gmra.mxu0 %v7565
      %v7688 = vpop.f32.mrf.mxu0
      %v7689 = vadd.f32 0.0, %v7688
      %v7690 = vpop.f32.mrf.mxu0
      %v7691 = vadd.f32 0.0, %v7690
      %v7692 = vpop.f32.mrf.mxu0
      %v7693 = vadd.f32 0.0, %v7692
      %v7694 = vpop.f32.mrf.mxu0
      %v7695 = vadd.f32 0.0, %v7694
      %7696 = vmatprep.mubr.bf16.mxu0 0
      %7697 = vmatmul.mubr.bf16.gmra.mxu0 %v7568
      %v7698 = vpop.f32.mrf.mxu0
      %v7699 = vadd.f32 0.0, %v7698
      %v7700 = vpop.f32.mrf.mxu0
      %v7701 = vadd.f32 0.0, %v7700
      %v7702 = vpop.f32.mrf.mxu0
      %v7703 = vadd.f32 0.0, %v7702
      %v7704 = vpop.f32.mrf.mxu0
      %v7705 = vadd.f32 0.0, %v7704
      %7706 = vmatprep.mubr.bf16.mxu0 0
      %7707 = vmatmul.mubr.bf16.gmra.mxu0 %v7571
      %v7708 = vpop.f32.mrf.mxu0
      %v7709 = vadd.f32 0.0, %v7708
      %v7710 = vpop.f32.mrf.mxu0
      %v7711 = vadd.f32 0.0, %v7710
      %v7712 = vpop.f32.mrf.mxu0
      %v7713 = vadd.f32 0.0, %v7712
      %v7714 = vpop.f32.mrf.mxu0
      %v7715 = vadd.f32 0.0, %v7714
      %7716 = vmatprep.mubr.bf16.mxu0 0
      %7717 = vmatmul.mubr.bf16.gmra.mxu0 %v7574
      %v7718 = vpop.f32.mrf.mxu0
      %v7719 = vadd.f32 0.0, %v7718
      %v7720 = vpop.f32.mrf.mxu0
      %v7721 = vadd.f32 0.0, %v7720
      %v7722 = vpop.f32.mrf.mxu0
      %v7723 = vadd.f32 0.0, %v7722
      %v7724 = vpop.f32.mrf.mxu0
      %v7725 = vadd.f32 0.0, %v7724
      %7726 = vmatprep.mubr.bf16.mxu0 0
      %7727 = vmatmul.mubr.bf16.gmra.mxu0 %v7577
      %v7728 = vpop.f32.mrf.mxu0
      %v7729 = vadd.f32 0.0, %v7728
      %v7730 = vpop.f32.mrf.mxu0
      %v7731 = vadd.f32 0.0, %v7730
      %v7732 = vpop.f32.mrf.mxu0
      %v7733 = vadd.f32 0.0, %v7732
      %v7734 = vpop.f32.mrf.mxu0
      %v7735 = vadd.f32 0.0, %v7734
      %7736 = vmatprep.mubr.bf16.mxu0 0
      %7737 = vmatmul.mubr.bf16.gmra.mxu0 %v7580
      %v7738 = vpop.f32.mrf.mxu0
      %v7739 = vadd.f32 0.0, %v7738
      %v7740 = vpop.f32.mrf.mxu0
      %v7741 = vadd.f32 0.0, %v7740
      %v7742 = vpop.f32.mrf.mxu0
      %v7743 = vadd.f32 0.0, %v7742
      %v7744 = vpop.f32.mrf.mxu0
      %v7745 = vadd.f32 0.0, %v7744
      %7746 = vmatprep.mubr.bf16.mxu0 0
      %7747 = vmatmul.mubr.bf16.gmra.mxu0 %v7583
      %v7748 = vpop.f32.mrf.mxu0
      %v7749 = vadd.f32 0.0, %v7748
      %v7750 = vpop.f32.mrf.mxu0
      %v7751 = vadd.f32 0.0, %v7750
      %v7752 = vpop.f32.mrf.mxu0
      %v7753 = vadd.f32 0.0, %v7752
      %v7754 = vpop.f32.mrf.mxu0
      %v7755 = vadd.f32 0.0, %v7754
      %7756 = vmatprep.mubr.bf16.mxu0 0
      %7757 = vmatmul.mubr.bf16.gmra.mxu0 %v7586
      %v7758 = vpop.f32.mrf.mxu0
      %v7759 = vadd.f32 0.0, %v7758
      %v7760 = vpop.f32.mrf.mxu0
      %v7761 = vadd.f32 0.0, %v7760
      %v7762 = vpop.f32.mrf.mxu0
      %v7763 = vadd.f32 0.0, %v7762
      %v7764 = vpop.f32.mrf.mxu0
      %v7765 = vadd.f32 0.0, %v7764
      %7766 = vmatprep.mubr.bf16.mxu0 0
      %7767 = vmatmul.mubr.bf16.gmra.mxu0 %v7589
      %v7768 = vpop.f32.mrf.mxu0
      %v7769 = vadd.f32 0.0, %v7768
      %v7770 = vpop.f32.mrf.mxu0
      %v7771 = vadd.f32 0.0, %v7770
      %v7772 = vpop.f32.mrf.mxu0
      %v7773 = vadd.f32 0.0, %v7772
      %v7774 = vpop.f32.mrf.mxu0
      %v7775 = vadd.f32 0.0, %v7774
      %7776 = vmatprep.mubr.bf16.mxu0 0
      %7777 = vmatmul.mubr.bf16.gmra.mxu0 %v7592
      %v7778 = vpop.f32.mrf.mxu0
      %v7779 = vadd.f32 0.0, %v7778
      %v7780 = vpop.f32.mrf.mxu0
      %v7781 = vadd.f32 0.0, %v7780
      %v7782 = vpop.f32.mrf.mxu0
      %v7783 = vadd.f32 0.0, %v7782
      %v7784 = vpop.f32.mrf.mxu0
      %v7785 = vadd.f32 0.0, %v7784
      %7786 = vdwg.mxu0
      %v7789 = vunpack.c.l.b16 %v7432
      %v7790 = vunpack.c.l.b16 %v7433
      %v7791 = vpack.c.b16 %v7790, %v7789
      %v7793 = vsel %vm440, %v7791, 0
      %7795 = vmatprep.subr.bf16.mxu0 0
      %7796 = vmatpush1.bf16.msra.mxu0 0
      %7797 = vmatprep.subr.bf16.mxu0 0
      %7798 = vmatpush1.bf16.msra.mxu0 0
      %7799 = vmatprep.subr.bf16.mxu0 0
      %7800 = vmatpush1.bf16.msra.mxu0 0
      %7801 = vmatprep.subr.bf16.mxu0 0
      %7802 = vmatpush1.bf16.msra.mxu0 0
      %7803 = vmatprep.subr.bf16.mxu0 0
      %7804 = vmatpush1.bf16.msra.mxu0 0
      %7805 = vmatprep.subr.bf16.mxu0 0
      %7806 = vmatpush1.bf16.msra.mxu0 0
      %7807 = vmatprep.subr.bf16.mxu0 0
      %7808 = vmatpush1.bf16.msra.mxu0 0
      %7809 = vmatprep.subr.bf16.mxu0 %v709
      %7810 = vmatpush1.bf16.msra.mxu0 %v706
      %7811 = vmatprep.subr.bf16.mxu0 0
      %7812 = vmatpush2.bf16.msra.mxu0 0
      %7813 = vmatprep.subr.bf16.mxu0 0
      %7814 = vmatpush2.bf16.msra.mxu0 0
      %7815 = vmatprep.subr.bf16.mxu0 0
      %7816 = vmatpush2.bf16.msra.mxu0 0
      %7817 = vmatprep.subr.bf16.mxu0 0
      %7818 = vmatpush2.bf16.msra.mxu0 0
      %7819 = vmatprep.subr.bf16.mxu0 0
      %7820 = vmatpush2.bf16.msra.mxu0 0
      %7821 = vmatprep.subr.bf16.mxu0 0
      %7822 = vmatpush2.bf16.msra.mxu0 0
      %7823 = vmatprep.subr.bf16.mxu0 0
      %7824 = vmatpush2.bf16.msra.mxu0 0
      %7825 = vmatprep.subr.bf16.mxu0 0
      %7826 = vmatpush2.bf16.msra.mxu0 0
      %7827 = vmatprep.mubr.bf16.mxu0 0
      %7828 = vmatmul.mubr.bf16.gmra.mxu0 %v7793
      %v7829 = vpop.f32.mrf.mxu0
      %v7830 = vadd.f32 %v7629, %v7829
      %v7831 = vpop.f32.mrf.mxu0
      %v7832 = vadd.f32 %v7631, %v7831
      %v7833 = vpop.f32.mrf.mxu0
      %v7834 = vadd.f32 %v7633, %v7833
      %v7835 = vpop.f32.mrf.mxu0
      %v7836 = vadd.f32 %v7635, %v7835
      %7837 = vmatprep.mubr.bf16.mxu0 0
      %7838 = vmatmul.mubr.bf16.gmra.mxu0 %v7547
      %v7839 = vpop.f32.mrf.mxu0
      %v7840 = vadd.f32 %v7639, %v7839
      %v7841 = vpop.f32.mrf.mxu0
      %v7842 = vadd.f32 %v7641, %v7841
      %v7843 = vpop.f32.mrf.mxu0
      %v7844 = vadd.f32 %v7643, %v7843
      %v7845 = vpop.f32.mrf.mxu0
      %v7846 = vadd.f32 %v7645, %v7845
      %7847 = vmatprep.mubr.bf16.mxu0 0
      %7848 = vmatmul.mubr.bf16.gmra.mxu0 %v7550
      %v7849 = vpop.f32.mrf.mxu0
      %v7850 = vadd.f32 %v7649, %v7849
      %v7851 = vpop.f32.mrf.mxu0
      %v7852 = vadd.f32 %v7651, %v7851
      %v7853 = vpop.f32.mrf.mxu0
      %v7854 = vadd.f32 %v7653, %v7853
      %v7855 = vpop.f32.mrf.mxu0
      %v7856 = vadd.f32 %v7655, %v7855
      %7857 = vmatprep.mubr.bf16.mxu0 0
      %7858 = vmatmul.mubr.bf16.gmra.mxu0 %v7553
      %v7859 = vpop.f32.mrf.mxu0
      %v7860 = vadd.f32 %v7659, %v7859
      %v7861 = vpop.f32.mrf.mxu0
      %v7862 = vadd.f32 %v7661, %v7861
      %v7863 = vpop.f32.mrf.mxu0
      %v7864 = vadd.f32 %v7663, %v7863
      %v7865 = vpop.f32.mrf.mxu0
      %v7866 = vadd.f32 %v7665, %v7865
      %7867 = vmatprep.mubr.bf16.mxu0 0
      %7868 = vmatmul.mubr.bf16.gmra.mxu0 %v7556
      %v7869 = vpop.f32.mrf.mxu0
      %v7870 = vadd.f32 %v7669, %v7869
      %v7871 = vpop.f32.mrf.mxu0
      %v7872 = vadd.f32 %v7671, %v7871
      %v7873 = vpop.f32.mrf.mxu0
      %v7874 = vadd.f32 %v7673, %v7873
      %v7875 = vpop.f32.mrf.mxu0
      %v7876 = vadd.f32 %v7675, %v7875
      %7877 = vmatprep.mubr.bf16.mxu0 0
      %7878 = vmatmul.mubr.bf16.gmra.mxu0 %v7559
      %v7879 = vpop.f32.mrf.mxu0
      %v7880 = vadd.f32 %v7679, %v7879
      %v7881 = vpop.f32.mrf.mxu0
      %v7882 = vadd.f32 %v7681, %v7881
      %v7883 = vpop.f32.mrf.mxu0
      %v7884 = vadd.f32 %v7683, %v7883
      %v7885 = vpop.f32.mrf.mxu0
      %v7886 = vadd.f32 %v7685, %v7885
      %7887 = vmatprep.mubr.bf16.mxu0 0
      %7888 = vmatmul.mubr.bf16.gmra.mxu0 %v7562
      %v7889 = vpop.f32.mrf.mxu0
      %v7890 = vadd.f32 %v7689, %v7889
      %v7891 = vpop.f32.mrf.mxu0
      %v7892 = vadd.f32 %v7691, %v7891
      %v7893 = vpop.f32.mrf.mxu0
      %v7894 = vadd.f32 %v7693, %v7893
      %v7895 = vpop.f32.mrf.mxu0
      %v7896 = vadd.f32 %v7695, %v7895
      %7897 = vmatprep.mubr.bf16.mxu0 0
      %7898 = vmatmul.mubr.bf16.gmra.mxu0 %v7565
      %v7899 = vpop.f32.mrf.mxu0
      %v7900 = vadd.f32 %v7699, %v7899
      %v7901 = vpop.f32.mrf.mxu0
      %v7902 = vadd.f32 %v7701, %v7901
      %v7903 = vpop.f32.mrf.mxu0
      %v7904 = vadd.f32 %v7703, %v7903
      %v7905 = vpop.f32.mrf.mxu0
      %v7906 = vadd.f32 %v7705, %v7905
      %7907 = vmatprep.mubr.bf16.mxu0 0
      %7908 = vmatmul.mubr.bf16.gmra.mxu0 %v7568
      %v7909 = vpop.f32.mrf.mxu0
      %v7910 = vadd.f32 %v7709, %v7909
      %v7911 = vpop.f32.mrf.mxu0
      %v7912 = vadd.f32 %v7711, %v7911
      %v7913 = vpop.f32.mrf.mxu0
      %v7914 = vadd.f32 %v7713, %v7913
      %v7915 = vpop.f32.mrf.mxu0
      %v7916 = vadd.f32 %v7715, %v7915
      %7917 = vmatprep.mubr.bf16.mxu0 0
      %7918 = vmatmul.mubr.bf16.gmra.mxu0 %v7571
      %v7919 = vpop.f32.mrf.mxu0
      %v7920 = vadd.f32 %v7719, %v7919
      %v7921 = vpop.f32.mrf.mxu0
      %v7922 = vadd.f32 %v7721, %v7921
      %v7923 = vpop.f32.mrf.mxu0
      %v7924 = vadd.f32 %v7723, %v7923
      %v7925 = vpop.f32.mrf.mxu0
      %v7926 = vadd.f32 %v7725, %v7925
      %7927 = vmatprep.mubr.bf16.mxu0 0
      %7928 = vmatmul.mubr.bf16.gmra.mxu0 %v7574
      %v7929 = vpop.f32.mrf.mxu0
      %v7930 = vadd.f32 %v7729, %v7929
      %v7931 = vpop.f32.mrf.mxu0
      %v7932 = vadd.f32 %v7731, %v7931
      %v7933 = vpop.f32.mrf.mxu0
      %v7934 = vadd.f32 %v7733, %v7933
      %v7935 = vpop.f32.mrf.mxu0
      %v7936 = vadd.f32 %v7735, %v7935
      %7937 = vmatprep.mubr.bf16.mxu0 0
      %7938 = vmatmul.mubr.bf16.gmra.mxu0 %v7577
      %v7939 = vpop.f32.mrf.mxu0
      %v7940 = vadd.f32 %v7739, %v7939
      %v7941 = vpop.f32.mrf.mxu0
      %v7942 = vadd.f32 %v7741, %v7941
      %v7943 = vpop.f32.mrf.mxu0
      %v7944 = vadd.f32 %v7743, %v7943
      %v7945 = vpop.f32.mrf.mxu0
      %v7946 = vadd.f32 %v7745, %v7945
      %7947 = vmatprep.mubr.bf16.mxu0 0
      %7948 = vmatmul.mubr.bf16.gmra.mxu0 %v7580
      %v7949 = vpop.f32.mrf.mxu0
      %v7950 = vadd.f32 %v7749, %v7949
      %v7951 = vpop.f32.mrf.mxu0
      %v7952 = vadd.f32 %v7751, %v7951
      %v7953 = vpop.f32.mrf.mxu0
      %v7954 = vadd.f32 %v7753, %v7953
      %v7955 = vpop.f32.mrf.mxu0
      %v7956 = vadd.f32 %v7755, %v7955
      %7957 = vmatprep.mubr.bf16.mxu0 0
      %7958 = vmatmul.mubr.bf16.gmra.mxu0 %v7583
      %v7959 = vpop.f32.mrf.mxu0
      %v7960 = vadd.f32 %v7759, %v7959
      %v7961 = vpop.f32.mrf.mxu0
      %v7962 = vadd.f32 %v7761, %v7961
      %v7963 = vpop.f32.mrf.mxu0
      %v7964 = vadd.f32 %v7763, %v7963
      %v7965 = vpop.f32.mrf.mxu0
      %v7966 = vadd.f32 %v7765, %v7965
      %7967 = vmatprep.mubr.bf16.mxu0 0
      %7968 = vmatmul.mubr.bf16.gmra.mxu0 %v7586
      %v7969 = vpop.f32.mrf.mxu0
      %v7970 = vadd.f32 %v7769, %v7969
      %v7971 = vpop.f32.mrf.mxu0
      %v7972 = vadd.f32 %v7771, %v7971
      %v7973 = vpop.f32.mrf.mxu0
      %v7974 = vadd.f32 %v7773, %v7973
      %v7975 = vpop.f32.mrf.mxu0
      %v7976 = vadd.f32 %v7775, %v7975
      %7977 = vmatprep.mubr.bf16.mxu0 0
      %7978 = vmatmul.mubr.bf16.gmra.mxu0 %v7589
      %v7979 = vpop.f32.mrf.mxu0
      %v7980 = vadd.f32 %v7779, %v7979
      %v7981 = vpop.f32.mrf.mxu0
      %v7982 = vadd.f32 %v7781, %v7981
      %v7983 = vpop.f32.mrf.mxu0
      %v7984 = vadd.f32 %v7783, %v7983
      %v7985 = vpop.f32.mrf.mxu0
      %v7986 = vadd.f32 %v7785, %v7985
      %7987 = vdwg.mxu0
      %v7988 = vld [vmem:[%s7431 + $0x10] sm:$0xf]
      %v7989 = vld [vmem:[%s7431 + $0x14] sm:$0xf]
      %v7990 = vld [vmem:[%s7431 + $0x18] sm:$0xf]
      %v7991 = vld [vmem:[%s7431 + $0x1c] sm:$0xf]
      %v7992 = vld [vmem:[%s7431 + $0x20] sm:$0xf]
      %v7993 = vld [vmem:[%s7431 + $0x24] sm:$0xf]
      %v7994 = vld [vmem:[%s7431 + $0x28] sm:$0xf]
      %v7995 = vld [vmem:[%s7431 + $0x2c] sm:$0xf]
      %v7996 = vld [vmem:[%s7431 + $0x30] sm:$0xf]
      %v7997 = vld [vmem:[%s7431 + $0x34] sm:$0xf]
      %v7998 = vld [vmem:[%s7431 + $0x38] sm:$0xf]
      %v7999 = vld [vmem:[%s7431 + $0x3c] sm:$0xf]
      %v8000 = vld [vmem:[%s7431 + $0x40] sm:$0xf]
      %v8001 = vld [vmem:[%s7431 + $0x44] sm:$0xf]
      %v8002 = vld [vmem:[%s7431 + $0x48] sm:$0xf]
      %v8003 = vld [vmem:[%s7431 + $0x4c] sm:$0xf]
      %v8004 = vld [vmem:[%s7431 + $0x50] sm:$0xf]
      %v8005 = vld [vmem:[%s7431 + $0x54] sm:$0xf]
      %v8006 = vld [vmem:[%s7431 + $0x58] sm:$0xf]
      %v8007 = vld [vmem:[%s7431 + $0x5c] sm:$0xf]
      %v8008 = vld [vmem:[%s7431 + $0x60] sm:$0xf]
      %v8009 = vld [vmem:[%s7431 + $0x64] sm:$0xf]
      %v8010 = vld [vmem:[%s7431 + $0x68] sm:$0xf]
      %v8011 = vld [vmem:[%s7431 + $0x6c] sm:$0xf]
      %v8012 = vld [vmem:[%s7431 + $0x70] sm:$0xf]
      %v8013 = vld [vmem:[%s7431 + $0x74] sm:$0xf]
      %v8014 = vld [vmem:[%s7431 + $0x78] sm:$0xf]
      %v8015 = vld [vmem:[%s7431 + $0x7c] sm:$0xf]
      %v8016 = vld [vmem:[%s7431 + $0x80] sm:$0xf]
      %v8017 = vld [vmem:[%s7431 + $0x84] sm:$0xf]
      %v8018 = vld [vmem:[%s7431 + $0x88] sm:$0xf]
      %v8019 = vld [vmem:[%s7431 + $0x8c] sm:$0xf]
      %v8052 = vunpack.c.l.b16 %v7988
      %v8053 = vunpack.c.l.b16 %v7989
      %v8054 = vunpack.c.l.b16 %v7990
      %v8055 = vunpack.c.l.b16 %v7991
      %v8056 = vunpack.c.l.b16 %v7992
      %v8057 = vunpack.c.l.b16 %v7993
      %v8058 = vunpack.c.l.b16 %v7994
      %v8059 = vunpack.c.l.b16 %v7995
      %v8060 = vunpack.c.l.b16 %v7996
      %v8061 = vunpack.c.l.b16 %v7997
      %v8062 = vunpack.c.l.b16 %v7998
      %v8063 = vunpack.c.l.b16 %v7999
      %v8064 = vunpack.c.l.b16 %v8000
      %v8065 = vunpack.c.l.b16 %v8001
      %v8066 = vunpack.c.l.b16 %v8002
      %v8067 = vunpack.c.l.b16 %v8003
      %v8068 = vunpack.c.l.b16 %v8004
      %v8069 = vunpack.c.l.b16 %v8005
      %v8070 = vunpack.c.l.b16 %v8006
      %v8071 = vunpack.c.l.b16 %v8007
      %v8072 = vunpack.c.l.b16 %v8008
      %v8073 = vunpack.c.l.b16 %v8009
      %v8074 = vunpack.c.l.b16 %v8010
      %v8075 = vunpack.c.l.b16 %v8011
      %v8076 = vunpack.c.l.b16 %v8012
      %v8077 = vunpack.c.l.b16 %v8013
      %v8078 = vunpack.c.l.b16 %v8014
      %v8079 = vunpack.c.l.b16 %v8015
      %v8080 = vunpack.c.l.b16 %v8016
      %v8081 = vunpack.c.l.b16 %v8017
      %v8082 = vunpack.c.l.b16 %v8018
      %v8083 = vunpack.c.l.b16 %v8019
      %v8084 = vpack.c.b16 %v8053, %v8052
      %v8085 = vpack.c.b16 %v8055, %v8054
      %v8086 = vpack.c.b16 %v8057, %v8056
      %v8087 = vpack.c.b16 %v8059, %v8058
      %v8088 = vpack.c.b16 %v8061, %v8060
      %v8089 = vpack.c.b16 %v8063, %v8062
      %v8090 = vpack.c.b16 %v8065, %v8064
      %v8091 = vpack.c.b16 %v8067, %v8066
      %v8092 = vpack.c.b16 %v8069, %v8068
      %v8093 = vpack.c.b16 %v8071, %v8070
      %v8094 = vpack.c.b16 %v8073, %v8072
      %v8095 = vpack.c.b16 %v8075, %v8074
      %v8096 = vpack.c.b16 %v8077, %v8076
      %v8097 = vpack.c.b16 %v8079, %v8078
      %v8098 = vpack.c.b16 %v8081, %v8080
      %v8099 = vpack.c.b16 %v8083, %v8082
      %v8101 = vsel %vm440, %v8084, 0
      %v8104 = vsel %vm440, %v8085, 0
      %v8107 = vsel %vm440, %v8086, 0
      %v8110 = vsel %vm440, %v8087, 0
      %v8113 = vsel %vm440, %v8088, 0
      %v8116 = vsel %vm440, %v8089, 0
      %v8119 = vsel %vm440, %v8090, 0
      %v8122 = vsel %vm440, %v8091, 0
      %v8125 = vsel %vm440, %v8092, 0
      %v8128 = vsel %vm440, %v8093, 0
      %v8131 = vsel %vm440, %v8094, 0
      %v8134 = vsel %vm440, %v8095, 0
      %v8137 = vsel %vm440, %v8096, 0
      %v8140 = vsel %vm440, %v8097, 0
      %v8143 = vsel %vm440, %v8098, 0
      %v8146 = vsel %vm440, %v8099, 0
      %8148 = vmatprep.subr.bf16.mxu0 0
      %8149 = vmatpush1.bf16.msra.mxu0 0
      %8150 = vmatprep.subr.bf16.mxu0 0
      %8151 = vmatpush1.bf16.msra.mxu0 0
      %8152 = vmatprep.subr.bf16.mxu0 0
      %8153 = vmatpush1.bf16.msra.mxu0 0
      %8154 = vmatprep.subr.bf16.mxu0 0
      %8155 = vmatpush1.bf16.msra.mxu0 0
      %8156 = vmatprep.subr.bf16.mxu0 0
      %8157 = vmatpush1.bf16.msra.mxu0 0
      %8158 = vmatprep.subr.bf16.mxu0 0
      %8159 = vmatpush1.bf16.msra.mxu0 0
      %8160 = vmatprep.subr.bf16.mxu0 0
      %8161 = vmatpush1.bf16.msra.mxu0 0
      %8162 = vmatprep.subr.bf16.mxu0 %v1079
      %8163 = vmatpush1.bf16.msra.mxu0 %v1076
      %8164 = vmatprep.subr.bf16.mxu0 0
      %8165 = vmatpush2.bf16.msra.mxu0 0
      %8166 = vmatprep.subr.bf16.mxu0 0
      %8167 = vmatpush2.bf16.msra.mxu0 0
      %8168 = vmatprep.subr.bf16.mxu0 0
      %8169 = vmatpush2.bf16.msra.mxu0 0
      %8170 = vmatprep.subr.bf16.mxu0 0
      %8171 = vmatpush2.bf16.msra.mxu0 0
      %8172 = vmatprep.subr.bf16.mxu0 0
      %8173 = vmatpush2.bf16.msra.mxu0 0
      %8174 = vmatprep.subr.bf16.mxu0 0
      %8175 = vmatpush2.bf16.msra.mxu0 0
      %8176 = vmatprep.subr.bf16.mxu0 0
      %8177 = vmatpush2.bf16.msra.mxu0 0
      %8178 = vmatprep.subr.bf16.mxu0 0
      %8179 = vmatpush2.bf16.msra.mxu0 0
      %8180 = vmatprep.mubr.bf16.mxu0 0
      %8181 = vmatmul.mubr.bf16.gmra.mxu0 %v8101
      %v8182 = vpop.f32.mrf.mxu0
      %v8183 = vadd.f32 0.0, %v8182
      %v8184 = vpop.f32.mrf.mxu0
      %v8185 = vadd.f32 0.0, %v8184
      %v8186 = vpop.f32.mrf.mxu0
      %v8187 = vadd.f32 0.0, %v8186
      %v8188 = vpop.f32.mrf.mxu0
      %v8189 = vadd.f32 0.0, %v8188
      %8190 = vmatprep.mubr.bf16.mxu0 0
      %8191 = vmatmul.mubr.bf16.gmra.mxu0 %v8104
      %v8192 = vpop.f32.mrf.mxu0
      %v8193 = vadd.f32 0.0, %v8192
      %v8194 = vpop.f32.mrf.mxu0
      %v8195 = vadd.f32 0.0, %v8194
      %v8196 = vpop.f32.mrf.mxu0
      %v8197 = vadd.f32 0.0, %v8196
      %v8198 = vpop.f32.mrf.mxu0
      %v8199 = vadd.f32 0.0, %v8198
      %8200 = vmatprep.mubr.bf16.mxu0 0
      %8201 = vmatmul.mubr.bf16.gmra.mxu0 %v8107
      %v8202 = vpop.f32.mrf.mxu0
      %v8203 = vadd.f32 0.0, %v8202
      %v8204 = vpop.f32.mrf.mxu0
      %v8205 = vadd.f32 0.0, %v8204
      %v8206 = vpop.f32.mrf.mxu0
      %v8207 = vadd.f32 0.0, %v8206
      %v8208 = vpop.f32.mrf.mxu0
      %v8209 = vadd.f32 0.0, %v8208
      %8210 = vmatprep.mubr.bf16.mxu0 0
      %8211 = vmatmul.mubr.bf16.gmra.mxu0 %v8110
      %v8212 = vpop.f32.mrf.mxu0
      %v8213 = vadd.f32 0.0, %v8212
      %v8214 = vpop.f32.mrf.mxu0
      %v8215 = vadd.f32 0.0, %v8214
      %v8216 = vpop.f32.mrf.mxu0
      %v8217 = vadd.f32 0.0, %v8216
      %v8218 = vpop.f32.mrf.mxu0
      %v8219 = vadd.f32 0.0, %v8218
      %8220 = vmatprep.mubr.bf16.mxu0 0
      %8221 = vmatmul.mubr.bf16.gmra.mxu0 %v8113
      %v8222 = vpop.f32.mrf.mxu0
      %v8223 = vadd.f32 0.0, %v8222
      %v8224 = vpop.f32.mrf.mxu0
      %v8225 = vadd.f32 0.0, %v8224
      %v8226 = vpop.f32.mrf.mxu0
      %v8227 = vadd.f32 0.0, %v8226
      %v8228 = vpop.f32.mrf.mxu0
      %v8229 = vadd.f32 0.0, %v8228
      %8230 = vmatprep.mubr.bf16.mxu0 0
      %8231 = vmatmul.mubr.bf16.gmra.mxu0 %v8116
      %v8232 = vpop.f32.mrf.mxu0
      %v8233 = vadd.f32 0.0, %v8232
      %v8234 = vpop.f32.mrf.mxu0
      %v8235 = vadd.f32 0.0, %v8234
      %v8236 = vpop.f32.mrf.mxu0
      %v8237 = vadd.f32 0.0, %v8236
      %v8238 = vpop.f32.mrf.mxu0
      %v8239 = vadd.f32 0.0, %v8238
      %8240 = vmatprep.mubr.bf16.mxu0 0
      %8241 = vmatmul.mubr.bf16.gmra.mxu0 %v8119
      %v8242 = vpop.f32.mrf.mxu0
      %v8243 = vadd.f32 0.0, %v8242
      %v8244 = vpop.f32.mrf.mxu0
      %v8245 = vadd.f32 0.0, %v8244
      %v8246 = vpop.f32.mrf.mxu0
      %v8247 = vadd.f32 0.0, %v8246
      %v8248 = vpop.f32.mrf.mxu0
      %v8249 = vadd.f32 0.0, %v8248
      %8250 = vmatprep.mubr.bf16.mxu0 0
      %8251 = vmatmul.mubr.bf16.gmra.mxu0 %v8122
      %v8252 = vpop.f32.mrf.mxu0
      %v8253 = vadd.f32 0.0, %v8252
      %v8254 = vpop.f32.mrf.mxu0
      %v8255 = vadd.f32 0.0, %v8254
      %v8256 = vpop.f32.mrf.mxu0
      %v8257 = vadd.f32 0.0, %v8256
      %v8258 = vpop.f32.mrf.mxu0
      %v8259 = vadd.f32 0.0, %v8258
      %8260 = vmatprep.mubr.bf16.mxu0 0
      %8261 = vmatmul.mubr.bf16.gmra.mxu0 %v8125
      %v8262 = vpop.f32.mrf.mxu0
      %v8263 = vadd.f32 0.0, %v8262
      %v8264 = vpop.f32.mrf.mxu0
      %v8265 = vadd.f32 0.0, %v8264
      %v8266 = vpop.f32.mrf.mxu0
      %v8267 = vadd.f32 0.0, %v8266
      %v8268 = vpop.f32.mrf.mxu0
      %v8269 = vadd.f32 0.0, %v8268
      %8270 = vmatprep.mubr.bf16.mxu0 0
      %8271 = vmatmul.mubr.bf16.gmra.mxu0 %v8128
      %v8272 = vpop.f32.mrf.mxu0
      %v8273 = vadd.f32 0.0, %v8272
      %v8274 = vpop.f32.mrf.mxu0
      %v8275 = vadd.f32 0.0, %v8274
      %v8276 = vpop.f32.mrf.mxu0
      %v8277 = vadd.f32 0.0, %v8276
      %v8278 = vpop.f32.mrf.mxu0
      %v8279 = vadd.f32 0.0, %v8278
      %8280 = vmatprep.mubr.bf16.mxu0 0
      %8281 = vmatmul.mubr.bf16.gmra.mxu0 %v8131
      %v8282 = vpop.f32.mrf.mxu0
      %v8283 = vadd.f32 0.0, %v8282
      %v8284 = vpop.f32.mrf.mxu0
      %v8285 = vadd.f32 0.0, %v8284
      %v8286 = vpop.f32.mrf.mxu0
      %v8287 = vadd.f32 0.0, %v8286
      %v8288 = vpop.f32.mrf.mxu0
      %v8289 = vadd.f32 0.0, %v8288
      %8290 = vmatprep.mubr.bf16.mxu0 0
      %8291 = vmatmul.mubr.bf16.gmra.mxu0 %v8134
      %v8292 = vpop.f32.mrf.mxu0
      %v8293 = vadd.f32 0.0, %v8292
      %v8294 = vpop.f32.mrf.mxu0
      %v8295 = vadd.f32 0.0, %v8294
      %v8296 = vpop.f32.mrf.mxu0
      %v8297 = vadd.f32 0.0, %v8296
      %v8298 = vpop.f32.mrf.mxu0
      %v8299 = vadd.f32 0.0, %v8298
      %8300 = vmatprep.mubr.bf16.mxu0 0
      %8301 = vmatmul.mubr.bf16.gmra.mxu0 %v8137
      %v8302 = vpop.f32.mrf.mxu0
      %v8303 = vadd.f32 0.0, %v8302
      %v8304 = vpop.f32.mrf.mxu0
      %v8305 = vadd.f32 0.0, %v8304
      %v8306 = vpop.f32.mrf.mxu0
      %v8307 = vadd.f32 0.0, %v8306
      %v8308 = vpop.f32.mrf.mxu0
      %v8309 = vadd.f32 0.0, %v8308
      %8310 = vmatprep.mubr.bf16.mxu0 0
      %8311 = vmatmul.mubr.bf16.gmra.mxu0 %v8140
      %v8312 = vpop.f32.mrf.mxu0
      %v8313 = vadd.f32 0.0, %v8312
      %v8314 = vpop.f32.mrf.mxu0
      %v8315 = vadd.f32 0.0, %v8314
      %v8316 = vpop.f32.mrf.mxu0
      %v8317 = vadd.f32 0.0, %v8316
      %v8318 = vpop.f32.mrf.mxu0
      %v8319 = vadd.f32 0.0, %v8318
      %8320 = vmatprep.mubr.bf16.mxu0 0
      %8321 = vmatmul.mubr.bf16.gmra.mxu0 %v8143
      %v8322 = vpop.f32.mrf.mxu0
      %v8323 = vadd.f32 0.0, %v8322
      %v8324 = vpop.f32.mrf.mxu0
      %v8325 = vadd.f32 0.0, %v8324
      %v8326 = vpop.f32.mrf.mxu0
      %v8327 = vadd.f32 0.0, %v8326
      %v8328 = vpop.f32.mrf.mxu0
      %v8329 = vadd.f32 0.0, %v8328
      %8330 = vmatprep.mubr.bf16.mxu0 0
      %8331 = vmatmul.mubr.bf16.gmra.mxu0 %v8146
      %v8332 = vpop.f32.mrf.mxu0
      %v8333 = vadd.f32 0.0, %v8332
      %v8334 = vpop.f32.mrf.mxu0
      %v8335 = vadd.f32 0.0, %v8334
      %v8336 = vpop.f32.mrf.mxu0
      %v8337 = vadd.f32 0.0, %v8336
      %v8338 = vpop.f32.mrf.mxu0
      %v8339 = vadd.f32 0.0, %v8338
      %8340 = vdwg.mxu0
      %v8341 = vadd.f32 %v7830, %v8183
      %v8342 = vadd.f32 %v7832, %v8185
      %v8343 = vadd.f32 %v7834, %v8187
      %v8344 = vadd.f32 %v7836, %v8189
      %v8345 = vadd.f32 %v7840, %v8193
      %v8346 = vadd.f32 %v7842, %v8195
      %v8347 = vadd.f32 %v7844, %v8197
      %v8348 = vadd.f32 %v7846, %v8199
      %v8349 = vadd.f32 %v7850, %v8203
      %v8350 = vadd.f32 %v7852, %v8205
      %v8351 = vadd.f32 %v7854, %v8207
      %v8352 = vadd.f32 %v7856, %v8209
      %v8353 = vadd.f32 %v7860, %v8213
      %v8354 = vadd.f32 %v7862, %v8215
      %v8355 = vadd.f32 %v7864, %v8217
      %v8356 = vadd.f32 %v7866, %v8219
      %v8357 = vadd.f32 %v7870, %v8223
      %v8358 = vadd.f32 %v7872, %v8225
      %v8359 = vadd.f32 %v7874, %v8227
      %v8360 = vadd.f32 %v7876, %v8229
      %v8361 = vadd.f32 %v7880, %v8233
      %v8362 = vadd.f32 %v7882, %v8235
      %v8363 = vadd.f32 %v7884, %v8237
      %v8364 = vadd.f32 %v7886, %v8239
      %v8365 = vadd.f32 %v7890, %v8243
      %v8366 = vadd.f32 %v7892, %v8245
      %v8367 = vadd.f32 %v7894, %v8247
      %v8368 = vadd.f32 %v7896, %v8249
      %v8369 = vadd.f32 %v7900, %v8253
      %v8370 = vadd.f32 %v7902, %v8255
      %v8371 = vadd.f32 %v7904, %v8257
      %v8372 = vadd.f32 %v7906, %v8259
      %v8373 = vadd.f32 %v7910, %v8263
      %v8374 = vadd.f32 %v7912, %v8265
      %v8375 = vadd.f32 %v7914, %v8267
      %v8376 = vadd.f32 %v7916, %v8269
      %v8377 = vadd.f32 %v7920, %v8273
      %v8378 = vadd.f32 %v7922, %v8275
      %v8379 = vadd.f32 %v7924, %v8277
      %v8380 = vadd.f32 %v7926, %v8279
      %v8381 = vadd.f32 %v7930, %v8283
      %v8382 = vadd.f32 %v7932, %v8285
      %v8383 = vadd.f32 %v7934, %v8287
      %v8384 = vadd.f32 %v7936, %v8289
      %v8385 = vadd.f32 %v7940, %v8293
      %v8386 = vadd.f32 %v7942, %v8295
      %v8387 = vadd.f32 %v7944, %v8297
      %v8388 = vadd.f32 %v7946, %v8299
      %v8389 = vadd.f32 %v7950, %v8303
      %v8390 = vadd.f32 %v7952, %v8305
      %v8391 = vadd.f32 %v7954, %v8307
      %v8392 = vadd.f32 %v7956, %v8309
      %v8393 = vadd.f32 %v7960, %v8313
      %v8394 = vadd.f32 %v7962, %v8315
      %v8395 = vadd.f32 %v7964, %v8317
      %v8396 = vadd.f32 %v7966, %v8319
      %v8397 = vadd.f32 %v7970, %v8323
      %v8398 = vadd.f32 %v7972, %v8325
      %v8399 = vadd.f32 %v7974, %v8327
      %v8400 = vadd.f32 %v7976, %v8329
      %v8401 = vadd.f32 %v7980, %v8333
      %v8402 = vadd.f32 %v7982, %v8335
      %v8403 = vadd.f32 %v7984, %v8337
      %v8404 = vadd.f32 %v7986, %v8339
      %v8405 = vadd.f32 %v8341, %v1342
      %v8406 = vadd.f32 %v8342, %v1346
      %v8407 = vadd.f32 %v8343, %v1342
      %v8408 = vadd.f32 %v8344, %v1346
      %v8409 = vadd.f32 %v8345, %v1342
      %v8410 = vadd.f32 %v8346, %v1346
      %v8411 = vadd.f32 %v8347, %v1342
      %v8412 = vadd.f32 %v8348, %v1346
      %v8413 = vadd.f32 %v8349, %v1342
      %v8414 = vadd.f32 %v8350, %v1346
      %v8415 = vadd.f32 %v8351, %v1342
      %v8416 = vadd.f32 %v8352, %v1346
      %v8417 = vadd.f32 %v8353, %v1342
      %v8418 = vadd.f32 %v8354, %v1346
      %v8419 = vadd.f32 %v8355, %v1342
      %v8420 = vadd.f32 %v8356, %v1346
      %v8421 = vadd.f32 %v8357, %v1342
      %v8422 = vadd.f32 %v8358, %v1346
      %v8423 = vadd.f32 %v8359, %v1342
      %v8424 = vadd.f32 %v8360, %v1346
      %v8425 = vadd.f32 %v8361, %v1342
      %v8426 = vadd.f32 %v8362, %v1346
      %v8427 = vadd.f32 %v8363, %v1342
      %v8428 = vadd.f32 %v8364, %v1346
      %v8429 = vadd.f32 %v8365, %v1342
      %v8430 = vadd.f32 %v8366, %v1346
      %v8431 = vadd.f32 %v8367, %v1342
      %v8432 = vadd.f32 %v8368, %v1346
      %v8433 = vadd.f32 %v8369, %v1342
      %v8434 = vadd.f32 %v8370, %v1346
      %v8435 = vadd.f32 %v8371, %v1342
      %v8436 = vadd.f32 %v8372, %v1346
      %v8437 = vadd.f32 %v8373, %v1342
      %v8438 = vadd.f32 %v8374, %v1346
      %v8439 = vadd.f32 %v8375, %v1342
      %v8440 = vadd.f32 %v8376, %v1346
      %v8441 = vadd.f32 %v8377, %v1342
      %v8442 = vadd.f32 %v8378, %v1346
      %v8443 = vadd.f32 %v8379, %v1342
      %v8444 = vadd.f32 %v8380, %v1346
      %v8445 = vadd.f32 %v8381, %v1342
      %v8446 = vadd.f32 %v8382, %v1346
      %v8447 = vadd.f32 %v8383, %v1342
      %v8448 = vadd.f32 %v8384, %v1346
      %v8449 = vadd.f32 %v8385, %v1342
      %v8450 = vadd.f32 %v8386, %v1346
      %v8451 = vadd.f32 %v8387, %v1342
      %v8452 = vadd.f32 %v8388, %v1346
      %v8453 = vadd.f32 %v8389, %v1342
      %v8454 = vadd.f32 %v8390, %v1346
      %v8455 = vadd.f32 %v8391, %v1342
      %v8456 = vadd.f32 %v8392, %v1346
      %v8457 = vadd.f32 %v8393, %v1342
      %v8458 = vadd.f32 %v8394, %v1346
      %v8459 = vadd.f32 %v8395, %v1342
      %v8460 = vadd.f32 %v8396, %v1346
      %v8461 = vadd.f32 %v8397, %v1342
      %v8462 = vadd.f32 %v8398, %v1346
      %v8463 = vadd.f32 %v8399, %v1342
      %v8464 = vadd.f32 %v8400, %v1346
      %v8465 = vadd.f32 %v8401, %v1342
      %v8466 = vadd.f32 %v8402, %v1346
      %v8467 = vadd.f32 %v8403, %v1342
      %v8468 = vadd.f32 %v8404, %v1346
      %v8469 = vmax.f32 %v8405, 0.0
      %v8470 = vmax.f32 %v8406, 0.0
      %v8471 = vmax.f32 %v8407, 0.0
      %v8472 = vmax.f32 %v8408, 0.0
      %v8473 = vmax.f32 %v8409, 0.0
      %v8474 = vmax.f32 %v8410, 0.0
      %v8475 = vmax.f32 %v8411, 0.0
      %v8476 = vmax.f32 %v8412, 0.0
      %v8477 = vmax.f32 %v8413, 0.0
      %v8478 = vmax.f32 %v8414, 0.0
      %v8479 = vmax.f32 %v8415, 0.0
      %v8480 = vmax.f32 %v8416, 0.0
      %v8481 = vmax.f32 %v8417, 0.0
      %v8482 = vmax.f32 %v8418, 0.0
      %v8483 = vmax.f32 %v8419, 0.0
      %v8484 = vmax.f32 %v8420, 0.0
      %v8485 = vmax.f32 %v8421, 0.0
      %v8486 = vmax.f32 %v8422, 0.0
      %v8487 = vmax.f32 %v8423, 0.0
      %v8488 = vmax.f32 %v8424, 0.0
      %v8489 = vmax.f32 %v8425, 0.0
      %v8490 = vmax.f32 %v8426, 0.0
      %v8491 = vmax.f32 %v8427, 0.0
      %v8492 = vmax.f32 %v8428, 0.0
      %v8493 = vmax.f32 %v8429, 0.0
      %v8494 = vmax.f32 %v8430, 0.0
      %v8495 = vmax.f32 %v8431, 0.0
      %v8496 = vmax.f32 %v8432, 0.0
      %v8497 = vmax.f32 %v8433, 0.0
      %v8498 = vmax.f32 %v8434, 0.0
      %v8499 = vmax.f32 %v8435, 0.0
      %v8500 = vmax.f32 %v8436, 0.0
      %v8501 = vmax.f32 %v8437, 0.0
      %v8502 = vmax.f32 %v8438, 0.0
      %v8503 = vmax.f32 %v8439, 0.0
      %v8504 = vmax.f32 %v8440, 0.0
      %v8505 = vmax.f32 %v8441, 0.0
      %v8506 = vmax.f32 %v8442, 0.0
      %v8507 = vmax.f32 %v8443, 0.0
      %v8508 = vmax.f32 %v8444, 0.0
      %v8509 = vmax.f32 %v8445, 0.0
      %v8510 = vmax.f32 %v8446, 0.0
      %v8511 = vmax.f32 %v8447, 0.0
      %v8512 = vmax.f32 %v8448, 0.0
      %v8513 = vmax.f32 %v8449, 0.0
      %v8514 = vmax.f32 %v8450, 0.0
      %v8515 = vmax.f32 %v8451, 0.0
      %v8516 = vmax.f32 %v8452, 0.0
      %v8517 = vmax.f32 %v8453, 0.0
      %v8518 = vmax.f32 %v8454, 0.0
      %v8519 = vmax.f32 %v8455, 0.0
      %v8520 = vmax.f32 %v8456, 0.0
      %v8521 = vmax.f32 %v8457, 0.0
      %v8522 = vmax.f32 %v8458, 0.0
      %v8523 = vmax.f32 %v8459, 0.0
      %v8524 = vmax.f32 %v8460, 0.0
      %v8525 = vmax.f32 %v8461, 0.0
      %v8526 = vmax.f32 %v8462, 0.0
      %v8527 = vmax.f32 %v8463, 0.0
      %v8528 = vmax.f32 %v8464, 0.0
      %v8529 = vmax.f32 %v8465, 0.0
      %v8530 = vmax.f32 %v8466, 0.0
      %v8531 = vmax.f32 %v8467, 0.0
      %v8532 = vmax.f32 %v8468, 0.0
      %v8533 = vadd.f32 %v8469, %v8471
      %v8534 = vadd.f32 %v8533, %v8473
      %v8535 = vadd.f32 %v8534, %v8475
      %v8536 = vadd.f32 %v8535, %v8477
      %v8537 = vadd.f32 %v8536, %v8479
      %v8538 = vadd.f32 %v8537, %v8481
      %v8539 = vadd.f32 %v8538, %v8483
      %v8540 = vadd.f32 %v8539, %v8485
      %v8541 = vadd.f32 %v8540, %v8487
      %v8542 = vadd.f32 %v8541, %v8489
      %v8543 = vadd.f32 %v8542, %v8491
      %v8544 = vadd.f32 %v8543, %v8493
      %v8545 = vadd.f32 %v8544, %v8495
      %v8546 = vadd.f32 %v8545, %v8497
      %v8547 = vadd.f32 %v8546, %v8499
      %v8548 = vadd.f32 %v8547, %v8501
      %v8549 = vadd.f32 %v8548, %v8503
      %v8550 = vadd.f32 %v8549, %v8505
      %v8551 = vadd.f32 %v8550, %v8507
      %v8552 = vadd.f32 %v8551, %v8509
      %v8553 = vadd.f32 %v8552, %v8511
      %v8554 = vadd.f32 %v8553, %v8513
      %v8555 = vadd.f32 %v8554, %v8515
      %v8556 = vadd.f32 %v8555, %v8517
      %v8557 = vadd.f32 %v8556, %v8519
      %v8558 = vadd.f32 %v8557, %v8521
      %v8559 = vadd.f32 %v8558, %v8523
      %v8560 = vadd.f32 %v8559, %v8525
      %v8561 = vadd.f32 %v8560, %v8527
      %v8562 = vadd.f32 %v8561, %v8529
      %v8563 = vadd.f32 %v8562, %v8531
      %v8564 = vrot.slane %v8563, 4
      %v8565 = vadd.f32 %v8563, %v8564
      %v8566 = vrot.slane %v8565, 2
      %v8567 = vadd.f32 %v8565, %v8566
      %v8568 = vrot.slane %v8567, 1
      %v8569 = vadd.f32 %v8567, %v8568
      %v8570 = vadd.f32 %v8470, %v8472
      %v8571 = vadd.f32 %v8570, %v8474
      %v8572 = vadd.f32 %v8571, %v8476
      %v8573 = vadd.f32 %v8572, %v8478
      %v8574 = vadd.f32 %v8573, %v8480
      %v8575 = vadd.f32 %v8574, %v8482
      %v8576 = vadd.f32 %v8575, %v8484
      %v8577 = vadd.f32 %v8576, %v8486
      %v8578 = vadd.f32 %v8577, %v8488
      %v8579 = vadd.f32 %v8578, %v8490
      %v8580 = vadd.f32 %v8579, %v8492
      %v8581 = vadd.f32 %v8580, %v8494
      %v8582 = vadd.f32 %v8581, %v8496
      %v8583 = vadd.f32 %v8582, %v8498
      %v8584 = vadd.f32 %v8583, %v8500
      %v8585 = vadd.f32 %v8584, %v8502
      %v8586 = vadd.f32 %v8585, %v8504
      %v8587 = vadd.f32 %v8586, %v8506
      %v8588 = vadd.f32 %v8587, %v8508
      %v8589 = vadd.f32 %v8588, %v8510
      %v8590 = vadd.f32 %v8589, %v8512
      %v8591 = vadd.f32 %v8590, %v8514
      %v8592 = vadd.f32 %v8591, %v8516
      %v8593 = vadd.f32 %v8592, %v8518
      %v8594 = vadd.f32 %v8593, %v8520
      %v8595 = vadd.f32 %v8594, %v8522
      %v8596 = vadd.f32 %v8595, %v8524
      %v8597 = vadd.f32 %v8596, %v8526
      %v8598 = vadd.f32 %v8597, %v8528
      %v8599 = vadd.f32 %v8598, %v8530
      %v8600 = vadd.f32 %v8599, %v8532
      %v8601 = vrot.slane %v8600, 4
      %v8602 = vadd.f32 %v8600, %v8601
      %v8603 = vrot.slane %v8602, 2
      %v8604 = vadd.f32 %v8602, %v8603
      %v8605 = vrot.slane %v8604, 1
      %v8606 = vadd.f32 %v8604, %v8605
      %s8607 = scalar_lea.vmem %s304, 1008
      %v8608 = vld [vmem:[%s8607] sm:$0xf]
      %v8609 = vld [vmem:[%s8607 + $0x4] sm:$0xf]
      %v8610 = vld [vmem:[%s8607 + $0x8] sm:$0xf]
      %v8611 = vld [vmem:[%s8607 + $0xc] sm:$0xf]
      %v8612 = vld [vmem:[%s8607 + $0x10] sm:$0xf]
      %v8613 = vld [vmem:[%s8607 + $0x14] sm:$0xf]
      %v8614 = vld [vmem:[%s8607 + $0x18] sm:$0xf]
      %v8615 = vld [vmem:[%s8607 + $0x1c] sm:$0xf]
      %v8616 = vld [vmem:[%s8607 + $0x20] sm:$0xf]
      %v8617 = vld [vmem:[%s8607 + $0x24] sm:$0xf]
      %v8618 = vld [vmem:[%s8607 + $0x28] sm:$0xf]
      %v8619 = vld [vmem:[%s8607 + $0x2c] sm:$0xf]
      %v8620 = vld [vmem:[%s8607 + $0x30] sm:$0xf]
      %v8621 = vld [vmem:[%s8607 + $0x34] sm:$0xf]
      %v8622 = vld [vmem:[%s8607 + $0x38] sm:$0xf]
      %v8623 = vld [vmem:[%s8607 + $0x3c] sm:$0xf]
      %v8624 = vld [vmem:[%s8607 + $0x40] sm:$0xf]
      %v8625 = vld [vmem:[%s8607 + $0x44] sm:$0xf]
      %v8626 = vld [vmem:[%s8607 + $0x48] sm:$0xf]
      %v8627 = vld [vmem:[%s8607 + $0x4c] sm:$0xf]
      %v8628 = vld [vmem:[%s8607 + $0x50] sm:$0xf]
      %v8629 = vld [vmem:[%s8607 + $0x54] sm:$0xf]
      %v8630 = vld [vmem:[%s8607 + $0x58] sm:$0xf]
      %v8631 = vld [vmem:[%s8607 + $0x5c] sm:$0xf]
      %v8632 = vld [vmem:[%s8607 + $0x60] sm:$0xf]
      %v8633 = vld [vmem:[%s8607 + $0x64] sm:$0xf]
      %v8634 = vld [vmem:[%s8607 + $0x68] sm:$0xf]
      %v8635 = vld [vmem:[%s8607 + $0x6c] sm:$0xf]
      %v8636 = vld [vmem:[%s8607 + $0x70] sm:$0xf]
      %v8637 = vld [vmem:[%s8607 + $0x74] sm:$0xf]
      %v8638 = vld [vmem:[%s8607 + $0x78] sm:$0xf]
      %v8639 = vld [vmem:[%s8607 + $0x7c] sm:$0xf]
      %v8640 = vld [vmem:[%s8607 + $0x80] sm:$0xf]
      %v8641 = vld [vmem:[%s8607 + $0x84] sm:$0xf]
      %v8674 = vunpack.c.l.b16 %v8610
      %v8675 = vunpack.c.l.b16 %v8611
      %v8676 = vunpack.c.l.b16 %v8612
      %v8677 = vunpack.c.l.b16 %v8613
      %v8678 = vunpack.c.l.b16 %v8614
      %v8679 = vunpack.c.l.b16 %v8615
      %v8680 = vunpack.c.l.b16 %v8616
      %v8681 = vunpack.c.l.b16 %v8617
      %v8682 = vunpack.c.l.b16 %v8618
      %v8683 = vunpack.c.l.b16 %v8619
      %v8684 = vunpack.c.l.b16 %v8620
      %v8685 = vunpack.c.l.b16 %v8621
      %v8686 = vunpack.c.l.b16 %v8622
      %v8687 = vunpack.c.l.b16 %v8623
      %v8688 = vunpack.c.l.b16 %v8624
      %v8689 = vunpack.c.l.b16 %v8625
      %v8690 = vunpack.c.l.b16 %v8626
      %v8691 = vunpack.c.l.b16 %v8627
      %v8692 = vunpack.c.l.b16 %v8628
      %v8693 = vunpack.c.l.b16 %v8629
      %v8694 = vunpack.c.l.b16 %v8630
      %v8695 = vunpack.c.l.b16 %v8631
      %v8696 = vunpack.c.l.b16 %v8632
      %v8697 = vunpack.c.l.b16 %v8633
      %v8698 = vunpack.c.l.b16 %v8634
      %v8699 = vunpack.c.l.b16 %v8635
      %v8700 = vunpack.c.l.b16 %v8636
      %v8701 = vunpack.c.l.b16 %v8637
      %v8702 = vunpack.c.l.b16 %v8638
      %v8703 = vunpack.c.l.b16 %v8639
      %v8704 = vunpack.c.l.b16 %v8640
      %v8705 = vunpack.c.l.b16 %v8641
      %v8706 = vpack.c.b16 %v8675, %v8674
      %v8707 = vpack.c.b16 %v8677, %v8676
      %v8708 = vpack.c.b16 %v8679, %v8678
      %v8709 = vpack.c.b16 %v8681, %v8680
      %v8710 = vpack.c.b16 %v8683, %v8682
      %v8711 = vpack.c.b16 %v8685, %v8684
      %v8712 = vpack.c.b16 %v8687, %v8686
      %v8713 = vpack.c.b16 %v8689, %v8688
      %v8714 = vpack.c.b16 %v8691, %v8690
      %v8715 = vpack.c.b16 %v8693, %v8692
      %v8716 = vpack.c.b16 %v8695, %v8694
      %v8717 = vpack.c.b16 %v8697, %v8696
      %v8718 = vpack.c.b16 %v8699, %v8698
      %v8719 = vpack.c.b16 %v8701, %v8700
      %v8720 = vpack.c.b16 %v8703, %v8702
      %v8721 = vpack.c.b16 %v8705, %v8704
      %v8723 = vsel %vm440, %v8706, 0
      %v8726 = vsel %vm440, %v8707, 0
      %v8729 = vsel %vm440, %v8708, 0
      %v8732 = vsel %vm440, %v8709, 0
      %v8735 = vsel %vm440, %v8710, 0
      %v8738 = vsel %vm440, %v8711, 0
      %v8741 = vsel %vm440, %v8712, 0
      %v8744 = vsel %vm440, %v8713, 0
      %v8747 = vsel %vm440, %v8714, 0
      %v8750 = vsel %vm440, %v8715, 0
      %v8753 = vsel %vm440, %v8716, 0
      %v8756 = vsel %vm440, %v8717, 0
      %v8759 = vsel %vm440, %v8718, 0
      %v8762 = vsel %vm440, %v8719, 0
      %v8765 = vsel %vm440, %v8720, 0
      %v8768 = vsel %vm440, %v8721, 0
      %8770 = vmatprep.subr.bf16.mxu0 0
      %8771 = vmatpush1.bf16.msra.mxu0 0
      %8772 = vmatprep.subr.bf16.mxu0 0
      %8773 = vmatpush1.bf16.msra.mxu0 0
      %8774 = vmatprep.subr.bf16.mxu0 0
      %8775 = vmatpush1.bf16.msra.mxu0 0
      %8776 = vmatprep.subr.bf16.mxu0 0
      %8777 = vmatpush1.bf16.msra.mxu0 0
      %8778 = vmatprep.subr.bf16.mxu0 0
      %8779 = vmatpush1.bf16.msra.mxu0 0
      %8780 = vmatprep.subr.bf16.mxu0 0
      %8781 = vmatpush1.bf16.msra.mxu0 0
      %8782 = vmatprep.subr.bf16.mxu0 0
      %8783 = vmatpush1.bf16.msra.mxu0 0
      %8784 = vmatprep.subr.bf16.mxu0 %v494
      %8785 = vmatpush1.bf16.msra.mxu0 %v491
      %8786 = vmatprep.subr.bf16.mxu0 0
      %8787 = vmatpush2.bf16.msra.mxu0 0
      %8788 = vmatprep.subr.bf16.mxu0 0
      %8789 = vmatpush2.bf16.msra.mxu0 0
      %8790 = vmatprep.subr.bf16.mxu0 0
      %8791 = vmatpush2.bf16.msra.mxu0 0
      %8792 = vmatprep.subr.bf16.mxu0 0
      %8793 = vmatpush2.bf16.msra.mxu0 0
      %8794 = vmatprep.subr.bf16.mxu0 0
      %8795 = vmatpush2.bf16.msra.mxu0 0
      %8796 = vmatprep.subr.bf16.mxu0 0
      %8797 = vmatpush2.bf16.msra.mxu0 0
      %8798 = vmatprep.subr.bf16.mxu0 0
      %8799 = vmatpush2.bf16.msra.mxu0 0
      %8800 = vmatprep.subr.bf16.mxu0 0
      %8801 = vmatpush2.bf16.msra.mxu0 0
      %8802 = vmatprep.mubr.bf16.mxu0 0
      %8803 = vmatmul.mubr.bf16.gmra.mxu0 %v8723
      %v8804 = vpop.f32.mrf.mxu0
      %v8805 = vadd.f32 0.0, %v8804
      %v8806 = vpop.f32.mrf.mxu0
      %v8807 = vadd.f32 0.0, %v8806
      %v8808 = vpop.f32.mrf.mxu0
      %v8809 = vadd.f32 0.0, %v8808
      %v8810 = vpop.f32.mrf.mxu0
      %v8811 = vadd.f32 0.0, %v8810
      %8812 = vmatprep.mubr.bf16.mxu0 0
      %8813 = vmatmul.mubr.bf16.gmra.mxu0 %v8726
      %v8814 = vpop.f32.mrf.mxu0
      %v8815 = vadd.f32 0.0, %v8814
      %v8816 = vpop.f32.mrf.mxu0
      %v8817 = vadd.f32 0.0, %v8816
      %v8818 = vpop.f32.mrf.mxu0
      %v8819 = vadd.f32 0.0, %v8818
      %v8820 = vpop.f32.mrf.mxu0
      %v8821 = vadd.f32 0.0, %v8820
      %8822 = vmatprep.mubr.bf16.mxu0 0
      %8823 = vmatmul.mubr.bf16.gmra.mxu0 %v8729
      %v8824 = vpop.f32.mrf.mxu0
      %v8825 = vadd.f32 0.0, %v8824
      %v8826 = vpop.f32.mrf.mxu0
      %v8827 = vadd.f32 0.0, %v8826
      %v8828 = vpop.f32.mrf.mxu0
      %v8829 = vadd.f32 0.0, %v8828
      %v8830 = vpop.f32.mrf.mxu0
      %v8831 = vadd.f32 0.0, %v8830
      %8832 = vmatprep.mubr.bf16.mxu0 0
      %8833 = vmatmul.mubr.bf16.gmra.mxu0 %v8732
      %v8834 = vpop.f32.mrf.mxu0
      %v8835 = vadd.f32 0.0, %v8834
      %v8836 = vpop.f32.mrf.mxu0
      %v8837 = vadd.f32 0.0, %v8836
      %v8838 = vpop.f32.mrf.mxu0
      %v8839 = vadd.f32 0.0, %v8838
      %v8840 = vpop.f32.mrf.mxu0
      %v8841 = vadd.f32 0.0, %v8840
      %8842 = vmatprep.mubr.bf16.mxu0 0
      %8843 = vmatmul.mubr.bf16.gmra.mxu0 %v8735
      %v8844 = vpop.f32.mrf.mxu0
      %v8845 = vadd.f32 0.0, %v8844
      %v8846 = vpop.f32.mrf.mxu0
      %v8847 = vadd.f32 0.0, %v8846
      %v8848 = vpop.f32.mrf.mxu0
      %v8849 = vadd.f32 0.0, %v8848
      %v8850 = vpop.f32.mrf.mxu0
      %v8851 = vadd.f32 0.0, %v8850
      %8852 = vmatprep.mubr.bf16.mxu0 0
      %8853 = vmatmul.mubr.bf16.gmra.mxu0 %v8738
      %v8854 = vpop.f32.mrf.mxu0
      %v8855 = vadd.f32 0.0, %v8854
      %v8856 = vpop.f32.mrf.mxu0
      %v8857 = vadd.f32 0.0, %v8856
      %v8858 = vpop.f32.mrf.mxu0
      %v8859 = vadd.f32 0.0, %v8858
      %v8860 = vpop.f32.mrf.mxu0
      %v8861 = vadd.f32 0.0, %v8860
      %8862 = vmatprep.mubr.bf16.mxu0 0
      %8863 = vmatmul.mubr.bf16.gmra.mxu0 %v8741
      %v8864 = vpop.f32.mrf.mxu0
      %v8865 = vadd.f32 0.0, %v8864
      %v8866 = vpop.f32.mrf.mxu0
      %v8867 = vadd.f32 0.0, %v8866
      %v8868 = vpop.f32.mrf.mxu0
      %v8869 = vadd.f32 0.0, %v8868
      %v8870 = vpop.f32.mrf.mxu0
      %v8871 = vadd.f32 0.0, %v8870
      %8872 = vmatprep.mubr.bf16.mxu0 0
      %8873 = vmatmul.mubr.bf16.gmra.mxu0 %v8744
      %v8874 = vpop.f32.mrf.mxu0
      %v8875 = vadd.f32 0.0, %v8874
      %v8876 = vpop.f32.mrf.mxu0
      %v8877 = vadd.f32 0.0, %v8876
      %v8878 = vpop.f32.mrf.mxu0
      %v8879 = vadd.f32 0.0, %v8878
      %v8880 = vpop.f32.mrf.mxu0
      %v8881 = vadd.f32 0.0, %v8880
      %8882 = vmatprep.mubr.bf16.mxu0 0
      %8883 = vmatmul.mubr.bf16.gmra.mxu0 %v8747
      %v8884 = vpop.f32.mrf.mxu0
      %v8885 = vadd.f32 0.0, %v8884
      %v8886 = vpop.f32.mrf.mxu0
      %v8887 = vadd.f32 0.0, %v8886
      %v8888 = vpop.f32.mrf.mxu0
      %v8889 = vadd.f32 0.0, %v8888
      %v8890 = vpop.f32.mrf.mxu0
      %v8891 = vadd.f32 0.0, %v8890
      %8892 = vmatprep.mubr.bf16.mxu0 0
      %8893 = vmatmul.mubr.bf16.gmra.mxu0 %v8750
      %v8894 = vpop.f32.mrf.mxu0
      %v8895 = vadd.f32 0.0, %v8894
      %v8896 = vpop.f32.mrf.mxu0
      %v8897 = vadd.f32 0.0, %v8896
      %v8898 = vpop.f32.mrf.mxu0
      %v8899 = vadd.f32 0.0, %v8898
      %v8900 = vpop.f32.mrf.mxu0
      %v8901 = vadd.f32 0.0, %v8900
      %8902 = vmatprep.mubr.bf16.mxu0 0
      %8903 = vmatmul.mubr.bf16.gmra.mxu0 %v8753
      %v8904 = vpop.f32.mrf.mxu0
      %v8905 = vadd.f32 0.0, %v8904
      %v8906 = vpop.f32.mrf.mxu0
      %v8907 = vadd.f32 0.0, %v8906
      %v8908 = vpop.f32.mrf.mxu0
      %v8909 = vadd.f32 0.0, %v8908
      %v8910 = vpop.f32.mrf.mxu0
      %v8911 = vadd.f32 0.0, %v8910
      %8912 = vmatprep.mubr.bf16.mxu0 0
      %8913 = vmatmul.mubr.bf16.gmra.mxu0 %v8756
      %v8914 = vpop.f32.mrf.mxu0
      %v8915 = vadd.f32 0.0, %v8914
      %v8916 = vpop.f32.mrf.mxu0
      %v8917 = vadd.f32 0.0, %v8916
      %v8918 = vpop.f32.mrf.mxu0
      %v8919 = vadd.f32 0.0, %v8918
      %v8920 = vpop.f32.mrf.mxu0
      %v8921 = vadd.f32 0.0, %v8920
      %8922 = vmatprep.mubr.bf16.mxu0 0
      %8923 = vmatmul.mubr.bf16.gmra.mxu0 %v8759
      %v8924 = vpop.f32.mrf.mxu0
      %v8925 = vadd.f32 0.0, %v8924
      %v8926 = vpop.f32.mrf.mxu0
      %v8927 = vadd.f32 0.0, %v8926
      %v8928 = vpop.f32.mrf.mxu0
      %v8929 = vadd.f32 0.0, %v8928
      %v8930 = vpop.f32.mrf.mxu0
      %v8931 = vadd.f32 0.0, %v8930
      %8932 = vmatprep.mubr.bf16.mxu0 0
      %8933 = vmatmul.mubr.bf16.gmra.mxu0 %v8762
      %v8934 = vpop.f32.mrf.mxu0
      %v8935 = vadd.f32 0.0, %v8934
      %v8936 = vpop.f32.mrf.mxu0
      %v8937 = vadd.f32 0.0, %v8936
      %v8938 = vpop.f32.mrf.mxu0
      %v8939 = vadd.f32 0.0, %v8938
      %v8940 = vpop.f32.mrf.mxu0
      %v8941 = vadd.f32 0.0, %v8940
      %8942 = vmatprep.mubr.bf16.mxu0 0
      %8943 = vmatmul.mubr.bf16.gmra.mxu0 %v8765
      %v8944 = vpop.f32.mrf.mxu0
      %v8945 = vadd.f32 0.0, %v8944
      %v8946 = vpop.f32.mrf.mxu0
      %v8947 = vadd.f32 0.0, %v8946
      %v8948 = vpop.f32.mrf.mxu0
      %v8949 = vadd.f32 0.0, %v8948
      %v8950 = vpop.f32.mrf.mxu0
      %v8951 = vadd.f32 0.0, %v8950
      %8952 = vmatprep.mubr.bf16.mxu0 0
      %8953 = vmatmul.mubr.bf16.gmra.mxu0 %v8768
      %v8954 = vpop.f32.mrf.mxu0
      %v8955 = vadd.f32 0.0, %v8954
      %v8956 = vpop.f32.mrf.mxu0
      %v8957 = vadd.f32 0.0, %v8956
      %v8958 = vpop.f32.mrf.mxu0
      %v8959 = vadd.f32 0.0, %v8958
      %v8960 = vpop.f32.mrf.mxu0
      %v8961 = vadd.f32 0.0, %v8960
      %8962 = vdwg.mxu0
      %v8965 = vunpack.c.l.b16 %v8608
      %v8966 = vunpack.c.l.b16 %v8609
      %v8967 = vpack.c.b16 %v8966, %v8965
      %v8969 = vsel %vm440, %v8967, 0
      %8971 = vmatprep.subr.bf16.mxu0 0
      %8972 = vmatpush1.bf16.msra.mxu0 0
      %8973 = vmatprep.subr.bf16.mxu0 0
      %8974 = vmatpush1.bf16.msra.mxu0 0
      %8975 = vmatprep.subr.bf16.mxu0 0
      %8976 = vmatpush1.bf16.msra.mxu0 0
      %8977 = vmatprep.subr.bf16.mxu0 0
      %8978 = vmatpush1.bf16.msra.mxu0 0
      %8979 = vmatprep.subr.bf16.mxu0 0
      %8980 = vmatpush1.bf16.msra.mxu0 0
      %8981 = vmatprep.subr.bf16.mxu0 0
      %8982 = vmatpush1.bf16.msra.mxu0 0
      %8983 = vmatprep.subr.bf16.mxu0 0
      %8984 = vmatpush1.bf16.msra.mxu0 0
      %8985 = vmatprep.subr.bf16.mxu0 %v709
      %8986 = vmatpush1.bf16.msra.mxu0 %v706
      %8987 = vmatprep.subr.bf16.mxu0 0
      %8988 = vmatpush2.bf16.msra.mxu0 0
      %8989 = vmatprep.subr.bf16.mxu0 0
      %8990 = vmatpush2.bf16.msra.mxu0 0
      %8991 = vmatprep.subr.bf16.mxu0 0
      %8992 = vmatpush2.bf16.msra.mxu0 0
      %8993 = vmatprep.subr.bf16.mxu0 0
      %8994 = vmatpush2.bf16.msra.mxu0 0
      %8995 = vmatprep.subr.bf16.mxu0 0
      %8996 = vmatpush2.bf16.msra.mxu0 0
      %8997 = vmatprep.subr.bf16.mxu0 0
      %8998 = vmatpush2.bf16.msra.mxu0 0
      %8999 = vmatprep.subr.bf16.mxu0 0
      %9000 = vmatpush2.bf16.msra.mxu0 0
      %9001 = vmatprep.subr.bf16.mxu0 0
      %9002 = vmatpush2.bf16.msra.mxu0 0
      %9003 = vmatprep.mubr.bf16.mxu0 0
      %9004 = vmatmul.mubr.bf16.gmra.mxu0 %v8969
      %v9005 = vpop.f32.mrf.mxu0
      %v9006 = vadd.f32 %v8805, %v9005
      %v9007 = vpop.f32.mrf.mxu0
      %v9008 = vadd.f32 %v8807, %v9007
      %v9009 = vpop.f32.mrf.mxu0
      %v9010 = vadd.f32 %v8809, %v9009
      %v9011 = vpop.f32.mrf.mxu0
      %v9012 = vadd.f32 %v8811, %v9011
      %9013 = vmatprep.mubr.bf16.mxu0 0
      %9014 = vmatmul.mubr.bf16.gmra.mxu0 %v8723
      %v9015 = vpop.f32.mrf.mxu0
      %v9016 = vadd.f32 %v8815, %v9015
      %v9017 = vpop.f32.mrf.mxu0
      %v9018 = vadd.f32 %v8817, %v9017
      %v9019 = vpop.f32.mrf.mxu0
      %v9020 = vadd.f32 %v8819, %v9019
      %v9021 = vpop.f32.mrf.mxu0
      %v9022 = vadd.f32 %v8821, %v9021
      %9023 = vmatprep.mubr.bf16.mxu0 0
      %9024 = vmatmul.mubr.bf16.gmra.mxu0 %v8726
      %v9025 = vpop.f32.mrf.mxu0
      %v9026 = vadd.f32 %v8825, %v9025
      %v9027 = vpop.f32.mrf.mxu0
      %v9028 = vadd.f32 %v8827, %v9027
      %v9029 = vpop.f32.mrf.mxu0
      %v9030 = vadd.f32 %v8829, %v9029
      %v9031 = vpop.f32.mrf.mxu0
      %v9032 = vadd.f32 %v8831, %v9031
      %9033 = vmatprep.mubr.bf16.mxu0 0
      %9034 = vmatmul.mubr.bf16.gmra.mxu0 %v8729
      %v9035 = vpop.f32.mrf.mxu0
      %v9036 = vadd.f32 %v8835, %v9035
      %v9037 = vpop.f32.mrf.mxu0
      %v9038 = vadd.f32 %v8837, %v9037
      %v9039 = vpop.f32.mrf.mxu0
      %v9040 = vadd.f32 %v8839, %v9039
      %v9041 = vpop.f32.mrf.mxu0
      %v9042 = vadd.f32 %v8841, %v9041
      %9043 = vmatprep.mubr.bf16.mxu0 0
      %9044 = vmatmul.mubr.bf16.gmra.mxu0 %v8732
      %v9045 = vpop.f32.mrf.mxu0
      %v9046 = vadd.f32 %v8845, %v9045
      %v9047 = vpop.f32.mrf.mxu0
      %v9048 = vadd.f32 %v8847, %v9047
      %v9049 = vpop.f32.mrf.mxu0
      %v9050 = vadd.f32 %v8849, %v9049
      %v9051 = vpop.f32.mrf.mxu0
      %v9052 = vadd.f32 %v8851, %v9051
      %9053 = vmatprep.mubr.bf16.mxu0 0
      %9054 = vmatmul.mubr.bf16.gmra.mxu0 %v8735
      %v9055 = vpop.f32.mrf.mxu0
      %v9056 = vadd.f32 %v8855, %v9055
      %v9057 = vpop.f32.mrf.mxu0
      %v9058 = vadd.f32 %v8857, %v9057
      %v9059 = vpop.f32.mrf.mxu0
      %v9060 = vadd.f32 %v8859, %v9059
      %v9061 = vpop.f32.mrf.mxu0
      %v9062 = vadd.f32 %v8861, %v9061
      %9063 = vmatprep.mubr.bf16.mxu0 0
      %9064 = vmatmul.mubr.bf16.gmra.mxu0 %v8738
      %v9065 = vpop.f32.mrf.mxu0
      %v9066 = vadd.f32 %v8865, %v9065
      %v9067 = vpop.f32.mrf.mxu0
      %v9068 = vadd.f32 %v8867, %v9067
      %v9069 = vpop.f32.mrf.mxu0
      %v9070 = vadd.f32 %v8869, %v9069
      %v9071 = vpop.f32.mrf.mxu0
      %v9072 = vadd.f32 %v8871, %v9071
      %9073 = vmatprep.mubr.bf16.mxu0 0
      %9074 = vmatmul.mubr.bf16.gmra.mxu0 %v8741
      %v9075 = vpop.f32.mrf.mxu0
      %v9076 = vadd.f32 %v8875, %v9075
      %v9077 = vpop.f32.mrf.mxu0
      %v9078 = vadd.f32 %v8877, %v9077
      %v9079 = vpop.f32.mrf.mxu0
      %v9080 = vadd.f32 %v8879, %v9079
      %v9081 = vpop.f32.mrf.mxu0
      %v9082 = vadd.f32 %v8881, %v9081
      %9083 = vmatprep.mubr.bf16.mxu0 0
      %9084 = vmatmul.mubr.bf16.gmra.mxu0 %v8744
      %v9085 = vpop.f32.mrf.mxu0
      %v9086 = vadd.f32 %v8885, %v9085
      %v9087 = vpop.f32.mrf.mxu0
      %v9088 = vadd.f32 %v8887, %v9087
      %v9089 = vpop.f32.mrf.mxu0
      %v9090 = vadd.f32 %v8889, %v9089
      %v9091 = vpop.f32.mrf.mxu0
      %v9092 = vadd.f32 %v8891, %v9091
      %9093 = vmatprep.mubr.bf16.mxu0 0
      %9094 = vmatmul.mubr.bf16.gmra.mxu0 %v8747
      %v9095 = vpop.f32.mrf.mxu0
      %v9096 = vadd.f32 %v8895, %v9095
      %v9097 = vpop.f32.mrf.mxu0
      %v9098 = vadd.f32 %v8897, %v9097
      %v9099 = vpop.f32.mrf.mxu0
      %v9100 = vadd.f32 %v8899, %v9099
      %v9101 = vpop.f32.mrf.mxu0
      %v9102 = vadd.f32 %v8901, %v9101
      %9103 = vmatprep.mubr.bf16.mxu0 0
      %9104 = vmatmul.mubr.bf16.gmra.mxu0 %v8750
      %v9105 = vpop.f32.mrf.mxu0
      %v9106 = vadd.f32 %v8905, %v9105
      %v9107 = vpop.f32.mrf.mxu0
      %v9108 = vadd.f32 %v8907, %v9107
      %v9109 = vpop.f32.mrf.mxu0
      %v9110 = vadd.f32 %v8909, %v9109
      %v9111 = vpop.f32.mrf.mxu0
      %v9112 = vadd.f32 %v8911, %v9111
      %9113 = vmatprep.mubr.bf16.mxu0 0
      %9114 = vmatmul.mubr.bf16.gmra.mxu0 %v8753
      %v9115 = vpop.f32.mrf.mxu0
      %v9116 = vadd.f32 %v8915, %v9115
      %v9117 = vpop.f32.mrf.mxu0
      %v9118 = vadd.f32 %v8917, %v9117
      %v9119 = vpop.f32.mrf.mxu0
      %v9120 = vadd.f32 %v8919, %v9119
      %v9121 = vpop.f32.mrf.mxu0
      %v9122 = vadd.f32 %v8921, %v9121
      %9123 = vmatprep.mubr.bf16.mxu0 0
      %9124 = vmatmul.mubr.bf16.gmra.mxu0 %v8756
      %v9125 = vpop.f32.mrf.mxu0
      %v9126 = vadd.f32 %v8925, %v9125
      %v9127 = vpop.f32.mrf.mxu0
      %v9128 = vadd.f32 %v8927, %v9127
      %v9129 = vpop.f32.mrf.mxu0
      %v9130 = vadd.f32 %v8929, %v9129
      %v9131 = vpop.f32.mrf.mxu0
      %v9132 = vadd.f32 %v8931, %v9131
      %9133 = vmatprep.mubr.bf16.mxu0 0
      %9134 = vmatmul.mubr.bf16.gmra.mxu0 %v8759
      %v9135 = vpop.f32.mrf.mxu0
      %v9136 = vadd.f32 %v8935, %v9135
      %v9137 = vpop.f32.mrf.mxu0
      %v9138 = vadd.f32 %v8937, %v9137
      %v9139 = vpop.f32.mrf.mxu0
      %v9140 = vadd.f32 %v8939, %v9139
      %v9141 = vpop.f32.mrf.mxu0
      %v9142 = vadd.f32 %v8941, %v9141
      %9143 = vmatprep.mubr.bf16.mxu0 0
      %9144 = vmatmul.mubr.bf16.gmra.mxu0 %v8762
      %v9145 = vpop.f32.mrf.mxu0
      %v9146 = vadd.f32 %v8945, %v9145
      %v9147 = vpop.f32.mrf.mxu0
      %v9148 = vadd.f32 %v8947, %v9147
      %v9149 = vpop.f32.mrf.mxu0
      %v9150 = vadd.f32 %v8949, %v9149
      %v9151 = vpop.f32.mrf.mxu0
      %v9152 = vadd.f32 %v8951, %v9151
      %9153 = vmatprep.mubr.bf16.mxu0 0
      %9154 = vmatmul.mubr.bf16.gmra.mxu0 %v8765
      %v9155 = vpop.f32.mrf.mxu0
      %v9156 = vadd.f32 %v8955, %v9155
      %v9157 = vpop.f32.mrf.mxu0
      %v9158 = vadd.f32 %v8957, %v9157
      %v9159 = vpop.f32.mrf.mxu0
      %v9160 = vadd.f32 %v8959, %v9159
      %v9161 = vpop.f32.mrf.mxu0
      %v9162 = vadd.f32 %v8961, %v9161
      %9163 = vdwg.mxu0
      %v9164 = vld [vmem:[%s8607 + $0x10] sm:$0xf]
      %v9165 = vld [vmem:[%s8607 + $0x14] sm:$0xf]
      %v9166 = vld [vmem:[%s8607 + $0x18] sm:$0xf]
      %v9167 = vld [vmem:[%s8607 + $0x1c] sm:$0xf]
      %v9168 = vld [vmem:[%s8607 + $0x20] sm:$0xf]
      %v9169 = vld [vmem:[%s8607 + $0x24] sm:$0xf]
      %v9170 = vld [vmem:[%s8607 + $0x28] sm:$0xf]
      %v9171 = vld [vmem:[%s8607 + $0x2c] sm:$0xf]
      %v9172 = vld [vmem:[%s8607 + $0x30] sm:$0xf]
      %v9173 = vld [vmem:[%s8607 + $0x34] sm:$0xf]
      %v9174 = vld [vmem:[%s8607 + $0x38] sm:$0xf]
      %v9175 = vld [vmem:[%s8607 + $0x3c] sm:$0xf]
      %v9176 = vld [vmem:[%s8607 + $0x40] sm:$0xf]
      %v9177 = vld [vmem:[%s8607 + $0x44] sm:$0xf]
      %v9178 = vld [vmem:[%s8607 + $0x48] sm:$0xf]
      %v9179 = vld [vmem:[%s8607 + $0x4c] sm:$0xf]
      %v9180 = vld [vmem:[%s8607 + $0x50] sm:$0xf]
      %v9181 = vld [vmem:[%s8607 + $0x54] sm:$0xf]
      %v9182 = vld [vmem:[%s8607 + $0x58] sm:$0xf]
      %v9183 = vld [vmem:[%s8607 + $0x5c] sm:$0xf]
      %v9184 = vld [vmem:[%s8607 + $0x60] sm:$0xf]
      %v9185 = vld [vmem:[%s8607 + $0x64] sm:$0xf]
      %v9186 = vld [vmem:[%s8607 + $0x68] sm:$0xf]
      %v9187 = vld [vmem:[%s8607 + $0x6c] sm:$0xf]
      %v9188 = vld [vmem:[%s8607 + $0x70] sm:$0xf]
      %v9189 = vld [vmem:[%s8607 + $0x74] sm:$0xf]
      %v9190 = vld [vmem:[%s8607 + $0x78] sm:$0xf]
      %v9191 = vld [vmem:[%s8607 + $0x7c] sm:$0xf]
      %v9192 = vld [vmem:[%s8607 + $0x80] sm:$0xf]
      %v9193 = vld [vmem:[%s8607 + $0x84] sm:$0xf]
      %v9194 = vld [vmem:[%s8607 + $0x88] sm:$0xf]
      %v9195 = vld [vmem:[%s8607 + $0x8c] sm:$0xf]
      %v9228 = vunpack.c.l.b16 %v9164
      %v9229 = vunpack.c.l.b16 %v9165
      %v9230 = vunpack.c.l.b16 %v9166
      %v9231 = vunpack.c.l.b16 %v9167
      %v9232 = vunpack.c.l.b16 %v9168
      %v9233 = vunpack.c.l.b16 %v9169
      %v9234 = vunpack.c.l.b16 %v9170
      %v9235 = vunpack.c.l.b16 %v9171
      %v9236 = vunpack.c.l.b16 %v9172
      %v9237 = vunpack.c.l.b16 %v9173
      %v9238 = vunpack.c.l.b16 %v9174
      %v9239 = vunpack.c.l.b16 %v9175
      %v9240 = vunpack.c.l.b16 %v9176
      %v9241 = vunpack.c.l.b16 %v9177
      %v9242 = vunpack.c.l.b16 %v9178
      %v9243 = vunpack.c.l.b16 %v9179
      %v9244 = vunpack.c.l.b16 %v9180
      %v9245 = vunpack.c.l.b16 %v9181
      %v9246 = vunpack.c.l.b16 %v9182
      %v9247 = vunpack.c.l.b16 %v9183
      %v9248 = vunpack.c.l.b16 %v9184
      %v9249 = vunpack.c.l.b16 %v9185
      %v9250 = vunpack.c.l.b16 %v9186
      %v9251 = vunpack.c.l.b16 %v9187
      %v9252 = vunpack.c.l.b16 %v9188
      %v9253 = vunpack.c.l.b16 %v9189
      %v9254 = vunpack.c.l.b16 %v9190
      %v9255 = vunpack.c.l.b16 %v9191
      %v9256 = vunpack.c.l.b16 %v9192
      %v9257 = vunpack.c.l.b16 %v9193
      %v9258 = vunpack.c.l.b16 %v9194
      %v9259 = vunpack.c.l.b16 %v9195
      %v9260 = vpack.c.b16 %v9229, %v9228
      %v9261 = vpack.c.b16 %v9231, %v9230
      %v9262 = vpack.c.b16 %v9233, %v9232
      %v9263 = vpack.c.b16 %v9235, %v9234
      %v9264 = vpack.c.b16 %v9237, %v9236
      %v9265 = vpack.c.b16 %v9239, %v9238
      %v9266 = vpack.c.b16 %v9241, %v9240
      %v9267 = vpack.c.b16 %v9243, %v9242
      %v9268 = vpack.c.b16 %v9245, %v9244
      %v9269 = vpack.c.b16 %v9247, %v9246
      %v9270 = vpack.c.b16 %v9249, %v9248
      %v9271 = vpack.c.b16 %v9251, %v9250
      %v9272 = vpack.c.b16 %v9253, %v9252
      %v9273 = vpack.c.b16 %v9255, %v9254
      %v9274 = vpack.c.b16 %v9257, %v9256
      %v9275 = vpack.c.b16 %v9259, %v9258
      %v9277 = vsel %vm440, %v9260, 0
      %v9280 = vsel %vm440, %v9261, 0
      %v9283 = vsel %vm440, %v9262, 0
      %v9286 = vsel %vm440, %v9263, 0
      %v9289 = vsel %vm440, %v9264, 0
      %v9292 = vsel %vm440, %v9265, 0
      %v9295 = vsel %vm440, %v9266, 0
      %v9298 = vsel %vm440, %v9267, 0
      %v9301 = vsel %vm440, %v9268, 0
      %v9304 = vsel %vm440, %v9269, 0
      %v9307 = vsel %vm440, %v9270, 0
      %v9310 = vsel %vm440, %v9271, 0
      %v9313 = vsel %vm440, %v9272, 0
      %v9316 = vsel %vm440, %v9273, 0
      %v9319 = vsel %vm440, %v9274, 0
      %v9322 = vsel %vm440, %v9275, 0
      %9324 = vmatprep.subr.bf16.mxu0 0
      %9325 = vmatpush1.bf16.msra.mxu0 0
      %9326 = vmatprep.subr.bf16.mxu0 0
      %9327 = vmatpush1.bf16.msra.mxu0 0
      %9328 = vmatprep.subr.bf16.mxu0 0
      %9329 = vmatpush1.bf16.msra.mxu0 0
      %9330 = vmatprep.subr.bf16.mxu0 0
      %9331 = vmatpush1.bf16.msra.mxu0 0
      %9332 = vmatprep.subr.bf16.mxu0 0
      %9333 = vmatpush1.bf16.msra.mxu0 0
      %9334 = vmatprep.subr.bf16.mxu0 0
      %9335 = vmatpush1.bf16.msra.mxu0 0
      %9336 = vmatprep.subr.bf16.mxu0 0
      %9337 = vmatpush1.bf16.msra.mxu0 0
      %9338 = vmatprep.subr.bf16.mxu0 %v1079
      %9339 = vmatpush1.bf16.msra.mxu0 %v1076
      %9340 = vmatprep.subr.bf16.mxu0 0
      %9341 = vmatpush2.bf16.msra.mxu0 0
      %9342 = vmatprep.subr.bf16.mxu0 0
      %9343 = vmatpush2.bf16.msra.mxu0 0
      %9344 = vmatprep.subr.bf16.mxu0 0
      %9345 = vmatpush2.bf16.msra.mxu0 0
      %9346 = vmatprep.subr.bf16.mxu0 0
      %9347 = vmatpush2.bf16.msra.mxu0 0
      %9348 = vmatprep.subr.bf16.mxu0 0
      %9349 = vmatpush2.bf16.msra.mxu0 0
      %9350 = vmatprep.subr.bf16.mxu0 0
      %9351 = vmatpush2.bf16.msra.mxu0 0
      %9352 = vmatprep.subr.bf16.mxu0 0
      %9353 = vmatpush2.bf16.msra.mxu0 0
      %9354 = vmatprep.subr.bf16.mxu0 0
      %9355 = vmatpush2.bf16.msra.mxu0 0
      %9356 = vmatprep.mubr.bf16.mxu0 0
      %9357 = vmatmul.mubr.bf16.gmra.mxu0 %v9277
      %v9358 = vpop.f32.mrf.mxu0
      %v9359 = vadd.f32 0.0, %v9358
      %v9360 = vpop.f32.mrf.mxu0
      %v9361 = vadd.f32 0.0, %v9360
      %v9362 = vpop.f32.mrf.mxu0
      %v9363 = vadd.f32 0.0, %v9362
      %v9364 = vpop.f32.mrf.mxu0
      %v9365 = vadd.f32 0.0, %v9364
      %9366 = vmatprep.mubr.bf16.mxu0 0
      %9367 = vmatmul.mubr.bf16.gmra.mxu0 %v9280
      %v9368 = vpop.f32.mrf.mxu0
      %v9369 = vadd.f32 0.0, %v9368
      %v9370 = vpop.f32.mrf.mxu0
      %v9371 = vadd.f32 0.0, %v9370
      %v9372 = vpop.f32.mrf.mxu0
      %v9373 = vadd.f32 0.0, %v9372
      %v9374 = vpop.f32.mrf.mxu0
      %v9375 = vadd.f32 0.0, %v9374
      %9376 = vmatprep.mubr.bf16.mxu0 0
      %9377 = vmatmul.mubr.bf16.gmra.mxu0 %v9283
      %v9378 = vpop.f32.mrf.mxu0
      %v9379 = vadd.f32 0.0, %v9378
      %v9380 = vpop.f32.mrf.mxu0
      %v9381 = vadd.f32 0.0, %v9380
      %v9382 = vpop.f32.mrf.mxu0
      %v9383 = vadd.f32 0.0, %v9382
      %v9384 = vpop.f32.mrf.mxu0
      %v9385 = vadd.f32 0.0, %v9384
      %9386 = vmatprep.mubr.bf16.mxu0 0
      %9387 = vmatmul.mubr.bf16.gmra.mxu0 %v9286
      %v9388 = vpop.f32.mrf.mxu0
      %v9389 = vadd.f32 0.0, %v9388
      %v9390 = vpop.f32.mrf.mxu0
      %v9391 = vadd.f32 0.0, %v9390
      %v9392 = vpop.f32.mrf.mxu0
      %v9393 = vadd.f32 0.0, %v9392
      %v9394 = vpop.f32.mrf.mxu0
      %v9395 = vadd.f32 0.0, %v9394
      %9396 = vmatprep.mubr.bf16.mxu0 0
      %9397 = vmatmul.mubr.bf16.gmra.mxu0 %v9289
      %v9398 = vpop.f32.mrf.mxu0
      %v9399 = vadd.f32 0.0, %v9398
      %v9400 = vpop.f32.mrf.mxu0
      %v9401 = vadd.f32 0.0, %v9400
      %v9402 = vpop.f32.mrf.mxu0
      %v9403 = vadd.f32 0.0, %v9402
      %v9404 = vpop.f32.mrf.mxu0
      %v9405 = vadd.f32 0.0, %v9404
      %9406 = vmatprep.mubr.bf16.mxu0 0
      %9407 = vmatmul.mubr.bf16.gmra.mxu0 %v9292
      %v9408 = vpop.f32.mrf.mxu0
      %v9409 = vadd.f32 0.0, %v9408
      %v9410 = vpop.f32.mrf.mxu0
      %v9411 = vadd.f32 0.0, %v9410
      %v9412 = vpop.f32.mrf.mxu0
      %v9413 = vadd.f32 0.0, %v9412
      %v9414 = vpop.f32.mrf.mxu0
      %v9415 = vadd.f32 0.0, %v9414
      %9416 = vmatprep.mubr.bf16.mxu0 0
      %9417 = vmatmul.mubr.bf16.gmra.mxu0 %v9295
      %v9418 = vpop.f32.mrf.mxu0
      %v9419 = vadd.f32 0.0, %v9418
      %v9420 = vpop.f32.mrf.mxu0
      %v9421 = vadd.f32 0.0, %v9420
      %v9422 = vpop.f32.mrf.mxu0
      %v9423 = vadd.f32 0.0, %v9422
      %v9424 = vpop.f32.mrf.mxu0
      %v9425 = vadd.f32 0.0, %v9424
      %9426 = vmatprep.mubr.bf16.mxu0 0
      %9427 = vmatmul.mubr.bf16.gmra.mxu0 %v9298
      %v9428 = vpop.f32.mrf.mxu0
      %v9429 = vadd.f32 0.0, %v9428
      %v9430 = vpop.f32.mrf.mxu0
      %v9431 = vadd.f32 0.0, %v9430
      %v9432 = vpop.f32.mrf.mxu0
      %v9433 = vadd.f32 0.0, %v9432
      %v9434 = vpop.f32.mrf.mxu0
      %v9435 = vadd.f32 0.0, %v9434
      %9436 = vmatprep.mubr.bf16.mxu0 0
      %9437 = vmatmul.mubr.bf16.gmra.mxu0 %v9301
      %v9438 = vpop.f32.mrf.mxu0
      %v9439 = vadd.f32 0.0, %v9438
      %v9440 = vpop.f32.mrf.mxu0
      %v9441 = vadd.f32 0.0, %v9440
      %v9442 = vpop.f32.mrf.mxu0
      %v9443 = vadd.f32 0.0, %v9442
      %v9444 = vpop.f32.mrf.mxu0
      %v9445 = vadd.f32 0.0, %v9444
      %9446 = vmatprep.mubr.bf16.mxu0 0
      %9447 = vmatmul.mubr.bf16.gmra.mxu0 %v9304
      %v9448 = vpop.f32.mrf.mxu0
      %v9449 = vadd.f32 0.0, %v9448
      %v9450 = vpop.f32.mrf.mxu0
      %v9451 = vadd.f32 0.0, %v9450
      %v9452 = vpop.f32.mrf.mxu0
      %v9453 = vadd.f32 0.0, %v9452
      %v9454 = vpop.f32.mrf.mxu0
      %v9455 = vadd.f32 0.0, %v9454
      %9456 = vmatprep.mubr.bf16.mxu0 0
      %9457 = vmatmul.mubr.bf16.gmra.mxu0 %v9307
      %v9458 = vpop.f32.mrf.mxu0
      %v9459 = vadd.f32 0.0, %v9458
      %v9460 = vpop.f32.mrf.mxu0
      %v9461 = vadd.f32 0.0, %v9460
      %v9462 = vpop.f32.mrf.mxu0
      %v9463 = vadd.f32 0.0, %v9462
      %v9464 = vpop.f32.mrf.mxu0
      %v9465 = vadd.f32 0.0, %v9464
      %9466 = vmatprep.mubr.bf16.mxu0 0
      %9467 = vmatmul.mubr.bf16.gmra.mxu0 %v9310
      %v9468 = vpop.f32.mrf.mxu0
      %v9469 = vadd.f32 0.0, %v9468
      %v9470 = vpop.f32.mrf.mxu0
      %v9471 = vadd.f32 0.0, %v9470
      %v9472 = vpop.f32.mrf.mxu0
      %v9473 = vadd.f32 0.0, %v9472
      %v9474 = vpop.f32.mrf.mxu0
      %v9475 = vadd.f32 0.0, %v9474
      %9476 = vmatprep.mubr.bf16.mxu0 0
      %9477 = vmatmul.mubr.bf16.gmra.mxu0 %v9313
      %v9478 = vpop.f32.mrf.mxu0
      %v9479 = vadd.f32 0.0, %v9478
      %v9480 = vpop.f32.mrf.mxu0
      %v9481 = vadd.f32 0.0, %v9480
      %v9482 = vpop.f32.mrf.mxu0
      %v9483 = vadd.f32 0.0, %v9482
      %v9484 = vpop.f32.mrf.mxu0
      %v9485 = vadd.f32 0.0, %v9484
      %9486 = vmatprep.mubr.bf16.mxu0 0
      %9487 = vmatmul.mubr.bf16.gmra.mxu0 %v9316
      %v9488 = vpop.f32.mrf.mxu0
      %v9489 = vadd.f32 0.0, %v9488
      %v9490 = vpop.f32.mrf.mxu0
      %v9491 = vadd.f32 0.0, %v9490
      %v9492 = vpop.f32.mrf.mxu0
      %v9493 = vadd.f32 0.0, %v9492
      %v9494 = vpop.f32.mrf.mxu0
      %v9495 = vadd.f32 0.0, %v9494
      %9496 = vmatprep.mubr.bf16.mxu0 0
      %9497 = vmatmul.mubr.bf16.gmra.mxu0 %v9319
      %v9498 = vpop.f32.mrf.mxu0
      %v9499 = vadd.f32 0.0, %v9498
      %v9500 = vpop.f32.mrf.mxu0
      %v9501 = vadd.f32 0.0, %v9500
      %v9502 = vpop.f32.mrf.mxu0
      %v9503 = vadd.f32 0.0, %v9502
      %v9504 = vpop.f32.mrf.mxu0
      %v9505 = vadd.f32 0.0, %v9504
      %9506 = vmatprep.mubr.bf16.mxu0 0
      %9507 = vmatmul.mubr.bf16.gmra.mxu0 %v9322
      %v9508 = vpop.f32.mrf.mxu0
      %v9509 = vadd.f32 0.0, %v9508
      %v9510 = vpop.f32.mrf.mxu0
      %v9511 = vadd.f32 0.0, %v9510
      %v9512 = vpop.f32.mrf.mxu0
      %v9513 = vadd.f32 0.0, %v9512
      %v9514 = vpop.f32.mrf.mxu0
      %v9515 = vadd.f32 0.0, %v9514
      %9516 = vdwg.mxu0
      %v9517 = vadd.f32 %v9006, %v9359
      %v9518 = vadd.f32 %v9008, %v9361
      %v9519 = vadd.f32 %v9010, %v9363
      %v9520 = vadd.f32 %v9012, %v9365
      %v9521 = vadd.f32 %v9016, %v9369
      %v9522 = vadd.f32 %v9018, %v9371
      %v9523 = vadd.f32 %v9020, %v9373
      %v9524 = vadd.f32 %v9022, %v9375
      %v9525 = vadd.f32 %v9026, %v9379
      %v9526 = vadd.f32 %v9028, %v9381
      %v9527 = vadd.f32 %v9030, %v9383
      %v9528 = vadd.f32 %v9032, %v9385
      %v9529 = vadd.f32 %v9036, %v9389
      %v9530 = vadd.f32 %v9038, %v9391
      %v9531 = vadd.f32 %v9040, %v9393
      %v9532 = vadd.f32 %v9042, %v9395
      %v9533 = vadd.f32 %v9046, %v9399
      %v9534 = vadd.f32 %v9048, %v9401
      %v9535 = vadd.f32 %v9050, %v9403
      %v9536 = vadd.f32 %v9052, %v9405
      %v9537 = vadd.f32 %v9056, %v9409
      %v9538 = vadd.f32 %v9058, %v9411
      %v9539 = vadd.f32 %v9060, %v9413
      %v9540 = vadd.f32 %v9062, %v9415
      %v9541 = vadd.f32 %v9066, %v9419
      %v9542 = vadd.f32 %v9068, %v9421
      %v9543 = vadd.f32 %v9070, %v9423
      %v9544 = vadd.f32 %v9072, %v9425
      %v9545 = vadd.f32 %v9076, %v9429
      %v9546 = vadd.f32 %v9078, %v9431
      %v9547 = vadd.f32 %v9080, %v9433
      %v9548 = vadd.f32 %v9082, %v9435
      %v9549 = vadd.f32 %v9086, %v9439
      %v9550 = vadd.f32 %v9088, %v9441
      %v9551 = vadd.f32 %v9090, %v9443
      %v9552 = vadd.f32 %v9092, %v9445
      %v9553 = vadd.f32 %v9096, %v9449
      %v9554 = vadd.f32 %v9098, %v9451
      %v9555 = vadd.f32 %v9100, %v9453
      %v9556 = vadd.f32 %v9102, %v9455
      %v9557 = vadd.f32 %v9106, %v9459
      %v9558 = vadd.f32 %v9108, %v9461
      %v9559 = vadd.f32 %v9110, %v9463
      %v9560 = vadd.f32 %v9112, %v9465
      %v9561 = vadd.f32 %v9116, %v9469
      %v9562 = vadd.f32 %v9118, %v9471
      %v9563 = vadd.f32 %v9120, %v9473
      %v9564 = vadd.f32 %v9122, %v9475
      %v9565 = vadd.f32 %v9126, %v9479
      %v9566 = vadd.f32 %v9128, %v9481
      %v9567 = vadd.f32 %v9130, %v9483
      %v9568 = vadd.f32 %v9132, %v9485
      %v9569 = vadd.f32 %v9136, %v9489
      %v9570 = vadd.f32 %v9138, %v9491
      %v9571 = vadd.f32 %v9140, %v9493
      %v9572 = vadd.f32 %v9142, %v9495
      %v9573 = vadd.f32 %v9146, %v9499
      %v9574 = vadd.f32 %v9148, %v9501
      %v9575 = vadd.f32 %v9150, %v9503
      %v9576 = vadd.f32 %v9152, %v9505
      %v9577 = vadd.f32 %v9156, %v9509
      %v9578 = vadd.f32 %v9158, %v9511
      %v9579 = vadd.f32 %v9160, %v9513
      %v9580 = vadd.f32 %v9162, %v9515
      %v9581 = vadd.f32 %v9517, %v1342
      %v9582 = vadd.f32 %v9518, %v1346
      %v9583 = vadd.f32 %v9519, %v1342
      %v9584 = vadd.f32 %v9520, %v1346
      %v9585 = vadd.f32 %v9521, %v1342
      %v9586 = vadd.f32 %v9522, %v1346
      %v9587 = vadd.f32 %v9523, %v1342
      %v9588 = vadd.f32 %v9524, %v1346
      %v9589 = vadd.f32 %v9525, %v1342
      %v9590 = vadd.f32 %v9526, %v1346
      %v9591 = vadd.f32 %v9527, %v1342
      %v9592 = vadd.f32 %v9528, %v1346
      %v9593 = vadd.f32 %v9529, %v1342
      %v9594 = vadd.f32 %v9530, %v1346
      %v9595 = vadd.f32 %v9531, %v1342
      %v9596 = vadd.f32 %v9532, %v1346
      %v9597 = vadd.f32 %v9533, %v1342
      %v9598 = vadd.f32 %v9534, %v1346
      %v9599 = vadd.f32 %v9535, %v1342
      %v9600 = vadd.f32 %v9536, %v1346
      %v9601 = vadd.f32 %v9537, %v1342
      %v9602 = vadd.f32 %v9538, %v1346
      %v9603 = vadd.f32 %v9539, %v1342
      %v9604 = vadd.f32 %v9540, %v1346
      %v9605 = vadd.f32 %v9541, %v1342
      %v9606 = vadd.f32 %v9542, %v1346
      %v9607 = vadd.f32 %v9543, %v1342
      %v9608 = vadd.f32 %v9544, %v1346
      %v9609 = vadd.f32 %v9545, %v1342
      %v9610 = vadd.f32 %v9546, %v1346
      %v9611 = vadd.f32 %v9547, %v1342
      %v9612 = vadd.f32 %v9548, %v1346
      %v9613 = vadd.f32 %v9549, %v1342
      %v9614 = vadd.f32 %v9550, %v1346
      %v9615 = vadd.f32 %v9551, %v1342
      %v9616 = vadd.f32 %v9552, %v1346
      %v9617 = vadd.f32 %v9553, %v1342
      %v9618 = vadd.f32 %v9554, %v1346
      %v9619 = vadd.f32 %v9555, %v1342
      %v9620 = vadd.f32 %v9556, %v1346
      %v9621 = vadd.f32 %v9557, %v1342
      %v9622 = vadd.f32 %v9558, %v1346
      %v9623 = vadd.f32 %v9559, %v1342
      %v9624 = vadd.f32 %v9560, %v1346
      %v9625 = vadd.f32 %v9561, %v1342
      %v9626 = vadd.f32 %v9562, %v1346
      %v9627 = vadd.f32 %v9563, %v1342
      %v9628 = vadd.f32 %v9564, %v1346
      %v9629 = vadd.f32 %v9565, %v1342
      %v9630 = vadd.f32 %v9566, %v1346
      %v9631 = vadd.f32 %v9567, %v1342
      %v9632 = vadd.f32 %v9568, %v1346
      %v9633 = vadd.f32 %v9569, %v1342
      %v9634 = vadd.f32 %v9570, %v1346
      %v9635 = vadd.f32 %v9571, %v1342
      %v9636 = vadd.f32 %v9572, %v1346
      %v9637 = vadd.f32 %v9573, %v1342
      %v9638 = vadd.f32 %v9574, %v1346
      %v9639 = vadd.f32 %v9575, %v1342
      %v9640 = vadd.f32 %v9576, %v1346
      %v9641 = vadd.f32 %v9577, %v1342
      %v9642 = vadd.f32 %v9578, %v1346
      %v9643 = vadd.f32 %v9579, %v1342
      %v9644 = vadd.f32 %v9580, %v1346
      %v9645 = vmax.f32 %v9581, 0.0
      %v9646 = vmax.f32 %v9582, 0.0
      %v9647 = vmax.f32 %v9583, 0.0
      %v9648 = vmax.f32 %v9584, 0.0
      %v9649 = vmax.f32 %v9585, 0.0
      %v9650 = vmax.f32 %v9586, 0.0
      %v9651 = vmax.f32 %v9587, 0.0
      %v9652 = vmax.f32 %v9588, 0.0
      %v9653 = vmax.f32 %v9589, 0.0
      %v9654 = vmax.f32 %v9590, 0.0
      %v9655 = vmax.f32 %v9591, 0.0
      %v9656 = vmax.f32 %v9592, 0.0
      %v9657 = vmax.f32 %v9593, 0.0
      %v9658 = vmax.f32 %v9594, 0.0
      %v9659 = vmax.f32 %v9595, 0.0
      %v9660 = vmax.f32 %v9596, 0.0
      %v9661 = vmax.f32 %v9597, 0.0
      %v9662 = vmax.f32 %v9598, 0.0
      %v9663 = vmax.f32 %v9599, 0.0
      %v9664 = vmax.f32 %v9600, 0.0
      %v9665 = vmax.f32 %v9601, 0.0
      %v9666 = vmax.f32 %v9602, 0.0
      %v9667 = vmax.f32 %v9603, 0.0
      %v9668 = vmax.f32 %v9604, 0.0
      %v9669 = vmax.f32 %v9605, 0.0
      %v9670 = vmax.f32 %v9606, 0.0
      %v9671 = vmax.f32 %v9607, 0.0
      %v9672 = vmax.f32 %v9608, 0.0
      %v9673 = vmax.f32 %v9609, 0.0
      %v9674 = vmax.f32 %v9610, 0.0
      %v9675 = vmax.f32 %v9611, 0.0
      %v9676 = vmax.f32 %v9612, 0.0
      %v9677 = vmax.f32 %v9613, 0.0
      %v9678 = vmax.f32 %v9614, 0.0
      %v9679 = vmax.f32 %v9615, 0.0
      %v9680 = vmax.f32 %v9616, 0.0
      %v9681 = vmax.f32 %v9617, 0.0
      %v9682 = vmax.f32 %v9618, 0.0
      %v9683 = vmax.f32 %v9619, 0.0
      %v9684 = vmax.f32 %v9620, 0.0
      %v9685 = vmax.f32 %v9621, 0.0
      %v9686 = vmax.f32 %v9622, 0.0
      %v9687 = vmax.f32 %v9623, 0.0
      %v9688 = vmax.f32 %v9624, 0.0
      %v9689 = vmax.f32 %v9625, 0.0
      %v9690 = vmax.f32 %v9626, 0.0
      %v9691 = vmax.f32 %v9627, 0.0
      %v9692 = vmax.f32 %v9628, 0.0
      %v9693 = vmax.f32 %v9629, 0.0
      %v9694 = vmax.f32 %v9630, 0.0
      %v9695 = vmax.f32 %v9631, 0.0
      %v9696 = vmax.f32 %v9632, 0.0
      %v9697 = vmax.f32 %v9633, 0.0
      %v9698 = vmax.f32 %v9634, 0.0
      %v9699 = vmax.f32 %v9635, 0.0
      %v9700 = vmax.f32 %v9636, 0.0
      %v9701 = vmax.f32 %v9637, 0.0
      %v9702 = vmax.f32 %v9638, 0.0
      %v9703 = vmax.f32 %v9639, 0.0
      %v9704 = vmax.f32 %v9640, 0.0
      %v9705 = vmax.f32 %v9641, 0.0
      %v9706 = vmax.f32 %v9642, 0.0
      %v9707 = vmax.f32 %v9643, 0.0
      %v9708 = vmax.f32 %v9644, 0.0
      %v9709 = vadd.f32 %v9645, %v9647
      %v9710 = vadd.f32 %v9709, %v9649
      %v9711 = vadd.f32 %v9710, %v9651
      %v9712 = vadd.f32 %v9711, %v9653
      %v9713 = vadd.f32 %v9712, %v9655
      %v9714 = vadd.f32 %v9713, %v9657
      %v9715 = vadd.f32 %v9714, %v9659
      %v9716 = vadd.f32 %v9715, %v9661
      %v9717 = vadd.f32 %v9716, %v9663
      %v9718 = vadd.f32 %v9717, %v9665
      %v9719 = vadd.f32 %v9718, %v9667
      %v9720 = vadd.f32 %v9719, %v9669
      %v9721 = vadd.f32 %v9720, %v9671
      %v9722 = vadd.f32 %v9721, %v9673
      %v9723 = vadd.f32 %v9722, %v9675
      %v9724 = vadd.f32 %v9723, %v9677
      %v9725 = vadd.f32 %v9724, %v9679
      %v9726 = vadd.f32 %v9725, %v9681
      %v9727 = vadd.f32 %v9726, %v9683
      %v9728 = vadd.f32 %v9727, %v9685
      %v9729 = vadd.f32 %v9728, %v9687
      %v9730 = vadd.f32 %v9729, %v9689
      %v9731 = vadd.f32 %v9730, %v9691
      %v9732 = vadd.f32 %v9731, %v9693
      %v9733 = vadd.f32 %v9732, %v9695
      %v9734 = vadd.f32 %v9733, %v9697
      %v9735 = vadd.f32 %v9734, %v9699
      %v9736 = vadd.f32 %v9735, %v9701
      %v9737 = vadd.f32 %v9736, %v9703
      %v9738 = vadd.f32 %v9737, %v9705
      %v9739 = vadd.f32 %v9738, %v9707
      %v9740 = vrot.slane %v9739, 4
      %v9741 = vadd.f32 %v9739, %v9740
      %v9742 = vrot.slane %v9741, 2
      %v9743 = vadd.f32 %v9741, %v9742
      %v9744 = vrot.slane %v9743, 1
      %v9745 = vadd.f32 %v9743, %v9744
      %v9746 = vadd.f32 %v9646, %v9648
      %v9747 = vadd.f32 %v9746, %v9650
      %v9748 = vadd.f32 %v9747, %v9652
      %v9749 = vadd.f32 %v9748, %v9654
      %v9750 = vadd.f32 %v9749, %v9656
      %v9751 = vadd.f32 %v9750, %v9658
      %v9752 = vadd.f32 %v9751, %v9660
      %v9753 = vadd.f32 %v9752, %v9662
      %v9754 = vadd.f32 %v9753, %v9664
      %v9755 = vadd.f32 %v9754, %v9666
      %v9756 = vadd.f32 %v9755, %v9668
      %v9757 = vadd.f32 %v9756, %v9670
      %v9758 = vadd.f32 %v9757, %v9672
      %v9759 = vadd.f32 %v9758, %v9674
      %v9760 = vadd.f32 %v9759, %v9676
      %v9761 = vadd.f32 %v9760, %v9678
      %v9762 = vadd.f32 %v9761, %v9680
      %v9763 = vadd.f32 %v9762, %v9682
      %v9764 = vadd.f32 %v9763, %v9684
      %v9765 = vadd.f32 %v9764, %v9686
      %v9766 = vadd.f32 %v9765, %v9688
      %v9767 = vadd.f32 %v9766, %v9690
      %v9768 = vadd.f32 %v9767, %v9692
      %v9769 = vadd.f32 %v9768, %v9694
      %v9770 = vadd.f32 %v9769, %v9696
      %v9771 = vadd.f32 %v9770, %v9698
      %v9772 = vadd.f32 %v9771, %v9700
      %v9773 = vadd.f32 %v9772, %v9702
      %v9774 = vadd.f32 %v9773, %v9704
      %v9775 = vadd.f32 %v9774, %v9706
      %v9776 = vadd.f32 %v9775, %v9708
      %v9777 = vrot.slane %v9776, 4
      %v9778 = vadd.f32 %v9776, %v9777
      %v9779 = vrot.slane %v9778, 2
      %v9780 = vadd.f32 %v9778, %v9779
      %v9781 = vrot.slane %v9780, 1
      %v9782 = vadd.f32 %v9780, %v9781
      %vm9783 = vcmask 1040384
      %v9784 = vsel %vm9783, %v1513, %v2689
      %v9785 = vsel %vm9783, %v1550, %v2726
      %vm9786 = vcmask 1041408
      %v9787 = vsel %vm9786, %v9784, %v3865
      %v9788 = vsel %vm9786, %v9785, %v3902
      %vm9789 = vcmask 1042432
      %v9790 = vsel %vm9789, %v9787, %v5041
      %v9791 = vsel %vm9789, %v9788, %v5078
      %vm9792 = vcmask 1043456
      %v9793 = vsel %vm9792, %v9790, %v6217
      %v9794 = vsel %vm9792, %v9791, %v6254
      %vm9795 = vcmask 1044480
      %v9796 = vsel %vm9795, %v9793, %v7393
      %v9797 = vsel %vm9795, %v9794, %v7430
      %v9798 = vsel %vm489, %v9796, %v8569
      %v9799 = vsel %vm489, %v9797, %v8606
      %vm9800 = vcmask 1046528
      %v9801 = vsel %vm9800, %v9798, %v9745
      %v9802 = vsel %vm9800, %v9799, %v9782
      %v9803 = vmul.f32 %v9801, 0.00390625
      %v9804 = vmul.f32 %v9802, 0.00390625
      %v9805 = vpack.c.bf16 %v9803, %v9803
      %v9806 = vpack.c.bf16 %v9804, %v9804
      %v9807 = vld [vmem:[%s3] sm:$0xf]
      %v9808 = vld [vmem:[%s3 + $0x4] sm:$0xf]
      %v9809 = vld [vmem:[%s3 + $0x8] sm:$0xf]
      %v9810 = vld [vmem:[%s3 + $0xc] sm:$0xf]
      %v9811 = vld [vmem:[%s3 + $0x10] sm:$0xf]
      %v9812 = vld [vmem:[%s3 + $0x14] sm:$0xf]
      %v9813 = vld [vmem:[%s3 + $0x18] sm:$0xf]
      %v9814 = vld [vmem:[%s3 + $0x1c] sm:$0xf]
      %v9815 = vld [vmem:[%s3 + $0x20] sm:$0xf]
      %v9816 = vld [vmem:[%s3 + $0x24] sm:$0xf]
      %v9817 = vld [vmem:[%s3 + $0x28] sm:$0xf]
      %v9818 = vld [vmem:[%s3 + $0x2c] sm:$0xf]
      %v9819 = vld [vmem:[%s3 + $0x30] sm:$0xf]
      %v9820 = vld [vmem:[%s3 + $0x34] sm:$0xf]
      %v9821 = vld [vmem:[%s3 + $0x38] sm:$0xf]
      %v9822 = vld [vmem:[%s3 + $0x3c] sm:$0xf]
      %v9823 = vld [vmem:[%s3 + $0x40] sm:$0xf]
      %v9824 = vld [vmem:[%s3 + $0x44] sm:$0xf]
      %v9825 = vld [vmem:[%s3 + $0x48] sm:$0xf]
      %v9826 = vld [vmem:[%s3 + $0x4c] sm:$0xf]
      %v9827 = vld [vmem:[%s3 + $0x50] sm:$0xf]
      %v9828 = vld [vmem:[%s3 + $0x54] sm:$0xf]
      %v9829 = vld [vmem:[%s3 + $0x58] sm:$0xf]
      %v9830 = vld [vmem:[%s3 + $0x5c] sm:$0xf]
      %v9831 = vld [vmem:[%s3 + $0x60] sm:$0xf]
      %v9832 = vld [vmem:[%s3 + $0x64] sm:$0xf]
      %v9833 = vld [vmem:[%s3 + $0x68] sm:$0xf]
      %v9834 = vld [vmem:[%s3 + $0x6c] sm:$0xf]
      %v9835 = vld [vmem:[%s3 + $0x70] sm:$0xf]
      %v9836 = vld [vmem:[%s3 + $0x74] sm:$0xf]
      %v9837 = vld [vmem:[%s3 + $0x78] sm:$0xf]
      %v9838 = vld [vmem:[%s3 + $0x7c] sm:$0xf]
      %v9839 = vld [vmem:[%s4] sm:$0x1]
      %v9841 = vlaneseq
      %v9842 = vshrl.u32 %v9841, 7
      %v9843 = vsub.s32 0, %v9842
      %v9844 = vrot.slane %v9839, %v9843
      %v9878 = vunpack.c.l.b16 %v9807
      %v9879 = vunpack.c.l.b16 %v9808
      %v9880 = vunpack.c.l.b16 %v9809
      %v9881 = vunpack.c.l.b16 %v9810
      %v9882 = vunpack.c.l.b16 %v9811
      %v9883 = vunpack.c.l.b16 %v9812
      %v9884 = vunpack.c.l.b16 %v9813
      %v9885 = vunpack.c.l.b16 %v9814
      %v9886 = vunpack.c.l.b16 %v9815
      %v9887 = vunpack.c.l.b16 %v9816
      %v9888 = vunpack.c.l.b16 %v9817
      %v9889 = vunpack.c.l.b16 %v9818
      %v9890 = vunpack.c.l.b16 %v9819
      %v9891 = vunpack.c.l.b16 %v9820
      %v9892 = vunpack.c.l.b16 %v9821
      %v9893 = vunpack.c.l.b16 %v9822
      %v9894 = vunpack.c.l.b16 %v9823
      %v9895 = vunpack.c.l.b16 %v9824
      %v9896 = vunpack.c.l.b16 %v9825
      %v9897 = vunpack.c.l.b16 %v9826
      %v9898 = vunpack.c.l.b16 %v9827
      %v9899 = vunpack.c.l.b16 %v9828
      %v9900 = vunpack.c.l.b16 %v9829
      %v9901 = vunpack.c.l.b16 %v9830
      %v9902 = vunpack.c.l.b16 %v9831
      %v9903 = vunpack.c.l.b16 %v9832
      %v9904 = vunpack.c.l.b16 %v9833
      %v9905 = vunpack.c.l.b16 %v9834
      %v9906 = vunpack.c.l.b16 %v9835
      %v9907 = vunpack.c.l.b16 %v9836
      %v9908 = vunpack.c.l.b16 %v9837
      %v9909 = vunpack.c.l.b16 %v9838
      %v9910 = vpack.c.b16 %v9879, %v9878
      %v9911 = vpack.c.b16 %v9881, %v9880
      %v9912 = vpack.c.b16 %v9883, %v9882
      %v9913 = vpack.c.b16 %v9885, %v9884
      %v9914 = vpack.c.b16 %v9887, %v9886
      %v9915 = vpack.c.b16 %v9889, %v9888
      %v9916 = vpack.c.b16 %v9891, %v9890
      %v9917 = vpack.c.b16 %v9893, %v9892
      %v9918 = vpack.c.b16 %v9895, %v9894
      %v9919 = vpack.c.b16 %v9897, %v9896
      %v9920 = vpack.c.b16 %v9899, %v9898
      %v9921 = vpack.c.b16 %v9901, %v9900
      %v9922 = vpack.c.b16 %v9903, %v9902
      %v9923 = vpack.c.b16 %v9905, %v9904
      %v9924 = vpack.c.b16 %v9907, %v9906
      %v9925 = vpack.c.b16 %v9909, %v9908
      %9942 = vmatprep.subr.bf16.mxu0 0
      %9943 = vmatpush1.bf16.msra.mxu0 %v9917
      %9944 = vmatprep.subr.bf16.mxu0 0
      %9945 = vmatpush1.bf16.msra.mxu0 %v9916
      %9946 = vmatprep.subr.bf16.mxu0 0
      %9947 = vmatpush1.bf16.msra.mxu0 %v9915
      %9948 = vmatprep.subr.bf16.mxu0 0
      %9949 = vmatpush1.bf16.msra.mxu0 %v9914
      %9950 = vmatprep.subr.bf16.mxu0 0
      %9951 = vmatpush1.bf16.msra.mxu0 %v9913
      %9952 = vmatprep.subr.bf16.mxu0 0
      %9953 = vmatpush1.bf16.msra.mxu0 %v9912
      %9954 = vmatprep.subr.bf16.mxu0 0
      %9955 = vmatpush1.bf16.msra.mxu0 %v9911
      %9956 = vmatprep.subr.bf16.mxu0 0
      %9957 = vmatpush1.bf16.msra.mxu0 %v9910
      %9958 = vmatprep.subr.bf16.mxu0 0
      %9959 = vmatpush2.bf16.msra.mxu0 %v9925
      %9960 = vmatprep.subr.bf16.mxu0 0
      %9961 = vmatpush2.bf16.msra.mxu0 %v9924
      %9962 = vmatprep.subr.bf16.mxu0 0
      %9963 = vmatpush2.bf16.msra.mxu0 %v9923
      %9964 = vmatprep.subr.bf16.mxu0 0
      %9965 = vmatpush2.bf16.msra.mxu0 %v9922
      %9966 = vmatprep.subr.bf16.mxu0 0
      %9967 = vmatpush2.bf16.msra.mxu0 %v9921
      %9968 = vmatprep.subr.bf16.mxu0 0
      %9969 = vmatpush2.bf16.msra.mxu0 %v9920
      %9970 = vmatprep.subr.bf16.mxu0 0
      %9971 = vmatpush2.bf16.msra.mxu0 %v9919
      %9972 = vmatprep.subr.bf16.mxu0 0
      %9973 = vmatpush2.bf16.msra.mxu0 %v9918
      %9974 = vmatprep.mubr.bf16.mxu0 %v9806
      %9975 = vmatmul.mubr.bf16.gmra.mxu0 %v9805
      %v9976 = vpop.f32.mrf.mxu0
      %v9977 = vadd.f32 %v9844, %v9976
      %v9978 = vpop.f32.mrf.mxu0
      %v9979 = vpop.f32.mrf.mxu0
      %v9980 = vpop.f32.mrf.mxu0
      %9981 = vdwg.mxu0
      %v9982 = vpack.c.bf16 %v9977, %v9977
      %v9983 = vld [vmem:[%s5] sm:$0xff]
      %v9984 = vld [vmem:[%s5 + $0x8] sm:$0xff]
      %v9985 = vld [vmem:[%s5 + $0x10] sm:$0xff]
      %v9986 = vld [vmem:[%s5 + $0x18] sm:$0xff]
      %v9987 = vld [vmem:[%s5 + $0x20] sm:$0xff]
      %v9988 = vld [vmem:[%s5 + $0x28] sm:$0xff]
      %v9989 = vld [vmem:[%s5 + $0x30] sm:$0xff]
      %v9990 = vld [vmem:[%s5 + $0x38] sm:$0xff]
      %v9991 = vld [vmem:[%s5 + $0x40] sm:$0xff]
      %v9992 = vld [vmem:[%s5 + $0x48] sm:$0xff]
      %v9993 = vld [vmem:[%s5 + $0x50] sm:$0xff]
      %v9994 = vld [vmem:[%s5 + $0x58] sm:$0xff]
      %v9995 = vld [vmem:[%s5 + $0x60] sm:$0xff]
      %v9996 = vld [vmem:[%s5 + $0x68] sm:$0xff]
      %v9997 = vld [vmem:[%s5 + $0x70] sm:$0xff]
      %v9998 = vld [vmem:[%s5 + $0x78] sm:$0xff]
      %v9999 = vld [vmem:[%s6] sm:$0x3]
      %v10001 = vlaneseq
      %v10002 = vshrl.u32 %v10001, 7
      %v10003 = vsub.s32 0, %v10002
      %v10004 = vrot.slane %v9999, %v10003
      %v10005 = vlaneseq
      %v10006 = vshrl.u32 %v10005, 7
      %v10007 = vsub.s32 1, %v10006
      %v10008 = vrot.slane %v9999, %v10007
      %v10027 = vunpack.c.l.b16 %v9983
      %v10028 = vunpack.c.h.b16 %v9983
      %v10029 = vunpack.c.l.b16 %v9984
      %v10030 = vunpack.c.h.b16 %v9984
      %v10031 = vunpack.c.l.b16 %v9985
      %v10032 = vunpack.c.h.b16 %v9985
      %v10033 = vunpack.c.l.b16 %v9986
      %v10034 = vunpack.c.h.b16 %v9986
      %v10035 = vunpack.c.l.b16 %v9987
      %v10036 = vunpack.c.h.b16 %v9987
      %v10037 = vunpack.c.l.b16 %v9988
      %v10038 = vunpack.c.h.b16 %v9988
      %v10039 = vunpack.c.l.b16 %v9989
      %v10040 = vunpack.c.h.b16 %v9989
      %v10041 = vunpack.c.l.b16 %v9990
      %v10042 = vunpack.c.h.b16 %v9990
      %v10043 = vunpack.c.l.b16 %v9991
      %v10044 = vunpack.c.h.b16 %v9991
      %v10045 = vunpack.c.l.b16 %v9992
      %v10046 = vunpack.c.h.b16 %v9992
      %v10047 = vunpack.c.l.b16 %v9993
      %v10048 = vunpack.c.h.b16 %v9993
      %v10049 = vunpack.c.l.b16 %v9994
      %v10050 = vunpack.c.h.b16 %v9994
      %v10051 = vunpack.c.l.b16 %v9995
      %v10052 = vunpack.c.h.b16 %v9995
      %v10053 = vunpack.c.l.b16 %v9996
      %v10054 = vunpack.c.h.b16 %v9996
      %v10055 = vunpack.c.l.b16 %v9997
      %v10056 = vunpack.c.h.b16 %v9997
      %v10057 = vunpack.c.l.b16 %v9998
      %v10058 = vunpack.c.h.b16 %v9998
      %v10059 = vpack.c.b16 %v10029, %v10027
      %v10060 = vpack.c.b16 %v10030, %v10028
      %v10061 = vpack.c.b16 %v10033, %v10031
      %v10062 = vpack.c.b16 %v10034, %v10032
      %v10063 = vpack.c.b16 %v10037, %v10035
      %v10064 = vpack.c.b16 %v10038, %v10036
      %v10065 = vpack.c.b16 %v10041, %v10039
      %v10066 = vpack.c.b16 %v10042, %v10040
      %v10067 = vpack.c.b16 %v10045, %v10043
      %v10068 = vpack.c.b16 %v10046, %v10044
      %v10069 = vpack.c.b16 %v10049, %v10047
      %v10070 = vpack.c.b16 %v10050, %v10048
      %v10071 = vpack.c.b16 %v10053, %v10051
      %v10072 = vpack.c.b16 %v10054, %v10052
      %v10073 = vpack.c.b16 %v10057, %v10055
      %v10074 = vpack.c.b16 %v10058, %v10056
      %10091 = vmatprep.subr.bf16.mxu0 %v10074
      %10092 = vmatpush1.bf16.msra.mxu0 %v10073
      %10093 = vmatprep.subr.bf16.mxu0 %v10072
      %10094 = vmatpush1.bf16.msra.mxu0 %v10071
      %10095 = vmatprep.subr.bf16.mxu0 %v10070
      %10096 = vmatpush1.bf16.msra.mxu0 %v10069
      %10097 = vmatprep.subr.bf16.mxu0 %v10068
      %10098 = vmatpush1.bf16.msra.mxu0 %v10067
      %10099 = vmatprep.subr.bf16.mxu0 %v10066
      %10100 = vmatpush1.bf16.msra.mxu0 %v10065
      %10101 = vmatprep.subr.bf16.mxu0 %v10064
      %10102 = vmatpush1.bf16.msra.mxu0 %v10063
      %10103 = vmatprep.subr.bf16.mxu0 %v10062
      %10104 = vmatpush1.bf16.msra.mxu0 %v10061
      %10105 = vmatprep.subr.bf16.mxu0 %v10060
      %10106 = vmatpush1.bf16.msra.mxu0 %v10059
      %10107 = vmatprep.subr.bf16.mxu0 0
      %10108 = vmatpush2.bf16.msra.mxu0 0
      %10109 = vmatprep.subr.bf16.mxu0 0
      %10110 = vmatpush2.bf16.msra.mxu0 0
      %10111 = vmatprep.subr.bf16.mxu0 0
      %10112 = vmatpush2.bf16.msra.mxu0 0
      %10113 = vmatprep.subr.bf16.mxu0 0
      %10114 = vmatpush2.bf16.msra.mxu0 0
      %10115 = vmatprep.subr.bf16.mxu0 0
      %10116 = vmatpush2.bf16.msra.mxu0 0
      %10117 = vmatprep.subr.bf16.mxu0 0
      %10118 = vmatpush2.bf16.msra.mxu0 0
      %10119 = vmatprep.subr.bf16.mxu0 0
      %10120 = vmatpush2.bf16.msra.mxu0 0
      %10121 = vmatprep.subr.bf16.mxu0 0
      %10122 = vmatpush2.bf16.msra.mxu0 0
      %10123 = vmatprep.mubr.bf16.mxu0 0
      %10124 = vmatmul.mubr.bf16.gmra.mxu0 %v9982
      %v10125 = vpop.f32.mrf.mxu0
      %v10126 = vadd.f32 %v10004, %v10125
      %v10127 = vpop.f32.mrf.mxu0
      %v10128 = vadd.f32 %v10008, %v10127
      %v10129 = vpop.f32.mrf.mxu0
      %v10130 = vpop.f32.mrf.mxu0
      %10131 = vdwg.mxu0
      %v10132 = vmax.f32 %v10126, 0.0
      %v10133 = vmax.f32 %v10128, 0.0
      %v10134 = vpack.c.bf16 %v10132, %v10132
      %v10135 = vpack.c.bf16 %v10133, %v10133
      %v10136 = vld [vmem:[%s7] sm:$0xf]
      %v10137 = vld [vmem:[%s7 + $0x4] sm:$0xf]
      %v10138 = vld [vmem:[%s7 + $0x8] sm:$0xf]
      %v10139 = vld [vmem:[%s7 + $0xc] sm:$0xf]
      %v10140 = vld [vmem:[%s7 + $0x10] sm:$0xf]
      %v10141 = vld [vmem:[%s7 + $0x14] sm:$0xf]
      %v10142 = vld [vmem:[%s7 + $0x18] sm:$0xf]
      %v10143 = vld [vmem:[%s7 + $0x1c] sm:$0xf]
      %v10144 = vld [vmem:[%s7 + $0x20] sm:$0xf]
      %v10145 = vld [vmem:[%s7 + $0x24] sm:$0xf]
      %v10146 = vld [vmem:[%s7 + $0x28] sm:$0xf]
      %v10147 = vld [vmem:[%s7 + $0x2c] sm:$0xf]
      %v10148 = vld [vmem:[%s7 + $0x30] sm:$0xf]
      %v10149 = vld [vmem:[%s7 + $0x34] sm:$0xf]
      %v10150 = vld [vmem:[%s7 + $0x38] sm:$0xf]
      %v10151 = vld [vmem:[%s7 + $0x3c] sm:$0xf]
      %v10152 = vld [vmem:[%s7 + $0x40] sm:$0xf]
      %v10153 = vld [vmem:[%s7 + $0x44] sm:$0xf]
      %v10154 = vld [vmem:[%s7 + $0x48] sm:$0xf]
      %v10155 = vld [vmem:[%s7 + $0x4c] sm:$0xf]
      %v10156 = vld [vmem:[%s7 + $0x50] sm:$0xf]
      %v10157 = vld [vmem:[%s7 + $0x54] sm:$0xf]
      %v10158 = vld [vmem:[%s7 + $0x58] sm:$0xf]
      %v10159 = vld [vmem:[%s7 + $0x5c] sm:$0xf]
      %v10160 = vld [vmem:[%s7 + $0x60] sm:$0xf]
      %v10161 = vld [vmem:[%s7 + $0x64] sm:$0xf]
      %v10162 = vld [vmem:[%s7 + $0x68] sm:$0xf]
      %v10163 = vld [vmem:[%s7 + $0x6c] sm:$0xf]
      %v10164 = vld [vmem:[%s7 + $0x70] sm:$0xf]
      %v10165 = vld [vmem:[%s7 + $0x74] sm:$0xf]
      %v10166 = vld [vmem:[%s7 + $0x78] sm:$0xf]
      %v10167 = vld [vmem:[%s7 + $0x7c] sm:$0xf]
      %v10200 = vunpack.c.l.b16 %v10136
      %v10201 = vunpack.c.l.b16 %v10137
      %v10202 = vunpack.c.l.b16 %v10138
      %v10203 = vunpack.c.l.b16 %v10139
      %v10204 = vunpack.c.l.b16 %v10140
      %v10205 = vunpack.c.l.b16 %v10141
      %v10206 = vunpack.c.l.b16 %v10142
      %v10207 = vunpack.c.l.b16 %v10143
      %v10208 = vunpack.c.l.b16 %v10144
      %v10209 = vunpack.c.l.b16 %v10145
      %v10210 = vunpack.c.l.b16 %v10146
      %v10211 = vunpack.c.l.b16 %v10147
      %v10212 = vunpack.c.l.b16 %v10148
      %v10213 = vunpack.c.l.b16 %v10149
      %v10214 = vunpack.c.l.b16 %v10150
      %v10215 = vunpack.c.l.b16 %v10151
      %v10216 = vunpack.c.l.b16 %v10152
      %v10217 = vunpack.c.l.b16 %v10153
      %v10218 = vunpack.c.l.b16 %v10154
      %v10219 = vunpack.c.l.b16 %v10155
      %v10220 = vunpack.c.l.b16 %v10156
      %v10221 = vunpack.c.l.b16 %v10157
      %v10222 = vunpack.c.l.b16 %v10158
      %v10223 = vunpack.c.l.b16 %v10159
      %v10224 = vunpack.c.l.b16 %v10160
      %v10225 = vunpack.c.l.b16 %v10161
      %v10226 = vunpack.c.l.b16 %v10162
      %v10227 = vunpack.c.l.b16 %v10163
      %v10228 = vunpack.c.l.b16 %v10164
      %v10229 = vunpack.c.l.b16 %v10165
      %v10230 = vunpack.c.l.b16 %v10166
      %v10231 = vunpack.c.l.b16 %v10167
      %v10232 = vpack.c.b16 %v10201, %v10200
      %v10233 = vpack.c.b16 %v10203, %v10202
      %v10234 = vpack.c.b16 %v10205, %v10204
      %v10235 = vpack.c.b16 %v10207, %v10206
      %v10236 = vpack.c.b16 %v10209, %v10208
      %v10237 = vpack.c.b16 %v10211, %v10210
      %v10238 = vpack.c.b16 %v10213, %v10212
      %v10239 = vpack.c.b16 %v10215, %v10214
      %v10240 = vpack.c.b16 %v10217, %v10216
      %v10241 = vpack.c.b16 %v10219, %v10218
      %v10242 = vpack.c.b16 %v10221, %v10220
      %v10243 = vpack.c.b16 %v10223, %v10222
      %v10244 = vpack.c.b16 %v10225, %v10224
      %v10245 = vpack.c.b16 %v10227, %v10226
      %v10246 = vpack.c.b16 %v10229, %v10228
      %v10247 = vpack.c.b16 %v10231, %v10230
      %10264 = vmatprep.subr.bf16.mxu0 0
      %10265 = vmatpush1.bf16.msra.mxu0 %v10239
      %10266 = vmatprep.subr.bf16.mxu0 0
      %10267 = vmatpush1.bf16.msra.mxu0 %v10238
      %10268 = vmatprep.subr.bf16.mxu0 0
      %10269 = vmatpush1.bf16.msra.mxu0 %v10237
      %10270 = vmatprep.subr.bf16.mxu0 0
      %10271 = vmatpush1.bf16.msra.mxu0 %v10236
      %10272 = vmatprep.subr.bf16.mxu0 0
      %10273 = vmatpush1.bf16.msra.mxu0 %v10235
      %10274 = vmatprep.subr.bf16.mxu0 0
      %10275 = vmatpush1.bf16.msra.mxu0 %v10234
      %10276 = vmatprep.subr.bf16.mxu0 0
      %10277 = vmatpush1.bf16.msra.mxu0 %v10233
      %10278 = vmatprep.subr.bf16.mxu0 0
      %10279 = vmatpush1.bf16.msra.mxu0 %v10232
      %10280 = vmatprep.subr.bf16.mxu0 0
      %10281 = vmatpush2.bf16.msra.mxu0 %v10247
      %10282 = vmatprep.subr.bf16.mxu0 0
      %10283 = vmatpush2.bf16.msra.mxu0 %v10246
      %10284 = vmatprep.subr.bf16.mxu0 0
      %10285 = vmatpush2.bf16.msra.mxu0 %v10245
      %10286 = vmatprep.subr.bf16.mxu0 0
      %10287 = vmatpush2.bf16.msra.mxu0 %v10244
      %10288 = vmatprep.subr.bf16.mxu0 0
      %10289 = vmatpush2.bf16.msra.mxu0 %v10243
      %10290 = vmatprep.subr.bf16.mxu0 0
      %10291 = vmatpush2.bf16.msra.mxu0 %v10242
      %10292 = vmatprep.subr.bf16.mxu0 0
      %10293 = vmatpush2.bf16.msra.mxu0 %v10241
      %10294 = vmatprep.subr.bf16.mxu0 0
      %10295 = vmatpush2.bf16.msra.mxu0 %v10240
      %10296 = vmatprep.mubr.bf16.mxu0 %v10135
      %10297 = vmatmul.mubr.bf16.gmra.mxu0 %v10134
      %v10298 = vpop.f32.mrf.mxu0
      %v10299 = vadd.f32 0.0, %v10298
      %v10300 = vpop.f32.mrf.mxu0
      %v10301 = vpop.f32.mrf.mxu0
      %v10302 = vpop.f32.mrf.mxu0
      %10303 = vdwg.mxu0
      %10304 = vst [vmem:[%s310] sm:$0xff] %v9977
      %10305 = vst [vmem:[%s310 + $0x8] sm:$0xff] %v10299
      %p10306 = scmp.lt.s32.totalorder %s19, 3
      %s10307 = scalar_select %p10306, %s19, 3
      %s10308 = smul.addr %s10307, 2
      %s10309 = smul.addr %s10308, 8
      %s10310 = scalar_lea.vmem %s8, %s10309
      // Predicated region
      $region53: #{_fused_forward.1} parent=51 // pred_check
        %p10311 = pneg %p210
      $region54: #{_fused_forward.1} parent=51 // pred_check_branch
        %10313 = sbr.rel (%p10311) target = $region56
      $region55: #{_fused_forward.1} parent=51 // pred_region
        _
      $region56: #{_fused_forward.1} parent=51 // pred_fallthru
        _
    $region52: #{_fused_forward.1} parent=5 // pred_fallthru
      _
    %p10314 = scmp.le.s32.totalorder 2, %s14
    // Predicated region
    $region57: #{_fused_forward.1} parent=5 // pred_check
      %p10315 = pneg %p10314
    $region58: #{_fused_forward.1} parent=5 // pred_check_branch
      %10317 = sbr.rel (%p10315) target = $region60
    $region59: #{_fused_forward.1} parent=5 // pred_region
      %s10318 = ssub.s32 %s14, 2
      // Predicated region
      $region61: #{_fused_forward.1} parent=59 // pred_check
        %p10319 = pneg %p216
      $region62: #{_fused_forward.1} parent=59 // pred_check_branch
        %10321 = sbr.rel (%p10319) target = $region64
      $region63: #{_fused_forward.1} parent=59 // pred_region
        %p10322 = scmp.lt.s32.totalorder %s20, 3
        %s10323 = scalar_select %p10322, %s20, 3
        %s10324 = smul.addr %s10323, 2
        %s10325 = smul.addr %s10324, 8
        %s10326 = scalar_lea.vmem %s8, %s10325
      $region64: #{_fused_forward.1} parent=59 // pred_fallthru
        _
    $region60: #{_fused_forward.1} parent=5 // pred_fallthru
      _
  $region6: #{_fused_forward.1} parent=0 // loop_footer
    %s18 = sadd.s32 1, %s14
  $region7: #{_fused_forward.1} parent=0 // loop_footer_branch
    %13 = sbr.rel target = $region3
  $region8: #{_fused_forward.1} parent=0 // loop_exit
    _

</llo_original>
